<compile_context>
chip_gen: v5e
topology: v5e:2x2
jax: 0.10.0
libtpu: 0.0.40
codegen_flags: <defaults>
</compile_context>

<pallas_src>
import functools

import jax
import jax.numpy as jnp
from jax.experimental import pallas as pl
from jax.experimental.pallas import tpu as pltpu


def _vmem_specs(n):
    return [pl.BlockSpec(memory_space=pltpu.MemorySpace.VMEM) for _ in range(n)]


# ---------------------------------------------------------------------------
# Fused DMN+ forward kernel
# ---------------------------------------------------------------------------
def _dmn_kernel(ctx_ref, que_ref,
                wi_f, wh_f, bi_f, bhn_f,
                wi_b, wh_b, bi_b, bhn_b,
                wi_q, wh_q, bi_q, bhn_q,
                wz1_q, wz1_m, bz1, wz2,
                w_af, u_a, b_af, b_u,
                wm_m, wm_c, wm_q, bm,
                out_ref,
                xpf_scr, xpb_scr, xpq_scr, facts_scr, fproj_scr,
                feats_scr, scflat_scr, sc3_scr,
                *, num_hop):
    f32 = jnp.float32
    H = wh_f.shape[0]
    B = out_ref.shape[0]
    Tc = ctx_ref.shape[0] // B
    Tq = que_ref.shape[0] // B

    def rows(ref, t):
        return ref[pl.ds(t * B, B), :]

    # ---- hoisted, fused input projections (one MXU matmul per GRU) --------
    ctx = ctx_ref[...]                                               # (Tc*B, E)
    xpf_scr[...] = jnp.dot(ctx, wi_f[...], preferred_element_type=f32) + bi_f[...]
    xpb_scr[...] = jnp.dot(ctx, wi_b[...], preferred_element_type=f32) + bi_b[...]
    xpq_scr[...] = (jnp.dot(que_ref[...], wi_q[...], preferred_element_type=f32)
                    + bi_q[...])

    wh_f_v = wh_f[...]; bhn_f_v = bhn_f[...]
    wh_b_v = wh_b[...]; bhn_b_v = bhn_b[...]
    wh_q_v = wh_q[...]; bhn_q_v = bhn_q[...]

    def gru_step(xp_t, h, wh_v, bhn_v):
        # PyTorch nn.GRU semantics; [r|z|n] fused along the lane axis.
        hp = jnp.dot(h, wh_v, preferred_element_type=f32)            # (B, 3H)
        r = jax.nn.sigmoid(xp_t[:, 0:H] + hp[:, 0:H])
        z = jax.nn.sigmoid(xp_t[:, H:2 * H] + hp[:, H:2 * H])
        n = jnp.tanh(xp_t[:, 2 * H:3 * H] + r * (hp[:, 2 * H:3 * H] + bhn_v))
        return (1.0 - z) * n + z * h

    # ---- InputModule: bidirectional GRU over the context (facts = fwd+bwd)
    # TODO(synk): train-mode Dropout(0.1) omitted (eval-mode identity).
    h = jnp.zeros((B, H), f32)
    fwd_hs = []
    for t in range(Tc):                                  # static unroll
        h = gru_step(rows(xpf_scr, t), h, wh_f_v, bhn_f_v)
        fwd_hs.append(h)
    h = jnp.zeros((B, H), f32)
    for t in range(Tc - 1, -1, -1):                      # static unroll
        h = gru_step(rows(xpb_scr, t), h, wh_b_v, bhn_b_v)
        facts_scr[pl.ds(t * B, B), :] = fwd_hs[t] + h

    # ---- QuestionModule: GRU, keep only the final hidden state ------------
    h = jnp.zeros((B, H), f32)
    for t in range(Tq):                                  # static unroll
        h = gru_step(rows(xpq_scr, t), h, wh_q_v, bhn_q_v)
    q = h                                                # (B, H)

    # ---- EpisodicMemory: hop-invariant precompute --------------------------
    # facts-side projection for the attention GRU (f @ [Wr|Wc] + [b_r|b_w])
    fproj_scr[...] = (jnp.dot(facts_scr[...], w_af[...], preferred_element_type=f32)
                      + b_af[...])
    # q-dependent half of the gate features: [f*q | |f-q|]
    for t in range(Tc):
        f_t = rows(facts_scr, t)
        feats_scr[pl.ds(t * B, B), 0:H] = f_t * q
        feats_scr[pl.ds(t * B, B), H:2 * H] = jnp.abs(f_t - q)
    gate_base = (jnp.dot(feats_scr[...], wz1_q[...], preferred_element_type=f32)
                 + bz1[...])                              # (Tc*B, H)
    qm_pre = jnp.dot(q, wm_q[...], preferred_element_type=f32) + bm[...]

    wz2_v = wz2[...]
    u_a_v = u_a[...]
    b_u_v = b_u[...]
    wm_m_v = wm_m[...]
    wm_c_v = wm_c[...]

    memory = q
    for _ in range(num_hop):                             # static unroll
        # attention-gate scores: one fused matmul over all timesteps
        for t in range(Tc):
            f_t = rows(facts_scr, t)
            feats_scr[pl.ds(t * B, B), 0:H] = f_t * memory
            feats_scr[pl.ds(t * B, B), H:2 * H] = jnp.abs(f_t - memory)
        g1 = jnp.tanh(gate_base
                      + jnp.dot(feats_scr[...], wz1_m[...],
                                preferred_element_type=f32))          # (Tc*B, H)
        scflat_scr[...] = jnp.sum(g1 * wz2_v, axis=-1, keepdims=True)  # (Tc*B, 1)
        for t in range(Tc):
            sc3_scr[t] = rows(scflat_scr, t)
        # softmax over the time axis (bz2 dropped: constant offset cancels here)
        s = sc3_scr[...]                                  # (Tc, B, 1)
        s_max = jnp.max(s, axis=0, keepdims=True)
        e = jnp.exp(s - s_max)
        att = e * pl.reciprocal(jnp.sum(e, axis=0, keepdims=True), approx=True)

        # attention GRU over the facts (the only truly sequential part)
        c = jnp.zeros((B, H), f32)
        for t in range(Tc):                              # static unroll
            fp = rows(fproj_scr, t)                      # (B, 2H) precomputed
            cp = jnp.dot(c, u_a_v, preferred_element_type=f32)        # (B, 2H)
            r = jax.nn.sigmoid(fp[:, 0:H] + cp[:, 0:H])
            hh = jnp.tanh(fp[:, H:2 * H] + r * (cp[:, H:2 * H] + b_u_v))
            g = att[t]                                   # (B, 1)
            c = g * hh + (1.0 - g) * c

        # memory update: relu(W_mem [m; C; q] + b)
        memory = jnp.maximum(
            jnp.dot(memory, wm_m_v, preferred_element_type=f32)
            + jnp.dot(c, wm_c_v, preferred_element_type=f32)
            + qm_pre, 0.0)

    # hidden = concat([memory, questions]) written lane-block-wise
    out_ref[:, 0:H] = memory
    out_ref[:, H:2 * H] = q


# ---------------------------------------------------------------------------
# Parameter construction (PyTorch-shaped, then repacked fused/transposed)
# ---------------------------------------------------------------------------
def _uniform(key, shape, scale):
    return jax.random.uniform(key, shape, jnp.float32, -scale, scale)


def _make_gru_params(key, in_size, hidden):
    ks = jax.random.split(key, 4)
    s = 1.0 / (hidden ** 0.5)
    w_ih = _uniform(ks[0], (3 * hidden, in_size), s)   # PyTorch layout [r;z;n]
    w_hh = _uniform(ks[1], (3 * hidden, hidden), s)
    b_ih = _uniform(ks[2], (3 * hidden,), s)
    b_hh = _uniform(ks[3], (3 * hidden,), s)
    H = hidden
    # Fold b_hr/b_hz into the hoisted input-projection bias; b_hn must stay
    # separate because it sits inside the r * (.) term.
    bi = b_ih + jnp.concatenate([b_hh[:2 * H], jnp.zeros((H,), jnp.float32)])
    return dict(wi=w_ih.T,                       # (E, 3H) columns [r|z|n]
                wh=w_hh.T,                       # (H, 3H)
                bi=bi.reshape(1, 3 * H),
                bhn=b_hh[2 * H:].reshape(1, H))


def _make_episodic_params(key, hidden):
    H = hidden
    ks = jax.random.split(key, 14)
    sz1 = 1.0 / (4.0 * H) ** 0.5
    sz2 = 1.0 / (1.0 * H) ** 0.5
    sm = 1.0 / (3.0 * H) ** 0.5
    wz1 = _uniform(ks[0], (H, 4 * H), sz1).T           # (4H, H): [f*q; f*m; |f-q|; |f-m|]
    wr = _uniform(ks[3], (H, H), sz2)
    ur = _uniform(ks[4], (H, H), sz2)
    wc = _uniform(ks[5], (H, H), sz2)
    uc = _uniform(ks[6], (H, H), sz2)
    b_wr = _uniform(ks[7], (H,), sz2)
    b_ur = _uniform(ks[8], (H,), sz2)
    wm = _uniform(ks[11], (H, 3 * H), sm).T            # (3H, H): [m; C; q]
    return dict(
        # hop-invariant (q-side) and per-hop (m-side) halves of the gate weights
        wz1_q=jnp.concatenate([wz1[0:H], wz1[2 * H:3 * H]], axis=0),      # (2H, H)
        wz1_m=jnp.concatenate([wz1[H:2 * H], wz1[3 * H:4 * H]], axis=0),  # (2H, H)
        bz1=_uniform(ks[1], (H,), sz1).reshape(1, H),
        wz2=_uniform(ks[2], (1, H), sz2),
        # NOTE: bz2 (scalar added to every score) is omitted: it cancels in softmax.
        w_af=jnp.concatenate([wr.T, wc.T], axis=1),                       # (H, 2H)
        u_a=jnp.concatenate([ur.T, uc.T], axis=1),                        # (H, 2H)
        b_af=jnp.concatenate([b_wr + b_ur,
                              _uniform(ks[10], (H,), sz2)]).reshape(1, 2 * H),
        b_u=_uniform(ks[12], (H,), sz2).reshape(1, H),
        wm_m=wm[0:H], wm_c=wm[H:2 * H], wm_q=wm[2 * H:3 * H],
        bm=_uniform(ks[13], (H,), sm).reshape(1, H))


def make_params(key, vocab_size, embeded_size, hidden_size):
    k_emb, k_fwd, k_bwd, k_q, k_ep = jax.random.split(key, 5)
    sqrt3 = 3.0 ** 0.5
    return dict(
        embedding=_uniform(k_emb, (vocab_size, embeded_size), sqrt3),
        gru_fwd=_make_gru_params(k_fwd, embeded_size, hidden_size),
        gru_bwd=_make_gru_params(k_bwd, embeded_size, hidden_size),
        gru_q=_make_gru_params(k_q, embeded_size, hidden_size),
        episodic=_make_episodic_params(k_ep, hidden_size))


# ---------------------------------------------------------------------------
# Forward pass (== DynamicMemoryNetworkPlus.forward)
# ---------------------------------------------------------------------------
def _flatten_time_major(x_bte):
    """(B, T, E) -> (T*B, E), rows ordered time-major (row = t*B + b)."""
    B, T, E = x_bte.shape
    return jnp.transpose(x_bte, (1, 0, 2)).reshape(T * B, E)


@functools.partial(jax.jit, static_argnames=("num_hop",))
def dmn_plus_forward(params, contexts, questions, num_hop=3):
    """contexts/questions: int32 (batch, token). Returns (1, batch, 2*hidden)."""
    emb = params["embedding"]
    B, Tc = contexts.shape
    Tq = questions.shape[1]
    H = params["gru_fwd"]["wh"].shape[0]

    ctx_flat = _flatten_time_major(jnp.take(emb, contexts, axis=0))   # (Tc*B, E)
    que_flat = _flatten_time_major(jnp.take(emb, questions, axis=0))  # (Tq*B, E)

    gf, gb, gq, ep = (params["gru_fwd"], params["gru_bwd"],
                      params["gru_q"], params["episodic"])
    args = (ctx_flat, que_flat,
            gf["wi"], gf["wh"], gf["bi"], gf["bhn"],
            gb["wi"], gb["wh"], gb["bi"], gb["bhn"],
            gq["wi"], gq["wh"], gq["bi"], gq["bhn"],
            ep["wz1_q"], ep["wz1_m"], ep["bz1"], ep["wz2"],
            ep["w_af"], ep["u_a"], ep["b_af"], ep["b_u"],
            ep["wm_m"], ep["wm_c"], ep["wm_q"], ep["bm"])

    out = pl.pallas_call(
        functools.partial(_dmn_kernel, num_hop=num_hop),
        out_shape=jax.ShapeDtypeStruct((B, 2 * H), jnp.float32),
        in_specs=_vmem_specs(len(args)),
        out_specs=pl.BlockSpec(memory_space=pltpu.MemorySpace.VMEM),
        scratch_shapes=[
            pltpu.VMEM((Tc * B, 3 * H), jnp.float32),   # hoisted fwd input proj
            pltpu.VMEM((Tc * B, 3 * H), jnp.float32),   # hoisted bwd input proj
            pltpu.VMEM((Tq * B, 3 * H), jnp.float32),   # hoisted question input proj
            pltpu.VMEM((Tc * B, H), jnp.float32),       # facts (fwd + bwd)
            pltpu.VMEM((Tc * B, 2 * H), jnp.float32),   # f @ [Wr|Wc] for attention GRU
            pltpu.VMEM((Tc * B, 2 * H), jnp.float32),   # gate feature slab
            pltpu.VMEM((Tc * B, 1), jnp.float32),       # flat gate scores
            pltpu.VMEM((Tc, B, 1), jnp.float32),        # (T, B, 1) scores for softmax
        ],
    )(*args)

    # cat([memory, questions], dim=2) -> (1, B, 2H)
    return out[None, :, :]


if __name__ == "__main__":
    VOCAB, EMB, HID = 50, 16, 32
    BATCH, T_CTX, T_Q = 2, 8, 5

    key = jax.random.PRNGKey(0)
    k_p, k_c, k_q = jax.random.split(key, 3)
    params = make_params(k_p, VOCAB, EMB, HID)
    contexts = jax.random.randint(k_c, (BATCH, T_CTX), 0, VOCAB, dtype=jnp.int32)
    questions = jax.random.randint(k_q, (BATCH, T_Q), 0, VOCAB, dtype=jnp.int32)

    hidden = dmn_plus_forward(params, contexts, questions, num_hop=3)
    hidden = jax.block_until_ready(hidden)
    assert hidden.shape == (1, BATCH, 2 * HID)
    assert bool(jnp.all(jnp.isfinite(hidden)))
    print("KERNEL_OK")
</pallas_src>

<mosaic_0001>
module attributes {stable_mosaic.version = 11 : i64} {
  func.func @_dmn_kernel(%arg0: memref<16x16xf32, #tpu.memory_space<vmem>>, %arg1: memref<10x16xf32, #tpu.memory_space<vmem>>, %arg2: memref<16x96xf32, #tpu.memory_space<vmem>>, %arg3: memref<32x96xf32, #tpu.memory_space<vmem>>, %arg4: memref<1x96xf32, #tpu.memory_space<vmem>>, %arg5: memref<1x32xf32, #tpu.memory_space<vmem>>, %arg6: memref<16x96xf32, #tpu.memory_space<vmem>>, %arg7: memref<32x96xf32, #tpu.memory_space<vmem>>, %arg8: memref<1x96xf32, #tpu.memory_space<vmem>>, %arg9: memref<1x32xf32, #tpu.memory_space<vmem>>, %arg10: memref<16x96xf32, #tpu.memory_space<vmem>>, %arg11: memref<32x96xf32, #tpu.memory_space<vmem>>, %arg12: memref<1x96xf32, #tpu.memory_space<vmem>>, %arg13: memref<1x32xf32, #tpu.memory_space<vmem>>, %arg14: memref<64x32xf32, #tpu.memory_space<vmem>>, %arg15: memref<64x32xf32, #tpu.memory_space<vmem>>, %arg16: memref<1x32xf32, #tpu.memory_space<vmem>>, %arg17: memref<1x32xf32, #tpu.memory_space<vmem>>, %arg18: memref<32x64xf32, #tpu.memory_space<vmem>>, %arg19: memref<32x64xf32, #tpu.memory_space<vmem>>, %arg20: memref<1x64xf32, #tpu.memory_space<vmem>>, %arg21: memref<1x32xf32, #tpu.memory_space<vmem>>, %arg22: memref<32x32xf32, #tpu.memory_space<vmem>>, %arg23: memref<32x32xf32, #tpu.memory_space<vmem>>, %arg24: memref<32x32xf32, #tpu.memory_space<vmem>>, %arg25: memref<1x32xf32, #tpu.memory_space<vmem>>, %arg26: memref<2x64xf32, #tpu.memory_space<vmem>>, %arg27: memref<16x96xf32, #tpu.memory_space<vmem>>, %arg28: memref<16x96xf32, #tpu.memory_space<vmem>>, %arg29: memref<10x96xf32, #tpu.memory_space<vmem>>, %arg30: memref<16x32xf32, #tpu.memory_space<vmem>>, %arg31: memref<16x64xf32, #tpu.memory_space<vmem>>, %arg32: memref<16x64xf32, #tpu.memory_space<vmem>>, %arg33: memref<16x1xf32, #tpu.memory_space<vmem>>, %arg34: memref<8x2x1xf32, #tpu.memory_space<vmem>>) attributes {dimension_semantics = [], scalar_prefetch = 0 : i64, scratch_operands = 8 : i64, tpu.core_type = #tpu.core_type<tc>} {
    %c0 = arith.constant 0 : index
    %c0_0 = arith.constant 0 : index
    %0 = vector.load %arg0[%c0, %c0_0] : memref<16x16xf32, #tpu.memory_space<vmem>>, vector<16x16xf32>
    %c0_1 = arith.constant 0 : index
    %c0_2 = arith.constant 0 : index
    %1 = vector.load %arg2[%c0_1, %c0_2] : memref<16x96xf32, #tpu.memory_space<vmem>>, vector<16x96xf32>
    %cst = arith.constant dense<0.000000e+00> : vector<16x96xf32>
    %2 = tpu.matmul %0, %1, %cst {dimension_numbers = #tpu.dot_dimension_numbers<[1], [0], [0], [1], [0, 0, 1, 1], [], []>} : vector<16x16xf32>, vector<16x96xf32>, vector<16x96xf32> -> vector<16x96xf32>
    %c0_3 = arith.constant 0 : index
    %c0_4 = arith.constant 0 : index
    %3 = vector.load %arg4[%c0_3, %c0_4] : memref<1x96xf32, #tpu.memory_space<vmem>>, vector<1x96xf32>
    %4 = vector.broadcast %3 : vector<1x96xf32> to vector<16x96xf32>
    %5 = arith.addf %2, %4 : vector<16x96xf32>
    %c0_5 = arith.constant 0 : index
    %c0_6 = arith.constant 0 : index
    %6 = vector.load %arg27[%c0_5, %c0_6] : memref<16x96xf32, #tpu.memory_space<vmem>>, vector<16x96xf32>
    tpu.vector_store %arg27[%c0_5, %c0_6], %5 {strides = array<i32>} : memref<16x96xf32, #tpu.memory_space<vmem>>, vector<16x96xf32>,
    %c0_7 = arith.constant 0 : index
    %c0_8 = arith.constant 0 : index
    %7 = vector.load %arg6[%c0_7, %c0_8] : memref<16x96xf32, #tpu.memory_space<vmem>>, vector<16x96xf32>
    %cst_9 = arith.constant dense<0.000000e+00> : vector<16x96xf32>
    %8 = tpu.matmul %0, %7, %cst_9 {dimension_numbers = #tpu.dot_dimension_numbers<[1], [0], [0], [1], [0, 0, 1, 1], [], []>} : vector<16x16xf32>, vector<16x96xf32>, vector<16x96xf32> -> vector<16x96xf32>
    %c0_10 = arith.constant 0 : index
    %c0_11 = arith.constant 0 : index
    %9 = vector.load %arg8[%c0_10, %c0_11] : memref<1x96xf32, #tpu.memory_space<vmem>>, vector<1x96xf32>
    %10 = vector.broadcast %9 : vector<1x96xf32> to vector<16x96xf32>
    %11 = arith.addf %8, %10 : vector<16x96xf32>
    %c0_12 = arith.constant 0 : index
    %c0_13 = arith.constant 0 : index
    %12 = vector.load %arg28[%c0_12, %c0_13] : memref<16x96xf32, #tpu.memory_space<vmem>>, vector<16x96xf32>
    tpu.vector_store %arg28[%c0_12, %c0_13], %11 {strides = array<i32>} : memref<16x96xf32, #tpu.memory_space<vmem>>, vector<16x96xf32>,
    %c0_14 = arith.constant 0 : index
    %c0_15 = arith.constant 0 : index
    %13 = vector.load %arg1[%c0_14, %c0_15] : memref<10x16xf32, #tpu.memory_space<vmem>>, vector<10x16xf32>
    %c0_16 = arith.constant 0 : index
    %c0_17 = arith.constant 0 : index
    %14 = vector.load %arg10[%c0_16, %c0_17] : memref<16x96xf32, #tpu.memory_space<vmem>>, vector<16x96xf32>
    %cst_18 = arith.constant dense<0.000000e+00> : vector<10x96xf32>
    %15 = tpu.matmul %13, %14, %cst_18 {dimension_numbers = #tpu.dot_dimension_numbers<[1], [0], [0], [1], [0, 0, 1, 1], [], []>} : vector<10x16xf32>, vector<16x96xf32>, vector<10x96xf32> -> vector<10x96xf32>
    %c0_19 = arith.constant 0 : index
    %c0_20 = arith.constant 0 : index
    %16 = vector.load %arg12[%c0_19, %c0_20] : memref<1x96xf32, #tpu.memory_space<vmem>>, vector<1x96xf32>
    %17 = vector.broadcast %16 : vector<1x96xf32> to vector<10x96xf32>
    %18 = arith.addf %15, %17 : vector<10x96xf32>
    %c0_21 = arith.constant 0 : index
    %c0_22 = arith.constant 0 : index
    %19 = vector.load %arg29[%c0_21, %c0_22] : memref<10x96xf32, #tpu.memory_space<vmem>>, vector<10x96xf32>
    tpu.vector_store %arg29[%c0_21, %c0_22], %18 {strides = array<i32>} : memref<10x96xf32, #tpu.memory_space<vmem>>, vector<10x96xf32>,
    %c0_23 = arith.constant 0 : index
    %c0_24 = arith.constant 0 : index
    %20 = vector.load %arg3[%c0_23, %c0_24] : memref<32x96xf32, #tpu.memory_space<vmem>>, vector<32x96xf32>
    %c0_25 = arith.constant 0 : index
    %c0_26 = arith.constant 0 : index
    %21 = vector.load %arg5[%c0_25, %c0_26] : memref<1x32xf32, #tpu.memory_space<vmem>>, vector<1x32xf32>
    %c0_27 = arith.constant 0 : index
    %c0_28 = arith.constant 0 : index
    %22 = vector.load %arg7[%c0_27, %c0_28] : memref<32x96xf32, #tpu.memory_space<vmem>>, vector<32x96xf32>
    %c0_29 = arith.constant 0 : index
    %c0_30 = arith.constant 0 : index
    %23 = vector.load %arg9[%c0_29, %c0_30] : memref<1x32xf32, #tpu.memory_space<vmem>>, vector<1x32xf32>
    %c0_31 = arith.constant 0 : index
    %c0_32 = arith.constant 0 : index
    %24 = vector.load %arg11[%c0_31, %c0_32] : memref<32x96xf32, #tpu.memory_space<vmem>>, vector<32x96xf32>
    %c0_33 = arith.constant 0 : index
    %c0_34 = arith.constant 0 : index
    %25 = vector.load %arg13[%c0_33, %c0_34] : memref<1x32xf32, #tpu.memory_space<vmem>>, vector<1x32xf32>
    %cst_35 = arith.constant 0.000000e+00 : f32
    %26 = vector.broadcast %cst_35 : f32 to vector<2x32xf32>
    %c0_36 = arith.constant 0 : index
    %c0_37 = arith.constant 0 : index
    %27 = vector.load %arg27[%c0_36, %c0_37] : memref<16x96xf32, #tpu.memory_space<vmem>>, vector<2x96xf32>
    %cst_38 = arith.constant dense<0.000000e+00> : vector<2x96xf32>
    %28 = tpu.matmul %26, %20, %cst_38 {dimension_numbers = #tpu.dot_dimension_numbers<[1], [0], [0], [1], [0, 0, 1, 1], [], []>} : vector<2x32xf32>, vector<32x96xf32>, vector<2x96xf32> -> vector<2x96xf32>
    %29 = vector.extract_strided_slice %27 {offsets = [0, 0], sizes = [2, 32], strides = [1, 1]} : vector<2x96xf32> to vector<2x32xf32>
    %30 = vector.extract_strided_slice %28 {offsets = [0, 0], sizes = [2, 32], strides = [1, 1]} : vector<2x96xf32> to vector<2x32xf32>
    %31 = arith.addf %29, %30 : vector<2x32xf32>
    %32 = arith.negf %31 : vector<2x32xf32>
    %33 = math.exp %32 : vector<2x32xf32>
    %cst_39 = arith.constant 1.000000e+00 : f32
    %34 = vector.broadcast %cst_39 : f32 to vector<2x32xf32>
    %35 = arith.addf %34, %33 : vector<2x32xf32>
    %36 = arith.divf %34, %35 : vector<2x32xf32>
    %37 = vector.extract_strided_slice %27 {offsets = [0, 32], sizes = [2, 32], strides = [1, 1]} : vector<2x96xf32> to vector<2x32xf32>
    %38 = vector.extract_strided_slice %28 {offsets = [0, 32], sizes = [2, 32], strides = [1, 1]} : vector<2x96xf32> to vector<2x32xf32>
    %39 = arith.addf %37, %38 : vector<2x32xf32>
    %40 = arith.negf %39 : vector<2x32xf32>
    %41 = math.exp %40 : vector<2x32xf32>
    %cst_40 = arith.constant 1.000000e+00 : f32
    %42 = vector.broadcast %cst_40 : f32 to vector<2x32xf32>
    %43 = arith.addf %42, %41 : vector<2x32xf32>
    %44 = arith.divf %42, %43 : vector<2x32xf32>
    %45 = vector.extract_strided_slice %27 {offsets = [0, 64], sizes = [2, 32], strides = [1, 1]} : vector<2x96xf32> to vector<2x32xf32>
    %46 = vector.extract_strided_slice %28 {offsets = [0, 64], sizes = [2, 32], strides = [1, 1]} : vector<2x96xf32> to vector<2x32xf32>
    %47 = vector.broadcast %21 : vector<1x32xf32> to vector<2x32xf32>
    %48 = arith.addf %46, %47 : vector<2x32xf32>
    %49 = arith.mulf %36, %48 : vector<2x32xf32>
    %50 = arith.addf %45, %49 : vector<2x32xf32>
    %51 = math.tanh %50 : vector<2x32xf32>
    %cst_41 = arith.constant 1.000000e+00 : f32
    %52 = vector.broadcast %cst_41 : f32 to vector<2x32xf32>
    %53 = arith.subf %52, %44 : vector<2x32xf32>
    %54 = arith.mulf %53, %51 : vector<2x32xf32>
    %55 = arith.mulf %44, %26 : vector<2x32xf32>
    %56 = arith.addf %54, %55 : vector<2x32xf32>
    %c2 = arith.constant 2 : index
    %c0_42 = arith.constant 0 : index
    %57 = vector.load %arg27[%c2, %c0_42] : memref<16x96xf32, #tpu.memory_space<vmem>>, vector<2x96xf32>
    %cst_43 = arith.constant dense<0.000000e+00> : vector<2x96xf32>
    %58 = tpu.matmul %56, %20, %cst_43 {dimension_numbers = #tpu.dot_dimension_numbers<[1], [0], [0], [1], [0, 0, 1, 1], [], []>} : vector<2x32xf32>, vector<32x96xf32>, vector<2x96xf32> -> vector<2x96xf32>
    %59 = vector.extract_strided_slice %57 {offsets = [0, 0], sizes = [2, 32], strides = [1, 1]} : vector<2x96xf32> to vector<2x32xf32>
    %60 = vector.extract_strided_slice %58 {offsets = [0, 0], sizes = [2, 32], strides = [1, 1]} : vector<2x96xf32> to vector<2x32xf32>
    %61 = arith.addf %59, %60 : vector<2x32xf32>
    %62 = arith.negf %61 : vector<2x32xf32>
    %63 = math.exp %62 : vector<2x32xf32>
    %cst_44 = arith.constant 1.000000e+00 : f32
    %64 = vector.broadcast %cst_44 : f32 to vector<2x32xf32>
    %65 = arith.addf %64, %63 : vector<2x32xf32>
    %66 = arith.divf %64, %65 : vector<2x32xf32>
    %67 = vector.extract_strided_slice %57 {offsets = [0, 32], sizes = [2, 32], strides = [1, 1]} : vector<2x96xf32> to vector<2x32xf32>
    %68 = vector.extract_strided_slice %58 {offsets = [0, 32], sizes = [2, 32], strides = [1, 1]} : vector<2x96xf32> to vector<2x32xf32>
    %69 = arith.addf %67, %68 : vector<2x32xf32>
    %70 = arith.negf %69 : vector<2x32xf32>
    %71 = math.exp %70 : vector<2x32xf32>
    %cst_45 = arith.constant 1.000000e+00 : f32
    %72 = vector.broadcast %cst_45 : f32 to vector<2x32xf32>
    %73 = arith.addf %72, %71 : vector<2x32xf32>
    %74 = arith.divf %72, %73 : vector<2x32xf32>
    %75 = vector.extract_strided_slice %57 {offsets = [0, 64], sizes = [2, 32], strides = [1, 1]} : vector<2x96xf32> to vector<2x32xf32>
    %76 = vector.extract_strided_slice %58 {offsets = [0, 64], sizes = [2, 32], strides = [1, 1]} : vector<2x96xf32> to vector<2x32xf32>
    %77 = vector.broadcast %21 : vector<1x32xf32> to vector<2x32xf32>
    %78 = arith.addf %76, %77 : vector<2x32xf32>
    %79 = arith.mulf %66, %78 : vector<2x32xf32>
    %80 = arith.addf %75, %79 : vector<2x32xf32>
    %81 = math.tanh %80 : vector<2x32xf32>
    %cst_46 = arith.constant 1.000000e+00 : f32
    %82 = vector.broadcast %cst_46 : f32 to vector<2x32xf32>
    %83 = arith.subf %82, %74 : vector<2x32xf32>
    %84 = arith.mulf %83, %81 : vector<2x32xf32>
    %85 = arith.mulf %74, %56 : vector<2x32xf32>
    %86 = arith.addf %84, %85 : vector<2x32xf32>
    %c4 = arith.constant 4 : index
    %c0_47 = arith.constant 0 : index
    %87 = vector.load %arg27[%c4, %c0_47] : memref<16x96xf32, #tpu.memory_space<vmem>>, vector<2x96xf32>
    %cst_48 = arith.constant dense<0.000000e+00> : vector<2x96xf32>
    %88 = tpu.matmul %86, %20, %cst_48 {dimension_numbers = #tpu.dot_dimension_numbers<[1], [0], [0], [1], [0, 0, 1, 1], [], []>} : vector<2x32xf32>, vector<32x96xf32>, vector<2x96xf32> -> vector<2x96xf32>
    %89 = vector.extract_strided_slice %87 {offsets = [0, 0], sizes = [2, 32], strides = [1, 1]} : vector<2x96xf32> to vector<2x32xf32>
    %90 = vector.extract_strided_slice %88 {offsets = [0, 0], sizes = [2, 32], strides = [1, 1]} : vector<2x96xf32> to vector<2x32xf32>
    %91 = arith.addf %89, %90 : vector<2x32xf32>
    %92 = arith.negf %91 : vector<2x32xf32>
    %93 = math.exp %92 : vector<2x32xf32>
    %cst_49 = arith.constant 1.000000e+00 : f32
    %94 = vector.broadcast %cst_49 : f32 to vector<2x32xf32>
    %95 = arith.addf %94, %93 : vector<2x32xf32>
    %96 = arith.divf %94, %95 : vector<2x32xf32>
    %97 = vector.extract_strided_slice %87 {offsets = [0, 32], sizes = [2, 32], strides = [1, 1]} : vector<2x96xf32> to vector<2x32xf32>
    %98 = vector.extract_strided_slice %88 {offsets = [0, 32], sizes = [2, 32], strides = [1, 1]} : vector<2x96xf32> to vector<2x32xf32>
    %99 = arith.addf %97, %98 : vector<2x32xf32>
    %100 = arith.negf %99 : vector<2x32xf32>
    %101 = math.exp %100 : vector<2x32xf32>
    %cst_50 = arith.constant 1.000000e+00 : f32
    %102 = vector.broadcast %cst_50 : f32 to vector<2x32xf32>
    %103 = arith.addf %102, %101 : vector<2x32xf32>
    %104 = arith.divf %102, %103 : vector<2x32xf32>
    %105 = vector.extract_strided_slice %87 {offsets = [0, 64], sizes = [2, 32], strides = [1, 1]} : vector<2x96xf32> to vector<2x32xf32>
    %106 = vector.extract_strided_slice %88 {offsets = [0, 64], sizes = [2, 32], strides = [1, 1]} : vector<2x96xf32> to vector<2x32xf32>
    %107 = vector.broadcast %21 : vector<1x32xf32> to vector<2x32xf32>
    %108 = arith.addf %106, %107 : vector<2x32xf32>
    %109 = arith.mulf %96, %108 : vector<2x32xf32>
    %110 = arith.addf %105, %109 : vector<2x32xf32>
    %111 = math.tanh %110 : vector<2x32xf32>
    %cst_51 = arith.constant 1.000000e+00 : f32
    %112 = vector.broadcast %cst_51 : f32 to vector<2x32xf32>
    %113 = arith.subf %112, %104 : vector<2x32xf32>
    %114 = arith.mulf %113, %111 : vector<2x32xf32>
    %115 = arith.mulf %104, %86 : vector<2x32xf32>
    %116 = arith.addf %114, %115 : vector<2x32xf32>
    %c6 = arith.constant 6 : index
    %c0_52 = arith.constant 0 : index
    %117 = vector.load %arg27[%c6, %c0_52] : memref<16x96xf32, #tpu.memory_space<vmem>>, vector<2x96xf32>
    %cst_53 = arith.constant dense<0.000000e+00> : vector<2x96xf32>
    %118 = tpu.matmul %116, %20, %cst_53 {dimension_numbers = #tpu.dot_dimension_numbers<[1], [0], [0], [1], [0, 0, 1, 1], [], []>} : vector<2x32xf32>, vector<32x96xf32>, vector<2x96xf32> -> vector<2x96xf32>
    %119 = vector.extract_strided_slice %117 {offsets = [0, 0], sizes = [2, 32], strides = [1, 1]} : vector<2x96xf32> to vector<2x32xf32>
    %120 = vector.extract_strided_slice %118 {offsets = [0, 0], sizes = [2, 32], strides = [1, 1]} : vector<2x96xf32> to vector<2x32xf32>
    %121 = arith.addf %119, %120 : vector<2x32xf32>
    %122 = arith.negf %121 : vector<2x32xf32>
    %123 = math.exp %122 : vector<2x32xf32>
    %cst_54 = arith.constant 1.000000e+00 : f32
    %124 = vector.broadcast %cst_54 : f32 to vector<2x32xf32>
    %125 = arith.addf %124, %123 : vector<2x32xf32>
    %126 = arith.divf %124, %125 : vector<2x32xf32>
    %127 = vector.extract_strided_slice %117 {offsets = [0, 32], sizes = [2, 32], strides = [1, 1]} : vector<2x96xf32> to vector<2x32xf32>
    %128 = vector.extract_strided_slice %118 {offsets = [0, 32], sizes = [2, 32], strides = [1, 1]} : vector<2x96xf32> to vector<2x32xf32>
    %129 = arith.addf %127, %128 : vector<2x32xf32>
    %130 = arith.negf %129 : vector<2x32xf32>
    %131 = math.exp %130 : vector<2x32xf32>
    %cst_55 = arith.constant 1.000000e+00 : f32
    %132 = vector.broadcast %cst_55 : f32 to vector<2x32xf32>
    %133 = arith.addf %132, %131 : vector<2x32xf32>
    %134 = arith.divf %132, %133 : vector<2x32xf32>
    %135 = vector.extract_strided_slice %117 {offsets = [0, 64], sizes = [2, 32], strides = [1, 1]} : vector<2x96xf32> to vector<2x32xf32>
    %136 = vector.extract_strided_slice %118 {offsets = [0, 64], sizes = [2, 32], strides = [1, 1]} : vector<2x96xf32> to vector<2x32xf32>
    %137 = vector.broadcast %21 : vector<1x32xf32> to vector<2x32xf32>
    %138 = arith.addf %136, %137 : vector<2x32xf32>
    %139 = arith.mulf %126, %138 : vector<2x32xf32>
    %140 = arith.addf %135, %139 : vector<2x32xf32>
    %141 = math.tanh %140 : vector<2x32xf32>
    %cst_56 = arith.constant 1.000000e+00 : f32
    %142 = vector.broadcast %cst_56 : f32 to vector<2x32xf32>
    %143 = arith.subf %142, %134 : vector<2x32xf32>
    %144 = arith.mulf %143, %141 : vector<2x32xf32>
    %145 = arith.mulf %134, %116 : vector<2x32xf32>
    %146 = arith.addf %144, %145 : vector<2x32xf32>
    %c8 = arith.constant 8 : index
    %c0_57 = arith.constant 0 : index
    %147 = vector.load %arg27[%c8, %c0_57] : memref<16x96xf32, #tpu.memory_space<vmem>>, vector<2x96xf32>
    %cst_58 = arith.constant dense<0.000000e+00> : vector<2x96xf32>
    %148 = tpu.matmul %146, %20, %cst_58 {dimension_numbers = #tpu.dot_dimension_numbers<[1], [0], [0], [1], [0, 0, 1, 1], [], []>} : vector<2x32xf32>, vector<32x96xf32>, vector<2x96xf32> -> vector<2x96xf32>
    %149 = vector.extract_strided_slice %147 {offsets = [0, 0], sizes = [2, 32], strides = [1, 1]} : vector<2x96xf32> to vector<2x32xf32>
    %150 = vector.extract_strided_slice %148 {offsets = [0, 0], sizes = [2, 32], strides = [1, 1]} : vector<2x96xf32> to vector<2x32xf32>
    %151 = arith.addf %149, %150 : vector<2x32xf32>
    %152 = arith.negf %151 : vector<2x32xf32>
    %153 = math.exp %152 : vector<2x32xf32>
    %cst_59 = arith.constant 1.000000e+00 : f32
    %154 = vector.broadcast %cst_59 : f32 to vector<2x32xf32>
    %155 = arith.addf %154, %153 : vector<2x32xf32>
    %156 = arith.divf %154, %155 : vector<2x32xf32>
    %157 = vector.extract_strided_slice %147 {offsets = [0, 32], sizes = [2, 32], strides = [1, 1]} : vector<2x96xf32> to vector<2x32xf32>
    %158 = vector.extract_strided_slice %148 {offsets = [0, 32], sizes = [2, 32], strides = [1, 1]} : vector<2x96xf32> to vector<2x32xf32>
    %159 = arith.addf %157, %158 : vector<2x32xf32>
    %160 = arith.negf %159 : vector<2x32xf32>
    %161 = math.exp %160 : vector<2x32xf32>
    %cst_60 = arith.constant 1.000000e+00 : f32
    %162 = vector.broadcast %cst_60 : f32 to vector<2x32xf32>
    %163 = arith.addf %162, %161 : vector<2x32xf32>
    %164 = arith.divf %162, %163 : vector<2x32xf32>
    %165 = vector.extract_strided_slice %147 {offsets = [0, 64], sizes = [2, 32], strides = [1, 1]} : vector<2x96xf32> to vector<2x32xf32>
    %166 = vector.extract_strided_slice %148 {offsets = [0, 64], sizes = [2, 32], strides = [1, 1]} : vector<2x96xf32> to vector<2x32xf32>
    %167 = vector.broadcast %21 : vector<1x32xf32> to vector<2x32xf32>
    %168 = arith.addf %166, %167 : vector<2x32xf32>
    %169 = arith.mulf %156, %168 : vector<2x32xf32>
    %170 = arith.addf %165, %169 : vector<2x32xf32>
    %171 = math.tanh %170 : vector<2x32xf32>
    %cst_61 = arith.constant 1.000000e+00 : f32
    %172 = vector.broadcast %cst_61 : f32 to vector<2x32xf32>
    %173 = arith.subf %172, %164 : vector<2x32xf32>
    %174 = arith.mulf %173, %171 : vector<2x32xf32>
    %175 = arith.mulf %164, %146 : vector<2x32xf32>
    %176 = arith.addf %174, %175 : vector<2x32xf32>
    %c10 = arith.constant 10 : index
    %c0_62 = arith.constant 0 : index
    %177 = vector.load %arg27[%c10, %c0_62] : memref<16x96xf32, #tpu.memory_space<vmem>>, vector<2x96xf32>
    %cst_63 = arith.constant dense<0.000000e+00> : vector<2x96xf32>
    %178 = tpu.matmul %176, %20, %cst_63 {dimension_numbers = #tpu.dot_dimension_numbers<[1], [0], [0], [1], [0, 0, 1, 1], [], []>} : vector<2x32xf32>, vector<32x96xf32>, vector<2x96xf32> -> vector<2x96xf32>
    %179 = vector.extract_strided_slice %177 {offsets = [0, 0], sizes = [2, 32], strides = [1, 1]} : vector<2x96xf32> to vector<2x32xf32>
    %180 = vector.extract_strided_slice %178 {offsets = [0, 0], sizes = [2, 32], strides = [1, 1]} : vector<2x96xf32> to vector<2x32xf32>
    %181 = arith.addf %179, %180 : vector<2x32xf32>
    %182 = arith.negf %181 : vector<2x32xf32>
    %183 = math.exp %182 : vector<2x32xf32>
    %cst_64 = arith.constant 1.000000e+00 : f32
    %184 = vector.broadcast %cst_64 : f32 to vector<2x32xf32>
    %185 = arith.addf %184, %183 : vector<2x32xf32>
    %186 = arith.divf %184, %185 : vector<2x32xf32>
    %187 = vector.extract_strided_slice %177 {offsets = [0, 32], sizes = [2, 32], strides = [1, 1]} : vector<2x96xf32> to vector<2x32xf32>
    %188 = vector.extract_strided_slice %178 {offsets = [0, 32], sizes = [2, 32], strides = [1, 1]} : vector<2x96xf32> to vector<2x32xf32>
    %189 = arith.addf %187, %188 : vector<2x32xf32>
    %190 = arith.negf %189 : vector<2x32xf32>
    %191 = math.exp %190 : vector<2x32xf32>
    %cst_65 = arith.constant 1.000000e+00 : f32
    %192 = vector.broadcast %cst_65 : f32 to vector<2x32xf32>
    %193 = arith.addf %192, %191 : vector<2x32xf32>
    %194 = arith.divf %192, %193 : vector<2x32xf32>
    %195 = vector.extract_strided_slice %177 {offsets = [0, 64], sizes = [2, 32], strides = [1, 1]} : vector<2x96xf32> to vector<2x32xf32>
    %196 = vector.extract_strided_slice %178 {offsets = [0, 64], sizes = [2, 32], strides = [1, 1]} : vector<2x96xf32> to vector<2x32xf32>
    %197 = vector.broadcast %21 : vector<1x32xf32> to vector<2x32xf32>
    %198 = arith.addf %196, %197 : vector<2x32xf32>
    %199 = arith.mulf %186, %198 : vector<2x32xf32>
    %200 = arith.addf %195, %199 : vector<2x32xf32>
    %201 = math.tanh %200 : vector<2x32xf32>
    %cst_66 = arith.constant 1.000000e+00 : f32
    %202 = vector.broadcast %cst_66 : f32 to vector<2x32xf32>
    %203 = arith.subf %202, %194 : vector<2x32xf32>
    %204 = arith.mulf %203, %201 : vector<2x32xf32>
    %205 = arith.mulf %194, %176 : vector<2x32xf32>
    %206 = arith.addf %204, %205 : vector<2x32xf32>
    %c12 = arith.constant 12 : index
    %c0_67 = arith.constant 0 : index
    %207 = vector.load %arg27[%c12, %c0_67] : memref<16x96xf32, #tpu.memory_space<vmem>>, vector<2x96xf32>
    %cst_68 = arith.constant dense<0.000000e+00> : vector<2x96xf32>
    %208 = tpu.matmul %206, %20, %cst_68 {dimension_numbers = #tpu.dot_dimension_numbers<[1], [0], [0], [1], [0, 0, 1, 1], [], []>} : vector<2x32xf32>, vector<32x96xf32>, vector<2x96xf32> -> vector<2x96xf32>
    %209 = vector.extract_strided_slice %207 {offsets = [0, 0], sizes = [2, 32], strides = [1, 1]} : vector<2x96xf32> to vector<2x32xf32>
    %210 = vector.extract_strided_slice %208 {offsets = [0, 0], sizes = [2, 32], strides = [1, 1]} : vector<2x96xf32> to vector<2x32xf32>
    %211 = arith.addf %209, %210 : vector<2x32xf32>
    %212 = arith.negf %211 : vector<2x32xf32>
    %213 = math.exp %212 : vector<2x32xf32>
    %cst_69 = arith.constant 1.000000e+00 : f32
    %214 = vector.broadcast %cst_69 : f32 to vector<2x32xf32>
    %215 = arith.addf %214, %213 : vector<2x32xf32>
    %216 = arith.divf %214, %215 : vector<2x32xf32>
    %217 = vector.extract_strided_slice %207 {offsets = [0, 32], sizes = [2, 32], strides = [1, 1]} : vector<2x96xf32> to vector<2x32xf32>
    %218 = vector.extract_strided_slice %208 {offsets = [0, 32], sizes = [2, 32], strides = [1, 1]} : vector<2x96xf32> to vector<2x32xf32>
    %219 = arith.addf %217, %218 : vector<2x32xf32>
    %220 = arith.negf %219 : vector<2x32xf32>
    %221 = math.exp %220 : vector<2x32xf32>
    %cst_70 = arith.constant 1.000000e+00 : f32
    %222 = vector.broadcast %cst_70 : f32 to vector<2x32xf32>
    %223 = arith.addf %222, %221 : vector<2x32xf32>
    %224 = arith.divf %222, %223 : vector<2x32xf32>
    %225 = vector.extract_strided_slice %207 {offsets = [0, 64], sizes = [2, 32], strides = [1, 1]} : vector<2x96xf32> to vector<2x32xf32>
    %226 = vector.extract_strided_slice %208 {offsets = [0, 64], sizes = [2, 32], strides = [1, 1]} : vector<2x96xf32> to vector<2x32xf32>
    %227 = vector.broadcast %21 : vector<1x32xf32> to vector<2x32xf32>
    %228 = arith.addf %226, %227 : vector<2x32xf32>
    %229 = arith.mulf %216, %228 : vector<2x32xf32>
    %230 = arith.addf %225, %229 : vector<2x32xf32>
    %231 = math.tanh %230 : vector<2x32xf32>
    %cst_71 = arith.constant 1.000000e+00 : f32
    %232 = vector.broadcast %cst_71 : f32 to vector<2x32xf32>
    %233 = arith.subf %232, %224 : vector<2x32xf32>
    %234 = arith.mulf %233, %231 : vector<2x32xf32>
    %235 = arith.mulf %224, %206 : vector<2x32xf32>
    %236 = arith.addf %234, %235 : vector<2x32xf32>
    %c14 = arith.constant 14 : index
    %c0_72 = arith.constant 0 : index
    %237 = vector.load %arg27[%c14, %c0_72] : memref<16x96xf32, #tpu.memory_space<vmem>>, vector<2x96xf32>
    %cst_73 = arith.constant dense<0.000000e+00> : vector<2x96xf32>
    %238 = tpu.matmul %236, %20, %cst_73 {dimension_numbers = #tpu.dot_dimension_numbers<[1], [0], [0], [1], [0, 0, 1, 1], [], []>} : vector<2x32xf32>, vector<32x96xf32>, vector<2x96xf32> -> vector<2x96xf32>
    %239 = vector.extract_strided_slice %237 {offsets = [0, 0], sizes = [2, 32], strides = [1, 1]} : vector<2x96xf32> to vector<2x32xf32>
    %240 = vector.extract_strided_slice %238 {offsets = [0, 0], sizes = [2, 32], strides = [1, 1]} : vector<2x96xf32> to vector<2x32xf32>
    %241 = arith.addf %239, %240 : vector<2x32xf32>
    %242 = arith.negf %241 : vector<2x32xf32>
    %243 = math.exp %242 : vector<2x32xf32>
    %cst_74 = arith.constant 1.000000e+00 : f32
    %244 = vector.broadcast %cst_74 : f32 to vector<2x32xf32>
    %245 = arith.addf %244, %243 : vector<2x32xf32>
    %246 = arith.divf %244, %245 : vector<2x32xf32>
    %247 = vector.extract_strided_slice %237 {offsets = [0, 32], sizes = [2, 32], strides = [1, 1]} : vector<2x96xf32> to vector<2x32xf32>
    %248 = vector.extract_strided_slice %238 {offsets = [0, 32], sizes = [2, 32], strides = [1, 1]} : vector<2x96xf32> to vector<2x32xf32>
    %249 = arith.addf %247, %248 : vector<2x32xf32>
    %250 = arith.negf %249 : vector<2x32xf32>
    %251 = math.exp %250 : vector<2x32xf32>
    %cst_75 = arith.constant 1.000000e+00 : f32
    %252 = vector.broadcast %cst_75 : f32 to vector<2x32xf32>
    %253 = arith.addf %252, %251 : vector<2x32xf32>
    %254 = arith.divf %252, %253 : vector<2x32xf32>
    %255 = vector.extract_strided_slice %237 {offsets = [0, 64], sizes = [2, 32], strides = [1, 1]} : vector<2x96xf32> to vector<2x32xf32>
    %256 = vector.extract_strided_slice %238 {offsets = [0, 64], sizes = [2, 32], strides = [1, 1]} : vector<2x96xf32> to vector<2x32xf32>
    %257 = vector.broadcast %21 : vector<1x32xf32> to vector<2x32xf32>
    %258 = arith.addf %256, %257 : vector<2x32xf32>
    %259 = arith.mulf %246, %258 : vector<2x32xf32>
    %260 = arith.addf %255, %259 : vector<2x32xf32>
    %261 = math.tanh %260 : vector<2x32xf32>
    %cst_76 = arith.constant 1.000000e+00 : f32
    %262 = vector.broadcast %cst_76 : f32 to vector<2x32xf32>
    %263 = arith.subf %262, %254 : vector<2x32xf32>
    %264 = arith.mulf %263, %261 : vector<2x32xf32>
    %265 = arith.mulf %254, %236 : vector<2x32xf32>
    %266 = arith.addf %264, %265 : vector<2x32xf32>
    %cst_77 = arith.constant 0.000000e+00 : f32
    %267 = vector.broadcast %cst_77 : f32 to vector<2x32xf32>
    %c14_78 = arith.constant 14 : index
    %c0_79 = arith.constant 0 : index
    %268 = vector.load %arg28[%c14_78, %c0_79] : memref<16x96xf32, #tpu.memory_space<vmem>>, vector<2x96xf32>
    %cst_80 = arith.constant dense<0.000000e+00> : vector<2x96xf32>
    %269 = tpu.matmul %267, %22, %cst_80 {dimension_numbers = #tpu.dot_dimension_numbers<[1], [0], [0], [1], [0, 0, 1, 1], [], []>} : vector<2x32xf32>, vector<32x96xf32>, vector<2x96xf32> -> vector<2x96xf32>
    %270 = vector.extract_strided_slice %268 {offsets = [0, 0], sizes = [2, 32], strides = [1, 1]} : vector<2x96xf32> to vector<2x32xf32>
    %271 = vector.extract_strided_slice %269 {offsets = [0, 0], sizes = [2, 32], strides = [1, 1]} : vector<2x96xf32> to vector<2x32xf32>
    %272 = arith.addf %270, %271 : vector<2x32xf32>
    %273 = arith.negf %272 : vector<2x32xf32>
    %274 = math.exp %273 : vector<2x32xf32>
    %cst_81 = arith.constant 1.000000e+00 : f32
    %275 = vector.broadcast %cst_81 : f32 to vector<2x32xf32>
    %276 = arith.addf %275, %274 : vector<2x32xf32>
    %277 = arith.divf %275, %276 : vector<2x32xf32>
    %278 = vector.extract_strided_slice %268 {offsets = [0, 32], sizes = [2, 32], strides = [1, 1]} : vector<2x96xf32> to vector<2x32xf32>
    %279 = vector.extract_strided_slice %269 {offsets = [0, 32], sizes = [2, 32], strides = [1, 1]} : vector<2x96xf32> to vector<2x32xf32>
    %280 = arith.addf %278, %279 : vector<2x32xf32>
    %281 = arith.negf %280 : vector<2x32xf32>
    %282 = math.exp %281 : vector<2x32xf32>
    %cst_82 = arith.constant 1.000000e+00 : f32
    %283 = vector.broadcast %cst_82 : f32 to vector<2x32xf32>
    %284 = arith.addf %283, %282 : vector<2x32xf32>
    %285 = arith.divf %283, %284 : vector<2x32xf32>
    %286 = vector.extract_strided_slice %268 {offsets = [0, 64], sizes = [2, 32], strides = [1, 1]} : vector<2x96xf32> to vector<2x32xf32>
    %287 = vector.extract_strided_slice %269 {offsets = [0, 64], sizes = [2, 32], strides = [1, 1]} : vector<2x96xf32> to vector<2x32xf32>
    %288 = vector.broadcast %23 : vector<1x32xf32> to vector<2x32xf32>
    %289 = arith.addf %287, %288 : vector<2x32xf32>
    %290 = arith.mulf %277, %289 : vector<2x32xf32>
    %291 = arith.addf %286, %290 : vector<2x32xf32>
    %292 = math.tanh %291 : vector<2x32xf32>
    %cst_83 = arith.constant 1.000000e+00 : f32
    %293 = vector.broadcast %cst_83 : f32 to vector<2x32xf32>
    %294 = arith.subf %293, %285 : vector<2x32xf32>
    %295 = arith.mulf %294, %292 : vector<2x32xf32>
    %296 = arith.mulf %285, %267 : vector<2x32xf32>
    %297 = arith.addf %295, %296 : vector<2x32xf32>
    %298 = arith.addf %266, %297 : vector<2x32xf32>
    %c14_84 = arith.constant 14 : index
    %c0_85 = arith.constant 0 : index
    %299 = vector.load %arg30[%c14_84, %c0_85] : memref<16x32xf32, #tpu.memory_space<vmem>>, vector<2x32xf32>
    tpu.vector_store %arg30[%c14_84, %c0_85], %298 {strides = array<i32>} : memref<16x32xf32, #tpu.memory_space<vmem>>, vector<2x32xf32>,
    %c12_86 = arith.constant 12 : index
    %c0_87 = arith.constant 0 : index
    %300 = vector.load %arg28[%c12_86, %c0_87] : memref<16x96xf32, #tpu.memory_space<vmem>>, vector<2x96xf32>
    %cst_88 = arith.constant dense<0.000000e+00> : vector<2x96xf32>
    %301 = tpu.matmul %297, %22, %cst_88 {dimension_numbers = #tpu.dot_dimension_numbers<[1], [0], [0], [1], [0, 0, 1, 1], [], []>} : vector<2x32xf32>, vector<32x96xf32>, vector<2x96xf32> -> vector<2x96xf32>
    %302 = vector.extract_strided_slice %300 {offsets = [0, 0], sizes = [2, 32], strides = [1, 1]} : vector<2x96xf32> to vector<2x32xf32>
    %303 = vector.extract_strided_slice %301 {offsets = [0, 0], sizes = [2, 32], strides = [1, 1]} : vector<2x96xf32> to vector<2x32xf32>
    %304 = arith.addf %302, %303 : vector<2x32xf32>
    %305 = arith.negf %304 : vector<2x32xf32>
    %306 = math.exp %305 : vector<2x32xf32>
    %cst_89 = arith.constant 1.000000e+00 : f32
    %307 = vector.broadcast %cst_89 : f32 to vector<2x32xf32>
    %308 = arith.addf %307, %306 : vector<2x32xf32>
    %309 = arith.divf %307, %308 : vector<2x32xf32>
    %310 = vector.extract_strided_slice %300 {offsets = [0, 32], sizes = [2, 32], strides = [1, 1]} : vector<2x96xf32> to vector<2x32xf32>
    %311 = vector.extract_strided_slice %301 {offsets = [0, 32], sizes = [2, 32], strides = [1, 1]} : vector<2x96xf32> to vector<2x32xf32>
    %312 = arith.addf %310, %311 : vector<2x32xf32>
    %313 = arith.negf %312 : vector<2x32xf32>
    %314 = math.exp %313 : vector<2x32xf32>
    %cst_90 = arith.constant 1.000000e+00 : f32
    %315 = vector.broadcast %cst_90 : f32 to vector<2x32xf32>
    %316 = arith.addf %315, %314 : vector<2x32xf32>
    %317 = arith.divf %315, %316 : vector<2x32xf32>
    %318 = vector.extract_strided_slice %300 {offsets = [0, 64], sizes = [2, 32], strides = [1, 1]} : vector<2x96xf32> to vector<2x32xf32>
    %319 = vector.extract_strided_slice %301 {offsets = [0, 64], sizes = [2, 32], strides = [1, 1]} : vector<2x96xf32> to vector<2x32xf32>
    %320 = vector.broadcast %23 : vector<1x32xf32> to vector<2x32xf32>
    %321 = arith.addf %319, %320 : vector<2x32xf32>
    %322 = arith.mulf %309, %321 : vector<2x32xf32>
    %323 = arith.addf %318, %322 : vector<2x32xf32>
    %324 = math.tanh %323 : vector<2x32xf32>
    %cst_91 = arith.constant 1.000000e+00 : f32
    %325 = vector.broadcast %cst_91 : f32 to vector<2x32xf32>
    %326 = arith.subf %325, %317 : vector<2x32xf32>
    %327 = arith.mulf %326, %324 : vector<2x32xf32>
    %328 = arith.mulf %317, %297 : vector<2x32xf32>
    %329 = arith.addf %327, %328 : vector<2x32xf32>
    %330 = arith.addf %236, %329 : vector<2x32xf32>
    %c12_92 = arith.constant 12 : index
    %c0_93 = arith.constant 0 : index
    %331 = vector.load %arg30[%c12_92, %c0_93] : memref<16x32xf32, #tpu.memory_space<vmem>>, vector<2x32xf32>
    tpu.vector_store %arg30[%c12_92, %c0_93], %330 {strides = array<i32>} : memref<16x32xf32, #tpu.memory_space<vmem>>, vector<2x32xf32>,
    %c10_94 = arith.constant 10 : index
    %c0_95 = arith.constant 0 : index
    %332 = vector.load %arg28[%c10_94, %c0_95] : memref<16x96xf32, #tpu.memory_space<vmem>>, vector<2x96xf32>
    %cst_96 = arith.constant dense<0.000000e+00> : vector<2x96xf32>
    %333 = tpu.matmul %329, %22, %cst_96 {dimension_numbers = #tpu.dot_dimension_numbers<[1], [0], [0], [1], [0, 0, 1, 1], [], []>} : vector<2x32xf32>, vector<32x96xf32>, vector<2x96xf32> -> vector<2x96xf32>
    %334 = vector.extract_strided_slice %332 {offsets = [0, 0], sizes = [2, 32], strides = [1, 1]} : vector<2x96xf32> to vector<2x32xf32>
    %335 = vector.extract_strided_slice %333 {offsets = [0, 0], sizes = [2, 32], strides = [1, 1]} : vector<2x96xf32> to vector<2x32xf32>
    %336 = arith.addf %334, %335 : vector<2x32xf32>
    %337 = arith.negf %336 : vector<2x32xf32>
    %338 = math.exp %337 : vector<2x32xf32>
    %cst_97 = arith.constant 1.000000e+00 : f32
    %339 = vector.broadcast %cst_97 : f32 to vector<2x32xf32>
    %340 = arith.addf %339, %338 : vector<2x32xf32>
    %341 = arith.divf %339, %340 : vector<2x32xf32>
    %342 = vector.extract_strided_slice %332 {offsets = [0, 32], sizes = [2, 32], strides = [1, 1]} : vector<2x96xf32> to vector<2x32xf32>
    %343 = vector.extract_strided_slice %333 {offsets = [0, 32], sizes = [2, 32], strides = [1, 1]} : vector<2x96xf32> to vector<2x32xf32>
    %344 = arith.addf %342, %343 : vector<2x32xf32>
    %345 = arith.negf %344 : vector<2x32xf32>
    %346 = math.exp %345 : vector<2x32xf32>
    %cst_98 = arith.constant 1.000000e+00 : f32
    %347 = vector.broadcast %cst_98 : f32 to vector<2x32xf32>
    %348 = arith.addf %347, %346 : vector<2x32xf32>
    %349 = arith.divf %347, %348 : vector<2x32xf32>
    %350 = vector.extract_strided_slice %332 {offsets = [0, 64], sizes = [2, 32], strides = [1, 1]} : vector<2x96xf32> to vector<2x32xf32>
    %351 = vector.extract_strided_slice %333 {offsets = [0, 64], sizes = [2, 32], strides = [1, 1]} : vector<2x96xf32> to vector<2x32xf32>
    %352 = vector.broadcast %23 : vector<1x32xf32> to vector<2x32xf32>
    %353 = arith.addf %351, %352 : vector<2x32xf32>
    %354 = arith.mulf %341, %353 : vector<2x32xf32>
    %355 = arith.addf %350, %354 : vector<2x32xf32>
    %356 = math.tanh %355 : vector<2x32xf32>
    %cst_99 = arith.constant 1.000000e+00 : f32
    %357 = vector.broadcast %cst_99 : f32 to vector<2x32xf32>
    %358 = arith.subf %357, %349 : vector<2x32xf32>
    %359 = arith.mulf %358, %356 : vector<2x32xf32>
    %360 = arith.mulf %349, %329 : vector<2x32xf32>
    %361 = arith.addf %359, %360 : vector<2x32xf32>
    %362 = arith.addf %206, %361 : vector<2x32xf32>
    %c10_100 = arith.constant 10 : index
    %c0_101 = arith.constant 0 : index
    %363 = vector.load %arg30[%c10_100, %c0_101] : memref<16x32xf32, #tpu.memory_space<vmem>>, vector<2x32xf32>
    tpu.vector_store %arg30[%c10_100, %c0_101], %362 {strides = array<i32>} : memref<16x32xf32, #tpu.memory_space<vmem>>, vector<2x32xf32>,
    %c8_102 = arith.constant 8 : index
    %c0_103 = arith.constant 0 : index
    %364 = vector.load %arg28[%c8_102, %c0_103] : memref<16x96xf32, #tpu.memory_space<vmem>>, vector<2x96xf32>
    %cst_104 = arith.constant dense<0.000000e+00> : vector<2x96xf32>
    %365 = tpu.matmul %361, %22, %cst_104 {dimension_numbers = #tpu.dot_dimension_numbers<[1], [0], [0], [1], [0, 0, 1, 1], [], []>} : vector<2x32xf32>, vector<32x96xf32>, vector<2x96xf32> -> vector<2x96xf32>
    %366 = vector.extract_strided_slice %364 {offsets = [0, 0], sizes = [2, 32], strides = [1, 1]} : vector<2x96xf32> to vector<2x32xf32>
    %367 = vector.extract_strided_slice %365 {offsets = [0, 0], sizes = [2, 32], strides = [1, 1]} : vector<2x96xf32> to vector<2x32xf32>
    %368 = arith.addf %366, %367 : vector<2x32xf32>
    %369 = arith.negf %368 : vector<2x32xf32>
    %370 = math.exp %369 : vector<2x32xf32>
    %cst_105 = arith.constant 1.000000e+00 : f32
    %371 = vector.broadcast %cst_105 : f32 to vector<2x32xf32>
    %372 = arith.addf %371, %370 : vector<2x32xf32>
    %373 = arith.divf %371, %372 : vector<2x32xf32>
    %374 = vector.extract_strided_slice %364 {offsets = [0, 32], sizes = [2, 32], strides = [1, 1]} : vector<2x96xf32> to vector<2x32xf32>
    %375 = vector.extract_strided_slice %365 {offsets = [0, 32], sizes = [2, 32], strides = [1, 1]} : vector<2x96xf32> to vector<2x32xf32>
    %376 = arith.addf %374, %375 : vector<2x32xf32>
    %377 = arith.negf %376 : vector<2x32xf32>
    %378 = math.exp %377 : vector<2x32xf32>
    %cst_106 = arith.constant 1.000000e+00 : f32
    %379 = vector.broadcast %cst_106 : f32 to vector<2x32xf32>
    %380 = arith.addf %379, %378 : vector<2x32xf32>
    %381 = arith.divf %379, %380 : vector<2x32xf32>
    %382 = vector.extract_strided_slice %364 {offsets = [0, 64], sizes = [2, 32], strides = [1, 1]} : vector<2x96xf32> to vector<2x32xf32>
    %383 = vector.extract_strided_slice %365 {offsets = [0, 64], sizes = [2, 32], strides = [1, 1]} : vector<2x96xf32> to vector<2x32xf32>
    %384 = vector.broadcast %23 : vector<1x32xf32> to vector<2x32xf32>
    %385 = arith.addf %383, %384 : vector<2x32xf32>
    %386 = arith.mulf %373, %385 : vector<2x32xf32>
    %387 = arith.addf %382, %386 : vector<2x32xf32>
    %388 = math.tanh %387 : vector<2x32xf32>
    %cst_107 = arith.constant 1.000000e+00 : f32
    %389 = vector.broadcast %cst_107 : f32 to vector<2x32xf32>
    %390 = arith.subf %389, %381 : vector<2x32xf32>
    %391 = arith.mulf %390, %388 : vector<2x32xf32>
    %392 = arith.mulf %381, %361 : vector<2x32xf32>
    %393 = arith.addf %391, %392 : vector<2x32xf32>
    %394 = arith.addf %176, %393 : vector<2x32xf32>
    %c8_108 = arith.constant 8 : index
    %c0_109 = arith.constant 0 : index
    %395 = vector.load %arg30[%c8_108, %c0_109] : memref<16x32xf32, #tpu.memory_space<vmem>>, vector<2x32xf32>
    tpu.vector_store %arg30[%c8_108, %c0_109], %394 {strides = array<i32>} : memref<16x32xf32, #tpu.memory_space<vmem>>, vector<2x32xf32>,
    %c6_110 = arith.constant 6 : index
    %c0_111 = arith.constant 0 : index
    %396 = vector.load %arg28[%c6_110, %c0_111] : memref<16x96xf32, #tpu.memory_space<vmem>>, vector<2x96xf32>
    %cst_112 = arith.constant dense<0.000000e+00> : vector<2x96xf32>
    %397 = tpu.matmul %393, %22, %cst_112 {dimension_numbers = #tpu.dot_dimension_numbers<[1], [0], [0], [1], [0, 0, 1, 1], [], []>} : vector<2x32xf32>, vector<32x96xf32>, vector<2x96xf32> -> vector<2x96xf32>
    %398 = vector.extract_strided_slice %396 {offsets = [0, 0], sizes = [2, 32], strides = [1, 1]} : vector<2x96xf32> to vector<2x32xf32>
    %399 = vector.extract_strided_slice %397 {offsets = [0, 0], sizes = [2, 32], strides = [1, 1]} : vector<2x96xf32> to vector<2x32xf32>
    %400 = arith.addf %398, %399 : vector<2x32xf32>
    %401 = arith.negf %400 : vector<2x32xf32>
    %402 = math.exp %401 : vector<2x32xf32>
    %cst_113 = arith.constant 1.000000e+00 : f32
    %403 = vector.broadcast %cst_113 : f32 to vector<2x32xf32>
    %404 = arith.addf %403, %402 : vector<2x32xf32>
    %405 = arith.divf %403, %404 : vector<2x32xf32>
    %406 = vector.extract_strided_slice %396 {offsets = [0, 32], sizes = [2, 32], strides = [1, 1]} : vector<2x96xf32> to vector<2x32xf32>
    %407 = vector.extract_strided_slice %397 {offsets = [0, 32], sizes = [2, 32], strides = [1, 1]} : vector<2x96xf32> to vector<2x32xf32>
    %408 = arith.addf %406, %407 : vector<2x32xf32>
    %409 = arith.negf %408 : vector<2x32xf32>
    %410 = math.exp %409 : vector<2x32xf32>
    %cst_114 = arith.constant 1.000000e+00 : f32
    %411 = vector.broadcast %cst_114 : f32 to vector<2x32xf32>
    %412 = arith.addf %411, %410 : vector<2x32xf32>
    %413 = arith.divf %411, %412 : vector<2x32xf32>
    %414 = vector.extract_strided_slice %396 {offsets = [0, 64], sizes = [2, 32], strides = [1, 1]} : vector<2x96xf32> to vector<2x32xf32>
    %415 = vector.extract_strided_slice %397 {offsets = [0, 64], sizes = [2, 32], strides = [1, 1]} : vector<2x96xf32> to vector<2x32xf32>
    %416 = vector.broadcast %23 : vector<1x32xf32> to vector<2x32xf32>
    %417 = arith.addf %415, %416 : vector<2x32xf32>
    %418 = arith.mulf %405, %417 : vector<2x32xf32>
    %419 = arith.addf %414, %418 : vector<2x32xf32>
    %420 = math.tanh %419 : vector<2x32xf32>
    %cst_115 = arith.constant 1.000000e+00 : f32
    %421 = vector.broadcast %cst_115 : f32 to vector<2x32xf32>
    %422 = arith.subf %421, %413 : vector<2x32xf32>
    %423 = arith.mulf %422, %420 : vector<2x32xf32>
    %424 = arith.mulf %413, %393 : vector<2x32xf32>
    %425 = arith.addf %423, %424 : vector<2x32xf32>
    %426 = arith.addf %146, %425 : vector<2x32xf32>
    %c6_116 = arith.constant 6 : index
    %c0_117 = arith.constant 0 : index
    %427 = vector.load %arg30[%c6_116, %c0_117] : memref<16x32xf32, #tpu.memory_space<vmem>>, vector<2x32xf32>
    tpu.vector_store %arg30[%c6_116, %c0_117], %426 {strides = array<i32>} : memref<16x32xf32, #tpu.memory_space<vmem>>, vector<2x32xf32>,
    %c4_118 = arith.constant 4 : index
    %c0_119 = arith.constant 0 : index
    %428 = vector.load %arg28[%c4_118, %c0_119] : memref<16x96xf32, #tpu.memory_space<vmem>>, vector<2x96xf32>
    %cst_120 = arith.constant dense<0.000000e+00> : vector<2x96xf32>
    %429 = tpu.matmul %425, %22, %cst_120 {dimension_numbers = #tpu.dot_dimension_numbers<[1], [0], [0], [1], [0, 0, 1, 1], [], []>} : vector<2x32xf32>, vector<32x96xf32>, vector<2x96xf32> -> vector<2x96xf32>
    %430 = vector.extract_strided_slice %428 {offsets = [0, 0], sizes = [2, 32], strides = [1, 1]} : vector<2x96xf32> to vector<2x32xf32>
    %431 = vector.extract_strided_slice %429 {offsets = [0, 0], sizes = [2, 32], strides = [1, 1]} : vector<2x96xf32> to vector<2x32xf32>
    %432 = arith.addf %430, %431 : vector<2x32xf32>
    %433 = arith.negf %432 : vector<2x32xf32>
    %434 = math.exp %433 : vector<2x32xf32>
    %cst_121 = arith.constant 1.000000e+00 : f32
    %435 = vector.broadcast %cst_121 : f32 to vector<2x32xf32>
    %436 = arith.addf %435, %434 : vector<2x32xf32>
    %437 = arith.divf %435, %436 : vector<2x32xf32>
    %438 = vector.extract_strided_slice %428 {offsets = [0, 32], sizes = [2, 32], strides = [1, 1]} : vector<2x96xf32> to vector<2x32xf32>
    %439 = vector.extract_strided_slice %429 {offsets = [0, 32], sizes = [2, 32], strides = [1, 1]} : vector<2x96xf32> to vector<2x32xf32>
    %440 = arith.addf %438, %439 : vector<2x32xf32>
    %441 = arith.negf %440 : vector<2x32xf32>
    %442 = math.exp %441 : vector<2x32xf32>
    %cst_122 = arith.constant 1.000000e+00 : f32
    %443 = vector.broadcast %cst_122 : f32 to vector<2x32xf32>
    %444 = arith.addf %443, %442 : vector<2x32xf32>
    %445 = arith.divf %443, %444 : vector<2x32xf32>
    %446 = vector.extract_strided_slice %428 {offsets = [0, 64], sizes = [2, 32], strides = [1, 1]} : vector<2x96xf32> to vector<2x32xf32>
    %447 = vector.extract_strided_slice %429 {offsets = [0, 64], sizes = [2, 32], strides = [1, 1]} : vector<2x96xf32> to vector<2x32xf32>
    %448 = vector.broadcast %23 : vector<1x32xf32> to vector<2x32xf32>
    %449 = arith.addf %447, %448 : vector<2x32xf32>
    %450 = arith.mulf %437, %449 : vector<2x32xf32>
    %451 = arith.addf %446, %450 : vector<2x32xf32>
    %452 = math.tanh %451 : vector<2x32xf32>
    %cst_123 = arith.constant 1.000000e+00 : f32
    %453 = vector.broadcast %cst_123 : f32 to vector<2x32xf32>
    %454 = arith.subf %453, %445 : vector<2x32xf32>
    %455 = arith.mulf %454, %452 : vector<2x32xf32>
    %456 = arith.mulf %445, %425 : vector<2x32xf32>
    %457 = arith.addf %455, %456 : vector<2x32xf32>
    %458 = arith.addf %116, %457 : vector<2x32xf32>
    %c4_124 = arith.constant 4 : index
    %c0_125 = arith.constant 0 : index
    %459 = vector.load %arg30[%c4_124, %c0_125] : memref<16x32xf32, #tpu.memory_space<vmem>>, vector<2x32xf32>
    tpu.vector_store %arg30[%c4_124, %c0_125], %458 {strides = array<i32>} : memref<16x32xf32, #tpu.memory_space<vmem>>, vector<2x32xf32>,
    %c2_126 = arith.constant 2 : index
    %c0_127 = arith.constant 0 : index
    %460 = vector.load %arg28[%c2_126, %c0_127] : memref<16x96xf32, #tpu.memory_space<vmem>>, vector<2x96xf32>
    %cst_128 = arith.constant dense<0.000000e+00> : vector<2x96xf32>
    %461 = tpu.matmul %457, %22, %cst_128 {dimension_numbers = #tpu.dot_dimension_numbers<[1], [0], [0], [1], [0, 0, 1, 1], [], []>} : vector<2x32xf32>, vector<32x96xf32>, vector<2x96xf32> -> vector<2x96xf32>
    %462 = vector.extract_strided_slice %460 {offsets = [0, 0], sizes = [2, 32], strides = [1, 1]} : vector<2x96xf32> to vector<2x32xf32>
    %463 = vector.extract_strided_slice %461 {offsets = [0, 0], sizes = [2, 32], strides = [1, 1]} : vector<2x96xf32> to vector<2x32xf32>
    %464 = arith.addf %462, %463 : vector<2x32xf32>
    %465 = arith.negf %464 : vector<2x32xf32>
    %466 = math.exp %465 : vector<2x32xf32>
    %cst_129 = arith.constant 1.000000e+00 : f32
    %467 = vector.broadcast %cst_129 : f32 to vector<2x32xf32>
    %468 = arith.addf %467, %466 : vector<2x32xf32>
    %469 = arith.divf %467, %468 : vector<2x32xf32>
    %470 = vector.extract_strided_slice %460 {offsets = [0, 32], sizes = [2, 32], strides = [1, 1]} : vector<2x96xf32> to vector<2x32xf32>
    %471 = vector.extract_strided_slice %461 {offsets = [0, 32], sizes = [2, 32], strides = [1, 1]} : vector<2x96xf32> to vector<2x32xf32>
    %472 = arith.addf %470, %471 : vector<2x32xf32>
    %473 = arith.negf %472 : vector<2x32xf32>
    %474 = math.exp %473 : vector<2x32xf32>
    %cst_130 = arith.constant 1.000000e+00 : f32
    %475 = vector.broadcast %cst_130 : f32 to vector<2x32xf32>
    %476 = arith.addf %475, %474 : vector<2x32xf32>
    %477 = arith.divf %475, %476 : vector<2x32xf32>
    %478 = vector.extract_strided_slice %460 {offsets = [0, 64], sizes = [2, 32], strides = [1, 1]} : vector<2x96xf32> to vector<2x32xf32>
    %479 = vector.extract_strided_slice %461 {offsets = [0, 64], sizes = [2, 32], strides = [1, 1]} : vector<2x96xf32> to vector<2x32xf32>
    %480 = vector.broadcast %23 : vector<1x32xf32> to vector<2x32xf32>
    %481 = arith.addf %479, %480 : vector<2x32xf32>
    %482 = arith.mulf %469, %481 : vector<2x32xf32>
    %483 = arith.addf %478, %482 : vector<2x32xf32>
    %484 = math.tanh %483 : vector<2x32xf32>
    %cst_131 = arith.constant 1.000000e+00 : f32
    %485 = vector.broadcast %cst_131 : f32 to vector<2x32xf32>
    %486 = arith.subf %485, %477 : vector<2x32xf32>
    %487 = arith.mulf %486, %484 : vector<2x32xf32>
    %488 = arith.mulf %477, %457 : vector<2x32xf32>
    %489 = arith.addf %487, %488 : vector<2x32xf32>
    %490 = arith.addf %86, %489 : vector<2x32xf32>
    %c2_132 = arith.constant 2 : index
    %c0_133 = arith.constant 0 : index
    %491 = vector.load %arg30[%c2_132, %c0_133] : memref<16x32xf32, #tpu.memory_space<vmem>>, vector<2x32xf32>
    tpu.vector_store %arg30[%c2_132, %c0_133], %490 {strides = array<i32>} : memref<16x32xf32, #tpu.memory_space<vmem>>, vector<2x32xf32>,
    %c0_134 = arith.constant 0 : index
    %c0_135 = arith.constant 0 : index
    %492 = vector.load %arg28[%c0_134, %c0_135] : memref<16x96xf32, #tpu.memory_space<vmem>>, vector<2x96xf32>
    %cst_136 = arith.constant dense<0.000000e+00> : vector<2x96xf32>
    %493 = tpu.matmul %489, %22, %cst_136 {dimension_numbers = #tpu.dot_dimension_numbers<[1], [0], [0], [1], [0, 0, 1, 1], [], []>} : vector<2x32xf32>, vector<32x96xf32>, vector<2x96xf32> -> vector<2x96xf32>
    %494 = vector.extract_strided_slice %492 {offsets = [0, 0], sizes = [2, 32], strides = [1, 1]} : vector<2x96xf32> to vector<2x32xf32>
    %495 = vector.extract_strided_slice %493 {offsets = [0, 0], sizes = [2, 32], strides = [1, 1]} : vector<2x96xf32> to vector<2x32xf32>
    %496 = arith.addf %494, %495 : vector<2x32xf32>
    %497 = arith.negf %496 : vector<2x32xf32>
    %498 = math.exp %497 : vector<2x32xf32>
    %cst_137 = arith.constant 1.000000e+00 : f32
    %499 = vector.broadcast %cst_137 : f32 to vector<2x32xf32>
    %500 = arith.addf %499, %498 : vector<2x32xf32>
    %501 = arith.divf %499, %500 : vector<2x32xf32>
    %502 = vector.extract_strided_slice %492 {offsets = [0, 32], sizes = [2, 32], strides = [1, 1]} : vector<2x96xf32> to vector<2x32xf32>
    %503 = vector.extract_strided_slice %493 {offsets = [0, 32], sizes = [2, 32], strides = [1, 1]} : vector<2x96xf32> to vector<2x32xf32>
    %504 = arith.addf %502, %503 : vector<2x32xf32>
    %505 = arith.negf %504 : vector<2x32xf32>
    %506 = math.exp %505 : vector<2x32xf32>
    %cst_138 = arith.constant 1.000000e+00 : f32
    %507 = vector.broadcast %cst_138 : f32 to vector<2x32xf32>
    %508 = arith.addf %507, %506 : vector<2x32xf32>
    %509 = arith.divf %507, %508 : vector<2x32xf32>
    %510 = vector.extract_strided_slice %492 {offsets = [0, 64], sizes = [2, 32], strides = [1, 1]} : vector<2x96xf32> to vector<2x32xf32>
    %511 = vector.extract_strided_slice %493 {offsets = [0, 64], sizes = [2, 32], strides = [1, 1]} : vector<2x96xf32> to vector<2x32xf32>
    %512 = vector.broadcast %23 : vector<1x32xf32> to vector<2x32xf32>
    %513 = arith.addf %511, %512 : vector<2x32xf32>
    %514 = arith.mulf %501, %513 : vector<2x32xf32>
    %515 = arith.addf %510, %514 : vector<2x32xf32>
    %516 = math.tanh %515 : vector<2x32xf32>
    %cst_139 = arith.constant 1.000000e+00 : f32
    %517 = vector.broadcast %cst_139 : f32 to vector<2x32xf32>
    %518 = arith.subf %517, %509 : vector<2x32xf32>
    %519 = arith.mulf %518, %516 : vector<2x32xf32>
    %520 = arith.mulf %509, %489 : vector<2x32xf32>
    %521 = arith.addf %519, %520 : vector<2x32xf32>
    %522 = arith.addf %56, %521 : vector<2x32xf32>
    %c0_140 = arith.constant 0 : index
    %c0_141 = arith.constant 0 : index
    %523 = vector.load %arg30[%c0_140, %c0_141] : memref<16x32xf32, #tpu.memory_space<vmem>>, vector<2x32xf32>
    tpu.vector_store %arg30[%c0_140, %c0_141], %522 {strides = array<i32>} : memref<16x32xf32, #tpu.memory_space<vmem>>, vector<2x32xf32>,
    %cst_142 = arith.constant 0.000000e+00 : f32
    %524 = vector.broadcast %cst_142 : f32 to vector<2x32xf32>
    %c0_143 = arith.constant 0 : index
    %c0_144 = arith.constant 0 : index
    %525 = vector.load %arg29[%c0_143, %c0_144] : memref<10x96xf32, #tpu.memory_space<vmem>>, vector<2x96xf32>
    %cst_145 = arith.constant dense<0.000000e+00> : vector<2x96xf32>
    %526 = tpu.matmul %524, %24, %cst_145 {dimension_numbers = #tpu.dot_dimension_numbers<[1], [0], [0], [1], [0, 0, 1, 1], [], []>} : vector<2x32xf32>, vector<32x96xf32>, vector<2x96xf32> -> vector<2x96xf32>
    %527 = vector.extract_strided_slice %525 {offsets = [0, 0], sizes = [2, 32], strides = [1, 1]} : vector<2x96xf32> to vector<2x32xf32>
    %528 = vector.extract_strided_slice %526 {offsets = [0, 0], sizes = [2, 32], strides = [1, 1]} : vector<2x96xf32> to vector<2x32xf32>
    %529 = arith.addf %527, %528 : vector<2x32xf32>
    %530 = arith.negf %529 : vector<2x32xf32>
    %531 = math.exp %530 : vector<2x32xf32>
    %cst_146 = arith.constant 1.000000e+00 : f32
    %532 = vector.broadcast %cst_146 : f32 to vector<2x32xf32>
    %533 = arith.addf %532, %531 : vector<2x32xf32>
    %534 = arith.divf %532, %533 : vector<2x32xf32>
    %535 = vector.extract_strided_slice %525 {offsets = [0, 32], sizes = [2, 32], strides = [1, 1]} : vector<2x96xf32> to vector<2x32xf32>
    %536 = vector.extract_strided_slice %526 {offsets = [0, 32], sizes = [2, 32], strides = [1, 1]} : vector<2x96xf32> to vector<2x32xf32>
    %537 = arith.addf %535, %536 : vector<2x32xf32>
    %538 = arith.negf %537 : vector<2x32xf32>
    %539 = math.exp %538 : vector<2x32xf32>
    %cst_147 = arith.constant 1.000000e+00 : f32
    %540 = vector.broadcast %cst_147 : f32 to vector<2x32xf32>
    %541 = arith.addf %540, %539 : vector<2x32xf32>
    %542 = arith.divf %540, %541 : vector<2x32xf32>
    %543 = vector.extract_strided_slice %525 {offsets = [0, 64], sizes = [2, 32], strides = [1, 1]} : vector<2x96xf32> to vector<2x32xf32>
    %544 = vector.extract_strided_slice %526 {offsets = [0, 64], sizes = [2, 32], strides = [1, 1]} : vector<2x96xf32> to vector<2x32xf32>
    %545 = vector.broadcast %25 : vector<1x32xf32> to vector<2x32xf32>
    %546 = arith.addf %544, %545 : vector<2x32xf32>
    %547 = arith.mulf %534, %546 : vector<2x32xf32>
    %548 = arith.addf %543, %547 : vector<2x32xf32>
    %549 = math.tanh %548 : vector<2x32xf32>
    %cst_148 = arith.constant 1.000000e+00 : f32
    %550 = vector.broadcast %cst_148 : f32 to vector<2x32xf32>
    %551 = arith.subf %550, %542 : vector<2x32xf32>
    %552 = arith.mulf %551, %549 : vector<2x32xf32>
    %553 = arith.mulf %542, %524 : vector<2x32xf32>
    %554 = arith.addf %552, %553 : vector<2x32xf32>
    %c2_149 = arith.constant 2 : index
    %c0_150 = arith.constant 0 : index
    %555 = vector.load %arg29[%c2_149, %c0_150] : memref<10x96xf32, #tpu.memory_space<vmem>>, vector<2x96xf32>
    %cst_151 = arith.constant dense<0.000000e+00> : vector<2x96xf32>
    %556 = tpu.matmul %554, %24, %cst_151 {dimension_numbers = #tpu.dot_dimension_numbers<[1], [0], [0], [1], [0, 0, 1, 1], [], []>} : vector<2x32xf32>, vector<32x96xf32>, vector<2x96xf32> -> vector<2x96xf32>
    %557 = vector.extract_strided_slice %555 {offsets = [0, 0], sizes = [2, 32], strides = [1, 1]} : vector<2x96xf32> to vector<2x32xf32>
    %558 = vector.extract_strided_slice %556 {offsets = [0, 0], sizes = [2, 32], strides = [1, 1]} : vector<2x96xf32> to vector<2x32xf32>
    %559 = arith.addf %557, %558 : vector<2x32xf32>
    %560 = arith.negf %559 : vector<2x32xf32>
    %561 = math.exp %560 : vector<2x32xf32>
    %cst_152 = arith.constant 1.000000e+00 : f32
    %562 = vector.broadcast %cst_152 : f32 to vector<2x32xf32>
    %563 = arith.addf %562, %561 : vector<2x32xf32>
    %564 = arith.divf %562, %563 : vector<2x32xf32>
    %565 = vector.extract_strided_slice %555 {offsets = [0, 32], sizes = [2, 32], strides = [1, 1]} : vector<2x96xf32> to vector<2x32xf32>
    %566 = vector.extract_strided_slice %556 {offsets = [0, 32], sizes = [2, 32], strides = [1, 1]} : vector<2x96xf32> to vector<2x32xf32>
    %567 = arith.addf %565, %566 : vector<2x32xf32>
    %568 = arith.negf %567 : vector<2x32xf32>
    %569 = math.exp %568 : vector<2x32xf32>
    %cst_153 = arith.constant 1.000000e+00 : f32
    %570 = vector.broadcast %cst_153 : f32 to vector<2x32xf32>
    %571 = arith.addf %570, %569 : vector<2x32xf32>
    %572 = arith.divf %570, %571 : vector<2x32xf32>
    %573 = vector.extract_strided_slice %555 {offsets = [0, 64], sizes = [2, 32], strides = [1, 1]} : vector<2x96xf32> to vector<2x32xf32>
    %574 = vector.extract_strided_slice %556 {offsets = [0, 64], sizes = [2, 32], strides = [1, 1]} : vector<2x96xf32> to vector<2x32xf32>
    %575 = vector.broadcast %25 : vector<1x32xf32> to vector<2x32xf32>
    %576 = arith.addf %574, %575 : vector<2x32xf32>
    %577 = arith.mulf %564, %576 : vector<2x32xf32>
    %578 = arith.addf %573, %577 : vector<2x32xf32>
    %579 = math.tanh %578 : vector<2x32xf32>
    %cst_154 = arith.constant 1.000000e+00 : f32
    %580 = vector.broadcast %cst_154 : f32 to vector<2x32xf32>
    %581 = arith.subf %580, %572 : vector<2x32xf32>
    %582 = arith.mulf %581, %579 : vector<2x32xf32>
    %583 = arith.mulf %572, %554 : vector<2x32xf32>
    %584 = arith.addf %582, %583 : vector<2x32xf32>
    %c4_155 = arith.constant 4 : index
    %c0_156 = arith.constant 0 : index
    %585 = vector.load %arg29[%c4_155, %c0_156] : memref<10x96xf32, #tpu.memory_space<vmem>>, vector<2x96xf32>
    %cst_157 = arith.constant dense<0.000000e+00> : vector<2x96xf32>
    %586 = tpu.matmul %584, %24, %cst_157 {dimension_numbers = #tpu.dot_dimension_numbers<[1], [0], [0], [1], [0, 0, 1, 1], [], []>} : vector<2x32xf32>, vector<32x96xf32>, vector<2x96xf32> -> vector<2x96xf32>
    %587 = vector.extract_strided_slice %585 {offsets = [0, 0], sizes = [2, 32], strides = [1, 1]} : vector<2x96xf32> to vector<2x32xf32>
    %588 = vector.extract_strided_slice %586 {offsets = [0, 0], sizes = [2, 32], strides = [1, 1]} : vector<2x96xf32> to vector<2x32xf32>
    %589 = arith.addf %587, %588 : vector<2x32xf32>
    %590 = arith.negf %589 : vector<2x32xf32>
    %591 = math.exp %590 : vector<2x32xf32>
    %cst_158 = arith.constant 1.000000e+00 : f32
    %592 = vector.broadcast %cst_158 : f32 to vector<2x32xf32>
    %593 = arith.addf %592, %591 : vector<2x32xf32>
    %594 = arith.divf %592, %593 : vector<2x32xf32>
    %595 = vector.extract_strided_slice %585 {offsets = [0, 32], sizes = [2, 32], strides = [1, 1]} : vector<2x96xf32> to vector<2x32xf32>
    %596 = vector.extract_strided_slice %586 {offsets = [0, 32], sizes = [2, 32], strides = [1, 1]} : vector<2x96xf32> to vector<2x32xf32>
    %597 = arith.addf %595, %596 : vector<2x32xf32>
    %598 = arith.negf %597 : vector<2x32xf32>
    %599 = math.exp %598 : vector<2x32xf32>
    %cst_159 = arith.constant 1.000000e+00 : f32
    %600 = vector.broadcast %cst_159 : f32 to vector<2x32xf32>
    %601 = arith.addf %600, %599 : vector<2x32xf32>
    %602 = arith.divf %600, %601 : vector<2x32xf32>
    %603 = vector.extract_strided_slice %585 {offsets = [0, 64], sizes = [2, 32], strides = [1, 1]} : vector<2x96xf32> to vector<2x32xf32>
    %604 = vector.extract_strided_slice %586 {offsets = [0, 64], sizes = [2, 32], strides = [1, 1]} : vector<2x96xf32> to vector<2x32xf32>
    %605 = vector.broadcast %25 : vector<1x32xf32> to vector<2x32xf32>
    %606 = arith.addf %604, %605 : vector<2x32xf32>
    %607 = arith.mulf %594, %606 : vector<2x32xf32>
    %608 = arith.addf %603, %607 : vector<2x32xf32>
    %609 = math.tanh %608 : vector<2x32xf32>
    %cst_160 = arith.constant 1.000000e+00 : f32
    %610 = vector.broadcast %cst_160 : f32 to vector<2x32xf32>
    %611 = arith.subf %610, %602 : vector<2x32xf32>
    %612 = arith.mulf %611, %609 : vector<2x32xf32>
    %613 = arith.mulf %602, %584 : vector<2x32xf32>
    %614 = arith.addf %612, %613 : vector<2x32xf32>
    %c6_161 = arith.constant 6 : index
    %c0_162 = arith.constant 0 : index
    %615 = vector.load %arg29[%c6_161, %c0_162] : memref<10x96xf32, #tpu.memory_space<vmem>>, vector<2x96xf32>
    %cst_163 = arith.constant dense<0.000000e+00> : vector<2x96xf32>
    %616 = tpu.matmul %614, %24, %cst_163 {dimension_numbers = #tpu.dot_dimension_numbers<[1], [0], [0], [1], [0, 0, 1, 1], [], []>} : vector<2x32xf32>, vector<32x96xf32>, vector<2x96xf32> -> vector<2x96xf32>
    %617 = vector.extract_strided_slice %615 {offsets = [0, 0], sizes = [2, 32], strides = [1, 1]} : vector<2x96xf32> to vector<2x32xf32>
    %618 = vector.extract_strided_slice %616 {offsets = [0, 0], sizes = [2, 32], strides = [1, 1]} : vector<2x96xf32> to vector<2x32xf32>
    %619 = arith.addf %617, %618 : vector<2x32xf32>
    %620 = arith.negf %619 : vector<2x32xf32>
    %621 = math.exp %620 : vector<2x32xf32>
    %cst_164 = arith.constant 1.000000e+00 : f32
    %622 = vector.broadcast %cst_164 : f32 to vector<2x32xf32>
    %623 = arith.addf %622, %621 : vector<2x32xf32>
    %624 = arith.divf %622, %623 : vector<2x32xf32>
    %625 = vector.extract_strided_slice %615 {offsets = [0, 32], sizes = [2, 32], strides = [1, 1]} : vector<2x96xf32> to vector<2x32xf32>
    %626 = vector.extract_strided_slice %616 {offsets = [0, 32], sizes = [2, 32], strides = [1, 1]} : vector<2x96xf32> to vector<2x32xf32>
    %627 = arith.addf %625, %626 : vector<2x32xf32>
    %628 = arith.negf %627 : vector<2x32xf32>
    %629 = math.exp %628 : vector<2x32xf32>
    %cst_165 = arith.constant 1.000000e+00 : f32
    %630 = vector.broadcast %cst_165 : f32 to vector<2x32xf32>
    %631 = arith.addf %630, %629 : vector<2x32xf32>
    %632 = arith.divf %630, %631 : vector<2x32xf32>
    %633 = vector.extract_strided_slice %615 {offsets = [0, 64], sizes = [2, 32], strides = [1, 1]} : vector<2x96xf32> to vector<2x32xf32>
    %634 = vector.extract_strided_slice %616 {offsets = [0, 64], sizes = [2, 32], strides = [1, 1]} : vector<2x96xf32> to vector<2x32xf32>
    %635 = vector.broadcast %25 : vector<1x32xf32> to vector<2x32xf32>
    %636 = arith.addf %634, %635 : vector<2x32xf32>
    %637 = arith.mulf %624, %636 : vector<2x32xf32>
    %638 = arith.addf %633, %637 : vector<2x32xf32>
    %639 = math.tanh %638 : vector<2x32xf32>
    %cst_166 = arith.constant 1.000000e+00 : f32
    %640 = vector.broadcast %cst_166 : f32 to vector<2x32xf32>
    %641 = arith.subf %640, %632 : vector<2x32xf32>
    %642 = arith.mulf %641, %639 : vector<2x32xf32>
    %643 = arith.mulf %632, %614 : vector<2x32xf32>
    %644 = arith.addf %642, %643 : vector<2x32xf32>
    %c8_167 = arith.constant 8 : index
    %c0_168 = arith.constant 0 : index
    %645 = vector.load %arg29[%c8_167, %c0_168] : memref<10x96xf32, #tpu.memory_space<vmem>>, vector<2x96xf32>
    %cst_169 = arith.constant dense<0.000000e+00> : vector<2x96xf32>
    %646 = tpu.matmul %644, %24, %cst_169 {dimension_numbers = #tpu.dot_dimension_numbers<[1], [0], [0], [1], [0, 0, 1, 1], [], []>} : vector<2x32xf32>, vector<32x96xf32>, vector<2x96xf32> -> vector<2x96xf32>
    %647 = vector.extract_strided_slice %645 {offsets = [0, 0], sizes = [2, 32], strides = [1, 1]} : vector<2x96xf32> to vector<2x32xf32>
    %648 = vector.extract_strided_slice %646 {offsets = [0, 0], sizes = [2, 32], strides = [1, 1]} : vector<2x96xf32> to vector<2x32xf32>
    %649 = arith.addf %647, %648 : vector<2x32xf32>
    %650 = arith.negf %649 : vector<2x32xf32>
    %651 = math.exp %650 : vector<2x32xf32>
    %cst_170 = arith.constant 1.000000e+00 : f32
    %652 = vector.broadcast %cst_170 : f32 to vector<2x32xf32>
    %653 = arith.addf %652, %651 : vector<2x32xf32>
    %654 = arith.divf %652, %653 : vector<2x32xf32>
    %655 = vector.extract_strided_slice %645 {offsets = [0, 32], sizes = [2, 32], strides = [1, 1]} : vector<2x96xf32> to vector<2x32xf32>
    %656 = vector.extract_strided_slice %646 {offsets = [0, 32], sizes = [2, 32], strides = [1, 1]} : vector<2x96xf32> to vector<2x32xf32>
    %657 = arith.addf %655, %656 : vector<2x32xf32>
    %658 = arith.negf %657 : vector<2x32xf32>
    %659 = math.exp %658 : vector<2x32xf32>
    %cst_171 = arith.constant 1.000000e+00 : f32
    %660 = vector.broadcast %cst_171 : f32 to vector<2x32xf32>
    %661 = arith.addf %660, %659 : vector<2x32xf32>
    %662 = arith.divf %660, %661 : vector<2x32xf32>
    %663 = vector.extract_strided_slice %645 {offsets = [0, 64], sizes = [2, 32], strides = [1, 1]} : vector<2x96xf32> to vector<2x32xf32>
    %664 = vector.extract_strided_slice %646 {offsets = [0, 64], sizes = [2, 32], strides = [1, 1]} : vector<2x96xf32> to vector<2x32xf32>
    %665 = vector.broadcast %25 : vector<1x32xf32> to vector<2x32xf32>
    %666 = arith.addf %664, %665 : vector<2x32xf32>
    %667 = arith.mulf %654, %666 : vector<2x32xf32>
    %668 = arith.addf %663, %667 : vector<2x32xf32>
    %669 = math.tanh %668 : vector<2x32xf32>
    %cst_172 = arith.constant 1.000000e+00 : f32
    %670 = vector.broadcast %cst_172 : f32 to vector<2x32xf32>
    %671 = arith.subf %670, %662 : vector<2x32xf32>
    %672 = arith.mulf %671, %669 : vector<2x32xf32>
    %673 = arith.mulf %662, %644 : vector<2x32xf32>
    %674 = arith.addf %672, %673 : vector<2x32xf32>
    %c0_173 = arith.constant 0 : index
    %c0_174 = arith.constant 0 : index
    %675 = vector.load %arg30[%c0_173, %c0_174] : memref<16x32xf32, #tpu.memory_space<vmem>>, vector<16x32xf32>
    %c0_175 = arith.constant 0 : index
    %c0_176 = arith.constant 0 : index
    %676 = vector.load %arg18[%c0_175, %c0_176] : memref<32x64xf32, #tpu.memory_space<vmem>>, vector<32x64xf32>
    %cst_177 = arith.constant dense<0.000000e+00> : vector<16x64xf32>
    %677 = tpu.matmul %675, %676, %cst_177 {dimension_numbers = #tpu.dot_dimension_numbers<[1], [0], [0], [1], [0, 0, 1, 1], [], []>} : vector<16x32xf32>, vector<32x64xf32>, vector<16x64xf32> -> vector<16x64xf32>
    %c0_178 = arith.constant 0 : index
    %c0_179 = arith.constant 0 : index
    %678 = vector.load %arg20[%c0_178, %c0_179] : memref<1x64xf32, #tpu.memory_space<vmem>>, vector<1x64xf32>
    %679 = vector.broadcast %678 : vector<1x64xf32> to vector<16x64xf32>
    %680 = arith.addf %677, %679 : vector<16x64xf32>
    %c0_180 = arith.constant 0 : index
    %c0_181 = arith.constant 0 : index
    %681 = vector.load %arg31[%c0_180, %c0_181] : memref<16x64xf32, #tpu.memory_space<vmem>>, vector<16x64xf32>
    tpu.vector_store %arg31[%c0_180, %c0_181], %680 {strides = array<i32>} : memref<16x64xf32, #tpu.memory_space<vmem>>, vector<16x64xf32>,
    %c0_182 = arith.constant 0 : index
    %c0_183 = arith.constant 0 : index
    %682 = vector.load %arg30[%c0_182, %c0_183] : memref<16x32xf32, #tpu.memory_space<vmem>>, vector<2x32xf32>
    %683 = arith.mulf %682, %674 : vector<2x32xf32>
    %c0_184 = arith.constant 0 : index
    %c0_185 = arith.constant 0 : index
    %684 = vector.load %arg32[%c0_184, %c0_185] : memref<16x64xf32, #tpu.memory_space<vmem>>, vector<2x32xf32>
    tpu.vector_store %arg32[%c0_184, %c0_185], %683 {strides = array<i32>} : memref<16x64xf32, #tpu.memory_space<vmem>>, vector<2x32xf32>,
    %685 = arith.subf %682, %674 : vector<2x32xf32>
    %686 = math.absf %685 : vector<2x32xf32>
    %c0_186 = arith.constant 0 : index
    %c32 = arith.constant 32 : index
    %687 = vector.load %arg32[%c0_186, %c32] : memref<16x64xf32, #tpu.memory_space<vmem>>, vector<2x32xf32>
    tpu.vector_store %arg32[%c0_186, %c32], %686 {strides = array<i32>} : memref<16x64xf32, #tpu.memory_space<vmem>>, vector<2x32xf32>,
    %c2_187 = arith.constant 2 : index
    %c0_188 = arith.constant 0 : index
    %688 = vector.load %arg30[%c2_187, %c0_188] : memref<16x32xf32, #tpu.memory_space<vmem>>, vector<2x32xf32>
    %689 = arith.mulf %688, %674 : vector<2x32xf32>
    %c2_189 = arith.constant 2 : index
    %c0_190 = arith.constant 0 : index
    %690 = vector.load %arg32[%c2_189, %c0_190] : memref<16x64xf32, #tpu.memory_space<vmem>>, vector<2x32xf32>
    tpu.vector_store %arg32[%c2_189, %c0_190], %689 {strides = array<i32>} : memref<16x64xf32, #tpu.memory_space<vmem>>, vector<2x32xf32>,
    %691 = arith.subf %688, %674 : vector<2x32xf32>
    %692 = math.absf %691 : vector<2x32xf32>
    %c2_191 = arith.constant 2 : index
    %c32_192 = arith.constant 32 : index
    %693 = vector.load %arg32[%c2_191, %c32_192] : memref<16x64xf32, #tpu.memory_space<vmem>>, vector<2x32xf32>
    tpu.vector_store %arg32[%c2_191, %c32_192], %692 {strides = array<i32>} : memref<16x64xf32, #tpu.memory_space<vmem>>, vector<2x32xf32>,
    %c4_193 = arith.constant 4 : index
    %c0_194 = arith.constant 0 : index
    %694 = vector.load %arg30[%c4_193, %c0_194] : memref<16x32xf32, #tpu.memory_space<vmem>>, vector<2x32xf32>
    %695 = arith.mulf %694, %674 : vector<2x32xf32>
    %c4_195 = arith.constant 4 : index
    %c0_196 = arith.constant 0 : index
    %696 = vector.load %arg32[%c4_195, %c0_196] : memref<16x64xf32, #tpu.memory_space<vmem>>, vector<2x32xf32>
    tpu.vector_store %arg32[%c4_195, %c0_196], %695 {strides = array<i32>} : memref<16x64xf32, #tpu.memory_space<vmem>>, vector<2x32xf32>,
    %697 = arith.subf %694, %674 : vector<2x32xf32>
    %698 = math.absf %697 : vector<2x32xf32>
    %c4_197 = arith.constant 4 : index
    %c32_198 = arith.constant 32 : index
    %699 = vector.load %arg32[%c4_197, %c32_198] : memref<16x64xf32, #tpu.memory_space<vmem>>, vector<2x32xf32>
    tpu.vector_store %arg32[%c4_197, %c32_198], %698 {strides = array<i32>} : memref<16x64xf32, #tpu.memory_space<vmem>>, vector<2x32xf32>,
    %c6_199 = arith.constant 6 : index
    %c0_200 = arith.constant 0 : index
    %700 = vector.load %arg30[%c6_199, %c0_200] : memref<16x32xf32, #tpu.memory_space<vmem>>, vector<2x32xf32>
    %701 = arith.mulf %700, %674 : vector<2x32xf32>
    %c6_201 = arith.constant 6 : index
    %c0_202 = arith.constant 0 : index
    %702 = vector.load %arg32[%c6_201, %c0_202] : memref<16x64xf32, #tpu.memory_space<vmem>>, vector<2x32xf32>
    tpu.vector_store %arg32[%c6_201, %c0_202], %701 {strides = array<i32>} : memref<16x64xf32, #tpu.memory_space<vmem>>, vector<2x32xf32>,
    %703 = arith.subf %700, %674 : vector<2x32xf32>
    %704 = math.absf %703 : vector<2x32xf32>
    %c6_203 = arith.constant 6 : index
    %c32_204 = arith.constant 32 : index
    %705 = vector.load %arg32[%c6_203, %c32_204] : memref<16x64xf32, #tpu.memory_space<vmem>>, vector<2x32xf32>
    tpu.vector_store %arg32[%c6_203, %c32_204], %704 {strides = array<i32>} : memref<16x64xf32, #tpu.memory_space<vmem>>, vector<2x32xf32>,
    %c8_205 = arith.constant 8 : index
    %c0_206 = arith.constant 0 : index
    %706 = vector.load %arg30[%c8_205, %c0_206] : memref<16x32xf32, #tpu.memory_space<vmem>>, vector<2x32xf32>
    %707 = arith.mulf %706, %674 : vector<2x32xf32>
    %c8_207 = arith.constant 8 : index
    %c0_208 = arith.constant 0 : index
    %708 = vector.load %arg32[%c8_207, %c0_208] : memref<16x64xf32, #tpu.memory_space<vmem>>, vector<2x32xf32>
    tpu.vector_store %arg32[%c8_207, %c0_208], %707 {strides = array<i32>} : memref<16x64xf32, #tpu.memory_space<vmem>>, vector<2x32xf32>,
    %709 = arith.subf %706, %674 : vector<2x32xf32>
    %710 = math.absf %709 : vector<2x32xf32>
    %c8_209 = arith.constant 8 : index
    %c32_210 = arith.constant 32 : index
    %711 = vector.load %arg32[%c8_209, %c32_210] : memref<16x64xf32, #tpu.memory_space<vmem>>, vector<2x32xf32>
    tpu.vector_store %arg32[%c8_209, %c32_210], %710 {strides = array<i32>} : memref<16x64xf32, #tpu.memory_space<vmem>>, vector<2x32xf32>,
    %c10_211 = arith.constant 10 : index
    %c0_212 = arith.constant 0 : index
    %712 = vector.load %arg30[%c10_211, %c0_212] : memref<16x32xf32, #tpu.memory_space<vmem>>, vector<2x32xf32>
    %713 = arith.mulf %712, %674 : vector<2x32xf32>
    %c10_213 = arith.constant 10 : index
    %c0_214 = arith.constant 0 : index
    %714 = vector.load %arg32[%c10_213, %c0_214] : memref<16x64xf32, #tpu.memory_space<vmem>>, vector<2x32xf32>
    tpu.vector_store %arg32[%c10_213, %c0_214], %713 {strides = array<i32>} : memref<16x64xf32, #tpu.memory_space<vmem>>, vector<2x32xf32>,
    %715 = arith.subf %712, %674 : vector<2x32xf32>
    %716 = math.absf %715 : vector<2x32xf32>
    %c10_215 = arith.constant 10 : index
    %c32_216 = arith.constant 32 : index
    %717 = vector.load %arg32[%c10_215, %c32_216] : memref<16x64xf32, #tpu.memory_space<vmem>>, vector<2x32xf32>
    tpu.vector_store %arg32[%c10_215, %c32_216], %716 {strides = array<i32>} : memref<16x64xf32, #tpu.memory_space<vmem>>, vector<2x32xf32>,
    %c12_217 = arith.constant 12 : index
    %c0_218 = arith.constant 0 : index
    %718 = vector.load %arg30[%c12_217, %c0_218] : memref<16x32xf32, #tpu.memory_space<vmem>>, vector<2x32xf32>
    %719 = arith.mulf %718, %674 : vector<2x32xf32>
    %c12_219 = arith.constant 12 : index
    %c0_220 = arith.constant 0 : index
    %720 = vector.load %arg32[%c12_219, %c0_220] : memref<16x64xf32, #tpu.memory_space<vmem>>, vector<2x32xf32>
    tpu.vector_store %arg32[%c12_219, %c0_220], %719 {strides = array<i32>} : memref<16x64xf32, #tpu.memory_space<vmem>>, vector<2x32xf32>,
    %721 = arith.subf %718, %674 : vector<2x32xf32>
    %722 = math.absf %721 : vector<2x32xf32>
    %c12_221 = arith.constant 12 : index
    %c32_222 = arith.constant 32 : index
    %723 = vector.load %arg32[%c12_221, %c32_222] : memref<16x64xf32, #tpu.memory_space<vmem>>, vector<2x32xf32>
    tpu.vector_store %arg32[%c12_221, %c32_222], %722 {strides = array<i32>} : memref<16x64xf32, #tpu.memory_space<vmem>>, vector<2x32xf32>,
    %c14_223 = arith.constant 14 : index
    %c0_224 = arith.constant 0 : index
    %724 = vector.load %arg30[%c14_223, %c0_224] : memref<16x32xf32, #tpu.memory_space<vmem>>, vector<2x32xf32>
    %725 = arith.mulf %724, %674 : vector<2x32xf32>
    %c14_225 = arith.constant 14 : index
    %c0_226 = arith.constant 0 : index
    %726 = vector.load %arg32[%c14_225, %c0_226] : memref<16x64xf32, #tpu.memory_space<vmem>>, vector<2x32xf32>
    tpu.vector_store %arg32[%c14_225, %c0_226], %725 {strides = array<i32>} : memref<16x64xf32, #tpu.memory_space<vmem>>, vector<2x32xf32>,
    %727 = arith.subf %724, %674 : vector<2x32xf32>
    %728 = math.absf %727 : vector<2x32xf32>
    %c14_227 = arith.constant 14 : index
    %c32_228 = arith.constant 32 : index
    %729 = vector.load %arg32[%c14_227, %c32_228] : memref<16x64xf32, #tpu.memory_space<vmem>>, vector<2x32xf32>
    tpu.vector_store %arg32[%c14_227, %c32_228], %728 {strides = array<i32>} : memref<16x64xf32, #tpu.memory_space<vmem>>, vector<2x32xf32>,
    %c0_229 = arith.constant 0 : index
    %c0_230 = arith.constant 0 : index
    %730 = vector.load %arg32[%c0_229, %c0_230] : memref<16x64xf32, #tpu.memory_space<vmem>>, vector<16x64xf32>
    %c0_231 = arith.constant 0 : index
    %c0_232 = arith.constant 0 : index
    %731 = vector.load %arg14[%c0_231, %c0_232] : memref<64x32xf32, #tpu.memory_space<vmem>>, vector<64x32xf32>
    %cst_233 = arith.constant dense<0.000000e+00> : vector<16x32xf32>
    %732 = tpu.matmul %730, %731, %cst_233 {dimension_numbers = #tpu.dot_dimension_numbers<[1], [0], [0], [1], [0, 0, 1, 1], [], []>} : vector<16x64xf32>, vector<64x32xf32>, vector<16x32xf32> -> vector<16x32xf32>
    %c0_234 = arith.constant 0 : index
    %c0_235 = arith.constant 0 : index
    %733 = vector.load %arg16[%c0_234, %c0_235] : memref<1x32xf32, #tpu.memory_space<vmem>>, vector<1x32xf32>
    %734 = vector.broadcast %733 : vector<1x32xf32> to vector<16x32xf32>
    %735 = arith.addf %732, %734 : vector<16x32xf32>
    %c0_236 = arith.constant 0 : index
    %c0_237 = arith.constant 0 : index
    %736 = vector.load %arg24[%c0_236, %c0_237] : memref<32x32xf32, #tpu.memory_space<vmem>>, vector<32x32xf32>
    %cst_238 = arith.constant dense<0.000000e+00> : vector<2x32xf32>
    %737 = tpu.matmul %674, %736, %cst_238 {dimension_numbers = #tpu.dot_dimension_numbers<[1], [0], [0], [1], [0, 0, 1, 1], [], []>} : vector<2x32xf32>, vector<32x32xf32>, vector<2x32xf32> -> vector<2x32xf32>
    %c0_239 = arith.constant 0 : index
    %c0_240 = arith.constant 0 : index
    %738 = vector.load %arg25[%c0_239, %c0_240] : memref<1x32xf32, #tpu.memory_space<vmem>>, vector<1x32xf32>
    %739 = vector.broadcast %738 : vector<1x32xf32> to vector<2x32xf32>
    %740 = arith.addf %737, %739 : vector<2x32xf32>
    %c0_241 = arith.constant 0 : index
    %c0_242 = arith.constant 0 : index
    %741 = vector.load %arg17[%c0_241, %c0_242] : memref<1x32xf32, #tpu.memory_space<vmem>>, vector<1x32xf32>
    %c0_243 = arith.constant 0 : index
    %c0_244 = arith.constant 0 : index
    %742 = vector.load %arg19[%c0_243, %c0_244] : memref<32x64xf32, #tpu.memory_space<vmem>>, vector<32x64xf32>
    %c0_245 = arith.constant 0 : index
    %c0_246 = arith.constant 0 : index
    %743 = vector.load %arg21[%c0_245, %c0_246] : memref<1x32xf32, #tpu.memory_space<vmem>>, vector<1x32xf32>
    %c0_247 = arith.constant 0 : index
    %c0_248 = arith.constant 0 : index
    %744 = vector.load %arg22[%c0_247, %c0_248] : memref<32x32xf32, #tpu.memory_space<vmem>>, vector<32x32xf32>
    %c0_249 = arith.constant 0 : index
    %c0_250 = arith.constant 0 : index
    %745 = vector.load %arg23[%c0_249, %c0_250] : memref<32x32xf32, #tpu.memory_space<vmem>>, vector<32x32xf32>
    %c0_251 = arith.constant 0 : index
    %c0_252 = arith.constant 0 : index
    %746 = vector.load %arg30[%c0_251, %c0_252] : memref<16x32xf32, #tpu.memory_space<vmem>>, vector<2x32xf32>
    %747 = arith.mulf %746, %674 : vector<2x32xf32>
    %c0_253 = arith.constant 0 : index
    %c0_254 = arith.constant 0 : index
    %748 = vector.load %arg32[%c0_253, %c0_254] : memref<16x64xf32, #tpu.memory_space<vmem>>, vector<2x32xf32>
    tpu.vector_store %arg32[%c0_253, %c0_254], %747 {strides = array<i32>} : memref<16x64xf32, #tpu.memory_space<vmem>>, vector<2x32xf32>,
    %749 = arith.subf %746, %674 : vector<2x32xf32>
    %750 = math.absf %749 : vector<2x32xf32>
    %c0_255 = arith.constant 0 : index
    %c32_256 = arith.constant 32 : index
    %751 = vector.load %arg32[%c0_255, %c32_256] : memref<16x64xf32, #tpu.memory_space<vmem>>, vector<2x32xf32>
    tpu.vector_store %arg32[%c0_255, %c32_256], %750 {strides = array<i32>} : memref<16x64xf32, #tpu.memory_space<vmem>>, vector<2x32xf32>,
    %c2_257 = arith.constant 2 : index
    %c0_258 = arith.constant 0 : index
    %752 = vector.load %arg30[%c2_257, %c0_258] : memref<16x32xf32, #tpu.memory_space<vmem>>, vector<2x32xf32>
    %753 = arith.mulf %752, %674 : vector<2x32xf32>
    %c2_259 = arith.constant 2 : index
    %c0_260 = arith.constant 0 : index
    %754 = vector.load %arg32[%c2_259, %c0_260] : memref<16x64xf32, #tpu.memory_space<vmem>>, vector<2x32xf32>
    tpu.vector_store %arg32[%c2_259, %c0_260], %753 {strides = array<i32>} : memref<16x64xf32, #tpu.memory_space<vmem>>, vector<2x32xf32>,
    %755 = arith.subf %752, %674 : vector<2x32xf32>
    %756 = math.absf %755 : vector<2x32xf32>
    %c2_261 = arith.constant 2 : index
    %c32_262 = arith.constant 32 : index
    %757 = vector.load %arg32[%c2_261, %c32_262] : memref<16x64xf32, #tpu.memory_space<vmem>>, vector<2x32xf32>
    tpu.vector_store %arg32[%c2_261, %c32_262], %756 {strides = array<i32>} : memref<16x64xf32, #tpu.memory_space<vmem>>, vector<2x32xf32>,
    %c4_263 = arith.constant 4 : index
    %c0_264 = arith.constant 0 : index
    %758 = vector.load %arg30[%c4_263, %c0_264] : memref<16x32xf32, #tpu.memory_space<vmem>>, vector<2x32xf32>
    %759 = arith.mulf %758, %674 : vector<2x32xf32>
    %c4_265 = arith.constant 4 : index
    %c0_266 = arith.constant 0 : index
    %760 = vector.load %arg32[%c4_265, %c0_266] : memref<16x64xf32, #tpu.memory_space<vmem>>, vector<2x32xf32>
    tpu.vector_store %arg32[%c4_265, %c0_266], %759 {strides = array<i32>} : memref<16x64xf32, #tpu.memory_space<vmem>>, vector<2x32xf32>,
    %761 = arith.subf %758, %674 : vector<2x32xf32>
    %762 = math.absf %761 : vector<2x32xf32>
    %c4_267 = arith.constant 4 : index
    %c32_268 = arith.constant 32 : index
    %763 = vector.load %arg32[%c4_267, %c32_268] : memref<16x64xf32, #tpu.memory_space<vmem>>, vector<2x32xf32>
    tpu.vector_store %arg32[%c4_267, %c32_268], %762 {strides = array<i32>} : memref<16x64xf32, #tpu.memory_space<vmem>>, vector<2x32xf32>,
    %c6_269 = arith.constant 6 : index
    %c0_270 = arith.constant 0 : index
    %764 = vector.load %arg30[%c6_269, %c0_270] : memref<16x32xf32, #tpu.memory_space<vmem>>, vector<2x32xf32>
    %765 = arith.mulf %764, %674 : vector<2x32xf32>
    %c6_271 = arith.constant 6 : index
    %c0_272 = arith.constant 0 : index
    %766 = vector.load %arg32[%c6_271, %c0_272] : memref<16x64xf32, #tpu.memory_space<vmem>>, vector<2x32xf32>
    tpu.vector_store %arg32[%c6_271, %c0_272], %765 {strides = array<i32>} : memref<16x64xf32, #tpu.memory_space<vmem>>, vector<2x32xf32>,
    %767 = arith.subf %764, %674 : vector<2x32xf32>
    %768 = math.absf %767 : vector<2x32xf32>
    %c6_273 = arith.constant 6 : index
    %c32_274 = arith.constant 32 : index
    %769 = vector.load %arg32[%c6_273, %c32_274] : memref<16x64xf32, #tpu.memory_space<vmem>>, vector<2x32xf32>
    tpu.vector_store %arg32[%c6_273, %c32_274], %768 {strides = array<i32>} : memref<16x64xf32, #tpu.memory_space<vmem>>, vector<2x32xf32>,
    %c8_275 = arith.constant 8 : index
    %c0_276 = arith.constant 0 : index
    %770 = vector.load %arg30[%c8_275, %c0_276] : memref<16x32xf32, #tpu.memory_space<vmem>>, vector<2x32xf32>
    %771 = arith.mulf %770, %674 : vector<2x32xf32>
    %c8_277 = arith.constant 8 : index
    %c0_278 = arith.constant 0 : index
    %772 = vector.load %arg32[%c8_277, %c0_278] : memref<16x64xf32, #tpu.memory_space<vmem>>, vector<2x32xf32>
    tpu.vector_store %arg32[%c8_277, %c0_278], %771 {strides = array<i32>} : memref<16x64xf32, #tpu.memory_space<vmem>>, vector<2x32xf32>,
    %773 = arith.subf %770, %674 : vector<2x32xf32>
    %774 = math.absf %773 : vector<2x32xf32>
    %c8_279 = arith.constant 8 : index
    %c32_280 = arith.constant 32 : index
    %775 = vector.load %arg32[%c8_279, %c32_280] : memref<16x64xf32, #tpu.memory_space<vmem>>, vector<2x32xf32>
    tpu.vector_store %arg32[%c8_279, %c32_280], %774 {strides = array<i32>} : memref<16x64xf32, #tpu.memory_space<vmem>>, vector<2x32xf32>,
    %c10_281 = arith.constant 10 : index
    %c0_282 = arith.constant 0 : index
    %776 = vector.load %arg30[%c10_281, %c0_282] : memref<16x32xf32, #tpu.memory_space<vmem>>, vector<2x32xf32>
    %777 = arith.mulf %776, %674 : vector<2x32xf32>
    %c10_283 = arith.constant 10 : index
    %c0_284 = arith.constant 0 : index
    %778 = vector.load %arg32[%c10_283, %c0_284] : memref<16x64xf32, #tpu.memory_space<vmem>>, vector<2x32xf32>
    tpu.vector_store %arg32[%c10_283, %c0_284], %777 {strides = array<i32>} : memref<16x64xf32, #tpu.memory_space<vmem>>, vector<2x32xf32>,
    %779 = arith.subf %776, %674 : vector<2x32xf32>
    %780 = math.absf %779 : vector<2x32xf32>
    %c10_285 = arith.constant 10 : index
    %c32_286 = arith.constant 32 : index
    %781 = vector.load %arg32[%c10_285, %c32_286] : memref<16x64xf32, #tpu.memory_space<vmem>>, vector<2x32xf32>
    tpu.vector_store %arg32[%c10_285, %c32_286], %780 {strides = array<i32>} : memref<16x64xf32, #tpu.memory_space<vmem>>, vector<2x32xf32>,
    %c12_287 = arith.constant 12 : index
    %c0_288 = arith.constant 0 : index
    %782 = vector.load %arg30[%c12_287, %c0_288] : memref<16x32xf32, #tpu.memory_space<vmem>>, vector<2x32xf32>
    %783 = arith.mulf %782, %674 : vector<2x32xf32>
    %c12_289 = arith.constant 12 : index
    %c0_290 = arith.constant 0 : index
    %784 = vector.load %arg32[%c12_289, %c0_290] : memref<16x64xf32, #tpu.memory_space<vmem>>, vector<2x32xf32>
    tpu.vector_store %arg32[%c12_289, %c0_290], %783 {strides = array<i32>} : memref<16x64xf32, #tpu.memory_space<vmem>>, vector<2x32xf32>,
    %785 = arith.subf %782, %674 : vector<2x32xf32>
    %786 = math.absf %785 : vector<2x32xf32>
    %c12_291 = arith.constant 12 : index
    %c32_292 = arith.constant 32 : index
    %787 = vector.load %arg32[%c12_291, %c32_292] : memref<16x64xf32, #tpu.memory_space<vmem>>, vector<2x32xf32>
    tpu.vector_store %arg32[%c12_291, %c32_292], %786 {strides = array<i32>} : memref<16x64xf32, #tpu.memory_space<vmem>>, vector<2x32xf32>,
    %c14_293 = arith.constant 14 : index
    %c0_294 = arith.constant 0 : index
    %788 = vector.load %arg30[%c14_293, %c0_294] : memref<16x32xf32, #tpu.memory_space<vmem>>, vector<2x32xf32>
    %789 = arith.mulf %788, %674 : vector<2x32xf32>
    %c14_295 = arith.constant 14 : index
    %c0_296 = arith.constant 0 : index
    %790 = vector.load %arg32[%c14_295, %c0_296] : memref<16x64xf32, #tpu.memory_space<vmem>>, vector<2x32xf32>
    tpu.vector_store %arg32[%c14_295, %c0_296], %789 {strides = array<i32>} : memref<16x64xf32, #tpu.memory_space<vmem>>, vector<2x32xf32>,
    %791 = arith.subf %788, %674 : vector<2x32xf32>
    %792 = math.absf %791 : vector<2x32xf32>
    %c14_297 = arith.constant 14 : index
    %c32_298 = arith.constant 32 : index
    %793 = vector.load %arg32[%c14_297, %c32_298] : memref<16x64xf32, #tpu.memory_space<vmem>>, vector<2x32xf32>
    tpu.vector_store %arg32[%c14_297, %c32_298], %792 {strides = array<i32>} : memref<16x64xf32, #tpu.memory_space<vmem>>, vector<2x32xf32>,
    %c0_299 = arith.constant 0 : index
    %c0_300 = arith.constant 0 : index
    %794 = vector.load %arg32[%c0_299, %c0_300] : memref<16x64xf32, #tpu.memory_space<vmem>>, vector<16x64xf32>
    %c0_301 = arith.constant 0 : index
    %c0_302 = arith.constant 0 : index
    %795 = vector.load %arg15[%c0_301, %c0_302] : memref<64x32xf32, #tpu.memory_space<vmem>>, vector<64x32xf32>
    %cst_303 = arith.constant dense<0.000000e+00> : vector<16x32xf32>
    %796 = tpu.matmul %794, %795, %cst_303 {dimension_numbers = #tpu.dot_dimension_numbers<[1], [0], [0], [1], [0, 0, 1, 1], [], []>} : vector<16x64xf32>, vector<64x32xf32>, vector<16x32xf32> -> vector<16x32xf32>
    %797 = arith.addf %735, %796 : vector<16x32xf32>
    %798 = math.tanh %797 : vector<16x32xf32>
    %799 = vector.broadcast %741 : vector<1x32xf32> to vector<16x32xf32>
    %800 = arith.mulf %798, %799 : vector<16x32xf32>
    %cst_304 = arith.constant dense<0.000000e+00> : vector<16xf32>
    %801 = vector.multi_reduction <add>, %800, %cst_304 [1] : vector<16x32xf32> to vector<16xf32>
    %802 = vector.shape_cast %801 : vector<16xf32> to vector<16x1xf32>
    %c0_305 = arith.constant 0 : index
    %c0_306 = arith.constant 0 : index
    %803 = vector.load %arg33[%c0_305, %c0_306] : memref<16x1xf32, #tpu.memory_space<vmem>>, vector<16x1xf32>
    tpu.vector_store %arg33[%c0_305, %c0_306], %802 {strides = array<i32>} : memref<16x1xf32, #tpu.memory_space<vmem>>, vector<16x1xf32>,
    %c0_307 = arith.constant 0 : index
    %c0_308 = arith.constant 0 : index
    %804 = vector.load %arg33[%c0_307, %c0_308] : memref<16x1xf32, #tpu.memory_space<vmem>>, vector<2x1xf32>
    %c0_309 = arith.constant 0 : index
    %c0_310 = arith.constant 0 : index
    %c0_311 = arith.constant 0 : index
    %805 = vector.load %arg34[%c0_309, %c0_310, %c0_311] : memref<8x2x1xf32, #tpu.memory_space<vmem>>, vector<1x2x1xf32>
    %806 = vector.shape_cast %805 : vector<1x2x1xf32> to vector<2x1xf32>
    %807 = vector.shape_cast %804 : vector<2x1xf32> to vector<1x2x1xf32>
    tpu.vector_store %arg34[%c0_309, %c0_310, %c0_311], %807 {strides = array<i32>} : memref<8x2x1xf32, #tpu.memory_space<vmem>>, vector<1x2x1xf32>,
    %c2_312 = arith.constant 2 : index
    %c0_313 = arith.constant 0 : index
    %808 = vector.load %arg33[%c2_312, %c0_313] : memref<16x1xf32, #tpu.memory_space<vmem>>, vector<2x1xf32>
    %c1 = arith.constant 1 : index
    %c0_314 = arith.constant 0 : index
    %c0_315 = arith.constant 0 : index
    %809 = vector.load %arg34[%c1, %c0_314, %c0_315] : memref<8x2x1xf32, #tpu.memory_space<vmem>>, vector<1x2x1xf32>
    %810 = vector.shape_cast %809 : vector<1x2x1xf32> to vector<2x1xf32>
    %811 = vector.shape_cast %808 : vector<2x1xf32> to vector<1x2x1xf32>
    tpu.vector_store %arg34[%c1, %c0_314, %c0_315], %811 {strides = array<i32>} : memref<8x2x1xf32, #tpu.memory_space<vmem>>, vector<1x2x1xf32>,
    %c4_316 = arith.constant 4 : index
    %c0_317 = arith.constant 0 : index
    %812 = vector.load %arg33[%c4_316, %c0_317] : memref<16x1xf32, #tpu.memory_space<vmem>>, vector<2x1xf32>
    %c2_318 = arith.constant 2 : index
    %c0_319 = arith.constant 0 : index
    %c0_320 = arith.constant 0 : index
    %813 = vector.load %arg34[%c2_318, %c0_319, %c0_320] : memref<8x2x1xf32, #tpu.memory_space<vmem>>, vector<1x2x1xf32>
    %814 = vector.shape_cast %813 : vector<1x2x1xf32> to vector<2x1xf32>
    %815 = vector.shape_cast %812 : vector<2x1xf32> to vector<1x2x1xf32>
    tpu.vector_store %arg34[%c2_318, %c0_319, %c0_320], %815 {strides = array<i32>} : memref<8x2x1xf32, #tpu.memory_space<vmem>>, vector<1x2x1xf32>,
    %c6_321 = arith.constant 6 : index
    %c0_322 = arith.constant 0 : index
    %816 = vector.load %arg33[%c6_321, %c0_322] : memref<16x1xf32, #tpu.memory_space<vmem>>, vector<2x1xf32>
    %c3 = arith.constant 3 : index
    %c0_323 = arith.constant 0 : index
    %c0_324 = arith.constant 0 : index
    %817 = vector.load %arg34[%c3, %c0_323, %c0_324] : memref<8x2x1xf32, #tpu.memory_space<vmem>>, vector<1x2x1xf32>
    %818 = vector.shape_cast %817 : vector<1x2x1xf32> to vector<2x1xf32>
    %819 = vector.shape_cast %816 : vector<2x1xf32> to vector<1x2x1xf32>
    tpu.vector_store %arg34[%c3, %c0_323, %c0_324], %819 {strides = array<i32>} : memref<8x2x1xf32, #tpu.memory_space<vmem>>, vector<1x2x1xf32>,
    %c8_325 = arith.constant 8 : index
    %c0_326 = arith.constant 0 : index
    %820 = vector.load %arg33[%c8_325, %c0_326] : memref<16x1xf32, #tpu.memory_space<vmem>>, vector<2x1xf32>
    %c4_327 = arith.constant 4 : index
    %c0_328 = arith.constant 0 : index
    %c0_329 = arith.constant 0 : index
    %821 = vector.load %arg34[%c4_327, %c0_328, %c0_329] : memref<8x2x1xf32, #tpu.memory_space<vmem>>, vector<1x2x1xf32>
    %822 = vector.shape_cast %821 : vector<1x2x1xf32> to vector<2x1xf32>
    %823 = vector.shape_cast %820 : vector<2x1xf32> to vector<1x2x1xf32>
    tpu.vector_store %arg34[%c4_327, %c0_328, %c0_329], %823 {strides = array<i32>} : memref<8x2x1xf32, #tpu.memory_space<vmem>>, vector<1x2x1xf32>,
    %c10_330 = arith.constant 10 : index
    %c0_331 = arith.constant 0 : index
    %824 = vector.load %arg33[%c10_330, %c0_331] : memref<16x1xf32, #tpu.memory_space<vmem>>, vector<2x1xf32>
    %c5 = arith.constant 5 : index
    %c0_332 = arith.constant 0 : index
    %c0_333 = arith.constant 0 : index
    %825 = vector.load %arg34[%c5, %c0_332, %c0_333] : memref<8x2x1xf32, #tpu.memory_space<vmem>>, vector<1x2x1xf32>
    %826 = vector.shape_cast %825 : vector<1x2x1xf32> to vector<2x1xf32>
    %827 = vector.shape_cast %824 : vector<2x1xf32> to vector<1x2x1xf32>
    tpu.vector_store %arg34[%c5, %c0_332, %c0_333], %827 {strides = array<i32>} : memref<8x2x1xf32, #tpu.memory_space<vmem>>, vector<1x2x1xf32>,
    %c12_334 = arith.constant 12 : index
    %c0_335 = arith.constant 0 : index
    %828 = vector.load %arg33[%c12_334, %c0_335] : memref<16x1xf32, #tpu.memory_space<vmem>>, vector<2x1xf32>
    %c6_336 = arith.constant 6 : index
    %c0_337 = arith.constant 0 : index
    %c0_338 = arith.constant 0 : index
    %829 = vector.load %arg34[%c6_336, %c0_337, %c0_338] : memref<8x2x1xf32, #tpu.memory_space<vmem>>, vector<1x2x1xf32>
    %830 = vector.shape_cast %829 : vector<1x2x1xf32> to vector<2x1xf32>
    %831 = vector.shape_cast %828 : vector<2x1xf32> to vector<1x2x1xf32>
    tpu.vector_store %arg34[%c6_336, %c0_337, %c0_338], %831 {strides = array<i32>} : memref<8x2x1xf32, #tpu.memory_space<vmem>>, vector<1x2x1xf32>,
    %c14_339 = arith.constant 14 : index
    %c0_340 = arith.constant 0 : index
    %832 = vector.load %arg33[%c14_339, %c0_340] : memref<16x1xf32, #tpu.memory_space<vmem>>, vector<2x1xf32>
    %c7 = arith.constant 7 : index
    %c0_341 = arith.constant 0 : index
    %c0_342 = arith.constant 0 : index
    %833 = vector.load %arg34[%c7, %c0_341, %c0_342] : memref<8x2x1xf32, #tpu.memory_space<vmem>>, vector<1x2x1xf32>
    %834 = vector.shape_cast %833 : vector<1x2x1xf32> to vector<2x1xf32>
    %835 = vector.shape_cast %832 : vector<2x1xf32> to vector<1x2x1xf32>
    tpu.vector_store %arg34[%c7, %c0_341, %c0_342], %835 {strides = array<i32>} : memref<8x2x1xf32, #tpu.memory_space<vmem>>, vector<1x2x1xf32>,
    %c0_343 = arith.constant 0 : index
    %c0_344 = arith.constant 0 : index
    %c0_345 = arith.constant 0 : index
    %836 = vector.load %arg34[%c0_343, %c0_344, %c0_345] : memref<8x2x1xf32, #tpu.memory_space<vmem>>, vector<8x2x1xf32>
    %cst_346 = arith.constant dense<0xFF800000> : vector<2x1xf32>
    %837 = vector.multi_reduction <maximumf>, %836, %cst_346 [0] : vector<8x2x1xf32> to vector<2x1xf32>
    %838 = vector.shape_cast %837 : vector<2x1xf32> to vector<1x2x1xf32>
    %839 = vector.broadcast %838 : vector<1x2x1xf32> to vector<8x2x1xf32>
    %840 = arith.subf %836, %839 : vector<8x2x1xf32>
    %841 = math.exp %840 : vector<8x2x1xf32>
    %cst_347 = arith.constant dense<0.000000e+00> : vector<2x1xf32>
    %842 = vector.multi_reduction <add>, %841, %cst_347 [0] : vector<8x2x1xf32> to vector<2x1xf32>
    %843 = vector.shape_cast %842 : vector<2x1xf32> to vector<1x2x1xf32>
    %844 = tpu.reciprocal %843 {approx = true} : vector<1x2x1xf32> -> vector<1x2x1xf32>
    %845 = vector.broadcast %844 : vector<1x2x1xf32> to vector<8x2x1xf32>
    %846 = arith.mulf %841, %845 : vector<8x2x1xf32>
    %cst_348 = arith.constant 0.000000e+00 : f32
    %847 = vector.broadcast %cst_348 : f32 to vector<2x32xf32>
    %c0_349 = arith.constant 0 : index
    %c0_350 = arith.constant 0 : index
    %848 = vector.load %arg31[%c0_349, %c0_350] : memref<16x64xf32, #tpu.memory_space<vmem>>, vector<2x64xf32>
    %cst_351 = arith.constant dense<0.000000e+00> : vector<2x64xf32>
    %849 = tpu.matmul %847, %742, %cst_351 {dimension_numbers = #tpu.dot_dimension_numbers<[1], [0], [0], [1], [0, 0, 1, 1], [], []>} : vector<2x32xf32>, vector<32x64xf32>, vector<2x64xf32> -> vector<2x64xf32>
    %850 = vector.extract_strided_slice %848 {offsets = [0, 0], sizes = [2, 32], strides = [1, 1]} : vector<2x64xf32> to vector<2x32xf32>
    %851 = vector.extract_strided_slice %849 {offsets = [0, 0], sizes = [2, 32], strides = [1, 1]} : vector<2x64xf32> to vector<2x32xf32>
    %852 = arith.addf %850, %851 : vector<2x32xf32>
    %853 = arith.negf %852 : vector<2x32xf32>
    %854 = math.exp %853 : vector<2x32xf32>
    %cst_352 = arith.constant 1.000000e+00 : f32
    %855 = vector.broadcast %cst_352 : f32 to vector<2x32xf32>
    %856 = arith.addf %855, %854 : vector<2x32xf32>
    %857 = arith.divf %855, %856 : vector<2x32xf32>
    %858 = vector.extract_strided_slice %848 {offsets = [0, 32], sizes = [2, 32], strides = [1, 1]} : vector<2x64xf32> to vector<2x32xf32>
    %859 = vector.extract_strided_slice %849 {offsets = [0, 32], sizes = [2, 32], strides = [1, 1]} : vector<2x64xf32> to vector<2x32xf32>
    %860 = vector.broadcast %743 : vector<1x32xf32> to vector<2x32xf32>
    %861 = arith.addf %859, %860 : vector<2x32xf32>
    %862 = arith.mulf %857, %861 : vector<2x32xf32>
    %863 = arith.addf %858, %862 : vector<2x32xf32>
    %864 = math.tanh %863 : vector<2x32xf32>
    %865 = vector.extract_strided_slice %846 {offsets = [0, 0, 0], sizes = [1, 2, 1], strides = [1, 1, 1]} : vector<8x2x1xf32> to vector<1x2x1xf32>
    %866 = vector.shape_cast %865 : vector<1x2x1xf32> to vector<2x1xf32>
    %867 = vector.broadcast %866 : vector<2x1xf32> to vector<2x32xf32>
    %868 = arith.mulf %867, %864 : vector<2x32xf32>
    %cst_353 = arith.constant 1.000000e+00 : f32
    %869 = vector.broadcast %cst_353 : f32 to vector<2x1xf32>
    %870 = arith.subf %869, %866 : vector<2x1xf32>
    %871 = vector.broadcast %870 : vector<2x1xf32> to vector<2x32xf32>
    %872 = arith.mulf %871, %847 : vector<2x32xf32>
    %873 = arith.addf %868, %872 : vector<2x32xf32>
    %c2_354 = arith.constant 2 : index
    %c0_355 = arith.constant 0 : index
    %874 = vector.load %arg31[%c2_354, %c0_355] : memref<16x64xf32, #tpu.memory_space<vmem>>, vector<2x64xf32>
    %cst_356 = arith.constant dense<0.000000e+00> : vector<2x64xf32>
    %875 = tpu.matmul %873, %742, %cst_356 {dimension_numbers = #tpu.dot_dimension_numbers<[1], [0], [0], [1], [0, 0, 1, 1], [], []>} : vector<2x32xf32>, vector<32x64xf32>, vector<2x64xf32> -> vector<2x64xf32>
    %876 = vector.extract_strided_slice %874 {offsets = [0, 0], sizes = [2, 32], strides = [1, 1]} : vector<2x64xf32> to vector<2x32xf32>
    %877 = vector.extract_strided_slice %875 {offsets = [0, 0], sizes = [2, 32], strides = [1, 1]} : vector<2x64xf32> to vector<2x32xf32>
    %878 = arith.addf %876, %877 : vector<2x32xf32>
    %879 = arith.negf %878 : vector<2x32xf32>
    %880 = math.exp %879 : vector<2x32xf32>
    %cst_357 = arith.constant 1.000000e+00 : f32
    %881 = vector.broadcast %cst_357 : f32 to vector<2x32xf32>
    %882 = arith.addf %881, %880 : vector<2x32xf32>
    %883 = arith.divf %881, %882 : vector<2x32xf32>
    %884 = vector.extract_strided_slice %874 {offsets = [0, 32], sizes = [2, 32], strides = [1, 1]} : vector<2x64xf32> to vector<2x32xf32>
    %885 = vector.extract_strided_slice %875 {offsets = [0, 32], sizes = [2, 32], strides = [1, 1]} : vector<2x64xf32> to vector<2x32xf32>
    %886 = vector.broadcast %743 : vector<1x32xf32> to vector<2x32xf32>
    %887 = arith.addf %885, %886 : vector<2x32xf32>
    %888 = arith.mulf %883, %887 : vector<2x32xf32>
    %889 = arith.addf %884, %888 : vector<2x32xf32>
    %890 = math.tanh %889 : vector<2x32xf32>
    %891 = vector.extract_strided_slice %846 {offsets = [1, 0, 0], sizes = [1, 2, 1], strides = [1, 1, 1]} : vector<8x2x1xf32> to vector<1x2x1xf32>
    %892 = vector.shape_cast %891 : vector<1x2x1xf32> to vector<2x1xf32>
    %893 = vector.broadcast %892 : vector<2x1xf32> to vector<2x32xf32>
    %894 = arith.mulf %893, %890 : vector<2x32xf32>
    %cst_358 = arith.constant 1.000000e+00 : f32
    %895 = vector.broadcast %cst_358 : f32 to vector<2x1xf32>
    %896 = arith.subf %895, %892 : vector<2x1xf32>
    %897 = vector.broadcast %896 : vector<2x1xf32> to vector<2x32xf32>
    %898 = arith.mulf %897, %873 : vector<2x32xf32>
    %899 = arith.addf %894, %898 : vector<2x32xf32>
    %c4_359 = arith.constant 4 : index
    %c0_360 = arith.constant 0 : index
    %900 = vector.load %arg31[%c4_359, %c0_360] : memref<16x64xf32, #tpu.memory_space<vmem>>, vector<2x64xf32>
    %cst_361 = arith.constant dense<0.000000e+00> : vector<2x64xf32>
    %901 = tpu.matmul %899, %742, %cst_361 {dimension_numbers = #tpu.dot_dimension_numbers<[1], [0], [0], [1], [0, 0, 1, 1], [], []>} : vector<2x32xf32>, vector<32x64xf32>, vector<2x64xf32> -> vector<2x64xf32>
    %902 = vector.extract_strided_slice %900 {offsets = [0, 0], sizes = [2, 32], strides = [1, 1]} : vector<2x64xf32> to vector<2x32xf32>
    %903 = vector.extract_strided_slice %901 {offsets = [0, 0], sizes = [2, 32], strides = [1, 1]} : vector<2x64xf32> to vector<2x32xf32>
    %904 = arith.addf %902, %903 : vector<2x32xf32>
    %905 = arith.negf %904 : vector<2x32xf32>
    %906 = math.exp %905 : vector<2x32xf32>
    %cst_362 = arith.constant 1.000000e+00 : f32
    %907 = vector.broadcast %cst_362 : f32 to vector<2x32xf32>
    %908 = arith.addf %907, %906 : vector<2x32xf32>
    %909 = arith.divf %907, %908 : vector<2x32xf32>
    %910 = vector.extract_strided_slice %900 {offsets = [0, 32], sizes = [2, 32], strides = [1, 1]} : vector<2x64xf32> to vector<2x32xf32>
    %911 = vector.extract_strided_slice %901 {offsets = [0, 32], sizes = [2, 32], strides = [1, 1]} : vector<2x64xf32> to vector<2x32xf32>
    %912 = vector.broadcast %743 : vector<1x32xf32> to vector<2x32xf32>
    %913 = arith.addf %911, %912 : vector<2x32xf32>
    %914 = arith.mulf %909, %913 : vector<2x32xf32>
    %915 = arith.addf %910, %914 : vector<2x32xf32>
    %916 = math.tanh %915 : vector<2x32xf32>
    %917 = vector.extract_strided_slice %846 {offsets = [2, 0, 0], sizes = [1, 2, 1], strides = [1, 1, 1]} : vector<8x2x1xf32> to vector<1x2x1xf32>
    %918 = vector.shape_cast %917 : vector<1x2x1xf32> to vector<2x1xf32>
    %919 = vector.broadcast %918 : vector<2x1xf32> to vector<2x32xf32>
    %920 = arith.mulf %919, %916 : vector<2x32xf32>
    %cst_363 = arith.constant 1.000000e+00 : f32
    %921 = vector.broadcast %cst_363 : f32 to vector<2x1xf32>
    %922 = arith.subf %921, %918 : vector<2x1xf32>
    %923 = vector.broadcast %922 : vector<2x1xf32> to vector<2x32xf32>
    %924 = arith.mulf %923, %899 : vector<2x32xf32>
    %925 = arith.addf %920, %924 : vector<2x32xf32>
    %c6_364 = arith.constant 6 : index
    %c0_365 = arith.constant 0 : index
    %926 = vector.load %arg31[%c6_364, %c0_365] : memref<16x64xf32, #tpu.memory_space<vmem>>, vector<2x64xf32>
    %cst_366 = arith.constant dense<0.000000e+00> : vector<2x64xf32>
    %927 = tpu.matmul %925, %742, %cst_366 {dimension_numbers = #tpu.dot_dimension_numbers<[1], [0], [0], [1], [0, 0, 1, 1], [], []>} : vector<2x32xf32>, vector<32x64xf32>, vector<2x64xf32> -> vector<2x64xf32>
    %928 = vector.extract_strided_slice %926 {offsets = [0, 0], sizes = [2, 32], strides = [1, 1]} : vector<2x64xf32> to vector<2x32xf32>
    %929 = vector.extract_strided_slice %927 {offsets = [0, 0], sizes = [2, 32], strides = [1, 1]} : vector<2x64xf32> to vector<2x32xf32>
    %930 = arith.addf %928, %929 : vector<2x32xf32>
    %931 = arith.negf %930 : vector<2x32xf32>
    %932 = math.exp %931 : vector<2x32xf32>
    %cst_367 = arith.constant 1.000000e+00 : f32
    %933 = vector.broadcast %cst_367 : f32 to vector<2x32xf32>
    %934 = arith.addf %933, %932 : vector<2x32xf32>
    %935 = arith.divf %933, %934 : vector<2x32xf32>
    %936 = vector.extract_strided_slice %926 {offsets = [0, 32], sizes = [2, 32], strides = [1, 1]} : vector<2x64xf32> to vector<2x32xf32>
    %937 = vector.extract_strided_slice %927 {offsets = [0, 32], sizes = [2, 32], strides = [1, 1]} : vector<2x64xf32> to vector<2x32xf32>
    %938 = vector.broadcast %743 : vector<1x32xf32> to vector<2x32xf32>
    %939 = arith.addf %937, %938 : vector<2x32xf32>
    %940 = arith.mulf %935, %939 : vector<2x32xf32>
    %941 = arith.addf %936, %940 : vector<2x32xf32>
    %942 = math.tanh %941 : vector<2x32xf32>
    %943 = vector.extract_strided_slice %846 {offsets = [3, 0, 0], sizes = [1, 2, 1], strides = [1, 1, 1]} : vector<8x2x1xf32> to vector<1x2x1xf32>
    %944 = vector.shape_cast %943 : vector<1x2x1xf32> to vector<2x1xf32>
    %945 = vector.broadcast %944 : vector<2x1xf32> to vector<2x32xf32>
    %946 = arith.mulf %945, %942 : vector<2x32xf32>
    %cst_368 = arith.constant 1.000000e+00 : f32
    %947 = vector.broadcast %cst_368 : f32 to vector<2x1xf32>
    %948 = arith.subf %947, %944 : vector<2x1xf32>
    %949 = vector.broadcast %948 : vector<2x1xf32> to vector<2x32xf32>
    %950 = arith.mulf %949, %925 : vector<2x32xf32>
    %951 = arith.addf %946, %950 : vector<2x32xf32>
    %c8_369 = arith.constant 8 : index
    %c0_370 = arith.constant 0 : index
    %952 = vector.load %arg31[%c8_369, %c0_370] : memref<16x64xf32, #tpu.memory_space<vmem>>, vector<2x64xf32>
    %cst_371 = arith.constant dense<0.000000e+00> : vector<2x64xf32>
    %953 = tpu.matmul %951, %742, %cst_371 {dimension_numbers = #tpu.dot_dimension_numbers<[1], [0], [0], [1], [0, 0, 1, 1], [], []>} : vector<2x32xf32>, vector<32x64xf32>, vector<2x64xf32> -> vector<2x64xf32>
    %954 = vector.extract_strided_slice %952 {offsets = [0, 0], sizes = [2, 32], strides = [1, 1]} : vector<2x64xf32> to vector<2x32xf32>
    %955 = vector.extract_strided_slice %953 {offsets = [0, 0], sizes = [2, 32], strides = [1, 1]} : vector<2x64xf32> to vector<2x32xf32>
    %956 = arith.addf %954, %955 : vector<2x32xf32>
    %957 = arith.negf %956 : vector<2x32xf32>
    %958 = math.exp %957 : vector<2x32xf32>
    %cst_372 = arith.constant 1.000000e+00 : f32
    %959 = vector.broadcast %cst_372 : f32 to vector<2x32xf32>
    %960 = arith.addf %959, %958 : vector<2x32xf32>
    %961 = arith.divf %959, %960 : vector<2x32xf32>
    %962 = vector.extract_strided_slice %952 {offsets = [0, 32], sizes = [2, 32], strides = [1, 1]} : vector<2x64xf32> to vector<2x32xf32>
    %963 = vector.extract_strided_slice %953 {offsets = [0, 32], sizes = [2, 32], strides = [1, 1]} : vector<2x64xf32> to vector<2x32xf32>
    %964 = vector.broadcast %743 : vector<1x32xf32> to vector<2x32xf32>
    %965 = arith.addf %963, %964 : vector<2x32xf32>
    %966 = arith.mulf %961, %965 : vector<2x32xf32>
    %967 = arith.addf %962, %966 : vector<2x32xf32>
    %968 = math.tanh %967 : vector<2x32xf32>
    %969 = vector.extract_strided_slice %846 {offsets = [4, 0, 0], sizes = [1, 2, 1], strides = [1, 1, 1]} : vector<8x2x1xf32> to vector<1x2x1xf32>
    %970 = vector.shape_cast %969 : vector<1x2x1xf32> to vector<2x1xf32>
    %971 = vector.broadcast %970 : vector<2x1xf32> to vector<2x32xf32>
    %972 = arith.mulf %971, %968 : vector<2x32xf32>
    %cst_373 = arith.constant 1.000000e+00 : f32
    %973 = vector.broadcast %cst_373 : f32 to vector<2x1xf32>
    %974 = arith.subf %973, %970 : vector<2x1xf32>
    %975 = vector.broadcast %974 : vector<2x1xf32> to vector<2x32xf32>
    %976 = arith.mulf %975, %951 : vector<2x32xf32>
    %977 = arith.addf %972, %976 : vector<2x32xf32>
    %c10_374 = arith.constant 10 : index
    %c0_375 = arith.constant 0 : index
    %978 = vector.load %arg31[%c10_374, %c0_375] : memref<16x64xf32, #tpu.memory_space<vmem>>, vector<2x64xf32>
    %cst_376 = arith.constant dense<0.000000e+00> : vector<2x64xf32>
    %979 = tpu.matmul %977, %742, %cst_376 {dimension_numbers = #tpu.dot_dimension_numbers<[1], [0], [0], [1], [0, 0, 1, 1], [], []>} : vector<2x32xf32>, vector<32x64xf32>, vector<2x64xf32> -> vector<2x64xf32>
    %980 = vector.extract_strided_slice %978 {offsets = [0, 0], sizes = [2, 32], strides = [1, 1]} : vector<2x64xf32> to vector<2x32xf32>
    %981 = vector.extract_strided_slice %979 {offsets = [0, 0], sizes = [2, 32], strides = [1, 1]} : vector<2x64xf32> to vector<2x32xf32>
    %982 = arith.addf %980, %981 : vector<2x32xf32>
    %983 = arith.negf %982 : vector<2x32xf32>
    %984 = math.exp %983 : vector<2x32xf32>
    %cst_377 = arith.constant 1.000000e+00 : f32
    %985 = vector.broadcast %cst_377 : f32 to vector<2x32xf32>
    %986 = arith.addf %985, %984 : vector<2x32xf32>
    %987 = arith.divf %985, %986 : vector<2x32xf32>
    %988 = vector.extract_strided_slice %978 {offsets = [0, 32], sizes = [2, 32], strides = [1, 1]} : vector<2x64xf32> to vector<2x32xf32>
    %989 = vector.extract_strided_slice %979 {offsets = [0, 32], sizes = [2, 32], strides = [1, 1]} : vector<2x64xf32> to vector<2x32xf32>
    %990 = vector.broadcast %743 : vector<1x32xf32> to vector<2x32xf32>
    %991 = arith.addf %989, %990 : vector<2x32xf32>
    %992 = arith.mulf %987, %991 : vector<2x32xf32>
    %993 = arith.addf %988, %992 : vector<2x32xf32>
    %994 = math.tanh %993 : vector<2x32xf32>
    %995 = vector.extract_strided_slice %846 {offsets = [5, 0, 0], sizes = [1, 2, 1], strides = [1, 1, 1]} : vector<8x2x1xf32> to vector<1x2x1xf32>
    %996 = vector.shape_cast %995 : vector<1x2x1xf32> to vector<2x1xf32>
    %997 = vector.broadcast %996 : vector<2x1xf32> to vector<2x32xf32>
    %998 = arith.mulf %997, %994 : vector<2x32xf32>
    %cst_378 = arith.constant 1.000000e+00 : f32
    %999 = vector.broadcast %cst_378 : f32 to vector<2x1xf32>
    %1000 = arith.subf %999, %996 : vector<2x1xf32>
    %1001 = vector.broadcast %1000 : vector<2x1xf32> to vector<2x32xf32>
    %1002 = arith.mulf %1001, %977 : vector<2x32xf32>
    %1003 = arith.addf %998, %1002 : vector<2x32xf32>
    %c12_379 = arith.constant 12 : index
    %c0_380 = arith.constant 0 : index
    %1004 = vector.load %arg31[%c12_379, %c0_380] : memref<16x64xf32, #tpu.memory_space<vmem>>, vector<2x64xf32>
    %cst_381 = arith.constant dense<0.000000e+00> : vector<2x64xf32>
    %1005 = tpu.matmul %1003, %742, %cst_381 {dimension_numbers = #tpu.dot_dimension_numbers<[1], [0], [0], [1], [0, 0, 1, 1], [], []>} : vector<2x32xf32>, vector<32x64xf32>, vector<2x64xf32> -> vector<2x64xf32>
    %1006 = vector.extract_strided_slice %1004 {offsets = [0, 0], sizes = [2, 32], strides = [1, 1]} : vector<2x64xf32> to vector<2x32xf32>
    %1007 = vector.extract_strided_slice %1005 {offsets = [0, 0], sizes = [2, 32], strides = [1, 1]} : vector<2x64xf32> to vector<2x32xf32>
    %1008 = arith.addf %1006, %1007 : vector<2x32xf32>
    %1009 = arith.negf %1008 : vector<2x32xf32>
    %1010 = math.exp %1009 : vector<2x32xf32>
    %cst_382 = arith.constant 1.000000e+00 : f32
    %1011 = vector.broadcast %cst_382 : f32 to vector<2x32xf32>
    %1012 = arith.addf %1011, %1010 : vector<2x32xf32>
    %1013 = arith.divf %1011, %1012 : vector<2x32xf32>
    %1014 = vector.extract_strided_slice %1004 {offsets = [0, 32], sizes = [2, 32], strides = [1, 1]} : vector<2x64xf32> to vector<2x32xf32>
    %1015 = vector.extract_strided_slice %1005 {offsets = [0, 32], sizes = [2, 32], strides = [1, 1]} : vector<2x64xf32> to vector<2x32xf32>
    %1016 = vector.broadcast %743 : vector<1x32xf32> to vector<2x32xf32>
    %1017 = arith.addf %1015, %1016 : vector<2x32xf32>
    %1018 = arith.mulf %1013, %1017 : vector<2x32xf32>
    %1019 = arith.addf %1014, %1018 : vector<2x32xf32>
    %1020 = math.tanh %1019 : vector<2x32xf32>
    %1021 = vector.extract_strided_slice %846 {offsets = [6, 0, 0], sizes = [1, 2, 1], strides = [1, 1, 1]} : vector<8x2x1xf32> to vector<1x2x1xf32>
    %1022 = vector.shape_cast %1021 : vector<1x2x1xf32> to vector<2x1xf32>
    %1023 = vector.broadcast %1022 : vector<2x1xf32> to vector<2x32xf32>
    %1024 = arith.mulf %1023, %1020 : vector<2x32xf32>
    %cst_383 = arith.constant 1.000000e+00 : f32
    %1025 = vector.broadcast %cst_383 : f32 to vector<2x1xf32>
    %1026 = arith.subf %1025, %1022 : vector<2x1xf32>
    %1027 = vector.broadcast %1026 : vector<2x1xf32> to vector<2x32xf32>
    %1028 = arith.mulf %1027, %1003 : vector<2x32xf32>
    %1029 = arith.addf %1024, %1028 : vector<2x32xf32>
    %c14_384 = arith.constant 14 : index
    %c0_385 = arith.constant 0 : index
    %1030 = vector.load %arg31[%c14_384, %c0_385] : memref<16x64xf32, #tpu.memory_space<vmem>>, vector<2x64xf32>
    %cst_386 = arith.constant dense<0.000000e+00> : vector<2x64xf32>
    %1031 = tpu.matmul %1029, %742, %cst_386 {dimension_numbers = #tpu.dot_dimension_numbers<[1], [0], [0], [1], [0, 0, 1, 1], [], []>} : vector<2x32xf32>, vector<32x64xf32>, vector<2x64xf32> -> vector<2x64xf32>
    %1032 = vector.extract_strided_slice %1030 {offsets = [0, 0], sizes = [2, 32], strides = [1, 1]} : vector<2x64xf32> to vector<2x32xf32>
    %1033 = vector.extract_strided_slice %1031 {offsets = [0, 0], sizes = [2, 32], strides = [1, 1]} : vector<2x64xf32> to vector<2x32xf32>
    %1034 = arith.addf %1032, %1033 : vector<2x32xf32>
    %1035 = arith.negf %1034 : vector<2x32xf32>
    %1036 = math.exp %1035 : vector<2x32xf32>
    %cst_387 = arith.constant 1.000000e+00 : f32
    %1037 = vector.broadcast %cst_387 : f32 to vector<2x32xf32>
    %1038 = arith.addf %1037, %1036 : vector<2x32xf32>
    %1039 = arith.divf %1037, %1038 : vector<2x32xf32>
    %1040 = vector.extract_strided_slice %1030 {offsets = [0, 32], sizes = [2, 32], strides = [1, 1]} : vector<2x64xf32> to vector<2x32xf32>
    %1041 = vector.extract_strided_slice %1031 {offsets = [0, 32], sizes = [2, 32], strides = [1, 1]} : vector<2x64xf32> to vector<2x32xf32>
    %1042 = vector.broadcast %743 : vector<1x32xf32> to vector<2x32xf32>
    %1043 = arith.addf %1041, %1042 : vector<2x32xf32>
    %1044 = arith.mulf %1039, %1043 : vector<2x32xf32>
    %1045 = arith.addf %1040, %1044 : vector<2x32xf32>
    %1046 = math.tanh %1045 : vector<2x32xf32>
    %1047 = vector.extract_strided_slice %846 {offsets = [7, 0, 0], sizes = [1, 2, 1], strides = [1, 1, 1]} : vector<8x2x1xf32> to vector<1x2x1xf32>
    %1048 = vector.shape_cast %1047 : vector<1x2x1xf32> to vector<2x1xf32>
    %1049 = vector.broadcast %1048 : vector<2x1xf32> to vector<2x32xf32>
    %1050 = arith.mulf %1049, %1046 : vector<2x32xf32>
    %cst_388 = arith.constant 1.000000e+00 : f32
    %1051 = vector.broadcast %cst_388 : f32 to vector<2x1xf32>
    %1052 = arith.subf %1051, %1048 : vector<2x1xf32>
    %1053 = vector.broadcast %1052 : vector<2x1xf32> to vector<2x32xf32>
    %1054 = arith.mulf %1053, %1029 : vector<2x32xf32>
    %1055 = arith.addf %1050, %1054 : vector<2x32xf32>
    %cst_389 = arith.constant dense<0.000000e+00> : vector<2x32xf32>
    %1056 = tpu.matmul %674, %744, %cst_389 {dimension_numbers = #tpu.dot_dimension_numbers<[1], [0], [0], [1], [0, 0, 1, 1], [], []>} : vector<2x32xf32>, vector<32x32xf32>, vector<2x32xf32> -> vector<2x32xf32>
    %cst_390 = arith.constant dense<0.000000e+00> : vector<2x32xf32>
    %1057 = tpu.matmul %1055, %745, %cst_390 {dimension_numbers = #tpu.dot_dimension_numbers<[1], [0], [0], [1], [0, 0, 1, 1], [], []>} : vector<2x32xf32>, vector<32x32xf32>, vector<2x32xf32> -> vector<2x32xf32>
    %1058 = arith.addf %1056, %1057 : vector<2x32xf32>
    %1059 = arith.addf %1058, %740 : vector<2x32xf32>
    %cst_391 = arith.constant 0.000000e+00 : f32
    %1060 = vector.broadcast %cst_391 : f32 to vector<2x32xf32>
    %1061 = arith.maximumf %1059, %1060 : vector<2x32xf32>
    %c0_392 = arith.constant 0 : index
    %c0_393 = arith.constant 0 : index
    %1062 = vector.load %arg30[%c0_392, %c0_393] : memref<16x32xf32, #tpu.memory_space<vmem>>, vector<2x32xf32>
    %1063 = arith.mulf %1062, %1061 : vector<2x32xf32>
    %c0_394 = arith.constant 0 : index
    %c0_395 = arith.constant 0 : index
    %1064 = vector.load %arg32[%c0_394, %c0_395] : memref<16x64xf32, #tpu.memory_space<vmem>>, vector<2x32xf32>
    tpu.vector_store %arg32[%c0_394, %c0_395], %1063 {strides = array<i32>} : memref<16x64xf32, #tpu.memory_space<vmem>>, vector<2x32xf32>,
    %1065 = arith.subf %1062, %1061 : vector<2x32xf32>
    %1066 = math.absf %1065 : vector<2x32xf32>
    %c0_396 = arith.constant 0 : index
    %c32_397 = arith.constant 32 : index
    %1067 = vector.load %arg32[%c0_396, %c32_397] : memref<16x64xf32, #tpu.memory_space<vmem>>, vector<2x32xf32>
    tpu.vector_store %arg32[%c0_396, %c32_397], %1066 {strides = array<i32>} : memref<16x64xf32, #tpu.memory_space<vmem>>, vector<2x32xf32>,
    %c2_398 = arith.constant 2 : index
    %c0_399 = arith.constant 0 : index
    %1068 = vector.load %arg30[%c2_398, %c0_399] : memref<16x32xf32, #tpu.memory_space<vmem>>, vector<2x32xf32>
    %1069 = arith.mulf %1068, %1061 : vector<2x32xf32>
    %c2_400 = arith.constant 2 : index
    %c0_401 = arith.constant 0 : index
    %1070 = vector.load %arg32[%c2_400, %c0_401] : memref<16x64xf32, #tpu.memory_space<vmem>>, vector<2x32xf32>
    tpu.vector_store %arg32[%c2_400, %c0_401], %1069 {strides = array<i32>} : memref<16x64xf32, #tpu.memory_space<vmem>>, vector<2x32xf32>,
    %1071 = arith.subf %1068, %1061 : vector<2x32xf32>
    %1072 = math.absf %1071 : vector<2x32xf32>
    %c2_402 = arith.constant 2 : index
    %c32_403 = arith.constant 32 : index
    %1073 = vector.load %arg32[%c2_402, %c32_403] : memref<16x64xf32, #tpu.memory_space<vmem>>, vector<2x32xf32>
    tpu.vector_store %arg32[%c2_402, %c32_403], %1072 {strides = array<i32>} : memref<16x64xf32, #tpu.memory_space<vmem>>, vector<2x32xf32>,
    %c4_404 = arith.constant 4 : index
    %c0_405 = arith.constant 0 : index
    %1074 = vector.load %arg30[%c4_404, %c0_405] : memref<16x32xf32, #tpu.memory_space<vmem>>, vector<2x32xf32>
    %1075 = arith.mulf %1074, %1061 : vector<2x32xf32>
    %c4_406 = arith.constant 4 : index
    %c0_407 = arith.constant 0 : index
    %1076 = vector.load %arg32[%c4_406, %c0_407] : memref<16x64xf32, #tpu.memory_space<vmem>>, vector<2x32xf32>
    tpu.vector_store %arg32[%c4_406, %c0_407], %1075 {strides = array<i32>} : memref<16x64xf32, #tpu.memory_space<vmem>>, vector<2x32xf32>,
    %1077 = arith.subf %1074, %1061 : vector<2x32xf32>
    %1078 = math.absf %1077 : vector<2x32xf32>
    %c4_408 = arith.constant 4 : index
    %c32_409 = arith.constant 32 : index
    %1079 = vector.load %arg32[%c4_408, %c32_409] : memref<16x64xf32, #tpu.memory_space<vmem>>, vector<2x32xf32>
    tpu.vector_store %arg32[%c4_408, %c32_409], %1078 {strides = array<i32>} : memref<16x64xf32, #tpu.memory_space<vmem>>, vector<2x32xf32>,
    %c6_410 = arith.constant 6 : index
    %c0_411 = arith.constant 0 : index
    %1080 = vector.load %arg30[%c6_410, %c0_411] : memref<16x32xf32, #tpu.memory_space<vmem>>, vector<2x32xf32>
    %1081 = arith.mulf %1080, %1061 : vector<2x32xf32>
    %c6_412 = arith.constant 6 : index
    %c0_413 = arith.constant 0 : index
    %1082 = vector.load %arg32[%c6_412, %c0_413] : memref<16x64xf32, #tpu.memory_space<vmem>>, vector<2x32xf32>
    tpu.vector_store %arg32[%c6_412, %c0_413], %1081 {strides = array<i32>} : memref<16x64xf32, #tpu.memory_space<vmem>>, vector<2x32xf32>,
    %1083 = arith.subf %1080, %1061 : vector<2x32xf32>
    %1084 = math.absf %1083 : vector<2x32xf32>
    %c6_414 = arith.constant 6 : index
    %c32_415 = arith.constant 32 : index
    %1085 = vector.load %arg32[%c6_414, %c32_415] : memref<16x64xf32, #tpu.memory_space<vmem>>, vector<2x32xf32>
    tpu.vector_store %arg32[%c6_414, %c32_415], %1084 {strides = array<i32>} : memref<16x64xf32, #tpu.memory_space<vmem>>, vector<2x32xf32>,
    %c8_416 = arith.constant 8 : index
    %c0_417 = arith.constant 0 : index
    %1086 = vector.load %arg30[%c8_416, %c0_417] : memref<16x32xf32, #tpu.memory_space<vmem>>, vector<2x32xf32>
    %1087 = arith.mulf %1086, %1061 : vector<2x32xf32>
    %c8_418 = arith.constant 8 : index
    %c0_419 = arith.constant 0 : index
    %1088 = vector.load %arg32[%c8_418, %c0_419] : memref<16x64xf32, #tpu.memory_space<vmem>>, vector<2x32xf32>
    tpu.vector_store %arg32[%c8_418, %c0_419], %1087 {strides = array<i32>} : memref<16x64xf32, #tpu.memory_space<vmem>>, vector<2x32xf32>,
    %1089 = arith.subf %1086, %1061 : vector<2x32xf32>
    %1090 = math.absf %1089 : vector<2x32xf32>
    %c8_420 = arith.constant 8 : index
    %c32_421 = arith.constant 32 : index
    %1091 = vector.load %arg32[%c8_420, %c32_421] : memref<16x64xf32, #tpu.memory_space<vmem>>, vector<2x32xf32>
    tpu.vector_store %arg32[%c8_420, %c32_421], %1090 {strides = array<i32>} : memref<16x64xf32, #tpu.memory_space<vmem>>, vector<2x32xf32>,
    %c10_422 = arith.constant 10 : index
    %c0_423 = arith.constant 0 : index
    %1092 = vector.load %arg30[%c10_422, %c0_423] : memref<16x32xf32, #tpu.memory_space<vmem>>, vector<2x32xf32>
    %1093 = arith.mulf %1092, %1061 : vector<2x32xf32>
    %c10_424 = arith.constant 10 : index
    %c0_425 = arith.constant 0 : index
    %1094 = vector.load %arg32[%c10_424, %c0_425] : memref<16x64xf32, #tpu.memory_space<vmem>>, vector<2x32xf32>
    tpu.vector_store %arg32[%c10_424, %c0_425], %1093 {strides = array<i32>} : memref<16x64xf32, #tpu.memory_space<vmem>>, vector<2x32xf32>,
    %1095 = arith.subf %1092, %1061 : vector<2x32xf32>
    %1096 = math.absf %1095 : vector<2x32xf32>
    %c10_426 = arith.constant 10 : index
    %c32_427 = arith.constant 32 : index
    %1097 = vector.load %arg32[%c10_426, %c32_427] : memref<16x64xf32, #tpu.memory_space<vmem>>, vector<2x32xf32>
    tpu.vector_store %arg32[%c10_426, %c32_427], %1096 {strides = array<i32>} : memref<16x64xf32, #tpu.memory_space<vmem>>, vector<2x32xf32>,
    %c12_428 = arith.constant 12 : index
    %c0_429 = arith.constant 0 : index
    %1098 = vector.load %arg30[%c12_428, %c0_429] : memref<16x32xf32, #tpu.memory_space<vmem>>, vector<2x32xf32>
    %1099 = arith.mulf %1098, %1061 : vector<2x32xf32>
    %c12_430 = arith.constant 12 : index
    %c0_431 = arith.constant 0 : index
    %1100 = vector.load %arg32[%c12_430, %c0_431] : memref<16x64xf32, #tpu.memory_space<vmem>>, vector<2x32xf32>
    tpu.vector_store %arg32[%c12_430, %c0_431], %1099 {strides = array<i32>} : memref<16x64xf32, #tpu.memory_space<vmem>>, vector<2x32xf32>,
    %1101 = arith.subf %1098, %1061 : vector<2x32xf32>
    %1102 = math.absf %1101 : vector<2x32xf32>
    %c12_432 = arith.constant 12 : index
    %c32_433 = arith.constant 32 : index
    %1103 = vector.load %arg32[%c12_432, %c32_433] : memref<16x64xf32, #tpu.memory_space<vmem>>, vector<2x32xf32>
    tpu.vector_store %arg32[%c12_432, %c32_433], %1102 {strides = array<i32>} : memref<16x64xf32, #tpu.memory_space<vmem>>, vector<2x32xf32>,
    %c14_434 = arith.constant 14 : index
    %c0_435 = arith.constant 0 : index
    %1104 = vector.load %arg30[%c14_434, %c0_435] : memref<16x32xf32, #tpu.memory_space<vmem>>, vector<2x32xf32>
    %1105 = arith.mulf %1104, %1061 : vector<2x32xf32>
    %c14_436 = arith.constant 14 : index
    %c0_437 = arith.constant 0 : index
    %1106 = vector.load %arg32[%c14_436, %c0_437] : memref<16x64xf32, #tpu.memory_space<vmem>>, vector<2x32xf32>
    tpu.vector_store %arg32[%c14_436, %c0_437], %1105 {strides = array<i32>} : memref<16x64xf32, #tpu.memory_space<vmem>>, vector<2x32xf32>,
    %1107 = arith.subf %1104, %1061 : vector<2x32xf32>
    %1108 = math.absf %1107 : vector<2x32xf32>
    %c14_438 = arith.constant 14 : index
    %c32_439 = arith.constant 32 : index
    %1109 = vector.load %arg32[%c14_438, %c32_439] : memref<16x64xf32, #tpu.memory_space<vmem>>, vector<2x32xf32>
    tpu.vector_store %arg32[%c14_438, %c32_439], %1108 {strides = array<i32>} : memref<16x64xf32, #tpu.memory_space<vmem>>, vector<2x32xf32>,
    %c0_440 = arith.constant 0 : index
    %c0_441 = arith.constant 0 : index
    %1110 = vector.load %arg32[%c0_440, %c0_441] : memref<16x64xf32, #tpu.memory_space<vmem>>, vector<16x64xf32>
    %c0_442 = arith.constant 0 : index
    %c0_443 = arith.constant 0 : index
    %1111 = vector.load %arg15[%c0_442, %c0_443] : memref<64x32xf32, #tpu.memory_space<vmem>>, vector<64x32xf32>
    %cst_444 = arith.constant dense<0.000000e+00> : vector<16x32xf32>
    %1112 = tpu.matmul %1110, %1111, %cst_444 {dimension_numbers = #tpu.dot_dimension_numbers<[1], [0], [0], [1], [0, 0, 1, 1], [], []>} : vector<16x64xf32>, vector<64x32xf32>, vector<16x32xf32> -> vector<16x32xf32>
    %1113 = arith.addf %735, %1112 : vector<16x32xf32>
    %1114 = math.tanh %1113 : vector<16x32xf32>
    %1115 = vector.broadcast %741 : vector<1x32xf32> to vector<16x32xf32>
    %1116 = arith.mulf %1114, %1115 : vector<16x32xf32>
    %cst_445 = arith.constant dense<0.000000e+00> : vector<16xf32>
    %1117 = vector.multi_reduction <add>, %1116, %cst_445 [1] : vector<16x32xf32> to vector<16xf32>
    %1118 = vector.shape_cast %1117 : vector<16xf32> to vector<16x1xf32>
    %c0_446 = arith.constant 0 : index
    %c0_447 = arith.constant 0 : index
    %1119 = vector.load %arg33[%c0_446, %c0_447] : memref<16x1xf32, #tpu.memory_space<vmem>>, vector<16x1xf32>
    tpu.vector_store %arg33[%c0_446, %c0_447], %1118 {strides = array<i32>} : memref<16x1xf32, #tpu.memory_space<vmem>>, vector<16x1xf32>,
    %c0_448 = arith.constant 0 : index
    %c0_449 = arith.constant 0 : index
    %1120 = vector.load %arg33[%c0_448, %c0_449] : memref<16x1xf32, #tpu.memory_space<vmem>>, vector<2x1xf32>
    %c0_450 = arith.constant 0 : index
    %c0_451 = arith.constant 0 : index
    %c0_452 = arith.constant 0 : index
    %1121 = vector.load %arg34[%c0_450, %c0_451, %c0_452] : memref<8x2x1xf32, #tpu.memory_space<vmem>>, vector<1x2x1xf32>
    %1122 = vector.shape_cast %1121 : vector<1x2x1xf32> to vector<2x1xf32>
    %1123 = vector.shape_cast %1120 : vector<2x1xf32> to vector<1x2x1xf32>
    tpu.vector_store %arg34[%c0_450, %c0_451, %c0_452], %1123 {strides = array<i32>} : memref<8x2x1xf32, #tpu.memory_space<vmem>>, vector<1x2x1xf32>,
    %c2_453 = arith.constant 2 : index
    %c0_454 = arith.constant 0 : index
    %1124 = vector.load %arg33[%c2_453, %c0_454] : memref<16x1xf32, #tpu.memory_space<vmem>>, vector<2x1xf32>
    %c1_455 = arith.constant 1 : index
    %c0_456 = arith.constant 0 : index
    %c0_457 = arith.constant 0 : index
    %1125 = vector.load %arg34[%c1_455, %c0_456, %c0_457] : memref<8x2x1xf32, #tpu.memory_space<vmem>>, vector<1x2x1xf32>
    %1126 = vector.shape_cast %1125 : vector<1x2x1xf32> to vector<2x1xf32>
    %1127 = vector.shape_cast %1124 : vector<2x1xf32> to vector<1x2x1xf32>
    tpu.vector_store %arg34[%c1_455, %c0_456, %c0_457], %1127 {strides = array<i32>} : memref<8x2x1xf32, #tpu.memory_space<vmem>>, vector<1x2x1xf32>,
    %c4_458 = arith.constant 4 : index
    %c0_459 = arith.constant 0 : index
    %1128 = vector.load %arg33[%c4_458, %c0_459] : memref<16x1xf32, #tpu.memory_space<vmem>>, vector<2x1xf32>
    %c2_460 = arith.constant 2 : index
    %c0_461 = arith.constant 0 : index
    %c0_462 = arith.constant 0 : index
    %1129 = vector.load %arg34[%c2_460, %c0_461, %c0_462] : memref<8x2x1xf32, #tpu.memory_space<vmem>>, vector<1x2x1xf32>
    %1130 = vector.shape_cast %1129 : vector<1x2x1xf32> to vector<2x1xf32>
    %1131 = vector.shape_cast %1128 : vector<2x1xf32> to vector<1x2x1xf32>
    tpu.vector_store %arg34[%c2_460, %c0_461, %c0_462], %1131 {strides = array<i32>} : memref<8x2x1xf32, #tpu.memory_space<vmem>>, vector<1x2x1xf32>,
    %c6_463 = arith.constant 6 : index
    %c0_464 = arith.constant 0 : index
    %1132 = vector.load %arg33[%c6_463, %c0_464] : memref<16x1xf32, #tpu.memory_space<vmem>>, vector<2x1xf32>
    %c3_465 = arith.constant 3 : index
    %c0_466 = arith.constant 0 : index
    %c0_467 = arith.constant 0 : index
    %1133 = vector.load %arg34[%c3_465, %c0_466, %c0_467] : memref<8x2x1xf32, #tpu.memory_space<vmem>>, vector<1x2x1xf32>
    %1134 = vector.shape_cast %1133 : vector<1x2x1xf32> to vector<2x1xf32>
    %1135 = vector.shape_cast %1132 : vector<2x1xf32> to vector<1x2x1xf32>
    tpu.vector_store %arg34[%c3_465, %c0_466, %c0_467], %1135 {strides = array<i32>} : memref<8x2x1xf32, #tpu.memory_space<vmem>>, vector<1x2x1xf32>,
    %c8_468 = arith.constant 8 : index
    %c0_469 = arith.constant 0 : index
    %1136 = vector.load %arg33[%c8_468, %c0_469] : memref<16x1xf32, #tpu.memory_space<vmem>>, vector<2x1xf32>
    %c4_470 = arith.constant 4 : index
    %c0_471 = arith.constant 0 : index
    %c0_472 = arith.constant 0 : index
    %1137 = vector.load %arg34[%c4_470, %c0_471, %c0_472] : memref<8x2x1xf32, #tpu.memory_space<vmem>>, vector<1x2x1xf32>
    %1138 = vector.shape_cast %1137 : vector<1x2x1xf32> to vector<2x1xf32>
    %1139 = vector.shape_cast %1136 : vector<2x1xf32> to vector<1x2x1xf32>
    tpu.vector_store %arg34[%c4_470, %c0_471, %c0_472], %1139 {strides = array<i32>} : memref<8x2x1xf32, #tpu.memory_space<vmem>>, vector<1x2x1xf32>,
    %c10_473 = arith.constant 10 : index
    %c0_474 = arith.constant 0 : index
    %1140 = vector.load %arg33[%c10_473, %c0_474] : memref<16x1xf32, #tpu.memory_space<vmem>>, vector<2x1xf32>
    %c5_475 = arith.constant 5 : index
    %c0_476 = arith.constant 0 : index
    %c0_477 = arith.constant 0 : index
    %1141 = vector.load %arg34[%c5_475, %c0_476, %c0_477] : memref<8x2x1xf32, #tpu.memory_space<vmem>>, vector<1x2x1xf32>
    %1142 = vector.shape_cast %1141 : vector<1x2x1xf32> to vector<2x1xf32>
    %1143 = vector.shape_cast %1140 : vector<2x1xf32> to vector<1x2x1xf32>
    tpu.vector_store %arg34[%c5_475, %c0_476, %c0_477], %1143 {strides = array<i32>} : memref<8x2x1xf32, #tpu.memory_space<vmem>>, vector<1x2x1xf32>,
    %c12_478 = arith.constant 12 : index
    %c0_479 = arith.constant 0 : index
    %1144 = vector.load %arg33[%c12_478, %c0_479] : memref<16x1xf32, #tpu.memory_space<vmem>>, vector<2x1xf32>
    %c6_480 = arith.constant 6 : index
    %c0_481 = arith.constant 0 : index
    %c0_482 = arith.constant 0 : index
    %1145 = vector.load %arg34[%c6_480, %c0_481, %c0_482] : memref<8x2x1xf32, #tpu.memory_space<vmem>>, vector<1x2x1xf32>
    %1146 = vector.shape_cast %1145 : vector<1x2x1xf32> to vector<2x1xf32>
    %1147 = vector.shape_cast %1144 : vector<2x1xf32> to vector<1x2x1xf32>
    tpu.vector_store %arg34[%c6_480, %c0_481, %c0_482], %1147 {strides = array<i32>} : memref<8x2x1xf32, #tpu.memory_space<vmem>>, vector<1x2x1xf32>,
    %c14_483 = arith.constant 14 : index
    %c0_484 = arith.constant 0 : index
    %1148 = vector.load %arg33[%c14_483, %c0_484] : memref<16x1xf32, #tpu.memory_space<vmem>>, vector<2x1xf32>
    %c7_485 = arith.constant 7 : index
    %c0_486 = arith.constant 0 : index
    %c0_487 = arith.constant 0 : index
    %1149 = vector.load %arg34[%c7_485, %c0_486, %c0_487] : memref<8x2x1xf32, #tpu.memory_space<vmem>>, vector<1x2x1xf32>
    %1150 = vector.shape_cast %1149 : vector<1x2x1xf32> to vector<2x1xf32>
    %1151 = vector.shape_cast %1148 : vector<2x1xf32> to vector<1x2x1xf32>
    tpu.vector_store %arg34[%c7_485, %c0_486, %c0_487], %1151 {strides = array<i32>} : memref<8x2x1xf32, #tpu.memory_space<vmem>>, vector<1x2x1xf32>,
    %c0_488 = arith.constant 0 : index
    %c0_489 = arith.constant 0 : index
    %c0_490 = arith.constant 0 : index
    %1152 = vector.load %arg34[%c0_488, %c0_489, %c0_490] : memref<8x2x1xf32, #tpu.memory_space<vmem>>, vector<8x2x1xf32>
    %cst_491 = arith.constant dense<0xFF800000> : vector<2x1xf32>
    %1153 = vector.multi_reduction <maximumf>, %1152, %cst_491 [0] : vector<8x2x1xf32> to vector<2x1xf32>
    %1154 = vector.shape_cast %1153 : vector<2x1xf32> to vector<1x2x1xf32>
    %1155 = vector.broadcast %1154 : vector<1x2x1xf32> to vector<8x2x1xf32>
    %1156 = arith.subf %1152, %1155 : vector<8x2x1xf32>
    %1157 = math.exp %1156 : vector<8x2x1xf32>
    %cst_492 = arith.constant dense<0.000000e+00> : vector<2x1xf32>
    %1158 = vector.multi_reduction <add>, %1157, %cst_492 [0] : vector<8x2x1xf32> to vector<2x1xf32>
    %1159 = vector.shape_cast %1158 : vector<2x1xf32> to vector<1x2x1xf32>
    %1160 = tpu.reciprocal %1159 {approx = true} : vector<1x2x1xf32> -> vector<1x2x1xf32>
    %1161 = vector.broadcast %1160 : vector<1x2x1xf32> to vector<8x2x1xf32>
    %1162 = arith.mulf %1157, %1161 : vector<8x2x1xf32>
    %cst_493 = arith.constant 0.000000e+00 : f32
    %1163 = vector.broadcast %cst_493 : f32 to vector<2x32xf32>
    %c0_494 = arith.constant 0 : index
    %c0_495 = arith.constant 0 : index
    %1164 = vector.load %arg31[%c0_494, %c0_495] : memref<16x64xf32, #tpu.memory_space<vmem>>, vector<2x64xf32>
    %cst_496 = arith.constant dense<0.000000e+00> : vector<2x64xf32>
    %1165 = tpu.matmul %1163, %742, %cst_496 {dimension_numbers = #tpu.dot_dimension_numbers<[1], [0], [0], [1], [0, 0, 1, 1], [], []>} : vector<2x32xf32>, vector<32x64xf32>, vector<2x64xf32> -> vector<2x64xf32>
    %1166 = vector.extract_strided_slice %1164 {offsets = [0, 0], sizes = [2, 32], strides = [1, 1]} : vector<2x64xf32> to vector<2x32xf32>
    %1167 = vector.extract_strided_slice %1165 {offsets = [0, 0], sizes = [2, 32], strides = [1, 1]} : vector<2x64xf32> to vector<2x32xf32>
    %1168 = arith.addf %1166, %1167 : vector<2x32xf32>
    %1169 = arith.negf %1168 : vector<2x32xf32>
    %1170 = math.exp %1169 : vector<2x32xf32>
    %cst_497 = arith.constant 1.000000e+00 : f32
    %1171 = vector.broadcast %cst_497 : f32 to vector<2x32xf32>
    %1172 = arith.addf %1171, %1170 : vector<2x32xf32>
    %1173 = arith.divf %1171, %1172 : vector<2x32xf32>
    %1174 = vector.extract_strided_slice %1164 {offsets = [0, 32], sizes = [2, 32], strides = [1, 1]} : vector<2x64xf32> to vector<2x32xf32>
    %1175 = vector.extract_strided_slice %1165 {offsets = [0, 32], sizes = [2, 32], strides = [1, 1]} : vector<2x64xf32> to vector<2x32xf32>
    %1176 = vector.broadcast %743 : vector<1x32xf32> to vector<2x32xf32>
    %1177 = arith.addf %1175, %1176 : vector<2x32xf32>
    %1178 = arith.mulf %1173, %1177 : vector<2x32xf32>
    %1179 = arith.addf %1174, %1178 : vector<2x32xf32>
    %1180 = math.tanh %1179 : vector<2x32xf32>
    %1181 = vector.extract_strided_slice %1162 {offsets = [0, 0, 0], sizes = [1, 2, 1], strides = [1, 1, 1]} : vector<8x2x1xf32> to vector<1x2x1xf32>
    %1182 = vector.shape_cast %1181 : vector<1x2x1xf32> to vector<2x1xf32>
    %1183 = vector.broadcast %1182 : vector<2x1xf32> to vector<2x32xf32>
    %1184 = arith.mulf %1183, %1180 : vector<2x32xf32>
    %cst_498 = arith.constant 1.000000e+00 : f32
    %1185 = vector.broadcast %cst_498 : f32 to vector<2x1xf32>
    %1186 = arith.subf %1185, %1182 : vector<2x1xf32>
    %1187 = vector.broadcast %1186 : vector<2x1xf32> to vector<2x32xf32>
    %1188 = arith.mulf %1187, %1163 : vector<2x32xf32>
    %1189 = arith.addf %1184, %1188 : vector<2x32xf32>
    %c2_499 = arith.constant 2 : index
    %c0_500 = arith.constant 0 : index
    %1190 = vector.load %arg31[%c2_499, %c0_500] : memref<16x64xf32, #tpu.memory_space<vmem>>, vector<2x64xf32>
    %cst_501 = arith.constant dense<0.000000e+00> : vector<2x64xf32>
    %1191 = tpu.matmul %1189, %742, %cst_501 {dimension_numbers = #tpu.dot_dimension_numbers<[1], [0], [0], [1], [0, 0, 1, 1], [], []>} : vector<2x32xf32>, vector<32x64xf32>, vector<2x64xf32> -> vector<2x64xf32>
    %1192 = vector.extract_strided_slice %1190 {offsets = [0, 0], sizes = [2, 32], strides = [1, 1]} : vector<2x64xf32> to vector<2x32xf32>
    %1193 = vector.extract_strided_slice %1191 {offsets = [0, 0], sizes = [2, 32], strides = [1, 1]} : vector<2x64xf32> to vector<2x32xf32>
    %1194 = arith.addf %1192, %1193 : vector<2x32xf32>
    %1195 = arith.negf %1194 : vector<2x32xf32>
    %1196 = math.exp %1195 : vector<2x32xf32>
    %cst_502 = arith.constant 1.000000e+00 : f32
    %1197 = vector.broadcast %cst_502 : f32 to vector<2x32xf32>
    %1198 = arith.addf %1197, %1196 : vector<2x32xf32>
    %1199 = arith.divf %1197, %1198 : vector<2x32xf32>
    %1200 = vector.extract_strided_slice %1190 {offsets = [0, 32], sizes = [2, 32], strides = [1, 1]} : vector<2x64xf32> to vector<2x32xf32>
    %1201 = vector.extract_strided_slice %1191 {offsets = [0, 32], sizes = [2, 32], strides = [1, 1]} : vector<2x64xf32> to vector<2x32xf32>
    %1202 = vector.broadcast %743 : vector<1x32xf32> to vector<2x32xf32>
    %1203 = arith.addf %1201, %1202 : vector<2x32xf32>
    %1204 = arith.mulf %1199, %1203 : vector<2x32xf32>
    %1205 = arith.addf %1200, %1204 : vector<2x32xf32>
    %1206 = math.tanh %1205 : vector<2x32xf32>
    %1207 = vector.extract_strided_slice %1162 {offsets = [1, 0, 0], sizes = [1, 2, 1], strides = [1, 1, 1]} : vector<8x2x1xf32> to vector<1x2x1xf32>
    %1208 = vector.shape_cast %1207 : vector<1x2x1xf32> to vector<2x1xf32>
    %1209 = vector.broadcast %1208 : vector<2x1xf32> to vector<2x32xf32>
    %1210 = arith.mulf %1209, %1206 : vector<2x32xf32>
    %cst_503 = arith.constant 1.000000e+00 : f32
    %1211 = vector.broadcast %cst_503 : f32 to vector<2x1xf32>
    %1212 = arith.subf %1211, %1208 : vector<2x1xf32>
    %1213 = vector.broadcast %1212 : vector<2x1xf32> to vector<2x32xf32>
    %1214 = arith.mulf %1213, %1189 : vector<2x32xf32>
    %1215 = arith.addf %1210, %1214 : vector<2x32xf32>
    %c4_504 = arith.constant 4 : index
    %c0_505 = arith.constant 0 : index
    %1216 = vector.load %arg31[%c4_504, %c0_505] : memref<16x64xf32, #tpu.memory_space<vmem>>, vector<2x64xf32>
    %cst_506 = arith.constant dense<0.000000e+00> : vector<2x64xf32>
    %1217 = tpu.matmul %1215, %742, %cst_506 {dimension_numbers = #tpu.dot_dimension_numbers<[1], [0], [0], [1], [0, 0, 1, 1], [], []>} : vector<2x32xf32>, vector<32x64xf32>, vector<2x64xf32> -> vector<2x64xf32>
    %1218 = vector.extract_strided_slice %1216 {offsets = [0, 0], sizes = [2, 32], strides = [1, 1]} : vector<2x64xf32> to vector<2x32xf32>
    %1219 = vector.extract_strided_slice %1217 {offsets = [0, 0], sizes = [2, 32], strides = [1, 1]} : vector<2x64xf32> to vector<2x32xf32>
    %1220 = arith.addf %1218, %1219 : vector<2x32xf32>
    %1221 = arith.negf %1220 : vector<2x32xf32>
    %1222 = math.exp %1221 : vector<2x32xf32>
    %cst_507 = arith.constant 1.000000e+00 : f32
    %1223 = vector.broadcast %cst_507 : f32 to vector<2x32xf32>
    %1224 = arith.addf %1223, %1222 : vector<2x32xf32>
    %1225 = arith.divf %1223, %1224 : vector<2x32xf32>
    %1226 = vector.extract_strided_slice %1216 {offsets = [0, 32], sizes = [2, 32], strides = [1, 1]} : vector<2x64xf32> to vector<2x32xf32>
    %1227 = vector.extract_strided_slice %1217 {offsets = [0, 32], sizes = [2, 32], strides = [1, 1]} : vector<2x64xf32> to vector<2x32xf32>
    %1228 = vector.broadcast %743 : vector<1x32xf32> to vector<2x32xf32>
    %1229 = arith.addf %1227, %1228 : vector<2x32xf32>
    %1230 = arith.mulf %1225, %1229 : vector<2x32xf32>
    %1231 = arith.addf %1226, %1230 : vector<2x32xf32>
    %1232 = math.tanh %1231 : vector<2x32xf32>
    %1233 = vector.extract_strided_slice %1162 {offsets = [2, 0, 0], sizes = [1, 2, 1], strides = [1, 1, 1]} : vector<8x2x1xf32> to vector<1x2x1xf32>
    %1234 = vector.shape_cast %1233 : vector<1x2x1xf32> to vector<2x1xf32>
    %1235 = vector.broadcast %1234 : vector<2x1xf32> to vector<2x32xf32>
    %1236 = arith.mulf %1235, %1232 : vector<2x32xf32>
    %cst_508 = arith.constant 1.000000e+00 : f32
    %1237 = vector.broadcast %cst_508 : f32 to vector<2x1xf32>
    %1238 = arith.subf %1237, %1234 : vector<2x1xf32>
    %1239 = vector.broadcast %1238 : vector<2x1xf32> to vector<2x32xf32>
    %1240 = arith.mulf %1239, %1215 : vector<2x32xf32>
    %1241 = arith.addf %1236, %1240 : vector<2x32xf32>
    %c6_509 = arith.constant 6 : index
    %c0_510 = arith.constant 0 : index
    %1242 = vector.load %arg31[%c6_509, %c0_510] : memref<16x64xf32, #tpu.memory_space<vmem>>, vector<2x64xf32>
    %cst_511 = arith.constant dense<0.000000e+00> : vector<2x64xf32>
    %1243 = tpu.matmul %1241, %742, %cst_511 {dimension_numbers = #tpu.dot_dimension_numbers<[1], [0], [0], [1], [0, 0, 1, 1], [], []>} : vector<2x32xf32>, vector<32x64xf32>, vector<2x64xf32> -> vector<2x64xf32>
    %1244 = vector.extract_strided_slice %1242 {offsets = [0, 0], sizes = [2, 32], strides = [1, 1]} : vector<2x64xf32> to vector<2x32xf32>
    %1245 = vector.extract_strided_slice %1243 {offsets = [0, 0], sizes = [2, 32], strides = [1, 1]} : vector<2x64xf32> to vector<2x32xf32>
    %1246 = arith.addf %1244, %1245 : vector<2x32xf32>
    %1247 = arith.negf %1246 : vector<2x32xf32>
    %1248 = math.exp %1247 : vector<2x32xf32>
    %cst_512 = arith.constant 1.000000e+00 : f32
    %1249 = vector.broadcast %cst_512 : f32 to vector<2x32xf32>
    %1250 = arith.addf %1249, %1248 : vector<2x32xf32>
    %1251 = arith.divf %1249, %1250 : vector<2x32xf32>
    %1252 = vector.extract_strided_slice %1242 {offsets = [0, 32], sizes = [2, 32], strides = [1, 1]} : vector<2x64xf32> to vector<2x32xf32>
    %1253 = vector.extract_strided_slice %1243 {offsets = [0, 32], sizes = [2, 32], strides = [1, 1]} : vector<2x64xf32> to vector<2x32xf32>
    %1254 = vector.broadcast %743 : vector<1x32xf32> to vector<2x32xf32>
    %1255 = arith.addf %1253, %1254 : vector<2x32xf32>
    %1256 = arith.mulf %1251, %1255 : vector<2x32xf32>
    %1257 = arith.addf %1252, %1256 : vector<2x32xf32>
    %1258 = math.tanh %1257 : vector<2x32xf32>
    %1259 = vector.extract_strided_slice %1162 {offsets = [3, 0, 0], sizes = [1, 2, 1], strides = [1, 1, 1]} : vector<8x2x1xf32> to vector<1x2x1xf32>
    %1260 = vector.shape_cast %1259 : vector<1x2x1xf32> to vector<2x1xf32>
    %1261 = vector.broadcast %1260 : vector<2x1xf32> to vector<2x32xf32>
    %1262 = arith.mulf %1261, %1258 : vector<2x32xf32>
    %cst_513 = arith.constant 1.000000e+00 : f32
    %1263 = vector.broadcast %cst_513 : f32 to vector<2x1xf32>
    %1264 = arith.subf %1263, %1260 : vector<2x1xf32>
    %1265 = vector.broadcast %1264 : vector<2x1xf32> to vector<2x32xf32>
    %1266 = arith.mulf %1265, %1241 : vector<2x32xf32>
    %1267 = arith.addf %1262, %1266 : vector<2x32xf32>
    %c8_514 = arith.constant 8 : index
    %c0_515 = arith.constant 0 : index
    %1268 = vector.load %arg31[%c8_514, %c0_515] : memref<16x64xf32, #tpu.memory_space<vmem>>, vector<2x64xf32>
    %cst_516 = arith.constant dense<0.000000e+00> : vector<2x64xf32>
    %1269 = tpu.matmul %1267, %742, %cst_516 {dimension_numbers = #tpu.dot_dimension_numbers<[1], [0], [0], [1], [0, 0, 1, 1], [], []>} : vector<2x32xf32>, vector<32x64xf32>, vector<2x64xf32> -> vector<2x64xf32>
    %1270 = vector.extract_strided_slice %1268 {offsets = [0, 0], sizes = [2, 32], strides = [1, 1]} : vector<2x64xf32> to vector<2x32xf32>
    %1271 = vector.extract_strided_slice %1269 {offsets = [0, 0], sizes = [2, 32], strides = [1, 1]} : vector<2x64xf32> to vector<2x32xf32>
    %1272 = arith.addf %1270, %1271 : vector<2x32xf32>
    %1273 = arith.negf %1272 : vector<2x32xf32>
    %1274 = math.exp %1273 : vector<2x32xf32>
    %cst_517 = arith.constant 1.000000e+00 : f32
    %1275 = vector.broadcast %cst_517 : f32 to vector<2x32xf32>
    %1276 = arith.addf %1275, %1274 : vector<2x32xf32>
    %1277 = arith.divf %1275, %1276 : vector<2x32xf32>
    %1278 = vector.extract_strided_slice %1268 {offsets = [0, 32], sizes = [2, 32], strides = [1, 1]} : vector<2x64xf32> to vector<2x32xf32>
    %1279 = vector.extract_strided_slice %1269 {offsets = [0, 32], sizes = [2, 32], strides = [1, 1]} : vector<2x64xf32> to vector<2x32xf32>
    %1280 = vector.broadcast %743 : vector<1x32xf32> to vector<2x32xf32>
    %1281 = arith.addf %1279, %1280 : vector<2x32xf32>
    %1282 = arith.mulf %1277, %1281 : vector<2x32xf32>
    %1283 = arith.addf %1278, %1282 : vector<2x32xf32>
    %1284 = math.tanh %1283 : vector<2x32xf32>
    %1285 = vector.extract_strided_slice %1162 {offsets = [4, 0, 0], sizes = [1, 2, 1], strides = [1, 1, 1]} : vector<8x2x1xf32> to vector<1x2x1xf32>
    %1286 = vector.shape_cast %1285 : vector<1x2x1xf32> to vector<2x1xf32>
    %1287 = vector.broadcast %1286 : vector<2x1xf32> to vector<2x32xf32>
    %1288 = arith.mulf %1287, %1284 : vector<2x32xf32>
    %cst_518 = arith.constant 1.000000e+00 : f32
    %1289 = vector.broadcast %cst_518 : f32 to vector<2x1xf32>
    %1290 = arith.subf %1289, %1286 : vector<2x1xf32>
    %1291 = vector.broadcast %1290 : vector<2x1xf32> to vector<2x32xf32>
    %1292 = arith.mulf %1291, %1267 : vector<2x32xf32>
    %1293 = arith.addf %1288, %1292 : vector<2x32xf32>
    %c10_519 = arith.constant 10 : index
    %c0_520 = arith.constant 0 : index
    %1294 = vector.load %arg31[%c10_519, %c0_520] : memref<16x64xf32, #tpu.memory_space<vmem>>, vector<2x64xf32>
    %cst_521 = arith.constant dense<0.000000e+00> : vector<2x64xf32>
    %1295 = tpu.matmul %1293, %742, %cst_521 {dimension_numbers = #tpu.dot_dimension_numbers<[1], [0], [0], [1], [0, 0, 1, 1], [], []>} : vector<2x32xf32>, vector<32x64xf32>, vector<2x64xf32> -> vector<2x64xf32>
    %1296 = vector.extract_strided_slice %1294 {offsets = [0, 0], sizes = [2, 32], strides = [1, 1]} : vector<2x64xf32> to vector<2x32xf32>
    %1297 = vector.extract_strided_slice %1295 {offsets = [0, 0], sizes = [2, 32], strides = [1, 1]} : vector<2x64xf32> to vector<2x32xf32>
    %1298 = arith.addf %1296, %1297 : vector<2x32xf32>
    %1299 = arith.negf %1298 : vector<2x32xf32>
    %1300 = math.exp %1299 : vector<2x32xf32>
    %cst_522 = arith.constant 1.000000e+00 : f32
    %1301 = vector.broadcast %cst_522 : f32 to vector<2x32xf32>
    %1302 = arith.addf %1301, %1300 : vector<2x32xf32>
    %1303 = arith.divf %1301, %1302 : vector<2x32xf32>
    %1304 = vector.extract_strided_slice %1294 {offsets = [0, 32], sizes = [2, 32], strides = [1, 1]} : vector<2x64xf32> to vector<2x32xf32>
    %1305 = vector.extract_strided_slice %1295 {offsets = [0, 32], sizes = [2, 32], strides = [1, 1]} : vector<2x64xf32> to vector<2x32xf32>
    %1306 = vector.broadcast %743 : vector<1x32xf32> to vector<2x32xf32>
    %1307 = arith.addf %1305, %1306 : vector<2x32xf32>
    %1308 = arith.mulf %1303, %1307 : vector<2x32xf32>
    %1309 = arith.addf %1304, %1308 : vector<2x32xf32>
    %1310 = math.tanh %1309 : vector<2x32xf32>
    %1311 = vector.extract_strided_slice %1162 {offsets = [5, 0, 0], sizes = [1, 2, 1], strides = [1, 1, 1]} : vector<8x2x1xf32> to vector<1x2x1xf32>
    %1312 = vector.shape_cast %1311 : vector<1x2x1xf32> to vector<2x1xf32>
    %1313 = vector.broadcast %1312 : vector<2x1xf32> to vector<2x32xf32>
    %1314 = arith.mulf %1313, %1310 : vector<2x32xf32>
    %cst_523 = arith.constant 1.000000e+00 : f32
    %1315 = vector.broadcast %cst_523 : f32 to vector<2x1xf32>
    %1316 = arith.subf %1315, %1312 : vector<2x1xf32>
    %1317 = vector.broadcast %1316 : vector<2x1xf32> to vector<2x32xf32>
    %1318 = arith.mulf %1317, %1293 : vector<2x32xf32>
    %1319 = arith.addf %1314, %1318 : vector<2x32xf32>
    %c12_524 = arith.constant 12 : index
    %c0_525 = arith.constant 0 : index
    %1320 = vector.load %arg31[%c12_524, %c0_525] : memref<16x64xf32, #tpu.memory_space<vmem>>, vector<2x64xf32>
    %cst_526 = arith.constant dense<0.000000e+00> : vector<2x64xf32>
    %1321 = tpu.matmul %1319, %742, %cst_526 {dimension_numbers = #tpu.dot_dimension_numbers<[1], [0], [0], [1], [0, 0, 1, 1], [], []>} : vector<2x32xf32>, vector<32x64xf32>, vector<2x64xf32> -> vector<2x64xf32>
    %1322 = vector.extract_strided_slice %1320 {offsets = [0, 0], sizes = [2, 32], strides = [1, 1]} : vector<2x64xf32> to vector<2x32xf32>
    %1323 = vector.extract_strided_slice %1321 {offsets = [0, 0], sizes = [2, 32], strides = [1, 1]} : vector<2x64xf32> to vector<2x32xf32>
    %1324 = arith.addf %1322, %1323 : vector<2x32xf32>
    %1325 = arith.negf %1324 : vector<2x32xf32>
    %1326 = math.exp %1325 : vector<2x32xf32>
    %cst_527 = arith.constant 1.000000e+00 : f32
    %1327 = vector.broadcast %cst_527 : f32 to vector<2x32xf32>
    %1328 = arith.addf %1327, %1326 : vector<2x32xf32>
    %1329 = arith.divf %1327, %1328 : vector<2x32xf32>
    %1330 = vector.extract_strided_slice %1320 {offsets = [0, 32], sizes = [2, 32], strides = [1, 1]} : vector<2x64xf32> to vector<2x32xf32>
    %1331 = vector.extract_strided_slice %1321 {offsets = [0, 32], sizes = [2, 32], strides = [1, 1]} : vector<2x64xf32> to vector<2x32xf32>
    %1332 = vector.broadcast %743 : vector<1x32xf32> to vector<2x32xf32>
    %1333 = arith.addf %1331, %1332 : vector<2x32xf32>
    %1334 = arith.mulf %1329, %1333 : vector<2x32xf32>
    %1335 = arith.addf %1330, %1334 : vector<2x32xf32>
    %1336 = math.tanh %1335 : vector<2x32xf32>
    %1337 = vector.extract_strided_slice %1162 {offsets = [6, 0, 0], sizes = [1, 2, 1], strides = [1, 1, 1]} : vector<8x2x1xf32> to vector<1x2x1xf32>
    %1338 = vector.shape_cast %1337 : vector<1x2x1xf32> to vector<2x1xf32>
    %1339 = vector.broadcast %1338 : vector<2x1xf32> to vector<2x32xf32>
    %1340 = arith.mulf %1339, %1336 : vector<2x32xf32>
    %cst_528 = arith.constant 1.000000e+00 : f32
    %1341 = vector.broadcast %cst_528 : f32 to vector<2x1xf32>
    %1342 = arith.subf %1341, %1338 : vector<2x1xf32>
    %1343 = vector.broadcast %1342 : vector<2x1xf32> to vector<2x32xf32>
    %1344 = arith.mulf %1343, %1319 : vector<2x32xf32>
    %1345 = arith.addf %1340, %1344 : vector<2x32xf32>
    %c14_529 = arith.constant 14 : index
    %c0_530 = arith.constant 0 : index
    %1346 = vector.load %arg31[%c14_529, %c0_530] : memref<16x64xf32, #tpu.memory_space<vmem>>, vector<2x64xf32>
    %cst_531 = arith.constant dense<0.000000e+00> : vector<2x64xf32>
    %1347 = tpu.matmul %1345, %742, %cst_531 {dimension_numbers = #tpu.dot_dimension_numbers<[1], [0], [0], [1], [0, 0, 1, 1], [], []>} : vector<2x32xf32>, vector<32x64xf32>, vector<2x64xf32> -> vector<2x64xf32>
    %1348 = vector.extract_strided_slice %1346 {offsets = [0, 0], sizes = [2, 32], strides = [1, 1]} : vector<2x64xf32> to vector<2x32xf32>
    %1349 = vector.extract_strided_slice %1347 {offsets = [0, 0], sizes = [2, 32], strides = [1, 1]} : vector<2x64xf32> to vector<2x32xf32>
    %1350 = arith.addf %1348, %1349 : vector<2x32xf32>
    %1351 = arith.negf %1350 : vector<2x32xf32>
    %1352 = math.exp %1351 : vector<2x32xf32>
    %cst_532 = arith.constant 1.000000e+00 : f32
    %1353 = vector.broadcast %cst_532 : f32 to vector<2x32xf32>
    %1354 = arith.addf %1353, %1352 : vector<2x32xf32>
    %1355 = arith.divf %1353, %1354 : vector<2x32xf32>
    %1356 = vector.extract_strided_slice %1346 {offsets = [0, 32], sizes = [2, 32], strides = [1, 1]} : vector<2x64xf32> to vector<2x32xf32>
    %1357 = vector.extract_strided_slice %1347 {offsets = [0, 32], sizes = [2, 32], strides = [1, 1]} : vector<2x64xf32> to vector<2x32xf32>
    %1358 = vector.broadcast %743 : vector<1x32xf32> to vector<2x32xf32>
    %1359 = arith.addf %1357, %1358 : vector<2x32xf32>
    %1360 = arith.mulf %1355, %1359 : vector<2x32xf32>
    %1361 = arith.addf %1356, %1360 : vector<2x32xf32>
    %1362 = math.tanh %1361 : vector<2x32xf32>
    %1363 = vector.extract_strided_slice %1162 {offsets = [7, 0, 0], sizes = [1, 2, 1], strides = [1, 1, 1]} : vector<8x2x1xf32> to vector<1x2x1xf32>
    %1364 = vector.shape_cast %1363 : vector<1x2x1xf32> to vector<2x1xf32>
    %1365 = vector.broadcast %1364 : vector<2x1xf32> to vector<2x32xf32>
    %1366 = arith.mulf %1365, %1362 : vector<2x32xf32>
    %cst_533 = arith.constant 1.000000e+00 : f32
    %1367 = vector.broadcast %cst_533 : f32 to vector<2x1xf32>
    %1368 = arith.subf %1367, %1364 : vector<2x1xf32>
    %1369 = vector.broadcast %1368 : vector<2x1xf32> to vector<2x32xf32>
    %1370 = arith.mulf %1369, %1345 : vector<2x32xf32>
    %1371 = arith.addf %1366, %1370 : vector<2x32xf32>
    %cst_534 = arith.constant dense<0.000000e+00> : vector<2x32xf32>
    %1372 = tpu.matmul %1061, %744, %cst_534 {dimension_numbers = #tpu.dot_dimension_numbers<[1], [0], [0], [1], [0, 0, 1, 1], [], []>} : vector<2x32xf32>, vector<32x32xf32>, vector<2x32xf32> -> vector<2x32xf32>
    %cst_535 = arith.constant dense<0.000000e+00> : vector<2x32xf32>
    %1373 = tpu.matmul %1371, %745, %cst_535 {dimension_numbers = #tpu.dot_dimension_numbers<[1], [0], [0], [1], [0, 0, 1, 1], [], []>} : vector<2x32xf32>, vector<32x32xf32>, vector<2x32xf32> -> vector<2x32xf32>
    %1374 = arith.addf %1372, %1373 : vector<2x32xf32>
    %1375 = arith.addf %1374, %740 : vector<2x32xf32>
    %cst_536 = arith.constant 0.000000e+00 : f32
    %1376 = vector.broadcast %cst_536 : f32 to vector<2x32xf32>
    %1377 = arith.maximumf %1375, %1376 : vector<2x32xf32>
    %c0_537 = arith.constant 0 : index
    %c0_538 = arith.constant 0 : index
    %1378 = vector.load %arg30[%c0_537, %c0_538] : memref<16x32xf32, #tpu.memory_space<vmem>>, vector<2x32xf32>
    %1379 = arith.mulf %1378, %1377 : vector<2x32xf32>
    %c0_539 = arith.constant 0 : index
    %c0_540 = arith.constant 0 : index
    %1380 = vector.load %arg32[%c0_539, %c0_540] : memref<16x64xf32, #tpu.memory_space<vmem>>, vector<2x32xf32>
    tpu.vector_store %arg32[%c0_539, %c0_540], %1379 {strides = array<i32>} : memref<16x64xf32, #tpu.memory_space<vmem>>, vector<2x32xf32>,
    %1381 = arith.subf %1378, %1377 : vector<2x32xf32>
    %1382 = math.absf %1381 : vector<2x32xf32>
    %c0_541 = arith.constant 0 : index
    %c32_542 = arith.constant 32 : index
    %1383 = vector.load %arg32[%c0_541, %c32_542] : memref<16x64xf32, #tpu.memory_space<vmem>>, vector<2x32xf32>
    tpu.vector_store %arg32[%c0_541, %c32_542], %1382 {strides = array<i32>} : memref<16x64xf32, #tpu.memory_space<vmem>>, vector<2x32xf32>,
    %c2_543 = arith.constant 2 : index
    %c0_544 = arith.constant 0 : index
    %1384 = vector.load %arg30[%c2_543, %c0_544] : memref<16x32xf32, #tpu.memory_space<vmem>>, vector<2x32xf32>
    %1385 = arith.mulf %1384, %1377 : vector<2x32xf32>
    %c2_545 = arith.constant 2 : index
    %c0_546 = arith.constant 0 : index
    %1386 = vector.load %arg32[%c2_545, %c0_546] : memref<16x64xf32, #tpu.memory_space<vmem>>, vector<2x32xf32>
    tpu.vector_store %arg32[%c2_545, %c0_546], %1385 {strides = array<i32>} : memref<16x64xf32, #tpu.memory_space<vmem>>, vector<2x32xf32>,
    %1387 = arith.subf %1384, %1377 : vector<2x32xf32>
    %1388 = math.absf %1387 : vector<2x32xf32>
    %c2_547 = arith.constant 2 : index
    %c32_548 = arith.constant 32 : index
    %1389 = vector.load %arg32[%c2_547, %c32_548] : memref<16x64xf32, #tpu.memory_space<vmem>>, vector<2x32xf32>
    tpu.vector_store %arg32[%c2_547, %c32_548], %1388 {strides = array<i32>} : memref<16x64xf32, #tpu.memory_space<vmem>>, vector<2x32xf32>,
    %c4_549 = arith.constant 4 : index
    %c0_550 = arith.constant 0 : index
    %1390 = vector.load %arg30[%c4_549, %c0_550] : memref<16x32xf32, #tpu.memory_space<vmem>>, vector<2x32xf32>
    %1391 = arith.mulf %1390, %1377 : vector<2x32xf32>
    %c4_551 = arith.constant 4 : index
    %c0_552 = arith.constant 0 : index
    %1392 = vector.load %arg32[%c4_551, %c0_552] : memref<16x64xf32, #tpu.memory_space<vmem>>, vector<2x32xf32>
    tpu.vector_store %arg32[%c4_551, %c0_552], %1391 {strides = array<i32>} : memref<16x64xf32, #tpu.memory_space<vmem>>, vector<2x32xf32>,
    %1393 = arith.subf %1390, %1377 : vector<2x32xf32>
    %1394 = math.absf %1393 : vector<2x32xf32>
    %c4_553 = arith.constant 4 : index
    %c32_554 = arith.constant 32 : index
    %1395 = vector.load %arg32[%c4_553, %c32_554] : memref<16x64xf32, #tpu.memory_space<vmem>>, vector<2x32xf32>
    tpu.vector_store %arg32[%c4_553, %c32_554], %1394 {strides = array<i32>} : memref<16x64xf32, #tpu.memory_space<vmem>>, vector<2x32xf32>,
    %c6_555 = arith.constant 6 : index
    %c0_556 = arith.constant 0 : index
    %1396 = vector.load %arg30[%c6_555, %c0_556] : memref<16x32xf32, #tpu.memory_space<vmem>>, vector<2x32xf32>
    %1397 = arith.mulf %1396, %1377 : vector<2x32xf32>
    %c6_557 = arith.constant 6 : index
    %c0_558 = arith.constant 0 : index
    %1398 = vector.load %arg32[%c6_557, %c0_558] : memref<16x64xf32, #tpu.memory_space<vmem>>, vector<2x32xf32>
    tpu.vector_store %arg32[%c6_557, %c0_558], %1397 {strides = array<i32>} : memref<16x64xf32, #tpu.memory_space<vmem>>, vector<2x32xf32>,
    %1399 = arith.subf %1396, %1377 : vector<2x32xf32>
    %1400 = math.absf %1399 : vector<2x32xf32>
    %c6_559 = arith.constant 6 : index
    %c32_560 = arith.constant 32 : index
    %1401 = vector.load %arg32[%c6_559, %c32_560] : memref<16x64xf32, #tpu.memory_space<vmem>>, vector<2x32xf32>
    tpu.vector_store %arg32[%c6_559, %c32_560], %1400 {strides = array<i32>} : memref<16x64xf32, #tpu.memory_space<vmem>>, vector<2x32xf32>,
    %c8_561 = arith.constant 8 : index
    %c0_562 = arith.constant 0 : index
    %1402 = vector.load %arg30[%c8_561, %c0_562] : memref<16x32xf32, #tpu.memory_space<vmem>>, vector<2x32xf32>
    %1403 = arith.mulf %1402, %1377 : vector<2x32xf32>
    %c8_563 = arith.constant 8 : index
    %c0_564 = arith.constant 0 : index
    %1404 = vector.load %arg32[%c8_563, %c0_564] : memref<16x64xf32, #tpu.memory_space<vmem>>, vector<2x32xf32>
    tpu.vector_store %arg32[%c8_563, %c0_564], %1403 {strides = array<i32>} : memref<16x64xf32, #tpu.memory_space<vmem>>, vector<2x32xf32>,
    %1405 = arith.subf %1402, %1377 : vector<2x32xf32>
    %1406 = math.absf %1405 : vector<2x32xf32>
    %c8_565 = arith.constant 8 : index
    %c32_566 = arith.constant 32 : index
    %1407 = vector.load %arg32[%c8_565, %c32_566] : memref<16x64xf32, #tpu.memory_space<vmem>>, vector<2x32xf32>
    tpu.vector_store %arg32[%c8_565, %c32_566], %1406 {strides = array<i32>} : memref<16x64xf32, #tpu.memory_space<vmem>>, vector<2x32xf32>,
    %c10_567 = arith.constant 10 : index
    %c0_568 = arith.constant 0 : index
    %1408 = vector.load %arg30[%c10_567, %c0_568] : memref<16x32xf32, #tpu.memory_space<vmem>>, vector<2x32xf32>
    %1409 = arith.mulf %1408, %1377 : vector<2x32xf32>
    %c10_569 = arith.constant 10 : index
    %c0_570 = arith.constant 0 : index
    %1410 = vector.load %arg32[%c10_569, %c0_570] : memref<16x64xf32, #tpu.memory_space<vmem>>, vector<2x32xf32>
    tpu.vector_store %arg32[%c10_569, %c0_570], %1409 {strides = array<i32>} : memref<16x64xf32, #tpu.memory_space<vmem>>, vector<2x32xf32>,
    %1411 = arith.subf %1408, %1377 : vector<2x32xf32>
    %1412 = math.absf %1411 : vector<2x32xf32>
    %c10_571 = arith.constant 10 : index
    %c32_572 = arith.constant 32 : index
    %1413 = vector.load %arg32[%c10_571, %c32_572] : memref<16x64xf32, #tpu.memory_space<vmem>>, vector<2x32xf32>
    tpu.vector_store %arg32[%c10_571, %c32_572], %1412 {strides = array<i32>} : memref<16x64xf32, #tpu.memory_space<vmem>>, vector<2x32xf32>,
    %c12_573 = arith.constant 12 : index
    %c0_574 = arith.constant 0 : index
    %1414 = vector.load %arg30[%c12_573, %c0_574] : memref<16x32xf32, #tpu.memory_space<vmem>>, vector<2x32xf32>
    %1415 = arith.mulf %1414, %1377 : vector<2x32xf32>
    %c12_575 = arith.constant 12 : index
    %c0_576 = arith.constant 0 : index
    %1416 = vector.load %arg32[%c12_575, %c0_576] : memref<16x64xf32, #tpu.memory_space<vmem>>, vector<2x32xf32>
    tpu.vector_store %arg32[%c12_575, %c0_576], %1415 {strides = array<i32>} : memref<16x64xf32, #tpu.memory_space<vmem>>, vector<2x32xf32>,
    %1417 = arith.subf %1414, %1377 : vector<2x32xf32>
    %1418 = math.absf %1417 : vector<2x32xf32>
    %c12_577 = arith.constant 12 : index
    %c32_578 = arith.constant 32 : index
    %1419 = vector.load %arg32[%c12_577, %c32_578] : memref<16x64xf32, #tpu.memory_space<vmem>>, vector<2x32xf32>
    tpu.vector_store %arg32[%c12_577, %c32_578], %1418 {strides = array<i32>} : memref<16x64xf32, #tpu.memory_space<vmem>>, vector<2x32xf32>,
    %c14_579 = arith.constant 14 : index
    %c0_580 = arith.constant 0 : index
    %1420 = vector.load %arg30[%c14_579, %c0_580] : memref<16x32xf32, #tpu.memory_space<vmem>>, vector<2x32xf32>
    %1421 = arith.mulf %1420, %1377 : vector<2x32xf32>
    %c14_581 = arith.constant 14 : index
    %c0_582 = arith.constant 0 : index
    %1422 = vector.load %arg32[%c14_581, %c0_582] : memref<16x64xf32, #tpu.memory_space<vmem>>, vector<2x32xf32>
    tpu.vector_store %arg32[%c14_581, %c0_582], %1421 {strides = array<i32>} : memref<16x64xf32, #tpu.memory_space<vmem>>, vector<2x32xf32>,
    %1423 = arith.subf %1420, %1377 : vector<2x32xf32>
    %1424 = math.absf %1423 : vector<2x32xf32>
    %c14_583 = arith.constant 14 : index
    %c32_584 = arith.constant 32 : index
    %1425 = vector.load %arg32[%c14_583, %c32_584] : memref<16x64xf32, #tpu.memory_space<vmem>>, vector<2x32xf32>
    tpu.vector_store %arg32[%c14_583, %c32_584], %1424 {strides = array<i32>} : memref<16x64xf32, #tpu.memory_space<vmem>>, vector<2x32xf32>,
    %c0_585 = arith.constant 0 : index
    %c0_586 = arith.constant 0 : index
    %1426 = vector.load %arg32[%c0_585, %c0_586] : memref<16x64xf32, #tpu.memory_space<vmem>>, vector<16x64xf32>
    %c0_587 = arith.constant 0 : index
    %c0_588 = arith.constant 0 : index
    %1427 = vector.load %arg15[%c0_587, %c0_588] : memref<64x32xf32, #tpu.memory_space<vmem>>, vector<64x32xf32>
    %cst_589 = arith.constant dense<0.000000e+00> : vector<16x32xf32>
    %1428 = tpu.matmul %1426, %1427, %cst_589 {dimension_numbers = #tpu.dot_dimension_numbers<[1], [0], [0], [1], [0, 0, 1, 1], [], []>} : vector<16x64xf32>, vector<64x32xf32>, vector<16x32xf32> -> vector<16x32xf32>
    %1429 = arith.addf %735, %1428 : vector<16x32xf32>
    %1430 = math.tanh %1429 : vector<16x32xf32>
    %1431 = vector.broadcast %741 : vector<1x32xf32> to vector<16x32xf32>
    %1432 = arith.mulf %1430, %1431 : vector<16x32xf32>
    %cst_590 = arith.constant dense<0.000000e+00> : vector<16xf32>
    %1433 = vector.multi_reduction <add>, %1432, %cst_590 [1] : vector<16x32xf32> to vector<16xf32>
    %1434 = vector.shape_cast %1433 : vector<16xf32> to vector<16x1xf32>
    %c0_591 = arith.constant 0 : index
    %c0_592 = arith.constant 0 : index
    %1435 = vector.load %arg33[%c0_591, %c0_592] : memref<16x1xf32, #tpu.memory_space<vmem>>, vector<16x1xf32>
    tpu.vector_store %arg33[%c0_591, %c0_592], %1434 {strides = array<i32>} : memref<16x1xf32, #tpu.memory_space<vmem>>, vector<16x1xf32>,
    %c0_593 = arith.constant 0 : index
    %c0_594 = arith.constant 0 : index
    %1436 = vector.load %arg33[%c0_593, %c0_594] : memref<16x1xf32, #tpu.memory_space<vmem>>, vector<2x1xf32>
    %c0_595 = arith.constant 0 : index
    %c0_596 = arith.constant 0 : index
    %c0_597 = arith.constant 0 : index
    %1437 = vector.load %arg34[%c0_595, %c0_596, %c0_597] : memref<8x2x1xf32, #tpu.memory_space<vmem>>, vector<1x2x1xf32>
    %1438 = vector.shape_cast %1437 : vector<1x2x1xf32> to vector<2x1xf32>
    %1439 = vector.shape_cast %1436 : vector<2x1xf32> to vector<1x2x1xf32>
    tpu.vector_store %arg34[%c0_595, %c0_596, %c0_597], %1439 {strides = array<i32>} : memref<8x2x1xf32, #tpu.memory_space<vmem>>, vector<1x2x1xf32>,
    %c2_598 = arith.constant 2 : index
    %c0_599 = arith.constant 0 : index
    %1440 = vector.load %arg33[%c2_598, %c0_599] : memref<16x1xf32, #tpu.memory_space<vmem>>, vector<2x1xf32>
    %c1_600 = arith.constant 1 : index
    %c0_601 = arith.constant 0 : index
    %c0_602 = arith.constant 0 : index
    %1441 = vector.load %arg34[%c1_600, %c0_601, %c0_602] : memref<8x2x1xf32, #tpu.memory_space<vmem>>, vector<1x2x1xf32>
    %1442 = vector.shape_cast %1441 : vector<1x2x1xf32> to vector<2x1xf32>
    %1443 = vector.shape_cast %1440 : vector<2x1xf32> to vector<1x2x1xf32>
    tpu.vector_store %arg34[%c1_600, %c0_601, %c0_602], %1443 {strides = array<i32>} : memref<8x2x1xf32, #tpu.memory_space<vmem>>, vector<1x2x1xf32>,
    %c4_603 = arith.constant 4 : index
    %c0_604 = arith.constant 0 : index
    %1444 = vector.load %arg33[%c4_603, %c0_604] : memref<16x1xf32, #tpu.memory_space<vmem>>, vector<2x1xf32>
    %c2_605 = arith.constant 2 : index
    %c0_606 = arith.constant 0 : index
    %c0_607 = arith.constant 0 : index
    %1445 = vector.load %arg34[%c2_605, %c0_606, %c0_607] : memref<8x2x1xf32, #tpu.memory_space<vmem>>, vector<1x2x1xf32>
    %1446 = vector.shape_cast %1445 : vector<1x2x1xf32> to vector<2x1xf32>
    %1447 = vector.shape_cast %1444 : vector<2x1xf32> to vector<1x2x1xf32>
    tpu.vector_store %arg34[%c2_605, %c0_606, %c0_607], %1447 {strides = array<i32>} : memref<8x2x1xf32, #tpu.memory_space<vmem>>, vector<1x2x1xf32>,
    %c6_608 = arith.constant 6 : index
    %c0_609 = arith.constant 0 : index
    %1448 = vector.load %arg33[%c6_608, %c0_609] : memref<16x1xf32, #tpu.memory_space<vmem>>, vector<2x1xf32>
    %c3_610 = arith.constant 3 : index
    %c0_611 = arith.constant 0 : index
    %c0_612 = arith.constant 0 : index
    %1449 = vector.load %arg34[%c3_610, %c0_611, %c0_612] : memref<8x2x1xf32, #tpu.memory_space<vmem>>, vector<1x2x1xf32>
    %1450 = vector.shape_cast %1449 : vector<1x2x1xf32> to vector<2x1xf32>
    %1451 = vector.shape_cast %1448 : vector<2x1xf32> to vector<1x2x1xf32>
    tpu.vector_store %arg34[%c3_610, %c0_611, %c0_612], %1451 {strides = array<i32>} : memref<8x2x1xf32, #tpu.memory_space<vmem>>, vector<1x2x1xf32>,
    %c8_613 = arith.constant 8 : index
    %c0_614 = arith.constant 0 : index
    %1452 = vector.load %arg33[%c8_613, %c0_614] : memref<16x1xf32, #tpu.memory_space<vmem>>, vector<2x1xf32>
    %c4_615 = arith.constant 4 : index
    %c0_616 = arith.constant 0 : index
    %c0_617 = arith.constant 0 : index
    %1453 = vector.load %arg34[%c4_615, %c0_616, %c0_617] : memref<8x2x1xf32, #tpu.memory_space<vmem>>, vector<1x2x1xf32>
    %1454 = vector.shape_cast %1453 : vector<1x2x1xf32> to vector<2x1xf32>
    %1455 = vector.shape_cast %1452 : vector<2x1xf32> to vector<1x2x1xf32>
    tpu.vector_store %arg34[%c4_615, %c0_616, %c0_617], %1455 {strides = array<i32>} : memref<8x2x1xf32, #tpu.memory_space<vmem>>, vector<1x2x1xf32>,
    %c10_618 = arith.constant 10 : index
    %c0_619 = arith.constant 0 : index
    %1456 = vector.load %arg33[%c10_618, %c0_619] : memref<16x1xf32, #tpu.memory_space<vmem>>, vector<2x1xf32>
    %c5_620 = arith.constant 5 : index
    %c0_621 = arith.constant 0 : index
    %c0_622 = arith.constant 0 : index
    %1457 = vector.load %arg34[%c5_620, %c0_621, %c0_622] : memref<8x2x1xf32, #tpu.memory_space<vmem>>, vector<1x2x1xf32>
    %1458 = vector.shape_cast %1457 : vector<1x2x1xf32> to vector<2x1xf32>
    %1459 = vector.shape_cast %1456 : vector<2x1xf32> to vector<1x2x1xf32>
    tpu.vector_store %arg34[%c5_620, %c0_621, %c0_622], %1459 {strides = array<i32>} : memref<8x2x1xf32, #tpu.memory_space<vmem>>, vector<1x2x1xf32>,
    %c12_623 = arith.constant 12 : index
    %c0_624 = arith.constant 0 : index
    %1460 = vector.load %arg33[%c12_623, %c0_624] : memref<16x1xf32, #tpu.memory_space<vmem>>, vector<2x1xf32>
    %c6_625 = arith.constant 6 : index
    %c0_626 = arith.constant 0 : index
    %c0_627 = arith.constant 0 : index
    %1461 = vector.load %arg34[%c6_625, %c0_626, %c0_627] : memref<8x2x1xf32, #tpu.memory_space<vmem>>, vector<1x2x1xf32>
    %1462 = vector.shape_cast %1461 : vector<1x2x1xf32> to vector<2x1xf32>
    %1463 = vector.shape_cast %1460 : vector<2x1xf32> to vector<1x2x1xf32>
    tpu.vector_store %arg34[%c6_625, %c0_626, %c0_627], %1463 {strides = array<i32>} : memref<8x2x1xf32, #tpu.memory_space<vmem>>, vector<1x2x1xf32>,
    %c14_628 = arith.constant 14 : index
    %c0_629 = arith.constant 0 : index
    %1464 = vector.load %arg33[%c14_628, %c0_629] : memref<16x1xf32, #tpu.memory_space<vmem>>, vector<2x1xf32>
    %c7_630 = arith.constant 7 : index
    %c0_631 = arith.constant 0 : index
    %c0_632 = arith.constant 0 : index
    %1465 = vector.load %arg34[%c7_630, %c0_631, %c0_632] : memref<8x2x1xf32, #tpu.memory_space<vmem>>, vector<1x2x1xf32>
    %1466 = vector.shape_cast %1465 : vector<1x2x1xf32> to vector<2x1xf32>
    %1467 = vector.shape_cast %1464 : vector<2x1xf32> to vector<1x2x1xf32>
    tpu.vector_store %arg34[%c7_630, %c0_631, %c0_632], %1467 {strides = array<i32>} : memref<8x2x1xf32, #tpu.memory_space<vmem>>, vector<1x2x1xf32>,
    %c0_633 = arith.constant 0 : index
    %c0_634 = arith.constant 0 : index
    %c0_635 = arith.constant 0 : index
    %1468 = vector.load %arg34[%c0_633, %c0_634, %c0_635] : memref<8x2x1xf32, #tpu.memory_space<vmem>>, vector<8x2x1xf32>
    %cst_636 = arith.constant dense<0xFF800000> : vector<2x1xf32>
    %1469 = vector.multi_reduction <maximumf>, %1468, %cst_636 [0] : vector<8x2x1xf32> to vector<2x1xf32>
    %1470 = vector.shape_cast %1469 : vector<2x1xf32> to vector<1x2x1xf32>
    %1471 = vector.broadcast %1470 : vector<1x2x1xf32> to vector<8x2x1xf32>
    %1472 = arith.subf %1468, %1471 : vector<8x2x1xf32>
    %1473 = math.exp %1472 : vector<8x2x1xf32>
    %cst_637 = arith.constant dense<0.000000e+00> : vector<2x1xf32>
    %1474 = vector.multi_reduction <add>, %1473, %cst_637 [0] : vector<8x2x1xf32> to vector<2x1xf32>
    %1475 = vector.shape_cast %1474 : vector<2x1xf32> to vector<1x2x1xf32>
    %1476 = tpu.reciprocal %1475 {approx = true} : vector<1x2x1xf32> -> vector<1x2x1xf32>
    %1477 = vector.broadcast %1476 : vector<1x2x1xf32> to vector<8x2x1xf32>
    %1478 = arith.mulf %1473, %1477 : vector<8x2x1xf32>
    %cst_638 = arith.constant 0.000000e+00 : f32
    %1479 = vector.broadcast %cst_638 : f32 to vector<2x32xf32>
    %c0_639 = arith.constant 0 : index
    %c0_640 = arith.constant 0 : index
    %1480 = vector.load %arg31[%c0_639, %c0_640] : memref<16x64xf32, #tpu.memory_space<vmem>>, vector<2x64xf32>
    %cst_641 = arith.constant dense<0.000000e+00> : vector<2x64xf32>
    %1481 = tpu.matmul %1479, %742, %cst_641 {dimension_numbers = #tpu.dot_dimension_numbers<[1], [0], [0], [1], [0, 0, 1, 1], [], []>} : vector<2x32xf32>, vector<32x64xf32>, vector<2x64xf32> -> vector<2x64xf32>
    %1482 = vector.extract_strided_slice %1480 {offsets = [0, 0], sizes = [2, 32], strides = [1, 1]} : vector<2x64xf32> to vector<2x32xf32>
    %1483 = vector.extract_strided_slice %1481 {offsets = [0, 0], sizes = [2, 32], strides = [1, 1]} : vector<2x64xf32> to vector<2x32xf32>
    %1484 = arith.addf %1482, %1483 : vector<2x32xf32>
    %1485 = arith.negf %1484 : vector<2x32xf32>
    %1486 = math.exp %1485 : vector<2x32xf32>
    %cst_642 = arith.constant 1.000000e+00 : f32
    %1487 = vector.broadcast %cst_642 : f32 to vector<2x32xf32>
    %1488 = arith.addf %1487, %1486 : vector<2x32xf32>
    %1489 = arith.divf %1487, %1488 : vector<2x32xf32>
    %1490 = vector.extract_strided_slice %1480 {offsets = [0, 32], sizes = [2, 32], strides = [1, 1]} : vector<2x64xf32> to vector<2x32xf32>
    %1491 = vector.extract_strided_slice %1481 {offsets = [0, 32], sizes = [2, 32], strides = [1, 1]} : vector<2x64xf32> to vector<2x32xf32>
    %1492 = vector.broadcast %743 : vector<1x32xf32> to vector<2x32xf32>
    %1493 = arith.addf %1491, %1492 : vector<2x32xf32>
    %1494 = arith.mulf %1489, %1493 : vector<2x32xf32>
    %1495 = arith.addf %1490, %1494 : vector<2x32xf32>
    %1496 = math.tanh %1495 : vector<2x32xf32>
    %1497 = vector.extract_strided_slice %1478 {offsets = [0, 0, 0], sizes = [1, 2, 1], strides = [1, 1, 1]} : vector<8x2x1xf32> to vector<1x2x1xf32>
    %1498 = vector.shape_cast %1497 : vector<1x2x1xf32> to vector<2x1xf32>
    %1499 = vector.broadcast %1498 : vector<2x1xf32> to vector<2x32xf32>
    %1500 = arith.mulf %1499, %1496 : vector<2x32xf32>
    %cst_643 = arith.constant 1.000000e+00 : f32
    %1501 = vector.broadcast %cst_643 : f32 to vector<2x1xf32>
    %1502 = arith.subf %1501, %1498 : vector<2x1xf32>
    %1503 = vector.broadcast %1502 : vector<2x1xf32> to vector<2x32xf32>
    %1504 = arith.mulf %1503, %1479 : vector<2x32xf32>
    %1505 = arith.addf %1500, %1504 : vector<2x32xf32>
    %c2_644 = arith.constant 2 : index
    %c0_645 = arith.constant 0 : index
    %1506 = vector.load %arg31[%c2_644, %c0_645] : memref<16x64xf32, #tpu.memory_space<vmem>>, vector<2x64xf32>
    %cst_646 = arith.constant dense<0.000000e+00> : vector<2x64xf32>
    %1507 = tpu.matmul %1505, %742, %cst_646 {dimension_numbers = #tpu.dot_dimension_numbers<[1], [0], [0], [1], [0, 0, 1, 1], [], []>} : vector<2x32xf32>, vector<32x64xf32>, vector<2x64xf32> -> vector<2x64xf32>
    %1508 = vector.extract_strided_slice %1506 {offsets = [0, 0], sizes = [2, 32], strides = [1, 1]} : vector<2x64xf32> to vector<2x32xf32>
    %1509 = vector.extract_strided_slice %1507 {offsets = [0, 0], sizes = [2, 32], strides = [1, 1]} : vector<2x64xf32> to vector<2x32xf32>
    %1510 = arith.addf %1508, %1509 : vector<2x32xf32>
    %1511 = arith.negf %1510 : vector<2x32xf32>
    %1512 = math.exp %1511 : vector<2x32xf32>
    %cst_647 = arith.constant 1.000000e+00 : f32
    %1513 = vector.broadcast %cst_647 : f32 to vector<2x32xf32>
    %1514 = arith.addf %1513, %1512 : vector<2x32xf32>
    %1515 = arith.divf %1513, %1514 : vector<2x32xf32>
    %1516 = vector.extract_strided_slice %1506 {offsets = [0, 32], sizes = [2, 32], strides = [1, 1]} : vector<2x64xf32> to vector<2x32xf32>
    %1517 = vector.extract_strided_slice %1507 {offsets = [0, 32], sizes = [2, 32], strides = [1, 1]} : vector<2x64xf32> to vector<2x32xf32>
    %1518 = vector.broadcast %743 : vector<1x32xf32> to vector<2x32xf32>
    %1519 = arith.addf %1517, %1518 : vector<2x32xf32>
    %1520 = arith.mulf %1515, %1519 : vector<2x32xf32>
    %1521 = arith.addf %1516, %1520 : vector<2x32xf32>
    %1522 = math.tanh %1521 : vector<2x32xf32>
    %1523 = vector.extract_strided_slice %1478 {offsets = [1, 0, 0], sizes = [1, 2, 1], strides = [1, 1, 1]} : vector<8x2x1xf32> to vector<1x2x1xf32>
    %1524 = vector.shape_cast %1523 : vector<1x2x1xf32> to vector<2x1xf32>
    %1525 = vector.broadcast %1524 : vector<2x1xf32> to vector<2x32xf32>
    %1526 = arith.mulf %1525, %1522 : vector<2x32xf32>
    %cst_648 = arith.constant 1.000000e+00 : f32
    %1527 = vector.broadcast %cst_648 : f32 to vector<2x1xf32>
    %1528 = arith.subf %1527, %1524 : vector<2x1xf32>
    %1529 = vector.broadcast %1528 : vector<2x1xf32> to vector<2x32xf32>
    %1530 = arith.mulf %1529, %1505 : vector<2x32xf32>
    %1531 = arith.addf %1526, %1530 : vector<2x32xf32>
    %c4_649 = arith.constant 4 : index
    %c0_650 = arith.constant 0 : index
    %1532 = vector.load %arg31[%c4_649, %c0_650] : memref<16x64xf32, #tpu.memory_space<vmem>>, vector<2x64xf32>
    %cst_651 = arith.constant dense<0.000000e+00> : vector<2x64xf32>
    %1533 = tpu.matmul %1531, %742, %cst_651 {dimension_numbers = #tpu.dot_dimension_numbers<[1], [0], [0], [1], [0, 0, 1, 1], [], []>} : vector<2x32xf32>, vector<32x64xf32>, vector<2x64xf32> -> vector<2x64xf32>
    %1534 = vector.extract_strided_slice %1532 {offsets = [0, 0], sizes = [2, 32], strides = [1, 1]} : vector<2x64xf32> to vector<2x32xf32>
    %1535 = vector.extract_strided_slice %1533 {offsets = [0, 0], sizes = [2, 32], strides = [1, 1]} : vector<2x64xf32> to vector<2x32xf32>
    %1536 = arith.addf %1534, %1535 : vector<2x32xf32>
    %1537 = arith.negf %1536 : vector<2x32xf32>
    %1538 = math.exp %1537 : vector<2x32xf32>
    %cst_652 = arith.constant 1.000000e+00 : f32
    %1539 = vector.broadcast %cst_652 : f32 to vector<2x32xf32>
    %1540 = arith.addf %1539, %1538 : vector<2x32xf32>
    %1541 = arith.divf %1539, %1540 : vector<2x32xf32>
    %1542 = vector.extract_strided_slice %1532 {offsets = [0, 32], sizes = [2, 32], strides = [1, 1]} : vector<2x64xf32> to vector<2x32xf32>
    %1543 = vector.extract_strided_slice %1533 {offsets = [0, 32], sizes = [2, 32], strides = [1, 1]} : vector<2x64xf32> to vector<2x32xf32>
    %1544 = vector.broadcast %743 : vector<1x32xf32> to vector<2x32xf32>
    %1545 = arith.addf %1543, %1544 : vector<2x32xf32>
    %1546 = arith.mulf %1541, %1545 : vector<2x32xf32>
    %1547 = arith.addf %1542, %1546 : vector<2x32xf32>
    %1548 = math.tanh %1547 : vector<2x32xf32>
    %1549 = vector.extract_strided_slice %1478 {offsets = [2, 0, 0], sizes = [1, 2, 1], strides = [1, 1, 1]} : vector<8x2x1xf32> to vector<1x2x1xf32>
    %1550 = vector.shape_cast %1549 : vector<1x2x1xf32> to vector<2x1xf32>
    %1551 = vector.broadcast %1550 : vector<2x1xf32> to vector<2x32xf32>
    %1552 = arith.mulf %1551, %1548 : vector<2x32xf32>
    %cst_653 = arith.constant 1.000000e+00 : f32
    %1553 = vector.broadcast %cst_653 : f32 to vector<2x1xf32>
    %1554 = arith.subf %1553, %1550 : vector<2x1xf32>
    %1555 = vector.broadcast %1554 : vector<2x1xf32> to vector<2x32xf32>
    %1556 = arith.mulf %1555, %1531 : vector<2x32xf32>
    %1557 = arith.addf %1552, %1556 : vector<2x32xf32>
    %c6_654 = arith.constant 6 : index
    %c0_655 = arith.constant 0 : index
    %1558 = vector.load %arg31[%c6_654, %c0_655] : memref<16x64xf32, #tpu.memory_space<vmem>>, vector<2x64xf32>
    %cst_656 = arith.constant dense<0.000000e+00> : vector<2x64xf32>
    %1559 = tpu.matmul %1557, %742, %cst_656 {dimension_numbers = #tpu.dot_dimension_numbers<[1], [0], [0], [1], [0, 0, 1, 1], [], []>} : vector<2x32xf32>, vector<32x64xf32>, vector<2x64xf32> -> vector<2x64xf32>
    %1560 = vector.extract_strided_slice %1558 {offsets = [0, 0], sizes = [2, 32], strides = [1, 1]} : vector<2x64xf32> to vector<2x32xf32>
    %1561 = vector.extract_strided_slice %1559 {offsets = [0, 0], sizes = [2, 32], strides = [1, 1]} : vector<2x64xf32> to vector<2x32xf32>
    %1562 = arith.addf %1560, %1561 : vector<2x32xf32>
    %1563 = arith.negf %1562 : vector<2x32xf32>
    %1564 = math.exp %1563 : vector<2x32xf32>
    %cst_657 = arith.constant 1.000000e+00 : f32
    %1565 = vector.broadcast %cst_657 : f32 to vector<2x32xf32>
    %1566 = arith.addf %1565, %1564 : vector<2x32xf32>
    %1567 = arith.divf %1565, %1566 : vector<2x32xf32>
    %1568 = vector.extract_strided_slice %1558 {offsets = [0, 32], sizes = [2, 32], strides = [1, 1]} : vector<2x64xf32> to vector<2x32xf32>
    %1569 = vector.extract_strided_slice %1559 {offsets = [0, 32], sizes = [2, 32], strides = [1, 1]} : vector<2x64xf32> to vector<2x32xf32>
    %1570 = vector.broadcast %743 : vector<1x32xf32> to vector<2x32xf32>
    %1571 = arith.addf %1569, %1570 : vector<2x32xf32>
    %1572 = arith.mulf %1567, %1571 : vector<2x32xf32>
    %1573 = arith.addf %1568, %1572 : vector<2x32xf32>
    %1574 = math.tanh %1573 : vector<2x32xf32>
    %1575 = vector.extract_strided_slice %1478 {offsets = [3, 0, 0], sizes = [1, 2, 1], strides = [1, 1, 1]} : vector<8x2x1xf32> to vector<1x2x1xf32>
    %1576 = vector.shape_cast %1575 : vector<1x2x1xf32> to vector<2x1xf32>
    %1577 = vector.broadcast %1576 : vector<2x1xf32> to vector<2x32xf32>
    %1578 = arith.mulf %1577, %1574 : vector<2x32xf32>
    %cst_658 = arith.constant 1.000000e+00 : f32
    %1579 = vector.broadcast %cst_658 : f32 to vector<2x1xf32>
    %1580 = arith.subf %1579, %1576 : vector<2x1xf32>
    %1581 = vector.broadcast %1580 : vector<2x1xf32> to vector<2x32xf32>
    %1582 = arith.mulf %1581, %1557 : vector<2x32xf32>
    %1583 = arith.addf %1578, %1582 : vector<2x32xf32>
    %c8_659 = arith.constant 8 : index
    %c0_660 = arith.constant 0 : index
    %1584 = vector.load %arg31[%c8_659, %c0_660] : memref<16x64xf32, #tpu.memory_space<vmem>>, vector<2x64xf32>
    %cst_661 = arith.constant dense<0.000000e+00> : vector<2x64xf32>
    %1585 = tpu.matmul %1583, %742, %cst_661 {dimension_numbers = #tpu.dot_dimension_numbers<[1], [0], [0], [1], [0, 0, 1, 1], [], []>} : vector<2x32xf32>, vector<32x64xf32>, vector<2x64xf32> -> vector<2x64xf32>
    %1586 = vector.extract_strided_slice %1584 {offsets = [0, 0], sizes = [2, 32], strides = [1, 1]} : vector<2x64xf32> to vector<2x32xf32>
    %1587 = vector.extract_strided_slice %1585 {offsets = [0, 0], sizes = [2, 32], strides = [1, 1]} : vector<2x64xf32> to vector<2x32xf32>
    %1588 = arith.addf %1586, %1587 : vector<2x32xf32>
    %1589 = arith.negf %1588 : vector<2x32xf32>
    %1590 = math.exp %1589 : vector<2x32xf32>
    %cst_662 = arith.constant 1.000000e+00 : f32
    %1591 = vector.broadcast %cst_662 : f32 to vector<2x32xf32>
    %1592 = arith.addf %1591, %1590 : vector<2x32xf32>
    %1593 = arith.divf %1591, %1592 : vector<2x32xf32>
    %1594 = vector.extract_strided_slice %1584 {offsets = [0, 32], sizes = [2, 32], strides = [1, 1]} : vector<2x64xf32> to vector<2x32xf32>
    %1595 = vector.extract_strided_slice %1585 {offsets = [0, 32], sizes = [2, 32], strides = [1, 1]} : vector<2x64xf32> to vector<2x32xf32>
    %1596 = vector.broadcast %743 : vector<1x32xf32> to vector<2x32xf32>
    %1597 = arith.addf %1595, %1596 : vector<2x32xf32>
    %1598 = arith.mulf %1593, %1597 : vector<2x32xf32>
    %1599 = arith.addf %1594, %1598 : vector<2x32xf32>
    %1600 = math.tanh %1599 : vector<2x32xf32>
    %1601 = vector.extract_strided_slice %1478 {offsets = [4, 0, 0], sizes = [1, 2, 1], strides = [1, 1, 1]} : vector<8x2x1xf32> to vector<1x2x1xf32>
    %1602 = vector.shape_cast %1601 : vector<1x2x1xf32> to vector<2x1xf32>
    %1603 = vector.broadcast %1602 : vector<2x1xf32> to vector<2x32xf32>
    %1604 = arith.mulf %1603, %1600 : vector<2x32xf32>
    %cst_663 = arith.constant 1.000000e+00 : f32
    %1605 = vector.broadcast %cst_663 : f32 to vector<2x1xf32>
    %1606 = arith.subf %1605, %1602 : vector<2x1xf32>
    %1607 = vector.broadcast %1606 : vector<2x1xf32> to vector<2x32xf32>
    %1608 = arith.mulf %1607, %1583 : vector<2x32xf32>
    %1609 = arith.addf %1604, %1608 : vector<2x32xf32>
    %c10_664 = arith.constant 10 : index
    %c0_665 = arith.constant 0 : index
    %1610 = vector.load %arg31[%c10_664, %c0_665] : memref<16x64xf32, #tpu.memory_space<vmem>>, vector<2x64xf32>
    %cst_666 = arith.constant dense<0.000000e+00> : vector<2x64xf32>
    %1611 = tpu.matmul %1609, %742, %cst_666 {dimension_numbers = #tpu.dot_dimension_numbers<[1], [0], [0], [1], [0, 0, 1, 1], [], []>} : vector<2x32xf32>, vector<32x64xf32>, vector<2x64xf32> -> vector<2x64xf32>
    %1612 = vector.extract_strided_slice %1610 {offsets = [0, 0], sizes = [2, 32], strides = [1, 1]} : vector<2x64xf32> to vector<2x32xf32>
    %1613 = vector.extract_strided_slice %1611 {offsets = [0, 0], sizes = [2, 32], strides = [1, 1]} : vector<2x64xf32> to vector<2x32xf32>
    %1614 = arith.addf %1612, %1613 : vector<2x32xf32>
    %1615 = arith.negf %1614 : vector<2x32xf32>
    %1616 = math.exp %1615 : vector<2x32xf32>
    %cst_667 = arith.constant 1.000000e+00 : f32
    %1617 = vector.broadcast %cst_667 : f32 to vector<2x32xf32>
    %1618 = arith.addf %1617, %1616 : vector<2x32xf32>
    %1619 = arith.divf %1617, %1618 : vector<2x32xf32>
    %1620 = vector.extract_strided_slice %1610 {offsets = [0, 32], sizes = [2, 32], strides = [1, 1]} : vector<2x64xf32> to vector<2x32xf32>
    %1621 = vector.extract_strided_slice %1611 {offsets = [0, 32], sizes = [2, 32], strides = [1, 1]} : vector<2x64xf32> to vector<2x32xf32>
    %1622 = vector.broadcast %743 : vector<1x32xf32> to vector<2x32xf32>
    %1623 = arith.addf %1621, %1622 : vector<2x32xf32>
    %1624 = arith.mulf %1619, %1623 : vector<2x32xf32>
    %1625 = arith.addf %1620, %1624 : vector<2x32xf32>
    %1626 = math.tanh %1625 : vector<2x32xf32>
    %1627 = vector.extract_strided_slice %1478 {offsets = [5, 0, 0], sizes = [1, 2, 1], strides = [1, 1, 1]} : vector<8x2x1xf32> to vector<1x2x1xf32>
    %1628 = vector.shape_cast %1627 : vector<1x2x1xf32> to vector<2x1xf32>
    %1629 = vector.broadcast %1628 : vector<2x1xf32> to vector<2x32xf32>
    %1630 = arith.mulf %1629, %1626 : vector<2x32xf32>
    %cst_668 = arith.constant 1.000000e+00 : f32
    %1631 = vector.broadcast %cst_668 : f32 to vector<2x1xf32>
    %1632 = arith.subf %1631, %1628 : vector<2x1xf32>
    %1633 = vector.broadcast %1632 : vector<2x1xf32> to vector<2x32xf32>
    %1634 = arith.mulf %1633, %1609 : vector<2x32xf32>
    %1635 = arith.addf %1630, %1634 : vector<2x32xf32>
    %c12_669 = arith.constant 12 : index
    %c0_670 = arith.constant 0 : index
    %1636 = vector.load %arg31[%c12_669, %c0_670] : memref<16x64xf32, #tpu.memory_space<vmem>>, vector<2x64xf32>
    %cst_671 = arith.constant dense<0.000000e+00> : vector<2x64xf32>
    %1637 = tpu.matmul %1635, %742, %cst_671 {dimension_numbers = #tpu.dot_dimension_numbers<[1], [0], [0], [1], [0, 0, 1, 1], [], []>} : vector<2x32xf32>, vector<32x64xf32>, vector<2x64xf32> -> vector<2x64xf32>
    %1638 = vector.extract_strided_slice %1636 {offsets = [0, 0], sizes = [2, 32], strides = [1, 1]} : vector<2x64xf32> to vector<2x32xf32>
    %1639 = vector.extract_strided_slice %1637 {offsets = [0, 0], sizes = [2, 32], strides = [1, 1]} : vector<2x64xf32> to vector<2x32xf32>
    %1640 = arith.addf %1638, %1639 : vector<2x32xf32>
    %1641 = arith.negf %1640 : vector<2x32xf32>
    %1642 = math.exp %1641 : vector<2x32xf32>
    %cst_672 = arith.constant 1.000000e+00 : f32
    %1643 = vector.broadcast %cst_672 : f32 to vector<2x32xf32>
    %1644 = arith.addf %1643, %1642 : vector<2x32xf32>
    %1645 = arith.divf %1643, %1644 : vector<2x32xf32>
    %1646 = vector.extract_strided_slice %1636 {offsets = [0, 32], sizes = [2, 32], strides = [1, 1]} : vector<2x64xf32> to vector<2x32xf32>
    %1647 = vector.extract_strided_slice %1637 {offsets = [0, 32], sizes = [2, 32], strides = [1, 1]} : vector<2x64xf32> to vector<2x32xf32>
    %1648 = vector.broadcast %743 : vector<1x32xf32> to vector<2x32xf32>
    %1649 = arith.addf %1647, %1648 : vector<2x32xf32>
    %1650 = arith.mulf %1645, %1649 : vector<2x32xf32>
    %1651 = arith.addf %1646, %1650 : vector<2x32xf32>
    %1652 = math.tanh %1651 : vector<2x32xf32>
    %1653 = vector.extract_strided_slice %1478 {offsets = [6, 0, 0], sizes = [1, 2, 1], strides = [1, 1, 1]} : vector<8x2x1xf32> to vector<1x2x1xf32>
    %1654 = vector.shape_cast %1653 : vector<1x2x1xf32> to vector<2x1xf32>
    %1655 = vector.broadcast %1654 : vector<2x1xf32> to vector<2x32xf32>
    %1656 = arith.mulf %1655, %1652 : vector<2x32xf32>
    %cst_673 = arith.constant 1.000000e+00 : f32
    %1657 = vector.broadcast %cst_673 : f32 to vector<2x1xf32>
    %1658 = arith.subf %1657, %1654 : vector<2x1xf32>
    %1659 = vector.broadcast %1658 : vector<2x1xf32> to vector<2x32xf32>
    %1660 = arith.mulf %1659, %1635 : vector<2x32xf32>
    %1661 = arith.addf %1656, %1660 : vector<2x32xf32>
    %c14_674 = arith.constant 14 : index
    %c0_675 = arith.constant 0 : index
    %1662 = vector.load %arg31[%c14_674, %c0_675] : memref<16x64xf32, #tpu.memory_space<vmem>>, vector<2x64xf32>
    %cst_676 = arith.constant dense<0.000000e+00> : vector<2x64xf32>
    %1663 = tpu.matmul %1661, %742, %cst_676 {dimension_numbers = #tpu.dot_dimension_numbers<[1], [0], [0], [1], [0, 0, 1, 1], [], []>} : vector<2x32xf32>, vector<32x64xf32>, vector<2x64xf32> -> vector<2x64xf32>
    %1664 = vector.extract_strided_slice %1662 {offsets = [0, 0], sizes = [2, 32], strides = [1, 1]} : vector<2x64xf32> to vector<2x32xf32>
    %1665 = vector.extract_strided_slice %1663 {offsets = [0, 0], sizes = [2, 32], strides = [1, 1]} : vector<2x64xf32> to vector<2x32xf32>
    %1666 = arith.addf %1664, %1665 : vector<2x32xf32>
    %1667 = arith.negf %1666 : vector<2x32xf32>
    %1668 = math.exp %1667 : vector<2x32xf32>
    %cst_677 = arith.constant 1.000000e+00 : f32
    %1669 = vector.broadcast %cst_677 : f32 to vector<2x32xf32>
    %1670 = arith.addf %1669, %1668 : vector<2x32xf32>
    %1671 = arith.divf %1669, %1670 : vector<2x32xf32>
    %1672 = vector.extract_strided_slice %1662 {offsets = [0, 32], sizes = [2, 32], strides = [1, 1]} : vector<2x64xf32> to vector<2x32xf32>
    %1673 = vector.extract_strided_slice %1663 {offsets = [0, 32], sizes = [2, 32], strides = [1, 1]} : vector<2x64xf32> to vector<2x32xf32>
    %1674 = vector.broadcast %743 : vector<1x32xf32> to vector<2x32xf32>
    %1675 = arith.addf %1673, %1674 : vector<2x32xf32>
    %1676 = arith.mulf %1671, %1675 : vector<2x32xf32>
    %1677 = arith.addf %1672, %1676 : vector<2x32xf32>
    %1678 = math.tanh %1677 : vector<2x32xf32>
    %1679 = vector.extract_strided_slice %1478 {offsets = [7, 0, 0], sizes = [1, 2, 1], strides = [1, 1, 1]} : vector<8x2x1xf32> to vector<1x2x1xf32>
    %1680 = vector.shape_cast %1679 : vector<1x2x1xf32> to vector<2x1xf32>
    %1681 = vector.broadcast %1680 : vector<2x1xf32> to vector<2x32xf32>
    %1682 = arith.mulf %1681, %1678 : vector<2x32xf32>
    %cst_678 = arith.constant 1.000000e+00 : f32
    %1683 = vector.broadcast %cst_678 : f32 to vector<2x1xf32>
    %1684 = arith.subf %1683, %1680 : vector<2x1xf32>
    %1685 = vector.broadcast %1684 : vector<2x1xf32> to vector<2x32xf32>
    %1686 = arith.mulf %1685, %1661 : vector<2x32xf32>
    %1687 = arith.addf %1682, %1686 : vector<2x32xf32>
    %cst_679 = arith.constant dense<0.000000e+00> : vector<2x32xf32>
    %1688 = tpu.matmul %1377, %744, %cst_679 {dimension_numbers = #tpu.dot_dimension_numbers<[1], [0], [0], [1], [0, 0, 1, 1], [], []>} : vector<2x32xf32>, vector<32x32xf32>, vector<2x32xf32> -> vector<2x32xf32>
    %cst_680 = arith.constant dense<0.000000e+00> : vector<2x32xf32>
    %1689 = tpu.matmul %1687, %745, %cst_680 {dimension_numbers = #tpu.dot_dimension_numbers<[1], [0], [0], [1], [0, 0, 1, 1], [], []>} : vector<2x32xf32>, vector<32x32xf32>, vector<2x32xf32> -> vector<2x32xf32>
    %1690 = arith.addf %1688, %1689 : vector<2x32xf32>
    %1691 = arith.addf %1690, %740 : vector<2x32xf32>
    %cst_681 = arith.constant 0.000000e+00 : f32
    %1692 = vector.broadcast %cst_681 : f32 to vector<2x32xf32>
    %1693 = arith.maximumf %1691, %1692 : vector<2x32xf32>
    %c0_682 = arith.constant 0 : index
    %c0_683 = arith.constant 0 : index
    %1694 = vector.load %arg26[%c0_682, %c0_683] : memref<2x64xf32, #tpu.memory_space<vmem>>, vector<2x32xf32>
    tpu.vector_store %arg26[%c0_682, %c0_683], %1693 {strides = array<i32>} : memref<2x64xf32, #tpu.memory_space<vmem>>, vector<2x32xf32>,
    %c0_684 = arith.constant 0 : index
    %c32_685 = arith.constant 32 : index
    %1695 = vector.load %arg26[%c0_684, %c32_685] : memref<2x64xf32, #tpu.memory_space<vmem>>, vector<2x32xf32>
    tpu.vector_store %arg26[%c0_684, %c32_685], %674 {strides = array<i32>} : memref<2x64xf32, #tpu.memory_space<vmem>>, vector<2x32xf32>,
    return
  }
}

</mosaic_0001>

<llo_original>
// kernel: dmn_plus_forward.1
$region0: #{dmn_plus_forward.1}
  #allocation0 [shape = 'u32[]', space=smem, size = 0x4, offset = 0x4, fixed_abs, tag = 'smem constant byte address 0x4 - core index']
  #allocation1 [shape = 'u32[72,128]{1,0:T(1,128)}', space=vmem, size = 0x9000, scoped, tag = 'internal scratch']
  #allocation2 [shape = 'f32[16,96]{1,0:T(8,128)}', space=vmem, size = 0x2000, scoped, tag = 'scratch operand']
  #allocation3 [shape = 'f32[16,96]{1,0:T(8,128)}', space=vmem, size = 0x2000, scoped, tag = 'scratch operand']
  #allocation4 [shape = 'f32[10,96]{1,0:T(8,128)}', space=vmem, size = 0x2000, scoped, tag = 'scratch operand']
  #allocation5 [shape = 'f32[16,32]{1,0:T(8,128)}', space=vmem, size = 0x2000, scoped, tag = 'scratch operand']
  #allocation6 [shape = 'f32[16,64]{1,0:T(8,128)}', space=vmem, size = 0x2000, scoped, tag = 'scratch operand']
  #allocation7 [shape = 'f32[16,64]{1,0:T(8,128)}', space=vmem, size = 0x2000, scoped, tag = 'scratch operand']
  #allocation8 [shape = 'f32[16,1]{1,0:T(8,128)}', space=vmem, size = 0x2000, scoped, tag = 'scratch operand']
  #allocation9 [shape = 'f32[8,2,1]{2,1,0:T(2,128)}', space=vmem, size = 0x2000, scoped, tag = 'scratch operand']
  %s0 = inlined_call_operand.vmem [shape: f32[16,16], index: 0, kind: input, shape index: {}]
  %s1 = inlined_call_operand.vmem [shape: f32[10,16], index: 1, kind: input, shape index: {}]
  %s2 = inlined_call_operand.vmem [shape: f32[16,96], index: 2, kind: input, shape index: {}]
  %s3 = inlined_call_operand.vmem [shape: f32[32,96], index: 3, kind: input, shape index: {}]
  %s4 = inlined_call_operand.vmem [shape: f32[1,96], index: 4, kind: input, shape index: {}]
  %s5 = inlined_call_operand.vmem [shape: f32[1,32], index: 5, kind: input, shape index: {}]
  %s6 = inlined_call_operand.vmem [shape: f32[16,96], index: 6, kind: input, shape index: {}]
  %s7 = inlined_call_operand.vmem [shape: f32[32,96], index: 7, kind: input, shape index: {}]
  %s8 = inlined_call_operand.vmem [shape: f32[1,96], index: 8, kind: input, shape index: {}]
  %s9 = inlined_call_operand.vmem [shape: f32[1,32], index: 9, kind: input, shape index: {}]
  %s10 = inlined_call_operand.vmem [shape: f32[16,96], index: 10, kind: input, shape index: {}]
  %s11 = inlined_call_operand.vmem [shape: f32[32,96], index: 11, kind: input, shape index: {}]
  %s12 = inlined_call_operand.vmem [shape: f32[1,96], index: 12, kind: input, shape index: {}]
  %s13 = inlined_call_operand.vmem [shape: f32[1,32], index: 13, kind: input, shape index: {}]
  %s14 = inlined_call_operand.vmem [shape: f32[64,32], index: 14, kind: input, shape index: {}]
  %s15 = inlined_call_operand.vmem [shape: f32[64,32], index: 15, kind: input, shape index: {}]
  %s16 = inlined_call_operand.vmem [shape: f32[1,32], index: 16, kind: input, shape index: {}]
  %s17 = inlined_call_operand.vmem [shape: f32[1,32], index: 17, kind: input, shape index: {}]
  %s18 = inlined_call_operand.vmem [shape: f32[32,64], index: 18, kind: input, shape index: {}]
  %s19 = inlined_call_operand.vmem [shape: f32[32,64], index: 19, kind: input, shape index: {}]
  %s20 = inlined_call_operand.vmem [shape: f32[1,64], index: 20, kind: input, shape index: {}]
  %s21 = inlined_call_operand.vmem [shape: f32[1,32], index: 21, kind: input, shape index: {}]
  %s22 = inlined_call_operand.vmem [shape: f32[32,32], index: 22, kind: input, shape index: {}]
  %s23 = inlined_call_operand.vmem [shape: f32[32,32], index: 23, kind: input, shape index: {}]
  %s24 = inlined_call_operand.vmem [shape: f32[32,32], index: 24, kind: input, shape index: {}]
  %s25 = inlined_call_operand.vmem [shape: f32[1,32], index: 25, kind: input, shape index: {}]
  %s26 = inlined_call_operand.hbm [shape: f32[2,64], index: 26, kind: output, shape index: {}]
  %s27 = sld [smem:[#allocation0]]
  $region114: #{dmn_plus_forward.1} parent=0
    _
  %s29 = ssub.s32 1, %s27
  %s30 = scalar_select 0, %s29, %s27
  $region1: #{dmn_plus_forward.1} parent=0
    #allocation10 [shape = 'u8[1024]{0}', space=vmem, size = 0x400, scoped, tag = 'output window, operand 0, single buffered']
    #allocation11 [shape = 's32[1]{0}', space=sflag, size = 0x4, scoped, tag = 'scoped memory for dmn_plus_forward.1']
    %31 = vsyncpa [#allocation11], 0
    // Predicated region
    $region2: #{dmn_plus_forward.1} parent=1 // pred_check
      _
    $region3: #{dmn_plus_forward.1} parent=1 // pred_check_branch
      %33 = sbr.rel (0) target = $region5
    $region4: #{dmn_plus_forward.1} parent=1 // pred_region
      _
    $region5: #{dmn_plus_forward.1} parent=1 // pred_fallthru
      _
    // Predicated region
    $region6: #{dmn_plus_forward.1} parent=1 // pred_check
      _
    $region7: #{dmn_plus_forward.1} parent=1 // pred_check_branch
      %35 = sbr.rel (0) target = $region9
    $region8: #{dmn_plus_forward.1} parent=1 // pred_region
      _
    $region9: #{dmn_plus_forward.1} parent=1 // pred_fallthru
      _
    // Predicated region
    $region10: #{dmn_plus_forward.1} parent=1 // pred_check
      _
    $region11: #{dmn_plus_forward.1} parent=1 // pred_check_branch
      %37 = sbr.rel (0) target = $region13
    $region12: #{dmn_plus_forward.1} parent=1 // pred_region
      _
    $region13: #{dmn_plus_forward.1} parent=1 // pred_fallthru
      _
    // Predicated region
    $region14: #{dmn_plus_forward.1} parent=1 // pred_check
      _
    $region15: #{dmn_plus_forward.1} parent=1 // pred_check_branch
      %39 = sbr.rel (0) target = $region17
    $region16: #{dmn_plus_forward.1} parent=1 // pred_region
      _
    $region17: #{dmn_plus_forward.1} parent=1 // pred_fallthru
      _
    // Predicated region
    $region18: #{dmn_plus_forward.1} parent=1 // pred_check
      _
    $region19: #{dmn_plus_forward.1} parent=1 // pred_check_branch
      %41 = sbr.rel (0) target = $region21
    $region20: #{dmn_plus_forward.1} parent=1 // pred_region
      _
    $region21: #{dmn_plus_forward.1} parent=1 // pred_fallthru
      _
    // Predicated region
    $region22: #{dmn_plus_forward.1} parent=1 // pred_check
      _
    $region23: #{dmn_plus_forward.1} parent=1 // pred_check_branch
      %43 = sbr.rel (0) target = $region25
    $region24: #{dmn_plus_forward.1} parent=1 // pred_region
      _
    $region25: #{dmn_plus_forward.1} parent=1 // pred_fallthru
      _
    // Predicated region
    $region26: #{dmn_plus_forward.1} parent=1 // pred_check
      _
    $region27: #{dmn_plus_forward.1} parent=1 // pred_check_branch
      %45 = sbr.rel (0) target = $region29
    $region28: #{dmn_plus_forward.1} parent=1 // pred_region
      _
    $region29: #{dmn_plus_forward.1} parent=1 // pred_fallthru
      _
    // Predicated region
    $region30: #{dmn_plus_forward.1} parent=1 // pred_check
      _
    $region31: #{dmn_plus_forward.1} parent=1 // pred_check_branch
      %47 = sbr.rel (0) target = $region33
    $region32: #{dmn_plus_forward.1} parent=1 // pred_region
      _
    $region33: #{dmn_plus_forward.1} parent=1 // pred_fallthru
      _
    // Predicated region
    $region34: #{dmn_plus_forward.1} parent=1 // pred_check
      _
    $region35: #{dmn_plus_forward.1} parent=1 // pred_check_branch
      %49 = sbr.rel (0) target = $region37
    $region36: #{dmn_plus_forward.1} parent=1 // pred_region
      _
    $region37: #{dmn_plus_forward.1} parent=1 // pred_fallthru
      _
    // Predicated region
    $region38: #{dmn_plus_forward.1} parent=1 // pred_check
      _
    $region39: #{dmn_plus_forward.1} parent=1 // pred_check_branch
      %51 = sbr.rel (0) target = $region41
    $region40: #{dmn_plus_forward.1} parent=1 // pred_region
      _
    $region41: #{dmn_plus_forward.1} parent=1 // pred_fallthru
      _
    // Predicated region
    $region42: #{dmn_plus_forward.1} parent=1 // pred_check
      _
    $region43: #{dmn_plus_forward.1} parent=1 // pred_check_branch
      %53 = sbr.rel (0) target = $region45
    $region44: #{dmn_plus_forward.1} parent=1 // pred_region
      _
    $region45: #{dmn_plus_forward.1} parent=1 // pred_fallthru
      _
    // Predicated region
    $region46: #{dmn_plus_forward.1} parent=1 // pred_check
      _
    $region47: #{dmn_plus_forward.1} parent=1 // pred_check_branch
      %55 = sbr.rel (0) target = $region49
    $region48: #{dmn_plus_forward.1} parent=1 // pred_region
      _
    $region49: #{dmn_plus_forward.1} parent=1 // pred_fallthru
      _
    // Predicated region
    $region50: #{dmn_plus_forward.1} parent=1 // pred_check
      _
    $region51: #{dmn_plus_forward.1} parent=1 // pred_check_branch
      %57 = sbr.rel (0) target = $region53
    $region52: #{dmn_plus_forward.1} parent=1 // pred_region
      _
    $region53: #{dmn_plus_forward.1} parent=1 // pred_fallthru
      _
    // Predicated region
    $region54: #{dmn_plus_forward.1} parent=1 // pred_check
      _
    $region55: #{dmn_plus_forward.1} parent=1 // pred_check_branch
      %59 = sbr.rel (0) target = $region57
    $region56: #{dmn_plus_forward.1} parent=1 // pred_region
      _
    $region57: #{dmn_plus_forward.1} parent=1 // pred_fallthru
      _
    // Predicated region
    $region58: #{dmn_plus_forward.1} parent=1 // pred_check
      _
    $region59: #{dmn_plus_forward.1} parent=1 // pred_check_branch
      %61 = sbr.rel (0) target = $region61
    $region60: #{dmn_plus_forward.1} parent=1 // pred_region
      _
    $region61: #{dmn_plus_forward.1} parent=1 // pred_fallthru
      _
    // Predicated region
    $region62: #{dmn_plus_forward.1} parent=1 // pred_check
      _
    $region63: #{dmn_plus_forward.1} parent=1 // pred_check_branch
      %63 = sbr.rel (0) target = $region65
    $region64: #{dmn_plus_forward.1} parent=1 // pred_region
      _
    $region65: #{dmn_plus_forward.1} parent=1 // pred_fallthru
      _
    // Predicated region
    $region66: #{dmn_plus_forward.1} parent=1 // pred_check
      _
    $region67: #{dmn_plus_forward.1} parent=1 // pred_check_branch
      %65 = sbr.rel (0) target = $region69
    $region68: #{dmn_plus_forward.1} parent=1 // pred_region
      _
    $region69: #{dmn_plus_forward.1} parent=1 // pred_fallthru
      _
    // Predicated region
    $region70: #{dmn_plus_forward.1} parent=1 // pred_check
      _
    $region71: #{dmn_plus_forward.1} parent=1 // pred_check_branch
      %67 = sbr.rel (0) target = $region73
    $region72: #{dmn_plus_forward.1} parent=1 // pred_region
      _
    $region73: #{dmn_plus_forward.1} parent=1 // pred_fallthru
      _
    // Predicated region
    $region74: #{dmn_plus_forward.1} parent=1 // pred_check
      _
    $region75: #{dmn_plus_forward.1} parent=1 // pred_check_branch
      %69 = sbr.rel (0) target = $region77
    $region76: #{dmn_plus_forward.1} parent=1 // pred_region
      _
    $region77: #{dmn_plus_forward.1} parent=1 // pred_fallthru
      _
    // Predicated region
    $region78: #{dmn_plus_forward.1} parent=1 // pred_check
      _
    $region79: #{dmn_plus_forward.1} parent=1 // pred_check_branch
      %71 = sbr.rel (0) target = $region81
    $region80: #{dmn_plus_forward.1} parent=1 // pred_region
      _
    $region81: #{dmn_plus_forward.1} parent=1 // pred_fallthru
      _
    // Predicated region
    $region82: #{dmn_plus_forward.1} parent=1 // pred_check
      _
    $region83: #{dmn_plus_forward.1} parent=1 // pred_check_branch
      %73 = sbr.rel (0) target = $region85
    $region84: #{dmn_plus_forward.1} parent=1 // pred_region
      _
    $region85: #{dmn_plus_forward.1} parent=1 // pred_fallthru
      _
    // Predicated region
    $region86: #{dmn_plus_forward.1} parent=1 // pred_check
      _
    $region87: #{dmn_plus_forward.1} parent=1 // pred_check_branch
      %75 = sbr.rel (0) target = $region89
    $region88: #{dmn_plus_forward.1} parent=1 // pred_region
      _
    $region89: #{dmn_plus_forward.1} parent=1 // pred_fallthru
      _
    // Predicated region
    $region90: #{dmn_plus_forward.1} parent=1 // pred_check
      _
    $region91: #{dmn_plus_forward.1} parent=1 // pred_check_branch
      %77 = sbr.rel (0) target = $region93
    $region92: #{dmn_plus_forward.1} parent=1 // pred_region
      _
    $region93: #{dmn_plus_forward.1} parent=1 // pred_fallthru
      _
    // Predicated region
    $region94: #{dmn_plus_forward.1} parent=1 // pred_check
      _
    $region95: #{dmn_plus_forward.1} parent=1 // pred_check_branch
      %79 = sbr.rel (0) target = $region97
    $region96: #{dmn_plus_forward.1} parent=1 // pred_region
      _
    $region97: #{dmn_plus_forward.1} parent=1 // pred_fallthru
      _
    // Predicated region
    $region98: #{dmn_plus_forward.1} parent=1 // pred_check
      _
    $region99: #{dmn_plus_forward.1} parent=1 // pred_check_branch
      %81 = sbr.rel (0) target = $region101
    $region100: #{dmn_plus_forward.1} parent=1 // pred_region
      _
    $region101: #{dmn_plus_forward.1} parent=1 // pred_fallthru
      _
    // Predicated region
    $region102: #{dmn_plus_forward.1} parent=1 // pred_check
      _
    $region103: #{dmn_plus_forward.1} parent=1 // pred_check_branch
      %83 = sbr.rel (0) target = $region105
    $region104: #{dmn_plus_forward.1} parent=1 // pred_region
      _
    $region105: #{dmn_plus_forward.1} parent=1 // pred_fallthru
      _
    %v84 = vld [vmem:[%s0] sm:$0xff]
    %v85 = vld [vmem:[%s0 + $0x8] sm:$0xff]
    %v86 = vld [vmem:[%s2] sm:$0xff]
    %v87 = vld [vmem:[%s2 + $0x8] sm:$0xff]
    %v88 = vld [vmem:[%s4] sm:$0x1]
    %v90 = vperm.slane %v88, 0
    %vm92 = vcmask 130048
    %v94 = vsel %vm92, %v84, 0
    %v97 = vsel %vm92, %v85, 0
    %99 = vmatpush.msra.mxu0 0.0
    %100 = vmatpush.msra.mxu0 0.0
    %101 = vmatpush.msra.mxu0 0.0
    %102 = vmatpush.msra.mxu0 0.0
    %103 = vmatpush.msra.mxu0 0.0
    %104 = vmatpush.msra.mxu0 0.0
    %105 = vmatpush.msra.mxu0 0.0
    %106 = vmatpush.msra.mxu0 0.0
    %107 = vmatpush.msra.mxu0 0.0
    %108 = vmatpush.msra.mxu0 0.0
    %109 = vmatpush.msra.mxu0 0.0
    %110 = vmatpush.msra.mxu0 0.0
    %111 = vmatpush.msra.mxu0 0.0
    %112 = vmatpush.msra.mxu0 0.0
    %113 = vmatpush.msra.mxu0 %v87
    %114 = vmatpush.msra.mxu0 %v86
    %115 = vmatmul.f32.gmra.mxu0 %v94
    %v116 = vpop.f32.mrf.mxu0
    %v117 = vadd.f32 %v90, %v116
    %118 = vmatmul.f32.gmra.mxu0 %v97
    %v119 = vpop.f32.mrf.mxu0
    %v120 = vadd.f32 %v90, %v119
    %121 = vdwg.mxu0
    %vm122 = vcmask 785408
    %123 = vst.msk [vmem:[#allocation2] sm:$0xff] %vm122, %v117
    %124 = vst.msk [vmem:[#allocation2 + $0x8] sm:$0xff] %vm122, %v120
    %v125 = vld [vmem:[%s6] sm:$0xff]
    %v126 = vld [vmem:[%s6 + $0x8] sm:$0xff]
    %v127 = vld [vmem:[%s8] sm:$0x1]
    %v129 = vperm.slane %v127, 0
    %131 = vmatpush.msra.mxu0 0.0
    %132 = vmatpush.msra.mxu0 0.0
    %133 = vmatpush.msra.mxu0 0.0
    %134 = vmatpush.msra.mxu0 0.0
    %135 = vmatpush.msra.mxu0 0.0
    %136 = vmatpush.msra.mxu0 0.0
    %137 = vmatpush.msra.mxu0 0.0
    %138 = vmatpush.msra.mxu0 0.0
    %139 = vmatpush.msra.mxu0 0.0
    %140 = vmatpush.msra.mxu0 0.0
    %141 = vmatpush.msra.mxu0 0.0
    %142 = vmatpush.msra.mxu0 0.0
    %143 = vmatpush.msra.mxu0 0.0
    %144 = vmatpush.msra.mxu0 0.0
    %145 = vmatpush.msra.mxu0 %v126
    %146 = vmatpush.msra.mxu0 %v125
    %147 = vmatmul.f32.gmra.mxu0 %v94
    %v148 = vpop.f32.mrf.mxu0
    %v149 = vadd.f32 %v129, %v148
    %150 = vmatmul.f32.gmra.mxu0 %v97
    %v151 = vpop.f32.mrf.mxu0
    %v152 = vadd.f32 %v129, %v151
    %153 = vdwg.mxu0
    %154 = vst.msk [vmem:[#allocation3] sm:$0xff] %vm122, %v149
    %155 = vst.msk [vmem:[#allocation3 + $0x8] sm:$0xff] %vm122, %v152
    %v156 = vld [vmem:[%s1] sm:$0xff]
    %v157 = vld [vmem:[%s1 + $0x8] sm:$0x3]
    %v158 = vld [vmem:[%s10] sm:$0xff]
    %v159 = vld [vmem:[%s10 + $0x8] sm:$0xff]
    %v160 = vld [vmem:[%s12] sm:$0x1]
    %v162 = vperm.slane %v160, 0
    %v165 = vsel %vm92, %v156, 0
    %v168 = vsel %vm92, %v157, 0
    %170 = vmatpush.msra.mxu0 0.0
    %171 = vmatpush.msra.mxu0 0.0
    %172 = vmatpush.msra.mxu0 0.0
    %173 = vmatpush.msra.mxu0 0.0
    %174 = vmatpush.msra.mxu0 0.0
    %175 = vmatpush.msra.mxu0 0.0
    %176 = vmatpush.msra.mxu0 0.0
    %177 = vmatpush.msra.mxu0 0.0
    %178 = vmatpush.msra.mxu0 0.0
    %179 = vmatpush.msra.mxu0 0.0
    %180 = vmatpush.msra.mxu0 0.0
    %181 = vmatpush.msra.mxu0 0.0
    %182 = vmatpush.msra.mxu0 0.0
    %183 = vmatpush.msra.mxu0 0.0
    %184 = vmatpush.msra.mxu0 %v159
    %185 = vmatpush.msra.mxu0 %v158
    %186 = vmatmul.f32.gmra.mxu0 %v165
    %v187 = vpop.f32.mrf.mxu0
    %v188 = vadd.f32 %v162, %v187
    %189 = vmatmul.f32.gmra.mxu0 %v168
    %v190 = vpop.f32.mrf.mxu0
    %v191 = vadd.f32 %v162, %v190
    %192 = vdwg.mxu0
    %193 = vst.msk [vmem:[#allocation4] sm:$0xff] %vm122, %v188
    %vm194 = vcmask 779264
    %195 = vst.msk [vmem:[#allocation4 + $0x8] sm:$0x3] %vm194, %v191
    %v196 = vld [vmem:[%s3] sm:$0xff]
    %v197 = vld [vmem:[%s3 + $0x8] sm:$0xff]
    %v198 = vld [vmem:[%s3 + $0x10] sm:$0xff]
    %v199 = vld [vmem:[%s3 + $0x18] sm:$0xff]
    %v200 = vld [vmem:[%s5] sm:$0x1]
    %v201 = vld [vmem:[%s7] sm:$0xff]
    %v202 = vld [vmem:[%s7 + $0x8] sm:$0xff]
    %v203 = vld [vmem:[%s7 + $0x10] sm:$0xff]
    %v204 = vld [vmem:[%s7 + $0x18] sm:$0xff]
    %v205 = vld [vmem:[%s9] sm:$0x1]
    %v206 = vld [vmem:[%s11] sm:$0xff]
    %v207 = vld [vmem:[%s11 + $0x8] sm:$0xff]
    %v208 = vld [vmem:[%s11 + $0x10] sm:$0xff]
    %v209 = vld [vmem:[%s11 + $0x18] sm:$0xff]
    %v210 = vld [vmem:[%s13] sm:$0x1]
    %v211 = vld [vmem:[#allocation2] sm:$0x3]
    %vm212 = vcmask 261120
    %v214 = vsel %vm212, 0.0, 0
    %216 = vmatpush.msra.mxu0 0.0
    %217 = vmatpush.msra.mxu0 0.0
    %218 = vmatpush.msra.mxu0 0.0
    %219 = vmatpush.msra.mxu0 0.0
    %220 = vmatpush.msra.mxu0 0.0
    %221 = vmatpush.msra.mxu0 0.0
    %222 = vmatpush.msra.mxu0 0.0
    %223 = vmatpush.msra.mxu0 0.0
    %224 = vmatpush.msra.mxu0 0.0
    %225 = vmatpush.msra.mxu0 0.0
    %226 = vmatpush.msra.mxu0 0.0
    %227 = vmatpush.msra.mxu0 0.0
    %228 = vmatpush.msra.mxu0 %v199
    %229 = vmatpush.msra.mxu0 %v198
    %230 = vmatpush.msra.mxu0 %v197
    %231 = vmatpush.msra.mxu0 %v196
    %232 = vmatmul.f32.gmra.mxu0 %v214
    %v233 = vpop.f32.mrf.mxu0
    %v234 = vadd.f32 0.0, %v233
    %235 = vdwg.mxu0
    %v236 = vadd.f32 %v211, %v234
    %v237 = vxor.u32 %v236, 2147483648
    %v238 = vmul.f32 %v237, 1.442695
    %v239 = vpow.pop %v238
    %v240 = vadd.f32 %v239, 1.0
    %v241 = vrcp.pop %v240
    %v242 = vmul.f32 %v240, %v241
    %v243 = vsub.f32 1.0, %v242
    %v244 = vmul.f32 %v241, %v243
    %v245 = vadd.f32 %v241, %v244
    %vm246 = vweird.f32 %v240
    %vm247 = vweird.f32 %v241
    %vm248 = vmor %vm246, %vm247
    %v249 = vsel %vm248, %v241, %v245
    %v250 = vand.u32 2147483647, %v240
    %vm251 = vcmp.eq.f32.partialorder %v250, 8.507059e+37
    %v252 = vand.u32 %v240, 2147483648
    %v253 = vor.u32 1.1754944e-38, %v252
    %v254 = vsel %vm251, %v253, %v249
    %v255 = vmul.f32 1.0, %v254
    %v257 = vperm.slane %v200, 0
    %258 = vrot.lane.b32.xlu0 %v257, 64
    %v259 = vpop.permute.xlu0 %258
    %v261 = vadd.f32 %v234, %v259
    %263 = vrot.lane.b32.xlu0 %v261, 64
    %v264 = vpop.permute.xlu0 %263
    %v266 = vmul.f32 %v255, %v264
    %268 = vrot.lane.b32.xlu0 %v266, 64
    %v269 = vpop.permute.xlu0 %268
    %v271 = vadd.f32 %v211, %v269
    %v272 = vtanh.pop %v271
    %v273 = vsub.f32 1.0, %v255
    %275 = vrot.lane.b32.xlu0 %v272, 96
    %v276 = vpop.permute.xlu0 %275
    %v278 = vmul.f32 %v273, %v276
    %v279 = vmul.f32 %v255, 0.0
    %v280 = vadd.f32 %v278, %v279
    %v281 = vld [vmem:[#allocation2 + $0x2] sm:$0x3]
    %283 = vrot.lane.b32.xlu0 %v280, 96
    %v284 = vpop.permute.xlu0 %283
    %v285 = vsel %vm212, %v284, 0
    %287 = vmatpush.msra.mxu0 0.0
    %288 = vmatpush.msra.mxu0 0.0
    %289 = vmatpush.msra.mxu0 0.0
    %290 = vmatpush.msra.mxu0 0.0
    %291 = vmatpush.msra.mxu0 0.0
    %292 = vmatpush.msra.mxu0 0.0
    %293 = vmatpush.msra.mxu0 0.0
    %294 = vmatpush.msra.mxu0 0.0
    %295 = vmatpush.msra.mxu0 0.0
    %296 = vmatpush.msra.mxu0 0.0
    %297 = vmatpush.msra.mxu0 0.0
    %298 = vmatpush.msra.mxu0 0.0
    %299 = vmatpush.msra.mxu0 %v199
    %300 = vmatpush.msra.mxu0 %v198
    %301 = vmatpush.msra.mxu0 %v197
    %302 = vmatpush.msra.mxu0 %v196
    %303 = vmatmul.f32.gmra.mxu0 %v285
    %v304 = vpop.f32.mrf.mxu0
    %v305 = vadd.f32 0.0, %v304
    %306 = vdwg.mxu0
    %v307 = vadd.f32 %v281, %v305
    %v308 = vxor.u32 %v307, 2147483648
    %v309 = vmul.f32 %v308, 1.442695
    %v310 = vpow.pop %v309
    %v311 = vadd.f32 %v310, 1.0
    %v312 = vrcp.pop %v311
    %v313 = vmul.f32 %v311, %v312
    %v314 = vsub.f32 1.0, %v313
    %v315 = vmul.f32 %v312, %v314
    %v316 = vadd.f32 %v312, %v315
    %vm317 = vweird.f32 %v311
    %vm318 = vweird.f32 %v312
    %vm319 = vmor %vm317, %vm318
    %v320 = vsel %vm319, %v312, %v316
    %v321 = vand.u32 2147483647, %v311
    %vm322 = vcmp.eq.f32.partialorder %v321, 8.507059e+37
    %v323 = vand.u32 %v311, 2147483648
    %v324 = vor.u32 1.1754944e-38, %v323
    %v325 = vsel %vm322, %v324, %v320
    %v326 = vmul.f32 1.0, %v325
    %v327 = vadd.f32 %v305, %v259
    %329 = vrot.lane.b32.xlu0 %v327, 64
    %v330 = vpop.permute.xlu0 %329
    %v332 = vmul.f32 %v326, %v330
    %334 = vrot.lane.b32.xlu0 %v332, 64
    %v335 = vpop.permute.xlu0 %334
    %v337 = vadd.f32 %v281, %v335
    %v338 = vtanh.pop %v337
    %v339 = vsub.f32 1.0, %v326
    %341 = vrot.lane.b32.xlu0 %v338, 96
    %v342 = vpop.permute.xlu0 %341
    %v344 = vmul.f32 %v339, %v342
    %v345 = vmul.f32 %v326, %v280
    %v346 = vadd.f32 %v344, %v345
    %v347 = vld [vmem:[#allocation2 + $0x4] sm:$0x3]
    %349 = vrot.lane.b32.xlu0 %v346, 96
    %v350 = vpop.permute.xlu0 %349
    %v351 = vsel %vm212, %v350, 0
    %353 = vmatpush.msra.mxu0 0.0
    %354 = vmatpush.msra.mxu0 0.0
    %355 = vmatpush.msra.mxu0 0.0
    %356 = vmatpush.msra.mxu0 0.0
    %357 = vmatpush.msra.mxu0 0.0
    %358 = vmatpush.msra.mxu0 0.0
    %359 = vmatpush.msra.mxu0 0.0
    %360 = vmatpush.msra.mxu0 0.0
    %361 = vmatpush.msra.mxu0 0.0
    %362 = vmatpush.msra.mxu0 0.0
    %363 = vmatpush.msra.mxu0 0.0
    %364 = vmatpush.msra.mxu0 0.0
    %365 = vmatpush.msra.mxu0 %v199
    %366 = vmatpush.msra.mxu0 %v198
    %367 = vmatpush.msra.mxu0 %v197
    %368 = vmatpush.msra.mxu0 %v196
    %369 = vmatmul.f32.gmra.mxu0 %v351
    %v370 = vpop.f32.mrf.mxu0
    %v371 = vadd.f32 0.0, %v370
    %372 = vdwg.mxu0
    %v373 = vadd.f32 %v347, %v371
    %v374 = vxor.u32 %v373, 2147483648
    %v375 = vmul.f32 %v374, 1.442695
    %v376 = vpow.pop %v375
    %v377 = vadd.f32 %v376, 1.0
    %v378 = vrcp.pop %v377
    %v379 = vmul.f32 %v377, %v378
    %v380 = vsub.f32 1.0, %v379
    %v381 = vmul.f32 %v378, %v380
    %v382 = vadd.f32 %v378, %v381
    %vm383 = vweird.f32 %v377
    %vm384 = vweird.f32 %v378
    %vm385 = vmor %vm383, %vm384
    %v386 = vsel %vm385, %v378, %v382
    %v387 = vand.u32 2147483647, %v377
    %vm388 = vcmp.eq.f32.partialorder %v387, 8.507059e+37
    %v389 = vand.u32 %v377, 2147483648
    %v390 = vor.u32 1.1754944e-38, %v389
    %v391 = vsel %vm388, %v390, %v386
    %v392 = vmul.f32 1.0, %v391
    %v393 = vadd.f32 %v371, %v259
    %395 = vrot.lane.b32.xlu0 %v393, 64
    %v396 = vpop.permute.xlu0 %395
    %v398 = vmul.f32 %v392, %v396
    %400 = vrot.lane.b32.xlu0 %v398, 64
    %v401 = vpop.permute.xlu0 %400
    %v403 = vadd.f32 %v347, %v401
    %v404 = vtanh.pop %v403
    %v405 = vsub.f32 1.0, %v392
    %407 = vrot.lane.b32.xlu0 %v404, 96
    %v408 = vpop.permute.xlu0 %407
    %v410 = vmul.f32 %v405, %v408
    %v411 = vmul.f32 %v392, %v346
    %v412 = vadd.f32 %v410, %v411
    %v413 = vld [vmem:[#allocation2 + $0x6] sm:$0x3]
    %415 = vrot.lane.b32.xlu0 %v412, 96
    %v416 = vpop.permute.xlu0 %415
    %v417 = vsel %vm212, %v416, 0
    %419 = vmatpush.msra.mxu0 0.0
    %420 = vmatpush.msra.mxu0 0.0
    %421 = vmatpush.msra.mxu0 0.0
    %422 = vmatpush.msra.mxu0 0.0
    %423 = vmatpush.msra.mxu0 0.0
    %424 = vmatpush.msra.mxu0 0.0
    %425 = vmatpush.msra.mxu0 0.0
    %426 = vmatpush.msra.mxu0 0.0
    %427 = vmatpush.msra.mxu0 0.0
    %428 = vmatpush.msra.mxu0 0.0
    %429 = vmatpush.msra.mxu0 0.0
    %430 = vmatpush.msra.mxu0 0.0
    %431 = vmatpush.msra.mxu0 %v199
    %432 = vmatpush.msra.mxu0 %v198
    %433 = vmatpush.msra.mxu0 %v197
    %434 = vmatpush.msra.mxu0 %v196
    %435 = vmatmul.f32.gmra.mxu0 %v417
    %v436 = vpop.f32.mrf.mxu0
    %v437 = vadd.f32 0.0, %v436
    %438 = vdwg.mxu0
    %v439 = vadd.f32 %v413, %v437
    %v440 = vxor.u32 %v439, 2147483648
    %v441 = vmul.f32 %v440, 1.442695
    %v442 = vpow.pop %v441
    %v443 = vadd.f32 %v442, 1.0
    %v444 = vrcp.pop %v443
    %v445 = vmul.f32 %v443, %v444
    %v446 = vsub.f32 1.0, %v445
    %v447 = vmul.f32 %v444, %v446
    %v448 = vadd.f32 %v444, %v447
    %vm449 = vweird.f32 %v443
    %vm450 = vweird.f32 %v444
    %vm451 = vmor %vm449, %vm450
    %v452 = vsel %vm451, %v444, %v448
    %v453 = vand.u32 2147483647, %v443
    %vm454 = vcmp.eq.f32.partialorder %v453, 8.507059e+37
    %v455 = vand.u32 %v443, 2147483648
    %v456 = vor.u32 1.1754944e-38, %v455
    %v457 = vsel %vm454, %v456, %v452
    %v458 = vmul.f32 1.0, %v457
    %v459 = vadd.f32 %v437, %v259
    %461 = vrot.lane.b32.xlu0 %v459, 64
    %v462 = vpop.permute.xlu0 %461
    %v464 = vmul.f32 %v458, %v462
    %466 = vrot.lane.b32.xlu0 %v464, 64
    %v467 = vpop.permute.xlu0 %466
    %v469 = vadd.f32 %v413, %v467
    %v470 = vtanh.pop %v469
    %v471 = vsub.f32 1.0, %v458
    %473 = vrot.lane.b32.xlu0 %v470, 96
    %v474 = vpop.permute.xlu0 %473
    %v476 = vmul.f32 %v471, %v474
    %v477 = vmul.f32 %v458, %v412
    %v478 = vadd.f32 %v476, %v477
    %v479 = vld [vmem:[#allocation2 + $0x8] sm:$0x3]
    %481 = vrot.lane.b32.xlu0 %v478, 96
    %v482 = vpop.permute.xlu0 %481
    %v483 = vsel %vm212, %v482, 0
    %485 = vmatpush.msra.mxu0 0.0
    %486 = vmatpush.msra.mxu0 0.0
    %487 = vmatpush.msra.mxu0 0.0
    %488 = vmatpush.msra.mxu0 0.0
    %489 = vmatpush.msra.mxu0 0.0
    %490 = vmatpush.msra.mxu0 0.0
    %491 = vmatpush.msra.mxu0 0.0
    %492 = vmatpush.msra.mxu0 0.0
    %493 = vmatpush.msra.mxu0 0.0
    %494 = vmatpush.msra.mxu0 0.0
    %495 = vmatpush.msra.mxu0 0.0
    %496 = vmatpush.msra.mxu0 0.0
    %497 = vmatpush.msra.mxu0 %v199
    %498 = vmatpush.msra.mxu0 %v198
    %499 = vmatpush.msra.mxu0 %v197
    %500 = vmatpush.msra.mxu0 %v196
    %501 = vmatmul.f32.gmra.mxu0 %v483
    %v502 = vpop.f32.mrf.mxu0
    %v503 = vadd.f32 0.0, %v502
    %504 = vdwg.mxu0
    %v505 = vadd.f32 %v479, %v503
    %v506 = vxor.u32 %v505, 2147483648
    %v507 = vmul.f32 %v506, 1.442695
    %v508 = vpow.pop %v507
    %v509 = vadd.f32 %v508, 1.0
    %v510 = vrcp.pop %v509
    %v511 = vmul.f32 %v509, %v510
    %v512 = vsub.f32 1.0, %v511
    %v513 = vmul.f32 %v510, %v512
    %v514 = vadd.f32 %v510, %v513
    %vm515 = vweird.f32 %v509
    %vm516 = vweird.f32 %v510
    %vm517 = vmor %vm515, %vm516
    %v518 = vsel %vm517, %v510, %v514
    %v519 = vand.u32 2147483647, %v509
    %vm520 = vcmp.eq.f32.partialorder %v519, 8.507059e+37
    %v521 = vand.u32 %v509, 2147483648
    %v522 = vor.u32 1.1754944e-38, %v521
    %v523 = vsel %vm520, %v522, %v518
    %v524 = vmul.f32 1.0, %v523
    %v525 = vadd.f32 %v503, %v259
    %527 = vrot.lane.b32.xlu0 %v525, 64
    %v528 = vpop.permute.xlu0 %527
    %v530 = vmul.f32 %v524, %v528
    %532 = vrot.lane.b32.xlu0 %v530, 64
    %v533 = vpop.permute.xlu0 %532
    %v535 = vadd.f32 %v479, %v533
    %v536 = vtanh.pop %v535
    %v537 = vsub.f32 1.0, %v524
    %539 = vrot.lane.b32.xlu0 %v536, 96
    %v540 = vpop.permute.xlu0 %539
    %v542 = vmul.f32 %v537, %v540
    %v543 = vmul.f32 %v524, %v478
    %v544 = vadd.f32 %v542, %v543
    %v545 = vld [vmem:[#allocation2 + $0xa] sm:$0x3]
    %547 = vrot.lane.b32.xlu0 %v544, 96
    %v548 = vpop.permute.xlu0 %547
    %v549 = vsel %vm212, %v548, 0
    %551 = vmatpush.msra.mxu0 0.0
    %552 = vmatpush.msra.mxu0 0.0
    %553 = vmatpush.msra.mxu0 0.0
    %554 = vmatpush.msra.mxu0 0.0
    %555 = vmatpush.msra.mxu0 0.0
    %556 = vmatpush.msra.mxu0 0.0
    %557 = vmatpush.msra.mxu0 0.0
    %558 = vmatpush.msra.mxu0 0.0
    %559 = vmatpush.msra.mxu0 0.0
    %560 = vmatpush.msra.mxu0 0.0
    %561 = vmatpush.msra.mxu0 0.0
    %562 = vmatpush.msra.mxu0 0.0
    %563 = vmatpush.msra.mxu0 %v199
    %564 = vmatpush.msra.mxu0 %v198
    %565 = vmatpush.msra.mxu0 %v197
    %566 = vmatpush.msra.mxu0 %v196
    %567 = vmatmul.f32.gmra.mxu0 %v549
    %v568 = vpop.f32.mrf.mxu0
    %v569 = vadd.f32 0.0, %v568
    %570 = vdwg.mxu0
    %v571 = vadd.f32 %v545, %v569
    %v572 = vxor.u32 %v571, 2147483648
    %v573 = vmul.f32 %v572, 1.442695
    %v574 = vpow.pop %v573
    %v575 = vadd.f32 %v574, 1.0
    %v576 = vrcp.pop %v575
    %v577 = vmul.f32 %v575, %v576
    %v578 = vsub.f32 1.0, %v577
    %v579 = vmul.f32 %v576, %v578
    %v580 = vadd.f32 %v576, %v579
    %vm581 = vweird.f32 %v575
    %vm582 = vweird.f32 %v576
    %vm583 = vmor %vm581, %vm582
    %v584 = vsel %vm583, %v576, %v580
    %v585 = vand.u32 2147483647, %v575
    %vm586 = vcmp.eq.f32.partialorder %v585, 8.507059e+37
    %v587 = vand.u32 %v575, 2147483648
    %v588 = vor.u32 1.1754944e-38, %v587
    %v589 = vsel %vm586, %v588, %v584
    %v590 = vmul.f32 1.0, %v589
    %v591 = vadd.f32 %v569, %v259
    %593 = vrot.lane.b32.xlu0 %v591, 64
    %v594 = vpop.permute.xlu0 %593
    %v596 = vmul.f32 %v590, %v594
    %598 = vrot.lane.b32.xlu0 %v596, 64
    %v599 = vpop.permute.xlu0 %598
    %v601 = vadd.f32 %v545, %v599
    %v602 = vtanh.pop %v601
    %v603 = vsub.f32 1.0, %v590
    %605 = vrot.lane.b32.xlu0 %v602, 96
    %v606 = vpop.permute.xlu0 %605
    %v608 = vmul.f32 %v603, %v606
    %v609 = vmul.f32 %v590, %v544
    %v610 = vadd.f32 %v608, %v609
    %v611 = vld [vmem:[#allocation2 + $0xc] sm:$0x3]
    %613 = vrot.lane.b32.xlu0 %v610, 96
    %v614 = vpop.permute.xlu0 %613
    %v615 = vsel %vm212, %v614, 0
    %617 = vmatpush.msra.mxu0 0.0
    %618 = vmatpush.msra.mxu0 0.0
    %619 = vmatpush.msra.mxu0 0.0
    %620 = vmatpush.msra.mxu0 0.0
    %621 = vmatpush.msra.mxu0 0.0
    %622 = vmatpush.msra.mxu0 0.0
    %623 = vmatpush.msra.mxu0 0.0
    %624 = vmatpush.msra.mxu0 0.0
    %625 = vmatpush.msra.mxu0 0.0
    %626 = vmatpush.msra.mxu0 0.0
    %627 = vmatpush.msra.mxu0 0.0
    %628 = vmatpush.msra.mxu0 0.0
    %629 = vmatpush.msra.mxu0 %v199
    %630 = vmatpush.msra.mxu0 %v198
    %631 = vmatpush.msra.mxu0 %v197
    %632 = vmatpush.msra.mxu0 %v196
    %633 = vmatmul.f32.gmra.mxu0 %v615
    %v634 = vpop.f32.mrf.mxu0
    %v635 = vadd.f32 0.0, %v634
    %636 = vdwg.mxu0
    %v637 = vadd.f32 %v611, %v635
    %v638 = vxor.u32 %v637, 2147483648
    %v639 = vmul.f32 %v638, 1.442695
    %v640 = vpow.pop %v639
    %v641 = vadd.f32 %v640, 1.0
    %v642 = vrcp.pop %v641
    %v643 = vmul.f32 %v641, %v642
    %v644 = vsub.f32 1.0, %v643
    %v645 = vmul.f32 %v642, %v644
    %v646 = vadd.f32 %v642, %v645
    %vm647 = vweird.f32 %v641
    %vm648 = vweird.f32 %v642
    %vm649 = vmor %vm647, %vm648
    %v650 = vsel %vm649, %v642, %v646
    %v651 = vand.u32 2147483647, %v641
    %vm652 = vcmp.eq.f32.partialorder %v651, 8.507059e+37
    %v653 = vand.u32 %v641, 2147483648
    %v654 = vor.u32 1.1754944e-38, %v653
    %v655 = vsel %vm652, %v654, %v650
    %v656 = vmul.f32 1.0, %v655
    %v657 = vadd.f32 %v635, %v259
    %659 = vrot.lane.b32.xlu0 %v657, 64
    %v660 = vpop.permute.xlu0 %659
    %v662 = vmul.f32 %v656, %v660
    %664 = vrot.lane.b32.xlu0 %v662, 64
    %v665 = vpop.permute.xlu0 %664
    %v667 = vadd.f32 %v611, %v665
    %v668 = vtanh.pop %v667
    %v669 = vsub.f32 1.0, %v656
    %671 = vrot.lane.b32.xlu0 %v668, 96
    %v672 = vpop.permute.xlu0 %671
    %v674 = vmul.f32 %v669, %v672
    %v675 = vmul.f32 %v656, %v610
    %v676 = vadd.f32 %v674, %v675
    %v677 = vld [vmem:[#allocation2 + $0xe] sm:$0x3]
    %679 = vrot.lane.b32.xlu0 %v676, 96
    %v680 = vpop.permute.xlu0 %679
    %v681 = vsel %vm212, %v680, 0
    %683 = vmatpush.msra.mxu0 0.0
    %684 = vmatpush.msra.mxu0 0.0
    %685 = vmatpush.msra.mxu0 0.0
    %686 = vmatpush.msra.mxu0 0.0
    %687 = vmatpush.msra.mxu0 0.0
    %688 = vmatpush.msra.mxu0 0.0
    %689 = vmatpush.msra.mxu0 0.0
    %690 = vmatpush.msra.mxu0 0.0
    %691 = vmatpush.msra.mxu0 0.0
    %692 = vmatpush.msra.mxu0 0.0
    %693 = vmatpush.msra.mxu0 0.0
    %694 = vmatpush.msra.mxu0 0.0
    %695 = vmatpush.msra.mxu0 %v199
    %696 = vmatpush.msra.mxu0 %v198
    %697 = vmatpush.msra.mxu0 %v197
    %698 = vmatpush.msra.mxu0 %v196
    %699 = vmatmul.f32.gmra.mxu0 %v681
    %v700 = vpop.f32.mrf.mxu0
    %v701 = vadd.f32 0.0, %v700
    %702 = vdwg.mxu0
    %v703 = vadd.f32 %v677, %v701
    %v704 = vxor.u32 %v703, 2147483648
    %v705 = vmul.f32 %v704, 1.442695
    %v706 = vpow.pop %v705
    %v707 = vadd.f32 %v706, 1.0
    %v708 = vrcp.pop %v707
    %v709 = vmul.f32 %v707, %v708
    %v710 = vsub.f32 1.0, %v709
    %v711 = vmul.f32 %v708, %v710
    %v712 = vadd.f32 %v708, %v711
    %vm713 = vweird.f32 %v707
    %vm714 = vweird.f32 %v708
    %vm715 = vmor %vm713, %vm714
    %v716 = vsel %vm715, %v708, %v712
    %v717 = vand.u32 2147483647, %v707
    %vm718 = vcmp.eq.f32.partialorder %v717, 8.507059e+37
    %v719 = vand.u32 %v707, 2147483648
    %v720 = vor.u32 1.1754944e-38, %v719
    %v721 = vsel %vm718, %v720, %v716
    %v722 = vmul.f32 1.0, %v721
    %v723 = vadd.f32 %v701, %v259
    %725 = vrot.lane.b32.xlu0 %v723, 64
    %v726 = vpop.permute.xlu0 %725
    %v728 = vmul.f32 %v722, %v726
    %730 = vrot.lane.b32.xlu0 %v728, 64
    %v731 = vpop.permute.xlu0 %730
    %v733 = vadd.f32 %v677, %v731
    %v734 = vtanh.pop %v733
    %v735 = vsub.f32 1.0, %v722
    %737 = vrot.lane.b32.xlu0 %v734, 96
    %v738 = vpop.permute.xlu0 %737
    %v740 = vmul.f32 %v735, %v738
    %v741 = vmul.f32 %v722, %v676
    %v742 = vadd.f32 %v740, %v741
    %v743 = vld [vmem:[#allocation3 + $0xe] sm:$0x3]
    %744 = vmatpush.msra.mxu0 0.0
    %745 = vmatpush.msra.mxu0 0.0
    %746 = vmatpush.msra.mxu0 0.0
    %747 = vmatpush.msra.mxu0 0.0
    %748 = vmatpush.msra.mxu0 0.0
    %749 = vmatpush.msra.mxu0 0.0
    %750 = vmatpush.msra.mxu0 0.0
    %751 = vmatpush.msra.mxu0 0.0
    %752 = vmatpush.msra.mxu0 0.0
    %753 = vmatpush.msra.mxu0 0.0
    %754 = vmatpush.msra.mxu0 0.0
    %755 = vmatpush.msra.mxu0 0.0
    %756 = vmatpush.msra.mxu0 %v204
    %757 = vmatpush.msra.mxu0 %v203
    %758 = vmatpush.msra.mxu0 %v202
    %759 = vmatpush.msra.mxu0 %v201
    %760 = vmatmul.f32.gmra.mxu0 %v214
    %v761 = vpop.f32.mrf.mxu0
    %v762 = vadd.f32 0.0, %v761
    %763 = vdwg.mxu0
    %v764 = vadd.f32 %v743, %v762
    %v765 = vxor.u32 %v764, 2147483648
    %v766 = vmul.f32 %v765, 1.442695
    %v767 = vpow.pop %v766
    %v768 = vadd.f32 %v767, 1.0
    %v769 = vrcp.pop %v768
    %v770 = vmul.f32 %v768, %v769
    %v771 = vsub.f32 1.0, %v770
    %v772 = vmul.f32 %v769, %v771
    %v773 = vadd.f32 %v769, %v772
    %vm774 = vweird.f32 %v768
    %vm775 = vweird.f32 %v769
    %vm776 = vmor %vm774, %vm775
    %v777 = vsel %vm776, %v769, %v773
    %v778 = vand.u32 2147483647, %v768
    %vm779 = vcmp.eq.f32.partialorder %v778, 8.507059e+37
    %v780 = vand.u32 %v768, 2147483648
    %v781 = vor.u32 1.1754944e-38, %v780
    %v782 = vsel %vm779, %v781, %v777
    %v783 = vmul.f32 1.0, %v782
    %v785 = vperm.slane %v205, 0
    %786 = vrot.lane.b32.xlu0 %v785, 64
    %v787 = vpop.permute.xlu0 %786
    %v789 = vadd.f32 %v762, %v787
    %791 = vrot.lane.b32.xlu0 %v789, 64
    %v792 = vpop.permute.xlu0 %791
    %v794 = vmul.f32 %v783, %v792
    %796 = vrot.lane.b32.xlu0 %v794, 64
    %v797 = vpop.permute.xlu0 %796
    %v799 = vadd.f32 %v743, %v797
    %v800 = vtanh.pop %v799
    %v801 = vsub.f32 1.0, %v783
    %803 = vrot.lane.b32.xlu0 %v800, 96
    %v804 = vpop.permute.xlu0 %803
    %v806 = vmul.f32 %v801, %v804
    %v807 = vmul.f32 %v783, 0.0
    %v808 = vadd.f32 %v806, %v807
    %v809 = vadd.f32 %v742, %v808
    %811 = vrot.lane.b32.xlu0 %v809, 96
    %v812 = vpop.permute.xlu0 %811
    %vm814 = vcmask 254976
    %815 = vst.msk [vmem:[#allocation5 + $0xe] sm:$0x3] %vm814, %v812
    %v816 = vld [vmem:[#allocation3 + $0xc] sm:$0x3]
    %818 = vrot.lane.b32.xlu0 %v808, 96
    %v819 = vpop.permute.xlu0 %818
    %v820 = vsel %vm212, %v819, 0
    %822 = vmatpush.msra.mxu0 0.0
    %823 = vmatpush.msra.mxu0 0.0
    %824 = vmatpush.msra.mxu0 0.0
    %825 = vmatpush.msra.mxu0 0.0
    %826 = vmatpush.msra.mxu0 0.0
    %827 = vmatpush.msra.mxu0 0.0
    %828 = vmatpush.msra.mxu0 0.0
    %829 = vmatpush.msra.mxu0 0.0
    %830 = vmatpush.msra.mxu0 0.0
    %831 = vmatpush.msra.mxu0 0.0
    %832 = vmatpush.msra.mxu0 0.0
    %833 = vmatpush.msra.mxu0 0.0
    %834 = vmatpush.msra.mxu0 %v204
    %835 = vmatpush.msra.mxu0 %v203
    %836 = vmatpush.msra.mxu0 %v202
    %837 = vmatpush.msra.mxu0 %v201
    %838 = vmatmul.f32.gmra.mxu0 %v820
    %v839 = vpop.f32.mrf.mxu0
    %v840 = vadd.f32 0.0, %v839
    %841 = vdwg.mxu0
    %v842 = vadd.f32 %v816, %v840
    %v843 = vxor.u32 %v842, 2147483648
    %v844 = vmul.f32 %v843, 1.442695
    %v845 = vpow.pop %v844
    %v846 = vadd.f32 %v845, 1.0
    %v847 = vrcp.pop %v846
    %v848 = vmul.f32 %v846, %v847
    %v849 = vsub.f32 1.0, %v848
    %v850 = vmul.f32 %v847, %v849
    %v851 = vadd.f32 %v847, %v850
    %vm852 = vweird.f32 %v846
    %vm853 = vweird.f32 %v847
    %vm854 = vmor %vm852, %vm853
    %v855 = vsel %vm854, %v847, %v851
    %v856 = vand.u32 2147483647, %v846
    %vm857 = vcmp.eq.f32.partialorder %v856, 8.507059e+37
    %v858 = vand.u32 %v846, 2147483648
    %v859 = vor.u32 1.1754944e-38, %v858
    %v860 = vsel %vm857, %v859, %v855
    %v861 = vmul.f32 1.0, %v860
    %v862 = vadd.f32 %v840, %v787
    %864 = vrot.lane.b32.xlu0 %v862, 64
    %v865 = vpop.permute.xlu0 %864
    %v867 = vmul.f32 %v861, %v865
    %869 = vrot.lane.b32.xlu0 %v867, 64
    %v870 = vpop.permute.xlu0 %869
    %v872 = vadd.f32 %v816, %v870
    %v873 = vtanh.pop %v872
    %v874 = vsub.f32 1.0, %v861
    %876 = vrot.lane.b32.xlu0 %v873, 96
    %v877 = vpop.permute.xlu0 %876
    %v879 = vmul.f32 %v874, %v877
    %v880 = vmul.f32 %v861, %v808
    %v881 = vadd.f32 %v879, %v880
    %v882 = vadd.f32 %v676, %v881
    %884 = vrot.lane.b32.xlu0 %v882, 96
    %v885 = vpop.permute.xlu0 %884
    %887 = vst.msk [vmem:[#allocation5 + $0xc] sm:$0x3] %vm814, %v885
    %v888 = vld [vmem:[#allocation3 + $0xa] sm:$0x3]
    %890 = vrot.lane.b32.xlu0 %v881, 96
    %v891 = vpop.permute.xlu0 %890
    %v892 = vsel %vm212, %v891, 0
    %894 = vmatpush.msra.mxu0 0.0
    %895 = vmatpush.msra.mxu0 0.0
    %896 = vmatpush.msra.mxu0 0.0
    %897 = vmatpush.msra.mxu0 0.0
    %898 = vmatpush.msra.mxu0 0.0
    %899 = vmatpush.msra.mxu0 0.0
    %900 = vmatpush.msra.mxu0 0.0
    %901 = vmatpush.msra.mxu0 0.0
    %902 = vmatpush.msra.mxu0 0.0
    %903 = vmatpush.msra.mxu0 0.0
    %904 = vmatpush.msra.mxu0 0.0
    %905 = vmatpush.msra.mxu0 0.0
    %906 = vmatpush.msra.mxu0 %v204
    %907 = vmatpush.msra.mxu0 %v203
    %908 = vmatpush.msra.mxu0 %v202
    %909 = vmatpush.msra.mxu0 %v201
    %910 = vmatmul.f32.gmra.mxu0 %v892
    %v911 = vpop.f32.mrf.mxu0
    %v912 = vadd.f32 0.0, %v911
    %913 = vdwg.mxu0
    %v914 = vadd.f32 %v888, %v912
    %v915 = vxor.u32 %v914, 2147483648
    %v916 = vmul.f32 %v915, 1.442695
    %v917 = vpow.pop %v916
    %v918 = vadd.f32 %v917, 1.0
    %v919 = vrcp.pop %v918
    %v920 = vmul.f32 %v918, %v919
    %v921 = vsub.f32 1.0, %v920
    %v922 = vmul.f32 %v919, %v921
    %v923 = vadd.f32 %v919, %v922
    %vm924 = vweird.f32 %v918
    %vm925 = vweird.f32 %v919
    %vm926 = vmor %vm924, %vm925
    %v927 = vsel %vm926, %v919, %v923
    %v928 = vand.u32 2147483647, %v918
    %vm929 = vcmp.eq.f32.partialorder %v928, 8.507059e+37
    %v930 = vand.u32 %v918, 2147483648
    %v931 = vor.u32 1.1754944e-38, %v930
    %v932 = vsel %vm929, %v931, %v927
    %v933 = vmul.f32 1.0, %v932
    %v934 = vadd.f32 %v912, %v787
    %936 = vrot.lane.b32.xlu0 %v934, 64
    %v937 = vpop.permute.xlu0 %936
    %v939 = vmul.f32 %v933, %v937
    %941 = vrot.lane.b32.xlu0 %v939, 64
    %v942 = vpop.permute.xlu0 %941
    %v944 = vadd.f32 %v888, %v942
    %v945 = vtanh.pop %v944
    %v946 = vsub.f32 1.0, %v933
    %948 = vrot.lane.b32.xlu0 %v945, 96
    %v949 = vpop.permute.xlu0 %948
    %v951 = vmul.f32 %v946, %v949
    %v952 = vmul.f32 %v933, %v881
    %v953 = vadd.f32 %v951, %v952
    %v954 = vadd.f32 %v610, %v953
    %956 = vrot.lane.b32.xlu0 %v954, 96
    %v957 = vpop.permute.xlu0 %956
    %959 = vst.msk [vmem:[#allocation5 + $0xa] sm:$0x3] %vm814, %v957
    %v960 = vld [vmem:[#allocation3 + $0x8] sm:$0x3]
    %962 = vrot.lane.b32.xlu0 %v953, 96
    %v963 = vpop.permute.xlu0 %962
    %v964 = vsel %vm212, %v963, 0
    %966 = vmatpush.msra.mxu0 0.0
    %967 = vmatpush.msra.mxu0 0.0
    %968 = vmatpush.msra.mxu0 0.0
    %969 = vmatpush.msra.mxu0 0.0
    %970 = vmatpush.msra.mxu0 0.0
    %971 = vmatpush.msra.mxu0 0.0
    %972 = vmatpush.msra.mxu0 0.0
    %973 = vmatpush.msra.mxu0 0.0
    %974 = vmatpush.msra.mxu0 0.0
    %975 = vmatpush.msra.mxu0 0.0
    %976 = vmatpush.msra.mxu0 0.0
    %977 = vmatpush.msra.mxu0 0.0
    %978 = vmatpush.msra.mxu0 %v204
    %979 = vmatpush.msra.mxu0 %v203
    %980 = vmatpush.msra.mxu0 %v202
    %981 = vmatpush.msra.mxu0 %v201
    %982 = vmatmul.f32.gmra.mxu0 %v964
    %v983 = vpop.f32.mrf.mxu0
    %v984 = vadd.f32 0.0, %v983
    %985 = vdwg.mxu0
    %v986 = vadd.f32 %v960, %v984
    %v987 = vxor.u32 %v986, 2147483648
    %v988 = vmul.f32 %v987, 1.442695
    %v989 = vpow.pop %v988
    %v990 = vadd.f32 %v989, 1.0
    %v991 = vrcp.pop %v990
    %v992 = vmul.f32 %v990, %v991
    %v993 = vsub.f32 1.0, %v992
    %v994 = vmul.f32 %v991, %v993
    %v995 = vadd.f32 %v991, %v994
    %vm996 = vweird.f32 %v990
    %vm997 = vweird.f32 %v991
    %vm998 = vmor %vm996, %vm997
    %v999 = vsel %vm998, %v991, %v995
    %v1000 = vand.u32 2147483647, %v990
    %vm1001 = vcmp.eq.f32.partialorder %v1000, 8.507059e+37
    %v1002 = vand.u32 %v990, 2147483648
    %v1003 = vor.u32 1.1754944e-38, %v1002
    %v1004 = vsel %vm1001, %v1003, %v999
    %v1005 = vmul.f32 1.0, %v1004
    %v1006 = vadd.f32 %v984, %v787
    %1008 = vrot.lane.b32.xlu0 %v1006, 64
    %v1009 = vpop.permute.xlu0 %1008
    %v1011 = vmul.f32 %v1005, %v1009
    %1013 = vrot.lane.b32.xlu0 %v1011, 64
    %v1014 = vpop.permute.xlu0 %1013
    %v1016 = vadd.f32 %v960, %v1014
    %v1017 = vtanh.pop %v1016
    %v1018 = vsub.f32 1.0, %v1005
    %1020 = vrot.lane.b32.xlu0 %v1017, 96
    %v1021 = vpop.permute.xlu0 %1020
    %v1023 = vmul.f32 %v1018, %v1021
    %v1024 = vmul.f32 %v1005, %v953
    %v1025 = vadd.f32 %v1023, %v1024
    %v1026 = vadd.f32 %v544, %v1025
    %1028 = vrot.lane.b32.xlu0 %v1026, 96
    %v1029 = vpop.permute.xlu0 %1028
    %1031 = vst.msk [vmem:[#allocation5 + $0x8] sm:$0x3] %vm814, %v1029
    %v1032 = vld [vmem:[#allocation3 + $0x6] sm:$0x3]
    %1034 = vrot.lane.b32.xlu0 %v1025, 96
    %v1035 = vpop.permute.xlu0 %1034
    %v1036 = vsel %vm212, %v1035, 0
    %1038 = vmatpush.msra.mxu0 0.0
    %1039 = vmatpush.msra.mxu0 0.0
    %1040 = vmatpush.msra.mxu0 0.0
    %1041 = vmatpush.msra.mxu0 0.0
    %1042 = vmatpush.msra.mxu0 0.0
    %1043 = vmatpush.msra.mxu0 0.0
    %1044 = vmatpush.msra.mxu0 0.0
    %1045 = vmatpush.msra.mxu0 0.0
    %1046 = vmatpush.msra.mxu0 0.0
    %1047 = vmatpush.msra.mxu0 0.0
    %1048 = vmatpush.msra.mxu0 0.0
    %1049 = vmatpush.msra.mxu0 0.0
    %1050 = vmatpush.msra.mxu0 %v204
    %1051 = vmatpush.msra.mxu0 %v203
    %1052 = vmatpush.msra.mxu0 %v202
    %1053 = vmatpush.msra.mxu0 %v201
    %1054 = vmatmul.f32.gmra.mxu0 %v1036
    %v1055 = vpop.f32.mrf.mxu0
    %v1056 = vadd.f32 0.0, %v1055
    %1057 = vdwg.mxu0
    %v1058 = vadd.f32 %v1032, %v1056
    %v1059 = vxor.u32 %v1058, 2147483648
    %v1060 = vmul.f32 %v1059, 1.442695
    %v1061 = vpow.pop %v1060
    %v1062 = vadd.f32 %v1061, 1.0
    %v1063 = vrcp.pop %v1062
    %v1064 = vmul.f32 %v1062, %v1063
    %v1065 = vsub.f32 1.0, %v1064
    %v1066 = vmul.f32 %v1063, %v1065
    %v1067 = vadd.f32 %v1063, %v1066
    %vm1068 = vweird.f32 %v1062
    %vm1069 = vweird.f32 %v1063
    %vm1070 = vmor %vm1068, %vm1069
    %v1071 = vsel %vm1070, %v1063, %v1067
    %v1072 = vand.u32 2147483647, %v1062
    %vm1073 = vcmp.eq.f32.partialorder %v1072, 8.507059e+37
    %v1074 = vand.u32 %v1062, 2147483648
    %v1075 = vor.u32 1.1754944e-38, %v1074
    %v1076 = vsel %vm1073, %v1075, %v1071
    %v1077 = vmul.f32 1.0, %v1076
    %v1078 = vadd.f32 %v1056, %v787
    %1080 = vrot.lane.b32.xlu0 %v1078, 64
    %v1081 = vpop.permute.xlu0 %1080
    %v1083 = vmul.f32 %v1077, %v1081
    %1085 = vrot.lane.b32.xlu0 %v1083, 64
    %v1086 = vpop.permute.xlu0 %1085
    %v1088 = vadd.f32 %v1032, %v1086
    %v1089 = vtanh.pop %v1088
    %v1090 = vsub.f32 1.0, %v1077
    %1092 = vrot.lane.b32.xlu0 %v1089, 96
    %v1093 = vpop.permute.xlu0 %1092
    %v1095 = vmul.f32 %v1090, %v1093
    %v1096 = vmul.f32 %v1077, %v1025
    %v1097 = vadd.f32 %v1095, %v1096
    %v1098 = vadd.f32 %v478, %v1097
    %1100 = vrot.lane.b32.xlu0 %v1098, 96
    %v1101 = vpop.permute.xlu0 %1100
    %1103 = vst.msk [vmem:[#allocation5 + $0x6] sm:$0x3] %vm814, %v1101
    %v1104 = vld [vmem:[#allocation3 + $0x4] sm:$0x3]
    %1106 = vrot.lane.b32.xlu0 %v1097, 96
    %v1107 = vpop.permute.xlu0 %1106
    %v1108 = vsel %vm212, %v1107, 0
    %1110 = vmatpush.msra.mxu0 0.0
    %1111 = vmatpush.msra.mxu0 0.0
    %1112 = vmatpush.msra.mxu0 0.0
    %1113 = vmatpush.msra.mxu0 0.0
    %1114 = vmatpush.msra.mxu0 0.0
    %1115 = vmatpush.msra.mxu0 0.0
    %1116 = vmatpush.msra.mxu0 0.0
    %1117 = vmatpush.msra.mxu0 0.0
    %1118 = vmatpush.msra.mxu0 0.0
    %1119 = vmatpush.msra.mxu0 0.0
    %1120 = vmatpush.msra.mxu0 0.0
    %1121 = vmatpush.msra.mxu0 0.0
    %1122 = vmatpush.msra.mxu0 %v204
    %1123 = vmatpush.msra.mxu0 %v203
    %1124 = vmatpush.msra.mxu0 %v202
    %1125 = vmatpush.msra.mxu0 %v201
    %1126 = vmatmul.f32.gmra.mxu0 %v1108
    %v1127 = vpop.f32.mrf.mxu0
    %v1128 = vadd.f32 0.0, %v1127
    %1129 = vdwg.mxu0
    %v1130 = vadd.f32 %v1104, %v1128
    %v1131 = vxor.u32 %v1130, 2147483648
    %v1132 = vmul.f32 %v1131, 1.442695
    %v1133 = vpow.pop %v1132
    %v1134 = vadd.f32 %v1133, 1.0
    %v1135 = vrcp.pop %v1134
    %v1136 = vmul.f32 %v1134, %v1135
    %v1137 = vsub.f32 1.0, %v1136
    %v1138 = vmul.f32 %v1135, %v1137
    %v1139 = vadd.f32 %v1135, %v1138
    %vm1140 = vweird.f32 %v1134
    %vm1141 = vweird.f32 %v1135
    %vm1142 = vmor %vm1140, %vm1141
    %v1143 = vsel %vm1142, %v1135, %v1139
    %v1144 = vand.u32 2147483647, %v1134
    %vm1145 = vcmp.eq.f32.partialorder %v1144, 8.507059e+37
    %v1146 = vand.u32 %v1134, 2147483648
    %v1147 = vor.u32 1.1754944e-38, %v1146
    %v1148 = vsel %vm1145, %v1147, %v1143
    %v1149 = vmul.f32 1.0, %v1148
    %v1150 = vadd.f32 %v1128, %v787
    %1152 = vrot.lane.b32.xlu0 %v1150, 64
    %v1153 = vpop.permute.xlu0 %1152
    %v1155 = vmul.f32 %v1149, %v1153
    %1157 = vrot.lane.b32.xlu0 %v1155, 64
    %v1158 = vpop.permute.xlu0 %1157
    %v1160 = vadd.f32 %v1104, %v1158
    %v1161 = vtanh.pop %v1160
    %v1162 = vsub.f32 1.0, %v1149
    %1164 = vrot.lane.b32.xlu0 %v1161, 96
    %v1165 = vpop.permute.xlu0 %1164
    %v1167 = vmul.f32 %v1162, %v1165
    %v1168 = vmul.f32 %v1149, %v1097
    %v1169 = vadd.f32 %v1167, %v1168
    %v1170 = vadd.f32 %v412, %v1169
    %1172 = vrot.lane.b32.xlu0 %v1170, 96
    %v1173 = vpop.permute.xlu0 %1172
    %1175 = vst.msk [vmem:[#allocation5 + $0x4] sm:$0x3] %vm814, %v1173
    %v1176 = vld [vmem:[#allocation3 + $0x2] sm:$0x3]
    %1178 = vrot.lane.b32.xlu0 %v1169, 96
    %v1179 = vpop.permute.xlu0 %1178
    %v1180 = vsel %vm212, %v1179, 0
    %1182 = vmatpush.msra.mxu0 0.0
    %1183 = vmatpush.msra.mxu0 0.0
    %1184 = vmatpush.msra.mxu0 0.0
    %1185 = vmatpush.msra.mxu0 0.0
    %1186 = vmatpush.msra.mxu0 0.0
    %1187 = vmatpush.msra.mxu0 0.0
    %1188 = vmatpush.msra.mxu0 0.0
    %1189 = vmatpush.msra.mxu0 0.0
    %1190 = vmatpush.msra.mxu0 0.0
    %1191 = vmatpush.msra.mxu0 0.0
    %1192 = vmatpush.msra.mxu0 0.0
    %1193 = vmatpush.msra.mxu0 0.0
    %1194 = vmatpush.msra.mxu0 %v204
    %1195 = vmatpush.msra.mxu0 %v203
    %1196 = vmatpush.msra.mxu0 %v202
    %1197 = vmatpush.msra.mxu0 %v201
    %1198 = vmatmul.f32.gmra.mxu0 %v1180
    %v1199 = vpop.f32.mrf.mxu0
    %v1200 = vadd.f32 0.0, %v1199
    %1201 = vdwg.mxu0
    %v1202 = vadd.f32 %v1176, %v1200
    %v1203 = vxor.u32 %v1202, 2147483648
    %v1204 = vmul.f32 %v1203, 1.442695
    %v1205 = vpow.pop %v1204
    %v1206 = vadd.f32 %v1205, 1.0
    %v1207 = vrcp.pop %v1206
    %v1208 = vmul.f32 %v1206, %v1207
    %v1209 = vsub.f32 1.0, %v1208
    %v1210 = vmul.f32 %v1207, %v1209
    %v1211 = vadd.f32 %v1207, %v1210
    %vm1212 = vweird.f32 %v1206
    %vm1213 = vweird.f32 %v1207
    %vm1214 = vmor %vm1212, %vm1213
    %v1215 = vsel %vm1214, %v1207, %v1211
    %v1216 = vand.u32 2147483647, %v1206
    %vm1217 = vcmp.eq.f32.partialorder %v1216, 8.507059e+37
    %v1218 = vand.u32 %v1206, 2147483648
    %v1219 = vor.u32 1.1754944e-38, %v1218
    %v1220 = vsel %vm1217, %v1219, %v1215
    %v1221 = vmul.f32 1.0, %v1220
    %v1222 = vadd.f32 %v1200, %v787
    %1224 = vrot.lane.b32.xlu0 %v1222, 64
    %v1225 = vpop.permute.xlu0 %1224
    %v1227 = vmul.f32 %v1221, %v1225
    %1229 = vrot.lane.b32.xlu0 %v1227, 64
    %v1230 = vpop.permute.xlu0 %1229
    %v1232 = vadd.f32 %v1176, %v1230
    %v1233 = vtanh.pop %v1232
    %v1234 = vsub.f32 1.0, %v1221
    %1236 = vrot.lane.b32.xlu0 %v1233, 96
    %v1237 = vpop.permute.xlu0 %1236
    %v1239 = vmul.f32 %v1234, %v1237
    %v1240 = vmul.f32 %v1221, %v1169
    %v1241 = vadd.f32 %v1239, %v1240
    %v1242 = vadd.f32 %v346, %v1241
    %1244 = vrot.lane.b32.xlu0 %v1242, 96
    %v1245 = vpop.permute.xlu0 %1244
    %1247 = vst.msk [vmem:[#allocation5 + $0x2] sm:$0x3] %vm814, %v1245
    %v1248 = vld [vmem:[#allocation3] sm:$0x3]
    %1250 = vrot.lane.b32.xlu0 %v1241, 96
    %v1251 = vpop.permute.xlu0 %1250
    %v1252 = vsel %vm212, %v1251, 0
    %1254 = vmatpush.msra.mxu0 0.0
    %1255 = vmatpush.msra.mxu0 0.0
    %1256 = vmatpush.msra.mxu0 0.0
    %1257 = vmatpush.msra.mxu0 0.0
    %1258 = vmatpush.msra.mxu0 0.0
    %1259 = vmatpush.msra.mxu0 0.0
    %1260 = vmatpush.msra.mxu0 0.0
    %1261 = vmatpush.msra.mxu0 0.0
    %1262 = vmatpush.msra.mxu0 0.0
    %1263 = vmatpush.msra.mxu0 0.0
    %1264 = vmatpush.msra.mxu0 0.0
    %1265 = vmatpush.msra.mxu0 0.0
    %1266 = vmatpush.msra.mxu0 %v204
    %1267 = vmatpush.msra.mxu0 %v203
    %1268 = vmatpush.msra.mxu0 %v202
    %1269 = vmatpush.msra.mxu0 %v201
    %1270 = vmatmul.f32.gmra.mxu0 %v1252
    %v1271 = vpop.f32.mrf.mxu0
    %v1272 = vadd.f32 0.0, %v1271
    %1273 = vdwg.mxu0
    %v1274 = vadd.f32 %v1248, %v1272
    %v1275 = vxor.u32 %v1274, 2147483648
    %v1276 = vmul.f32 %v1275, 1.442695
    %v1277 = vpow.pop %v1276
    %v1278 = vadd.f32 %v1277, 1.0
    %v1279 = vrcp.pop %v1278
    %v1280 = vmul.f32 %v1278, %v1279
    %v1281 = vsub.f32 1.0, %v1280
    %v1282 = vmul.f32 %v1279, %v1281
    %v1283 = vadd.f32 %v1279, %v1282
    %vm1284 = vweird.f32 %v1278
    %vm1285 = vweird.f32 %v1279
    %vm1286 = vmor %vm1284, %vm1285
    %v1287 = vsel %vm1286, %v1279, %v1283
    %v1288 = vand.u32 2147483647, %v1278
    %vm1289 = vcmp.eq.f32.partialorder %v1288, 8.507059e+37
    %v1290 = vand.u32 %v1278, 2147483648
    %v1291 = vor.u32 1.1754944e-38, %v1290
    %v1292 = vsel %vm1289, %v1291, %v1287
    %v1293 = vmul.f32 1.0, %v1292
    %v1294 = vadd.f32 %v1272, %v787
    %1296 = vrot.lane.b32.xlu0 %v1294, 64
    %v1297 = vpop.permute.xlu0 %1296
    %v1299 = vmul.f32 %v1293, %v1297
    %1301 = vrot.lane.b32.xlu0 %v1299, 64
    %v1302 = vpop.permute.xlu0 %1301
    %v1304 = vadd.f32 %v1248, %v1302
    %v1305 = vtanh.pop %v1304
    %v1306 = vsub.f32 1.0, %v1293
    %1308 = vrot.lane.b32.xlu0 %v1305, 96
    %v1309 = vpop.permute.xlu0 %1308
    %v1311 = vmul.f32 %v1306, %v1309
    %v1312 = vmul.f32 %v1293, %v1241
    %v1313 = vadd.f32 %v1311, %v1312
    %v1314 = vadd.f32 %v280, %v1313
    %1316 = vrot.lane.b32.xlu0 %v1314, 96
    %v1317 = vpop.permute.xlu0 %1316
    %1319 = vst.msk [vmem:[#allocation5] sm:$0x3] %vm814, %v1317
    %v1320 = vld [vmem:[#allocation4] sm:$0x3]
    %1321 = vmatpush.msra.mxu0 0.0
    %1322 = vmatpush.msra.mxu0 0.0
    %1323 = vmatpush.msra.mxu0 0.0
    %1324 = vmatpush.msra.mxu0 0.0
    %1325 = vmatpush.msra.mxu0 0.0
    %1326 = vmatpush.msra.mxu0 0.0
    %1327 = vmatpush.msra.mxu0 0.0
    %1328 = vmatpush.msra.mxu0 0.0
    %1329 = vmatpush.msra.mxu0 0.0
    %1330 = vmatpush.msra.mxu0 0.0
    %1331 = vmatpush.msra.mxu0 0.0
    %1332 = vmatpush.msra.mxu0 0.0
    %1333 = vmatpush.msra.mxu0 %v209
    %1334 = vmatpush.msra.mxu0 %v208
    %1335 = vmatpush.msra.mxu0 %v207
    %1336 = vmatpush.msra.mxu0 %v206
    %1337 = vmatmul.f32.gmra.mxu0 %v214
    %v1338 = vpop.f32.mrf.mxu0
    %v1339 = vadd.f32 0.0, %v1338
    %1340 = vdwg.mxu0
    %v1341 = vadd.f32 %v1320, %v1339
    %v1342 = vxor.u32 %v1341, 2147483648
    %v1343 = vmul.f32 %v1342, 1.442695
    %v1344 = vpow.pop %v1343
    %v1345 = vadd.f32 %v1344, 1.0
    %v1346 = vrcp.pop %v1345
    %v1347 = vmul.f32 %v1345, %v1346
    %v1348 = vsub.f32 1.0, %v1347
    %v1349 = vmul.f32 %v1346, %v1348
    %v1350 = vadd.f32 %v1346, %v1349
    %vm1351 = vweird.f32 %v1345
    %vm1352 = vweird.f32 %v1346
    %vm1353 = vmor %vm1351, %vm1352
    %v1354 = vsel %vm1353, %v1346, %v1350
    %v1355 = vand.u32 2147483647, %v1345
    %vm1356 = vcmp.eq.f32.partialorder %v1355, 8.507059e+37
    %v1357 = vand.u32 %v1345, 2147483648
    %v1358 = vor.u32 1.1754944e-38, %v1357
    %v1359 = vsel %vm1356, %v1358, %v1354
    %v1360 = vmul.f32 1.0, %v1359
    %v1362 = vperm.slane %v210, 0
    %1363 = vrot.lane.b32.xlu0 %v1362, 64
    %v1364 = vpop.permute.xlu0 %1363
    %v1366 = vadd.f32 %v1339, %v1364
    %1368 = vrot.lane.b32.xlu0 %v1366, 64
    %v1369 = vpop.permute.xlu0 %1368
    %v1371 = vmul.f32 %v1360, %v1369
    %1373 = vrot.lane.b32.xlu0 %v1371, 64
    %v1374 = vpop.permute.xlu0 %1373
    %v1376 = vadd.f32 %v1320, %v1374
    %v1377 = vtanh.pop %v1376
    %v1378 = vsub.f32 1.0, %v1360
    %1380 = vrot.lane.b32.xlu0 %v1377, 96
    %v1381 = vpop.permute.xlu0 %1380
    %v1383 = vmul.f32 %v1378, %v1381
    %v1384 = vmul.f32 %v1360, 0.0
    %v1385 = vadd.f32 %v1383, %v1384
    %v1386 = vld [vmem:[#allocation4 + $0x2] sm:$0x3]
    %1388 = vrot.lane.b32.xlu0 %v1385, 96
    %v1389 = vpop.permute.xlu0 %1388
    %v1390 = vsel %vm212, %v1389, 0
    %1392 = vmatpush.msra.mxu0 0.0
    %1393 = vmatpush.msra.mxu0 0.0
    %1394 = vmatpush.msra.mxu0 0.0
    %1395 = vmatpush.msra.mxu0 0.0
    %1396 = vmatpush.msra.mxu0 0.0
    %1397 = vmatpush.msra.mxu0 0.0
    %1398 = vmatpush.msra.mxu0 0.0
    %1399 = vmatpush.msra.mxu0 0.0
    %1400 = vmatpush.msra.mxu0 0.0
    %1401 = vmatpush.msra.mxu0 0.0
    %1402 = vmatpush.msra.mxu0 0.0
    %1403 = vmatpush.msra.mxu0 0.0
    %1404 = vmatpush.msra.mxu0 %v209
    %1405 = vmatpush.msra.mxu0 %v208
    %1406 = vmatpush.msra.mxu0 %v207
    %1407 = vmatpush.msra.mxu0 %v206
    %1408 = vmatmul.f32.gmra.mxu0 %v1390
    %v1409 = vpop.f32.mrf.mxu0
    %v1410 = vadd.f32 0.0, %v1409
    %1411 = vdwg.mxu0
    %v1412 = vadd.f32 %v1386, %v1410
    %v1413 = vxor.u32 %v1412, 2147483648
    %v1414 = vmul.f32 %v1413, 1.442695
    %v1415 = vpow.pop %v1414
    %v1416 = vadd.f32 %v1415, 1.0
    %v1417 = vrcp.pop %v1416
    %v1418 = vmul.f32 %v1416, %v1417
    %v1419 = vsub.f32 1.0, %v1418
    %v1420 = vmul.f32 %v1417, %v1419
    %v1421 = vadd.f32 %v1417, %v1420
    %vm1422 = vweird.f32 %v1416
    %vm1423 = vweird.f32 %v1417
    %vm1424 = vmor %vm1422, %vm1423
    %v1425 = vsel %vm1424, %v1417, %v1421
    %v1426 = vand.u32 2147483647, %v1416
    %vm1427 = vcmp.eq.f32.partialorder %v1426, 8.507059e+37
    %v1428 = vand.u32 %v1416, 2147483648
    %v1429 = vor.u32 1.1754944e-38, %v1428
    %v1430 = vsel %vm1427, %v1429, %v1425
    %v1431 = vmul.f32 1.0, %v1430
    %v1432 = vadd.f32 %v1410, %v1364
    %1434 = vrot.lane.b32.xlu0 %v1432, 64
    %v1435 = vpop.permute.xlu0 %1434
    %v1437 = vmul.f32 %v1431, %v1435
    %1439 = vrot.lane.b32.xlu0 %v1437, 64
    %v1440 = vpop.permute.xlu0 %1439
    %v1442 = vadd.f32 %v1386, %v1440
    %v1443 = vtanh.pop %v1442
    %v1444 = vsub.f32 1.0, %v1431
    %1446 = vrot.lane.b32.xlu0 %v1443, 96
    %v1447 = vpop.permute.xlu0 %1446
    %v1449 = vmul.f32 %v1444, %v1447
    %v1450 = vmul.f32 %v1431, %v1385
    %v1451 = vadd.f32 %v1449, %v1450
    %v1452 = vld [vmem:[#allocation4 + $0x4] sm:$0x3]
    %1454 = vrot.lane.b32.xlu0 %v1451, 96
    %v1455 = vpop.permute.xlu0 %1454
    %v1456 = vsel %vm212, %v1455, 0
    %1458 = vmatpush.msra.mxu0 0.0
    %1459 = vmatpush.msra.mxu0 0.0
    %1460 = vmatpush.msra.mxu0 0.0
    %1461 = vmatpush.msra.mxu0 0.0
    %1462 = vmatpush.msra.mxu0 0.0
    %1463 = vmatpush.msra.mxu0 0.0
    %1464 = vmatpush.msra.mxu0 0.0
    %1465 = vmatpush.msra.mxu0 0.0
    %1466 = vmatpush.msra.mxu0 0.0
    %1467 = vmatpush.msra.mxu0 0.0
    %1468 = vmatpush.msra.mxu0 0.0
    %1469 = vmatpush.msra.mxu0 0.0
    %1470 = vmatpush.msra.mxu0 %v209
    %1471 = vmatpush.msra.mxu0 %v208
    %1472 = vmatpush.msra.mxu0 %v207
    %1473 = vmatpush.msra.mxu0 %v206
    %1474 = vmatmul.f32.gmra.mxu0 %v1456
    %v1475 = vpop.f32.mrf.mxu0
    %v1476 = vadd.f32 0.0, %v1475
    %1477 = vdwg.mxu0
    %v1478 = vadd.f32 %v1452, %v1476
    %v1479 = vxor.u32 %v1478, 2147483648
    %v1480 = vmul.f32 %v1479, 1.442695
    %v1481 = vpow.pop %v1480
    %v1482 = vadd.f32 %v1481, 1.0
    %v1483 = vrcp.pop %v1482
    %v1484 = vmul.f32 %v1482, %v1483
    %v1485 = vsub.f32 1.0, %v1484
    %v1486 = vmul.f32 %v1483, %v1485
    %v1487 = vadd.f32 %v1483, %v1486
    %vm1488 = vweird.f32 %v1482
    %vm1489 = vweird.f32 %v1483
    %vm1490 = vmor %vm1488, %vm1489
    %v1491 = vsel %vm1490, %v1483, %v1487
    %v1492 = vand.u32 2147483647, %v1482
    %vm1493 = vcmp.eq.f32.partialorder %v1492, 8.507059e+37
    %v1494 = vand.u32 %v1482, 2147483648
    %v1495 = vor.u32 1.1754944e-38, %v1494
    %v1496 = vsel %vm1493, %v1495, %v1491
    %v1497 = vmul.f32 1.0, %v1496
    %v1498 = vadd.f32 %v1476, %v1364
    %1500 = vrot.lane.b32.xlu0 %v1498, 64
    %v1501 = vpop.permute.xlu0 %1500
    %v1503 = vmul.f32 %v1497, %v1501
    %1505 = vrot.lane.b32.xlu0 %v1503, 64
    %v1506 = vpop.permute.xlu0 %1505
    %v1508 = vadd.f32 %v1452, %v1506
    %v1509 = vtanh.pop %v1508
    %v1510 = vsub.f32 1.0, %v1497
    %1512 = vrot.lane.b32.xlu0 %v1509, 96
    %v1513 = vpop.permute.xlu0 %1512
    %v1515 = vmul.f32 %v1510, %v1513
    %v1516 = vmul.f32 %v1497, %v1451
    %v1517 = vadd.f32 %v1515, %v1516
    %v1518 = vld [vmem:[#allocation4 + $0x6] sm:$0x3]
    %1520 = vrot.lane.b32.xlu0 %v1517, 96
    %v1521 = vpop.permute.xlu0 %1520
    %v1522 = vsel %vm212, %v1521, 0
    %1524 = vmatpush.msra.mxu0 0.0
    %1525 = vmatpush.msra.mxu0 0.0
    %1526 = vmatpush.msra.mxu0 0.0
    %1527 = vmatpush.msra.mxu0 0.0
    %1528 = vmatpush.msra.mxu0 0.0
    %1529 = vmatpush.msra.mxu0 0.0
    %1530 = vmatpush.msra.mxu0 0.0
    %1531 = vmatpush.msra.mxu0 0.0
    %1532 = vmatpush.msra.mxu0 0.0
    %1533 = vmatpush.msra.mxu0 0.0
    %1534 = vmatpush.msra.mxu0 0.0
    %1535 = vmatpush.msra.mxu0 0.0
    %1536 = vmatpush.msra.mxu0 %v209
    %1537 = vmatpush.msra.mxu0 %v208
    %1538 = vmatpush.msra.mxu0 %v207
    %1539 = vmatpush.msra.mxu0 %v206
    %1540 = vmatmul.f32.gmra.mxu0 %v1522
    %v1541 = vpop.f32.mrf.mxu0
    %v1542 = vadd.f32 0.0, %v1541
    %1543 = vdwg.mxu0
    %v1544 = vadd.f32 %v1518, %v1542
    %v1545 = vxor.u32 %v1544, 2147483648
    %v1546 = vmul.f32 %v1545, 1.442695
    %v1547 = vpow.pop %v1546
    %v1548 = vadd.f32 %v1547, 1.0
    %v1549 = vrcp.pop %v1548
    %v1550 = vmul.f32 %v1548, %v1549
    %v1551 = vsub.f32 1.0, %v1550
    %v1552 = vmul.f32 %v1549, %v1551
    %v1553 = vadd.f32 %v1549, %v1552
    %vm1554 = vweird.f32 %v1548
    %vm1555 = vweird.f32 %v1549
    %vm1556 = vmor %vm1554, %vm1555
    %v1557 = vsel %vm1556, %v1549, %v1553
    %v1558 = vand.u32 2147483647, %v1548
    %vm1559 = vcmp.eq.f32.partialorder %v1558, 8.507059e+37
    %v1560 = vand.u32 %v1548, 2147483648
    %v1561 = vor.u32 1.1754944e-38, %v1560
    %v1562 = vsel %vm1559, %v1561, %v1557
    %v1563 = vmul.f32 1.0, %v1562
    %v1564 = vadd.f32 %v1542, %v1364
    %1566 = vrot.lane.b32.xlu0 %v1564, 64
    %v1567 = vpop.permute.xlu0 %1566
    %v1569 = vmul.f32 %v1563, %v1567
    %1571 = vrot.lane.b32.xlu0 %v1569, 64
    %v1572 = vpop.permute.xlu0 %1571
    %v1574 = vadd.f32 %v1518, %v1572
    %v1575 = vtanh.pop %v1574
    %v1576 = vsub.f32 1.0, %v1563
    %1578 = vrot.lane.b32.xlu0 %v1575, 96
    %v1579 = vpop.permute.xlu0 %1578
    %v1581 = vmul.f32 %v1576, %v1579
    %v1582 = vmul.f32 %v1563, %v1517
    %v1583 = vadd.f32 %v1581, %v1582
    %v1584 = vld [vmem:[#allocation4 + $0x8] sm:$0x3]
    %1586 = vrot.lane.b32.xlu0 %v1583, 96
    %v1587 = vpop.permute.xlu0 %1586
    %v1588 = vsel %vm212, %v1587, 0
    %1590 = vmatpush.msra.mxu0 0.0
    %1591 = vmatpush.msra.mxu0 0.0
    %1592 = vmatpush.msra.mxu0 0.0
    %1593 = vmatpush.msra.mxu0 0.0
    %1594 = vmatpush.msra.mxu0 0.0
    %1595 = vmatpush.msra.mxu0 0.0
    %1596 = vmatpush.msra.mxu0 0.0
    %1597 = vmatpush.msra.mxu0 0.0
    %1598 = vmatpush.msra.mxu0 0.0
    %1599 = vmatpush.msra.mxu0 0.0
    %1600 = vmatpush.msra.mxu0 0.0
    %1601 = vmatpush.msra.mxu0 0.0
    %1602 = vmatpush.msra.mxu0 %v209
    %1603 = vmatpush.msra.mxu0 %v208
    %1604 = vmatpush.msra.mxu0 %v207
    %1605 = vmatpush.msra.mxu0 %v206
    %1606 = vmatmul.f32.gmra.mxu0 %v1588
    %v1607 = vpop.f32.mrf.mxu0
    %v1608 = vadd.f32 0.0, %v1607
    %1609 = vdwg.mxu0
    %v1610 = vadd.f32 %v1584, %v1608
    %v1611 = vxor.u32 %v1610, 2147483648
    %v1612 = vmul.f32 %v1611, 1.442695
    %v1613 = vpow.pop %v1612
    %v1614 = vadd.f32 %v1613, 1.0
    %v1615 = vrcp.pop %v1614
    %v1616 = vmul.f32 %v1614, %v1615
    %v1617 = vsub.f32 1.0, %v1616
    %v1618 = vmul.f32 %v1615, %v1617
    %v1619 = vadd.f32 %v1615, %v1618
    %vm1620 = vweird.f32 %v1614
    %vm1621 = vweird.f32 %v1615
    %vm1622 = vmor %vm1620, %vm1621
    %v1623 = vsel %vm1622, %v1615, %v1619
    %v1624 = vand.u32 2147483647, %v1614
    %vm1625 = vcmp.eq.f32.partialorder %v1624, 8.507059e+37
    %v1626 = vand.u32 %v1614, 2147483648
    %v1627 = vor.u32 1.1754944e-38, %v1626
    %v1628 = vsel %vm1625, %v1627, %v1623
    %v1629 = vmul.f32 1.0, %v1628
    %v1630 = vadd.f32 %v1608, %v1364
    %1632 = vrot.lane.b32.xlu0 %v1630, 64
    %v1633 = vpop.permute.xlu0 %1632
    %v1635 = vmul.f32 %v1629, %v1633
    %1637 = vrot.lane.b32.xlu0 %v1635, 64
    %v1638 = vpop.permute.xlu0 %1637
    %v1640 = vadd.f32 %v1584, %v1638
    %v1641 = vtanh.pop %v1640
    %v1642 = vsub.f32 1.0, %v1629
    %1644 = vrot.lane.b32.xlu0 %v1641, 96
    %v1645 = vpop.permute.xlu0 %1644
    %v1647 = vmul.f32 %v1642, %v1645
    %v1648 = vmul.f32 %v1629, %v1583
    %v1649 = vadd.f32 %v1647, %v1648
    %v1650 = vld [vmem:[#allocation5] sm:$0xff]
    %v1651 = vld [vmem:[#allocation5 + $0x8] sm:$0xff]
    %v1652 = vld [vmem:[%s18] sm:$0xff]
    %v1653 = vld [vmem:[%s18 + $0x8] sm:$0xff]
    %v1654 = vld [vmem:[%s18 + $0x10] sm:$0xff]
    %v1655 = vld [vmem:[%s18 + $0x18] sm:$0xff]
    %v1656 = vld [vmem:[%s20] sm:$0x1]
    %v1658 = vperm.slane %v1656, 0
    %v1661 = vsel %vm212, %v1650, 0
    %v1664 = vsel %vm212, %v1651, 0
    %1666 = vmatpush.msra.mxu0 0.0
    %1667 = vmatpush.msra.mxu0 0.0
    %1668 = vmatpush.msra.mxu0 0.0
    %1669 = vmatpush.msra.mxu0 0.0
    %1670 = vmatpush.msra.mxu0 0.0
    %1671 = vmatpush.msra.mxu0 0.0
    %1672 = vmatpush.msra.mxu0 0.0
    %1673 = vmatpush.msra.mxu0 0.0
    %1674 = vmatpush.msra.mxu0 0.0
    %1675 = vmatpush.msra.mxu0 0.0
    %1676 = vmatpush.msra.mxu0 0.0
    %1677 = vmatpush.msra.mxu0 0.0
    %1678 = vmatpush.msra.mxu0 %v1655
    %1679 = vmatpush.msra.mxu0 %v1654
    %1680 = vmatpush.msra.mxu0 %v1653
    %1681 = vmatpush.msra.mxu0 %v1652
    %1682 = vmatmul.f32.gmra.mxu0 %v1661
    %v1683 = vpop.f32.mrf.mxu0
    %v1684 = vadd.f32 %v1658, %v1683
    %1685 = vmatmul.f32.gmra.mxu0 %v1664
    %v1686 = vpop.f32.mrf.mxu0
    %v1687 = vadd.f32 %v1658, %v1686
    %1688 = vdwg.mxu0
    %vm1689 = vcmask 523264
    %1690 = vst.msk [vmem:[#allocation6] sm:$0xff] %vm1689, %v1684
    %1691 = vst.msk [vmem:[#allocation6 + $0x8] sm:$0xff] %vm1689, %v1687
    %v1692 = vld [vmem:[#allocation5] sm:$0x3]
    %1694 = vrot.lane.b32.xlu0 %v1649, 96
    %v1695 = vpop.permute.xlu0 %1694
    %v1697 = vmul.f32 %v1692, %v1695
    %1698 = vst.msk [vmem:[#allocation7] sm:$0x3] %vm814, %v1697
    %v1699 = vsub.f32 %v1692, %v1695
    %v1700 = vand.u32 2147483647, %v1699
    %1702 = vrot.lane.b32.xlu0 %v1700, 32
    %v1703 = vpop.permute.xlu0 %1702
    %vm1705 = vcmask 517376
    %1706 = vst.msk [vmem:[#allocation7] sm:$0x3] %vm1705, %v1703
    %v1707 = vld [vmem:[#allocation5 + $0x2] sm:$0x3]
    %v1708 = vmul.f32 %v1707, %v1695
    %1709 = vst.msk [vmem:[#allocation7 + $0x2] sm:$0x3] %vm814, %v1708
    %v1710 = vsub.f32 %v1707, %v1695
    %v1711 = vand.u32 2147483647, %v1710
    %1713 = vrot.lane.b32.xlu0 %v1711, 32
    %v1714 = vpop.permute.xlu0 %1713
    %1716 = vst.msk [vmem:[#allocation7 + $0x2] sm:$0x3] %vm1705, %v1714
    %v1717 = vld [vmem:[#allocation5 + $0x4] sm:$0x3]
    %v1718 = vmul.f32 %v1717, %v1695
    %1719 = vst.msk [vmem:[#allocation7 + $0x4] sm:$0x3] %vm814, %v1718
    %v1720 = vsub.f32 %v1717, %v1695
    %v1721 = vand.u32 2147483647, %v1720
    %1723 = vrot.lane.b32.xlu0 %v1721, 32
    %v1724 = vpop.permute.xlu0 %1723
    %1726 = vst.msk [vmem:[#allocation7 + $0x4] sm:$0x3] %vm1705, %v1724
    %v1727 = vld [vmem:[#allocation5 + $0x6] sm:$0x3]
    %v1728 = vmul.f32 %v1727, %v1695
    %1729 = vst.msk [vmem:[#allocation7 + $0x6] sm:$0x3] %vm814, %v1728
    %v1730 = vsub.f32 %v1727, %v1695
    %v1731 = vand.u32 2147483647, %v1730
    %1733 = vrot.lane.b32.xlu0 %v1731, 32
    %v1734 = vpop.permute.xlu0 %1733
    %1736 = vst.msk [vmem:[#allocation7 + $0x6] sm:$0x3] %vm1705, %v1734
    %v1737 = vld [vmem:[#allocation5 + $0x8] sm:$0x3]
    %v1738 = vmul.f32 %v1737, %v1695
    %1739 = vst.msk [vmem:[#allocation7 + $0x8] sm:$0x3] %vm814, %v1738
    %v1740 = vsub.f32 %v1737, %v1695
    %v1741 = vand.u32 2147483647, %v1740
    %1743 = vrot.lane.b32.xlu0 %v1741, 32
    %v1744 = vpop.permute.xlu0 %1743
    %1746 = vst.msk [vmem:[#allocation7 + $0x8] sm:$0x3] %vm1705, %v1744
    %v1747 = vld [vmem:[#allocation5 + $0xa] sm:$0x3]
    %v1748 = vmul.f32 %v1747, %v1695
    %1749 = vst.msk [vmem:[#allocation7 + $0xa] sm:$0x3] %vm814, %v1748
    %v1750 = vsub.f32 %v1747, %v1695
    %v1751 = vand.u32 2147483647, %v1750
    %1753 = vrot.lane.b32.xlu0 %v1751, 32
    %v1754 = vpop.permute.xlu0 %1753
    %1756 = vst.msk [vmem:[#allocation7 + $0xa] sm:$0x3] %vm1705, %v1754
    %v1757 = vld [vmem:[#allocation5 + $0xc] sm:$0x3]
    %v1758 = vmul.f32 %v1757, %v1695
    %1759 = vst.msk [vmem:[#allocation7 + $0xc] sm:$0x3] %vm814, %v1758
    %v1760 = vsub.f32 %v1757, %v1695
    %v1761 = vand.u32 2147483647, %v1760
    %1763 = vrot.lane.b32.xlu0 %v1761, 32
    %v1764 = vpop.permute.xlu0 %1763
    %1766 = vst.msk [vmem:[#allocation7 + $0xc] sm:$0x3] %vm1705, %v1764
    %v1767 = vld [vmem:[#allocation5 + $0xe] sm:$0x3]
    %v1768 = vmul.f32 %v1767, %v1695
    %1769 = vst.msk [vmem:[#allocation7 + $0xe] sm:$0x3] %vm814, %v1768
    %v1770 = vsub.f32 %v1767, %v1695
    %v1771 = vand.u32 2147483647, %v1770
    %1773 = vrot.lane.b32.xlu0 %v1771, 32
    %v1774 = vpop.permute.xlu0 %1773
    %1776 = vst.msk [vmem:[#allocation7 + $0xe] sm:$0x3] %vm1705, %v1774
    %v1777 = vld [vmem:[#allocation7] sm:$0xff]
    %v1778 = vld [vmem:[#allocation7 + $0x8] sm:$0xff]
    %v1779 = vld [vmem:[%s14] sm:$0xff]
    %v1780 = vld [vmem:[%s14 + $0x8] sm:$0xff]
    %v1781 = vld [vmem:[%s14 + $0x10] sm:$0xff]
    %v1782 = vld [vmem:[%s14 + $0x18] sm:$0xff]
    %v1783 = vld [vmem:[%s14 + $0x20] sm:$0xff]
    %v1784 = vld [vmem:[%s14 + $0x28] sm:$0xff]
    %v1785 = vld [vmem:[%s14 + $0x30] sm:$0xff]
    %v1786 = vld [vmem:[%s14 + $0x38] sm:$0xff]
    %v1787 = vld [vmem:[%s16] sm:$0x1]
    %v1789 = vperm.slane %v1787, 0
    %v1792 = vsel %vm1689, %v1777, 0
    %v1795 = vsel %vm1689, %v1778, 0
    %1797 = vmatpush.msra.mxu0 0.0
    %1798 = vmatpush.msra.mxu0 0.0
    %1799 = vmatpush.msra.mxu0 0.0
    %1800 = vmatpush.msra.mxu0 0.0
    %1801 = vmatpush.msra.mxu0 0.0
    %1802 = vmatpush.msra.mxu0 0.0
    %1803 = vmatpush.msra.mxu0 0.0
    %1804 = vmatpush.msra.mxu0 0.0
    %1805 = vmatpush.msra.mxu0 %v1786
    %1806 = vmatpush.msra.mxu0 %v1785
    %1807 = vmatpush.msra.mxu0 %v1784
    %1808 = vmatpush.msra.mxu0 %v1783
    %1809 = vmatpush.msra.mxu0 %v1782
    %1810 = vmatpush.msra.mxu0 %v1781
    %1811 = vmatpush.msra.mxu0 %v1780
    %1812 = vmatpush.msra.mxu0 %v1779
    %1813 = vmatmul.f32.gmra.mxu0 %v1792
    %v1814 = vpop.f32.mrf.mxu0
    %v1815 = vadd.f32 %v1789, %v1814
    %1816 = vmatmul.f32.gmra.mxu0 %v1795
    %v1817 = vpop.f32.mrf.mxu0
    %v1818 = vadd.f32 %v1789, %v1817
    %1819 = vdwg.mxu0
    %v1820 = vld [vmem:[%s24] sm:$0xff]
    %v1821 = vld [vmem:[%s24 + $0x8] sm:$0xff]
    %v1822 = vld [vmem:[%s24 + $0x10] sm:$0xff]
    %v1823 = vld [vmem:[%s24 + $0x18] sm:$0xff]
    %v1824 = vld [vmem:[%s25] sm:$0x1]
    %v1826 = vperm.slane %v1824, 0
    %v1828 = vsel %vm212, %v1695, 0
    %1830 = vmatpush.msra.mxu0 0.0
    %1831 = vmatpush.msra.mxu0 0.0
    %1832 = vmatpush.msra.mxu0 0.0
    %1833 = vmatpush.msra.mxu0 0.0
    %1834 = vmatpush.msra.mxu0 0.0
    %1835 = vmatpush.msra.mxu0 0.0
    %1836 = vmatpush.msra.mxu0 0.0
    %1837 = vmatpush.msra.mxu0 0.0
    %1838 = vmatpush.msra.mxu0 0.0
    %1839 = vmatpush.msra.mxu0 0.0
    %1840 = vmatpush.msra.mxu0 0.0
    %1841 = vmatpush.msra.mxu0 0.0
    %1842 = vmatpush.msra.mxu0 %v1823
    %1843 = vmatpush.msra.mxu0 %v1822
    %1844 = vmatpush.msra.mxu0 %v1821
    %1845 = vmatpush.msra.mxu0 %v1820
    %1846 = vmatmul.f32.gmra.mxu0 %v1828
    %v1847 = vpop.f32.mrf.mxu0
    %v1848 = vadd.f32 %v1826, %v1847
    %1849 = vdwg.mxu0
    %v1850 = vld [vmem:[%s17] sm:$0x1]
    %v1851 = vld [vmem:[%s19] sm:$0xff]
    %v1852 = vld [vmem:[%s19 + $0x8] sm:$0xff]
    %v1853 = vld [vmem:[%s19 + $0x10] sm:$0xff]
    %v1854 = vld [vmem:[%s19 + $0x18] sm:$0xff]
    %v1855 = vld [vmem:[%s21] sm:$0x1]
    %v1856 = vld [vmem:[%s22] sm:$0xff]
    %v1857 = vld [vmem:[%s22 + $0x8] sm:$0xff]
    %v1858 = vld [vmem:[%s22 + $0x10] sm:$0xff]
    %v1859 = vld [vmem:[%s22 + $0x18] sm:$0xff]
    %v1860 = vld [vmem:[%s23] sm:$0xff]
    %v1861 = vld [vmem:[%s23 + $0x8] sm:$0xff]
    %v1862 = vld [vmem:[%s23 + $0x10] sm:$0xff]
    %v1863 = vld [vmem:[%s23 + $0x18] sm:$0xff]
    %v1864 = vld [vmem:[#allocation5] sm:$0x3]
    %v1865 = vmul.f32 %v1864, %v1695
    %1866 = vst.msk [vmem:[#allocation7] sm:$0x3] %vm814, %v1865
    %v1867 = vsub.f32 %v1864, %v1695
    %v1868 = vand.u32 2147483647, %v1867
    %1870 = vrot.lane.b32.xlu0 %v1868, 32
    %v1871 = vpop.permute.xlu0 %1870
    %1873 = vst.msk [vmem:[#allocation7] sm:$0x3] %vm1705, %v1871
    %v1874 = vld [vmem:[#allocation5 + $0x2] sm:$0x3]
    %v1875 = vmul.f32 %v1874, %v1695
    %1876 = vst.msk [vmem:[#allocation7 + $0x2] sm:$0x3] %vm814, %v1875
    %v1877 = vsub.f32 %v1874, %v1695
    %v1878 = vand.u32 2147483647, %v1877
    %1880 = vrot.lane.b32.xlu0 %v1878, 32
    %v1881 = vpop.permute.xlu0 %1880
    %1883 = vst.msk [vmem:[#allocation7 + $0x2] sm:$0x3] %vm1705, %v1881
    %v1884 = vld [vmem:[#allocation5 + $0x4] sm:$0x3]
    %v1885 = vmul.f32 %v1884, %v1695
    %1886 = vst.msk [vmem:[#allocation7 + $0x4] sm:$0x3] %vm814, %v1885
    %v1887 = vsub.f32 %v1884, %v1695
    %v1888 = vand.u32 2147483647, %v1887
    %1890 = vrot.lane.b32.xlu0 %v1888, 32
    %v1891 = vpop.permute.xlu0 %1890
    %1893 = vst.msk [vmem:[#allocation7 + $0x4] sm:$0x3] %vm1705, %v1891
    %v1894 = vld [vmem:[#allocation5 + $0x6] sm:$0x3]
    %v1895 = vmul.f32 %v1894, %v1695
    %1896 = vst.msk [vmem:[#allocation7 + $0x6] sm:$0x3] %vm814, %v1895
    %v1897 = vsub.f32 %v1894, %v1695
    %v1898 = vand.u32 2147483647, %v1897
    %1900 = vrot.lane.b32.xlu0 %v1898, 32
    %v1901 = vpop.permute.xlu0 %1900
    %1903 = vst.msk [vmem:[#allocation7 + $0x6] sm:$0x3] %vm1705, %v1901
    %v1904 = vld [vmem:[#allocation5 + $0x8] sm:$0x3]
    %v1905 = vmul.f32 %v1904, %v1695
    %1906 = vst.msk [vmem:[#allocation7 + $0x8] sm:$0x3] %vm814, %v1905
    %v1907 = vsub.f32 %v1904, %v1695
    %v1908 = vand.u32 2147483647, %v1907
    %1910 = vrot.lane.b32.xlu0 %v1908, 32
    %v1911 = vpop.permute.xlu0 %1910
    %1913 = vst.msk [vmem:[#allocation7 + $0x8] sm:$0x3] %vm1705, %v1911
    %v1914 = vld [vmem:[#allocation5 + $0xa] sm:$0x3]
    %v1915 = vmul.f32 %v1914, %v1695
    %1916 = vst.msk [vmem:[#allocation7 + $0xa] sm:$0x3] %vm814, %v1915
    %v1917 = vsub.f32 %v1914, %v1695
    %v1918 = vand.u32 2147483647, %v1917
    %1920 = vrot.lane.b32.xlu0 %v1918, 32
    %v1921 = vpop.permute.xlu0 %1920
    %1923 = vst.msk [vmem:[#allocation7 + $0xa] sm:$0x3] %vm1705, %v1921
    %v1924 = vld [vmem:[#allocation5 + $0xc] sm:$0x3]
    %v1925 = vmul.f32 %v1924, %v1695
    %1926 = vst.msk [vmem:[#allocation7 + $0xc] sm:$0x3] %vm814, %v1925
    %v1927 = vsub.f32 %v1924, %v1695
    %v1928 = vand.u32 2147483647, %v1927
    %1930 = vrot.lane.b32.xlu0 %v1928, 32
    %v1931 = vpop.permute.xlu0 %1930
    %1933 = vst.msk [vmem:[#allocation7 + $0xc] sm:$0x3] %vm1705, %v1931
    %v1934 = vld [vmem:[#allocation5 + $0xe] sm:$0x3]
    %v1935 = vmul.f32 %v1934, %v1695
    %1936 = vst.msk [vmem:[#allocation7 + $0xe] sm:$0x3] %vm814, %v1935
    %v1937 = vsub.f32 %v1934, %v1695
    %v1938 = vand.u32 2147483647, %v1937
    %1940 = vrot.lane.b32.xlu0 %v1938, 32
    %v1941 = vpop.permute.xlu0 %1940
    %1943 = vst.msk [vmem:[#allocation7 + $0xe] sm:$0x3] %vm1705, %v1941
    %v1944 = vld [vmem:[#allocation7] sm:$0xff]
    %v1945 = vld [vmem:[#allocation7 + $0x8] sm:$0xff]
    %v1946 = vld [vmem:[%s15] sm:$0xff]
    %v1947 = vld [vmem:[%s15 + $0x8] sm:$0xff]
    %v1948 = vld [vmem:[%s15 + $0x10] sm:$0xff]
    %v1949 = vld [vmem:[%s15 + $0x18] sm:$0xff]
    %v1950 = vld [vmem:[%s15 + $0x20] sm:$0xff]
    %v1951 = vld [vmem:[%s15 + $0x28] sm:$0xff]
    %v1952 = vld [vmem:[%s15 + $0x30] sm:$0xff]
    %v1953 = vld [vmem:[%s15 + $0x38] sm:$0xff]
    %v1955 = vsel %vm1689, %v1944, 0
    %v1958 = vsel %vm1689, %v1945, 0
    %1960 = vmatpush.msra.mxu0 0.0
    %1961 = vmatpush.msra.mxu0 0.0
    %1962 = vmatpush.msra.mxu0 0.0
    %1963 = vmatpush.msra.mxu0 0.0
    %1964 = vmatpush.msra.mxu0 0.0
    %1965 = vmatpush.msra.mxu0 0.0
    %1966 = vmatpush.msra.mxu0 0.0
    %1967 = vmatpush.msra.mxu0 0.0
    %1968 = vmatpush.msra.mxu0 %v1953
    %1969 = vmatpush.msra.mxu0 %v1952
    %1970 = vmatpush.msra.mxu0 %v1951
    %1971 = vmatpush.msra.mxu0 %v1950
    %1972 = vmatpush.msra.mxu0 %v1949
    %1973 = vmatpush.msra.mxu0 %v1948
    %1974 = vmatpush.msra.mxu0 %v1947
    %1975 = vmatpush.msra.mxu0 %v1946
    %1976 = vmatmul.f32.gmra.mxu0 %v1955
    %v1977 = vpop.f32.mrf.mxu0
    %v1978 = vadd.f32 0.0, %v1977
    %1979 = vmatmul.f32.gmra.mxu0 %v1958
    %v1980 = vpop.f32.mrf.mxu0
    %v1981 = vadd.f32 0.0, %v1980
    %1982 = vdwg.mxu0
    %v1983 = vadd.f32 %v1815, %v1978
    %v1984 = vadd.f32 %v1818, %v1981
    %v1985 = vtanh.pop %v1983
    %v1986 = vtanh.pop %v1984
    %v1988 = vperm.slane %v1850, 0
    %v1990 = vmul.f32 %v1985, %v1988
    %v1991 = vmul.f32 %v1986, %v1988
    %v1992 = vsel %vm212, %v1990, 0.0
    %1993 = vadd.xlane.f32.xlu0 %v1992
    %v1994 = vpop.xlane.xlu0 %1993
    %v1995 = vsel %vm212, %v1991, 0.0
    %1996 = vadd.xlane.f32.xlu0 %v1995
    %v1997 = vpop.xlane.xlu0 %1996
    %vm1998 = vcmask 7168
    %1999 = vst.msk [vmem:[#allocation8] sm:$0xff] %vm1998, %v1994
    %2000 = vst.msk [vmem:[#allocation8 + $0x8] sm:$0xff] %vm1998, %v1997
    %v2001 = vld [vmem:[#allocation8] sm:$0x3]
    %vm2002 = vcmask 1024
    %2003 = vst.msk [vmem:[#allocation9] sm:$0x3] %vm2002, %v2001
    %v2004 = vld [vmem:[#allocation8 + $0x2] sm:$0x3]
    %s2005 = scalar_lea.vmem [#allocation9], 2
    %2006 = vst.msk [vmem:[%s2005] sm:$0x3] %vm2002, %v2004
    %v2007 = vld [vmem:[#allocation8 + $0x4] sm:$0x3]
    %s2008 = scalar_lea.vmem [#allocation9], 4
    %2009 = vst.msk [vmem:[%s2008] sm:$0x3] %vm2002, %v2007
    %v2010 = vld [vmem:[#allocation8 + $0x6] sm:$0x3]
    %s2011 = scalar_lea.vmem [#allocation9], 6
    %2012 = vst.msk [vmem:[%s2011] sm:$0x3] %vm2002, %v2010
    %v2013 = vld [vmem:[#allocation8 + $0x8] sm:$0x3]
    %s2014 = scalar_lea.vmem [#allocation9], 8
    %2015 = vst.msk [vmem:[%s2014] sm:$0x3] %vm2002, %v2013
    %v2016 = vld [vmem:[#allocation8 + $0xa] sm:$0x3]
    %s2017 = scalar_lea.vmem [#allocation9], 10
    %2018 = vst.msk [vmem:[%s2017] sm:$0x3] %vm2002, %v2016
    %v2019 = vld [vmem:[#allocation8 + $0xc] sm:$0x3]
    %s2020 = scalar_lea.vmem [#allocation9], 12
    %2021 = vst.msk [vmem:[%s2020] sm:$0x3] %vm2002, %v2019
    %v2022 = vld [vmem:[#allocation8 + $0xe] sm:$0x3]
    %s2023 = scalar_lea.vmem [#allocation9], 14
    %2024 = vst.msk [vmem:[%s2023] sm:$0x3] %vm2002, %v2022
    %v2025 = vld [vmem:[#allocation9] sm:$0x3]
    %v2026 = vld [vmem:[#allocation9 + $0x2] sm:$0x3]
    %v2027 = vld [vmem:[#allocation9 + $0x4] sm:$0x3]
    %v2028 = vld [vmem:[#allocation9 + $0x6] sm:$0x3]
    %v2029 = vld [vmem:[#allocation9 + $0x8] sm:$0x3]
    %v2030 = vld [vmem:[#allocation9 + $0xa] sm:$0x3]
    %v2031 = vld [vmem:[#allocation9 + $0xc] sm:$0x3]
    %v2032 = vld [vmem:[#allocation9 + $0xe] sm:$0x3]
    %v2033 = vsel %vm2002, %v2025, -inf
    %v2034 = vsel %vm2002, %v2026, -inf
    %v2035 = vsel %vm2002, %v2027, -inf
    %v2036 = vsel %vm2002, %v2028, -inf
    %v2037 = vsel %vm2002, %v2029, -inf
    %v2038 = vmax.f32 %v2033, %v2037
    %v2039 = vsel %vm2002, %v2030, -inf
    %v2040 = vmax.f32 %v2034, %v2039
    %v2041 = vsel %vm2002, %v2031, -inf
    %v2042 = vmax.f32 %v2035, %v2041
    %v2043 = vsel %vm2002, %v2032, -inf
    %v2044 = vmax.f32 %v2036, %v2043
    %v2045 = vmax.f32 %v2038, %v2040
    %v2046 = vmax.f32 %v2042, %v2044
    %v2047 = vmax.f32 %v2045, %v2046
    %v2048 = vsub.f32 %v2025, %v2047
    %v2049 = vsub.f32 %v2026, %v2047
    %v2050 = vsub.f32 %v2027, %v2047
    %v2051 = vsub.f32 %v2028, %v2047
    %v2052 = vsub.f32 %v2029, %v2047
    %v2053 = vsub.f32 %v2030, %v2047
    %v2054 = vsub.f32 %v2031, %v2047
    %v2055 = vsub.f32 %v2032, %v2047
    %v2056 = vmul.f32 %v2048, 1.442695
    %v2057 = vpow.pop %v2056
    %v2058 = vmul.f32 %v2049, 1.442695
    %v2059 = vpow.pop %v2058
    %v2060 = vmul.f32 %v2050, 1.442695
    %v2061 = vpow.pop %v2060
    %v2062 = vmul.f32 %v2051, 1.442695
    %v2063 = vpow.pop %v2062
    %v2064 = vmul.f32 %v2052, 1.442695
    %v2065 = vpow.pop %v2064
    %v2066 = vmul.f32 %v2053, 1.442695
    %v2067 = vpow.pop %v2066
    %v2068 = vmul.f32 %v2054, 1.442695
    %v2069 = vpow.pop %v2068
    %v2070 = vmul.f32 %v2055, 1.442695
    %v2071 = vpow.pop %v2070
    %v2072 = vsel %vm2002, %v2057, 0.0
    %v2073 = vsel %vm2002, %v2059, 0.0
    %v2074 = vadd.f32 %v2072, %v2073
    %v2075 = vsel %vm2002, %v2061, 0.0
    %v2076 = vadd.f32 %v2074, %v2075
    %v2077 = vsel %vm2002, %v2063, 0.0
    %v2078 = vadd.f32 %v2076, %v2077
    %v2079 = vsel %vm2002, %v2065, 0.0
    %v2080 = vadd.f32 %v2078, %v2079
    %v2081 = vsel %vm2002, %v2067, 0.0
    %v2082 = vadd.f32 %v2080, %v2081
    %v2083 = vsel %vm2002, %v2069, 0.0
    %v2084 = vadd.f32 %v2082, %v2083
    %v2085 = vsel %vm2002, %v2071, 0.0
    %v2086 = vadd.f32 %v2084, %v2085
    %v2087 = vrcp.pop %v2086
    %v2088 = vmul.f32 %v2057, %v2087
    %v2089 = vmul.f32 %v2059, %v2087
    %v2090 = vmul.f32 %v2061, %v2087
    %v2091 = vmul.f32 %v2063, %v2087
    %v2092 = vmul.f32 %v2065, %v2087
    %v2093 = vmul.f32 %v2067, %v2087
    %v2094 = vmul.f32 %v2069, %v2087
    %v2095 = vmul.f32 %v2071, %v2087
    %v2096 = vld [vmem:[#allocation6] sm:$0x3]
    %2097 = vmatpush.msra.mxu0 0.0
    %2098 = vmatpush.msra.mxu0 0.0
    %2099 = vmatpush.msra.mxu0 0.0
    %2100 = vmatpush.msra.mxu0 0.0
    %2101 = vmatpush.msra.mxu0 0.0
    %2102 = vmatpush.msra.mxu0 0.0
    %2103 = vmatpush.msra.mxu0 0.0
    %2104 = vmatpush.msra.mxu0 0.0
    %2105 = vmatpush.msra.mxu0 0.0
    %2106 = vmatpush.msra.mxu0 0.0
    %2107 = vmatpush.msra.mxu0 0.0
    %2108 = vmatpush.msra.mxu0 0.0
    %2109 = vmatpush.msra.mxu0 %v1854
    %2110 = vmatpush.msra.mxu0 %v1853
    %2111 = vmatpush.msra.mxu0 %v1852
    %2112 = vmatpush.msra.mxu0 %v1851
    %2113 = vmatmul.f32.gmra.mxu0 %v214
    %v2114 = vpop.f32.mrf.mxu0
    %v2115 = vadd.f32 0.0, %v2114
    %2116 = vdwg.mxu0
    %v2117 = vadd.f32 %v2096, %v2115
    %v2118 = vxor.u32 %v2117, 2147483648
    %v2119 = vmul.f32 %v2118, 1.442695
    %v2120 = vpow.pop %v2119
    %v2121 = vadd.f32 %v2120, 1.0
    %v2122 = vrcp.pop %v2121
    %v2123 = vmul.f32 %v2121, %v2122
    %v2124 = vsub.f32 1.0, %v2123
    %v2125 = vmul.f32 %v2122, %v2124
    %v2126 = vadd.f32 %v2122, %v2125
    %vm2127 = vweird.f32 %v2121
    %vm2128 = vweird.f32 %v2122
    %vm2129 = vmor %vm2127, %vm2128
    %v2130 = vsel %vm2129, %v2122, %v2126
    %v2131 = vand.u32 2147483647, %v2121
    %vm2132 = vcmp.eq.f32.partialorder %v2131, 8.507059e+37
    %v2133 = vand.u32 %v2121, 2147483648
    %v2134 = vor.u32 1.1754944e-38, %v2133
    %v2135 = vsel %vm2132, %v2134, %v2130
    %v2136 = vmul.f32 1.0, %v2135
    %v2138 = vperm.slane %v1855, 0
    %2139 = vrot.lane.b32.xlu0 %v2138, 32
    %v2140 = vpop.permute.xlu0 %2139
    %v2142 = vadd.f32 %v2115, %v2140
    %2144 = vrot.lane.b32.xlu0 %v2142, 96
    %v2145 = vpop.permute.xlu0 %2144
    %v2147 = vmul.f32 %v2136, %v2145
    %2149 = vrot.lane.b32.xlu0 %v2147, 32
    %v2150 = vpop.permute.xlu0 %2149
    %v2152 = vadd.f32 %v2096, %v2150
    %v2153 = vtanh.pop %v2152
    %2155 = vset.pattern.permute.xlu0 0
    %2156 = vperm.xlu0 %2155, %v2088
    %v2157 = vpop.permute.xlu0 %2156
    %v2159 = vmul.f32 %v2157, %v2153
    %v2160 = vsub.f32 1.0, %v2088
    %2162 = vset.pattern.permute.xlu0 0
    %2163 = vperm.xlu0 %2162, %v2160
    %v2164 = vpop.permute.xlu0 %2163
    %v2166 = vmul.f32 %v2164, 0.0
    %v2167 = vadd.f32 %v2159, %v2166
    %v2168 = vld [vmem:[#allocation6 + $0x2] sm:$0x3]
    %2170 = vrot.lane.b32.xlu0 %v2167, 96
    %v2171 = vpop.permute.xlu0 %2170
    %v2172 = vsel %vm212, %v2171, 0
    %2174 = vmatpush.msra.mxu0 0.0
    %2175 = vmatpush.msra.mxu0 0.0
    %2176 = vmatpush.msra.mxu0 0.0
    %2177 = vmatpush.msra.mxu0 0.0
    %2178 = vmatpush.msra.mxu0 0.0
    %2179 = vmatpush.msra.mxu0 0.0
    %2180 = vmatpush.msra.mxu0 0.0
    %2181 = vmatpush.msra.mxu0 0.0
    %2182 = vmatpush.msra.mxu0 0.0
    %2183 = vmatpush.msra.mxu0 0.0
    %2184 = vmatpush.msra.mxu0 0.0
    %2185 = vmatpush.msra.mxu0 0.0
    %2186 = vmatpush.msra.mxu0 %v1854
    %2187 = vmatpush.msra.mxu0 %v1853
    %2188 = vmatpush.msra.mxu0 %v1852
    %2189 = vmatpush.msra.mxu0 %v1851
    %2190 = vmatmul.f32.gmra.mxu0 %v2172
    %v2191 = vpop.f32.mrf.mxu0
    %v2192 = vadd.f32 0.0, %v2191
    %2193 = vdwg.mxu0
    %v2194 = vadd.f32 %v2168, %v2192
    %v2195 = vxor.u32 %v2194, 2147483648
    %v2196 = vmul.f32 %v2195, 1.442695
    %v2197 = vpow.pop %v2196
    %v2198 = vadd.f32 %v2197, 1.0
    %v2199 = vrcp.pop %v2198
    %v2200 = vmul.f32 %v2198, %v2199
    %v2201 = vsub.f32 1.0, %v2200
    %v2202 = vmul.f32 %v2199, %v2201
    %v2203 = vadd.f32 %v2199, %v2202
    %vm2204 = vweird.f32 %v2198
    %vm2205 = vweird.f32 %v2199
    %vm2206 = vmor %vm2204, %vm2205
    %v2207 = vsel %vm2206, %v2199, %v2203
    %v2208 = vand.u32 2147483647, %v2198
    %vm2209 = vcmp.eq.f32.partialorder %v2208, 8.507059e+37
    %v2210 = vand.u32 %v2198, 2147483648
    %v2211 = vor.u32 1.1754944e-38, %v2210
    %v2212 = vsel %vm2209, %v2211, %v2207
    %v2213 = vmul.f32 1.0, %v2212
    %v2214 = vadd.f32 %v2192, %v2140
    %2216 = vrot.lane.b32.xlu0 %v2214, 96
    %v2217 = vpop.permute.xlu0 %2216
    %v2219 = vmul.f32 %v2213, %v2217
    %2221 = vrot.lane.b32.xlu0 %v2219, 32
    %v2222 = vpop.permute.xlu0 %2221
    %v2224 = vadd.f32 %v2168, %v2222
    %v2225 = vtanh.pop %v2224
    %2227 = vset.pattern.permute.xlu0 0
    %2228 = vperm.xlu0 %2227, %v2089
    %v2229 = vpop.permute.xlu0 %2228
    %v2231 = vmul.f32 %v2229, %v2225
    %v2232 = vsub.f32 1.0, %v2089
    %2234 = vset.pattern.permute.xlu0 0
    %2235 = vperm.xlu0 %2234, %v2232
    %v2236 = vpop.permute.xlu0 %2235
    %v2238 = vmul.f32 %v2236, %v2167
    %v2239 = vadd.f32 %v2231, %v2238
    %v2240 = vld [vmem:[#allocation6 + $0x4] sm:$0x3]
    %2242 = vrot.lane.b32.xlu0 %v2239, 96
    %v2243 = vpop.permute.xlu0 %2242
    %v2244 = vsel %vm212, %v2243, 0
    %2246 = vmatpush.msra.mxu0 0.0
    %2247 = vmatpush.msra.mxu0 0.0
    %2248 = vmatpush.msra.mxu0 0.0
    %2249 = vmatpush.msra.mxu0 0.0
    %2250 = vmatpush.msra.mxu0 0.0
    %2251 = vmatpush.msra.mxu0 0.0
    %2252 = vmatpush.msra.mxu0 0.0
    %2253 = vmatpush.msra.mxu0 0.0
    %2254 = vmatpush.msra.mxu0 0.0
    %2255 = vmatpush.msra.mxu0 0.0
    %2256 = vmatpush.msra.mxu0 0.0
    %2257 = vmatpush.msra.mxu0 0.0
    %2258 = vmatpush.msra.mxu0 %v1854
    %2259 = vmatpush.msra.mxu0 %v1853
    %2260 = vmatpush.msra.mxu0 %v1852
    %2261 = vmatpush.msra.mxu0 %v1851
    %2262 = vmatmul.f32.gmra.mxu0 %v2244
    %v2263 = vpop.f32.mrf.mxu0
    %v2264 = vadd.f32 0.0, %v2263
    %2265 = vdwg.mxu0
    %v2266 = vadd.f32 %v2240, %v2264
    %v2267 = vxor.u32 %v2266, 2147483648
    %v2268 = vmul.f32 %v2267, 1.442695
    %v2269 = vpow.pop %v2268
    %v2270 = vadd.f32 %v2269, 1.0
    %v2271 = vrcp.pop %v2270
    %v2272 = vmul.f32 %v2270, %v2271
    %v2273 = vsub.f32 1.0, %v2272
    %v2274 = vmul.f32 %v2271, %v2273
    %v2275 = vadd.f32 %v2271, %v2274
    %vm2276 = vweird.f32 %v2270
    %vm2277 = vweird.f32 %v2271
    %vm2278 = vmor %vm2276, %vm2277
    %v2279 = vsel %vm2278, %v2271, %v2275
    %v2280 = vand.u32 2147483647, %v2270
    %vm2281 = vcmp.eq.f32.partialorder %v2280, 8.507059e+37
    %v2282 = vand.u32 %v2270, 2147483648
    %v2283 = vor.u32 1.1754944e-38, %v2282
    %v2284 = vsel %vm2281, %v2283, %v2279
    %v2285 = vmul.f32 1.0, %v2284
    %v2286 = vadd.f32 %v2264, %v2140
    %2288 = vrot.lane.b32.xlu0 %v2286, 96
    %v2289 = vpop.permute.xlu0 %2288
    %v2291 = vmul.f32 %v2285, %v2289
    %2293 = vrot.lane.b32.xlu0 %v2291, 32
    %v2294 = vpop.permute.xlu0 %2293
    %v2296 = vadd.f32 %v2240, %v2294
    %v2297 = vtanh.pop %v2296
    %2299 = vset.pattern.permute.xlu0 0
    %2300 = vperm.xlu0 %2299, %v2090
    %v2301 = vpop.permute.xlu0 %2300
    %v2303 = vmul.f32 %v2301, %v2297
    %v2304 = vsub.f32 1.0, %v2090
    %2306 = vset.pattern.permute.xlu0 0
    %2307 = vperm.xlu0 %2306, %v2304
    %v2308 = vpop.permute.xlu0 %2307
    %v2310 = vmul.f32 %v2308, %v2239
    %v2311 = vadd.f32 %v2303, %v2310
    %v2312 = vld [vmem:[#allocation6 + $0x6] sm:$0x3]
    %2314 = vrot.lane.b32.xlu0 %v2311, 96
    %v2315 = vpop.permute.xlu0 %2314
    %v2316 = vsel %vm212, %v2315, 0
    %2318 = vmatpush.msra.mxu0 0.0
    %2319 = vmatpush.msra.mxu0 0.0
    %2320 = vmatpush.msra.mxu0 0.0
    %2321 = vmatpush.msra.mxu0 0.0
    %2322 = vmatpush.msra.mxu0 0.0
    %2323 = vmatpush.msra.mxu0 0.0
    %2324 = vmatpush.msra.mxu0 0.0
    %2325 = vmatpush.msra.mxu0 0.0
    %2326 = vmatpush.msra.mxu0 0.0
    %2327 = vmatpush.msra.mxu0 0.0
    %2328 = vmatpush.msra.mxu0 0.0
    %2329 = vmatpush.msra.mxu0 0.0
    %2330 = vmatpush.msra.mxu0 %v1854
    %2331 = vmatpush.msra.mxu0 %v1853
    %2332 = vmatpush.msra.mxu0 %v1852
    %2333 = vmatpush.msra.mxu0 %v1851
    %2334 = vmatmul.f32.gmra.mxu0 %v2316
    %v2335 = vpop.f32.mrf.mxu0
    %v2336 = vadd.f32 0.0, %v2335
    %2337 = vdwg.mxu0
    %v2338 = vadd.f32 %v2312, %v2336
    %v2339 = vxor.u32 %v2338, 2147483648
    %v2340 = vmul.f32 %v2339, 1.442695
    %v2341 = vpow.pop %v2340
    %v2342 = vadd.f32 %v2341, 1.0
    %v2343 = vrcp.pop %v2342
    %v2344 = vmul.f32 %v2342, %v2343
    %v2345 = vsub.f32 1.0, %v2344
    %v2346 = vmul.f32 %v2343, %v2345
    %v2347 = vadd.f32 %v2343, %v2346
    %vm2348 = vweird.f32 %v2342
    %vm2349 = vweird.f32 %v2343
    %vm2350 = vmor %vm2348, %vm2349
    %v2351 = vsel %vm2350, %v2343, %v2347
    %v2352 = vand.u32 2147483647, %v2342
    %vm2353 = vcmp.eq.f32.partialorder %v2352, 8.507059e+37
    %v2354 = vand.u32 %v2342, 2147483648
    %v2355 = vor.u32 1.1754944e-38, %v2354
    %v2356 = vsel %vm2353, %v2355, %v2351
    %v2357 = vmul.f32 1.0, %v2356
    %v2358 = vadd.f32 %v2336, %v2140
    %2360 = vrot.lane.b32.xlu0 %v2358, 96
    %v2361 = vpop.permute.xlu0 %2360
    %v2363 = vmul.f32 %v2357, %v2361
    %2365 = vrot.lane.b32.xlu0 %v2363, 32
    %v2366 = vpop.permute.xlu0 %2365
    %v2368 = vadd.f32 %v2312, %v2366
    %v2369 = vtanh.pop %v2368
    %2371 = vset.pattern.permute.xlu0 0
    %2372 = vperm.xlu0 %2371, %v2091
    %v2373 = vpop.permute.xlu0 %2372
    %v2375 = vmul.f32 %v2373, %v2369
    %v2376 = vsub.f32 1.0, %v2091
    %2378 = vset.pattern.permute.xlu0 0
    %2379 = vperm.xlu0 %2378, %v2376
    %v2380 = vpop.permute.xlu0 %2379
    %v2382 = vmul.f32 %v2380, %v2311
    %v2383 = vadd.f32 %v2375, %v2382
    %v2384 = vld [vmem:[#allocation6 + $0x8] sm:$0x3]
    %2386 = vrot.lane.b32.xlu0 %v2383, 96
    %v2387 = vpop.permute.xlu0 %2386
    %v2388 = vsel %vm212, %v2387, 0
    %2390 = vmatpush.msra.mxu0 0.0
    %2391 = vmatpush.msra.mxu0 0.0
    %2392 = vmatpush.msra.mxu0 0.0
    %2393 = vmatpush.msra.mxu0 0.0
    %2394 = vmatpush.msra.mxu0 0.0
    %2395 = vmatpush.msra.mxu0 0.0
    %2396 = vmatpush.msra.mxu0 0.0
    %2397 = vmatpush.msra.mxu0 0.0
    %2398 = vmatpush.msra.mxu0 0.0
    %2399 = vmatpush.msra.mxu0 0.0
    %2400 = vmatpush.msra.mxu0 0.0
    %2401 = vmatpush.msra.mxu0 0.0
    %2402 = vmatpush.msra.mxu0 %v1854
    %2403 = vmatpush.msra.mxu0 %v1853
    %2404 = vmatpush.msra.mxu0 %v1852
    %2405 = vmatpush.msra.mxu0 %v1851
    %2406 = vmatmul.f32.gmra.mxu0 %v2388
    %v2407 = vpop.f32.mrf.mxu0
    %v2408 = vadd.f32 0.0, %v2407
    %2409 = vdwg.mxu0
    %v2410 = vadd.f32 %v2384, %v2408
    %v2411 = vxor.u32 %v2410, 2147483648
    %v2412 = vmul.f32 %v2411, 1.442695
    %v2413 = vpow.pop %v2412
    %v2414 = vadd.f32 %v2413, 1.0
    %v2415 = vrcp.pop %v2414
    %v2416 = vmul.f32 %v2414, %v2415
    %v2417 = vsub.f32 1.0, %v2416
    %v2418 = vmul.f32 %v2415, %v2417
    %v2419 = vadd.f32 %v2415, %v2418
    %vm2420 = vweird.f32 %v2414
    %vm2421 = vweird.f32 %v2415
    %vm2422 = vmor %vm2420, %vm2421
    %v2423 = vsel %vm2422, %v2415, %v2419
    %v2424 = vand.u32 2147483647, %v2414
    %vm2425 = vcmp.eq.f32.partialorder %v2424, 8.507059e+37
    %v2426 = vand.u32 %v2414, 2147483648
    %v2427 = vor.u32 1.1754944e-38, %v2426
    %v2428 = vsel %vm2425, %v2427, %v2423
    %v2429 = vmul.f32 1.0, %v2428
    %v2430 = vadd.f32 %v2408, %v2140
    %2432 = vrot.lane.b32.xlu0 %v2430, 96
    %v2433 = vpop.permute.xlu0 %2432
    %v2435 = vmul.f32 %v2429, %v2433
    %2437 = vrot.lane.b32.xlu0 %v2435, 32
    %v2438 = vpop.permute.xlu0 %2437
    %v2440 = vadd.f32 %v2384, %v2438
    %v2441 = vtanh.pop %v2440
    %2443 = vset.pattern.permute.xlu0 0
    %2444 = vperm.xlu0 %2443, %v2092
    %v2445 = vpop.permute.xlu0 %2444
    %v2447 = vmul.f32 %v2445, %v2441
    %v2448 = vsub.f32 1.0, %v2092
    %2450 = vset.pattern.permute.xlu0 0
    %2451 = vperm.xlu0 %2450, %v2448
    %v2452 = vpop.permute.xlu0 %2451
    %v2454 = vmul.f32 %v2452, %v2383
    %v2455 = vadd.f32 %v2447, %v2454
    %v2456 = vld [vmem:[#allocation6 + $0xa] sm:$0x3]
    %2458 = vrot.lane.b32.xlu0 %v2455, 96
    %v2459 = vpop.permute.xlu0 %2458
    %v2460 = vsel %vm212, %v2459, 0
    %2462 = vmatpush.msra.mxu0 0.0
    %2463 = vmatpush.msra.mxu0 0.0
    %2464 = vmatpush.msra.mxu0 0.0
    %2465 = vmatpush.msra.mxu0 0.0
    %2466 = vmatpush.msra.mxu0 0.0
    %2467 = vmatpush.msra.mxu0 0.0
    %2468 = vmatpush.msra.mxu0 0.0
    %2469 = vmatpush.msra.mxu0 0.0
    %2470 = vmatpush.msra.mxu0 0.0
    %2471 = vmatpush.msra.mxu0 0.0
    %2472 = vmatpush.msra.mxu0 0.0
    %2473 = vmatpush.msra.mxu0 0.0
    %2474 = vmatpush.msra.mxu0 %v1854
    %2475 = vmatpush.msra.mxu0 %v1853
    %2476 = vmatpush.msra.mxu0 %v1852
    %2477 = vmatpush.msra.mxu0 %v1851
    %2478 = vmatmul.f32.gmra.mxu0 %v2460
    %v2479 = vpop.f32.mrf.mxu0
    %v2480 = vadd.f32 0.0, %v2479
    %2481 = vdwg.mxu0
    %v2482 = vadd.f32 %v2456, %v2480
    %v2483 = vxor.u32 %v2482, 2147483648
    %v2484 = vmul.f32 %v2483, 1.442695
    %v2485 = vpow.pop %v2484
    %v2486 = vadd.f32 %v2485, 1.0
    %v2487 = vrcp.pop %v2486
    %v2488 = vmul.f32 %v2486, %v2487
    %v2489 = vsub.f32 1.0, %v2488
    %v2490 = vmul.f32 %v2487, %v2489
    %v2491 = vadd.f32 %v2487, %v2490
    %vm2492 = vweird.f32 %v2486
    %vm2493 = vweird.f32 %v2487
    %vm2494 = vmor %vm2492, %vm2493
    %v2495 = vsel %vm2494, %v2487, %v2491
    %v2496 = vand.u32 2147483647, %v2486
    %vm2497 = vcmp.eq.f32.partialorder %v2496, 8.507059e+37
    %v2498 = vand.u32 %v2486, 2147483648
    %v2499 = vor.u32 1.1754944e-38, %v2498
    %v2500 = vsel %vm2497, %v2499, %v2495
    %v2501 = vmul.f32 1.0, %v2500
    %v2502 = vadd.f32 %v2480, %v2140
    %2504 = vrot.lane.b32.xlu0 %v2502, 96
    %v2505 = vpop.permute.xlu0 %2504
    %v2507 = vmul.f32 %v2501, %v2505
    %2509 = vrot.lane.b32.xlu0 %v2507, 32
    %v2510 = vpop.permute.xlu0 %2509
    %v2512 = vadd.f32 %v2456, %v2510
    %v2513 = vtanh.pop %v2512
    %2515 = vset.pattern.permute.xlu0 0
    %2516 = vperm.xlu0 %2515, %v2093
    %v2517 = vpop.permute.xlu0 %2516
    %v2519 = vmul.f32 %v2517, %v2513
    %v2520 = vsub.f32 1.0, %v2093
    %2522 = vset.pattern.permute.xlu0 0
    %2523 = vperm.xlu0 %2522, %v2520
    %v2524 = vpop.permute.xlu0 %2523
    %v2526 = vmul.f32 %v2524, %v2455
    %v2527 = vadd.f32 %v2519, %v2526
    %v2528 = vld [vmem:[#allocation6 + $0xc] sm:$0x3]
    %2530 = vrot.lane.b32.xlu0 %v2527, 96
    %v2531 = vpop.permute.xlu0 %2530
    %v2532 = vsel %vm212, %v2531, 0
    %2534 = vmatpush.msra.mxu0 0.0
    %2535 = vmatpush.msra.mxu0 0.0
    %2536 = vmatpush.msra.mxu0 0.0
    %2537 = vmatpush.msra.mxu0 0.0
    %2538 = vmatpush.msra.mxu0 0.0
    %2539 = vmatpush.msra.mxu0 0.0
    %2540 = vmatpush.msra.mxu0 0.0
    %2541 = vmatpush.msra.mxu0 0.0
    %2542 = vmatpush.msra.mxu0 0.0
    %2543 = vmatpush.msra.mxu0 0.0
    %2544 = vmatpush.msra.mxu0 0.0
    %2545 = vmatpush.msra.mxu0 0.0
    %2546 = vmatpush.msra.mxu0 %v1854
    %2547 = vmatpush.msra.mxu0 %v1853
    %2548 = vmatpush.msra.mxu0 %v1852
    %2549 = vmatpush.msra.mxu0 %v1851
    %2550 = vmatmul.f32.gmra.mxu0 %v2532
    %v2551 = vpop.f32.mrf.mxu0
    %v2552 = vadd.f32 0.0, %v2551
    %2553 = vdwg.mxu0
    %v2554 = vadd.f32 %v2528, %v2552
    %v2555 = vxor.u32 %v2554, 2147483648
    %v2556 = vmul.f32 %v2555, 1.442695
    %v2557 = vpow.pop %v2556
    %v2558 = vadd.f32 %v2557, 1.0
    %v2559 = vrcp.pop %v2558
    %v2560 = vmul.f32 %v2558, %v2559
    %v2561 = vsub.f32 1.0, %v2560
    %v2562 = vmul.f32 %v2559, %v2561
    %v2563 = vadd.f32 %v2559, %v2562
    %vm2564 = vweird.f32 %v2558
    %vm2565 = vweird.f32 %v2559
    %vm2566 = vmor %vm2564, %vm2565
    %v2567 = vsel %vm2566, %v2559, %v2563
    %v2568 = vand.u32 2147483647, %v2558
    %vm2569 = vcmp.eq.f32.partialorder %v2568, 8.507059e+37
    %v2570 = vand.u32 %v2558, 2147483648
    %v2571 = vor.u32 1.1754944e-38, %v2570
    %v2572 = vsel %vm2569, %v2571, %v2567
    %v2573 = vmul.f32 1.0, %v2572
    %v2574 = vadd.f32 %v2552, %v2140
    %2576 = vrot.lane.b32.xlu0 %v2574, 96
    %v2577 = vpop.permute.xlu0 %2576
    %v2579 = vmul.f32 %v2573, %v2577
    %2581 = vrot.lane.b32.xlu0 %v2579, 32
    %v2582 = vpop.permute.xlu0 %2581
    %v2584 = vadd.f32 %v2528, %v2582
    %v2585 = vtanh.pop %v2584
    %2587 = vset.pattern.permute.xlu0 0
    %2588 = vperm.xlu0 %2587, %v2094
    %v2589 = vpop.permute.xlu0 %2588
    %v2591 = vmul.f32 %v2589, %v2585
    %v2592 = vsub.f32 1.0, %v2094
    %2594 = vset.pattern.permute.xlu0 0
    %2595 = vperm.xlu0 %2594, %v2592
    %v2596 = vpop.permute.xlu0 %2595
    %v2598 = vmul.f32 %v2596, %v2527
    %v2599 = vadd.f32 %v2591, %v2598
    %v2600 = vld [vmem:[#allocation6 + $0xe] sm:$0x3]
    %2602 = vrot.lane.b32.xlu0 %v2599, 96
    %v2603 = vpop.permute.xlu0 %2602
    %v2604 = vsel %vm212, %v2603, 0
    %2606 = vmatpush.msra.mxu0 0.0
    %2607 = vmatpush.msra.mxu0 0.0
    %2608 = vmatpush.msra.mxu0 0.0
    %2609 = vmatpush.msra.mxu0 0.0
    %2610 = vmatpush.msra.mxu0 0.0
    %2611 = vmatpush.msra.mxu0 0.0
    %2612 = vmatpush.msra.mxu0 0.0
    %2613 = vmatpush.msra.mxu0 0.0
    %2614 = vmatpush.msra.mxu0 0.0
    %2615 = vmatpush.msra.mxu0 0.0
    %2616 = vmatpush.msra.mxu0 0.0
    %2617 = vmatpush.msra.mxu0 0.0
    %2618 = vmatpush.msra.mxu0 %v1854
    %2619 = vmatpush.msra.mxu0 %v1853
    %2620 = vmatpush.msra.mxu0 %v1852
    %2621 = vmatpush.msra.mxu0 %v1851
    %2622 = vmatmul.f32.gmra.mxu0 %v2604
    %v2623 = vpop.f32.mrf.mxu0
    %v2624 = vadd.f32 0.0, %v2623
    %2625 = vdwg.mxu0
    %v2626 = vadd.f32 %v2600, %v2624
    %v2627 = vxor.u32 %v2626, 2147483648
    %v2628 = vmul.f32 %v2627, 1.442695
    %v2629 = vpow.pop %v2628
    %v2630 = vadd.f32 %v2629, 1.0
    %v2631 = vrcp.pop %v2630
    %v2632 = vmul.f32 %v2630, %v2631
    %v2633 = vsub.f32 1.0, %v2632
    %v2634 = vmul.f32 %v2631, %v2633
    %v2635 = vadd.f32 %v2631, %v2634
    %vm2636 = vweird.f32 %v2630
    %vm2637 = vweird.f32 %v2631
    %vm2638 = vmor %vm2636, %vm2637
    %v2639 = vsel %vm2638, %v2631, %v2635
    %v2640 = vand.u32 2147483647, %v2630
    %vm2641 = vcmp.eq.f32.partialorder %v2640, 8.507059e+37
    %v2642 = vand.u32 %v2630, 2147483648
    %v2643 = vor.u32 1.1754944e-38, %v2642
    %v2644 = vsel %vm2641, %v2643, %v2639
    %v2645 = vmul.f32 1.0, %v2644
    %v2646 = vadd.f32 %v2624, %v2140
    %2648 = vrot.lane.b32.xlu0 %v2646, 96
    %v2649 = vpop.permute.xlu0 %2648
    %v2651 = vmul.f32 %v2645, %v2649
    %2653 = vrot.lane.b32.xlu0 %v2651, 32
    %v2654 = vpop.permute.xlu0 %2653
    %v2656 = vadd.f32 %v2600, %v2654
    %v2657 = vtanh.pop %v2656
    %2659 = vset.pattern.permute.xlu0 0
    %2660 = vperm.xlu0 %2659, %v2095
    %v2661 = vpop.permute.xlu0 %2660
    %v2663 = vmul.f32 %v2661, %v2657
    %v2664 = vsub.f32 1.0, %v2095
    %2666 = vset.pattern.permute.xlu0 0
    %2667 = vperm.xlu0 %2666, %v2664
    %v2668 = vpop.permute.xlu0 %2667
    %v2670 = vmul.f32 %v2668, %v2599
    %v2671 = vadd.f32 %v2663, %v2670
    %2673 = vrot.lane.b32.xlu0 %v2671, 96
    %v2674 = vpop.permute.xlu0 %2673
    %v2675 = vsel %vm212, %v2674, 0
    %2677 = vmatpush.msra.mxu0 0.0
    %2678 = vmatpush.msra.mxu0 0.0
    %2679 = vmatpush.msra.mxu0 0.0
    %2680 = vmatpush.msra.mxu0 0.0
    %2681 = vmatpush.msra.mxu0 0.0
    %2682 = vmatpush.msra.mxu0 0.0
    %2683 = vmatpush.msra.mxu0 0.0
    %2684 = vmatpush.msra.mxu0 0.0
    %2685 = vmatpush.msra.mxu0 0.0
    %2686 = vmatpush.msra.mxu0 0.0
    %2687 = vmatpush.msra.mxu0 0.0
    %2688 = vmatpush.msra.mxu0 0.0
    %2689 = vmatpush.msra.mxu0 %v1863
    %2690 = vmatpush.msra.mxu0 %v1862
    %2691 = vmatpush.msra.mxu0 %v1861
    %2692 = vmatpush.msra.mxu0 %v1860
    %2693 = vmatmul.f32.gmra.mxu0 %v2675
    %v2694 = vpop.f32.mrf.mxu0
    %v2695 = vadd.f32 0.0, %v2694
    %2696 = vdwg.mxu0
    %2697 = vmatpush.msra.mxu0 0.0
    %2698 = vmatpush.msra.mxu0 0.0
    %2699 = vmatpush.msra.mxu0 0.0
    %2700 = vmatpush.msra.mxu0 0.0
    %2701 = vmatpush.msra.mxu0 0.0
    %2702 = vmatpush.msra.mxu0 0.0
    %2703 = vmatpush.msra.mxu0 0.0
    %2704 = vmatpush.msra.mxu0 0.0
    %2705 = vmatpush.msra.mxu0 0.0
    %2706 = vmatpush.msra.mxu0 0.0
    %2707 = vmatpush.msra.mxu0 0.0
    %2708 = vmatpush.msra.mxu0 0.0
    %2709 = vmatpush.msra.mxu0 %v1859
    %2710 = vmatpush.msra.mxu0 %v1858
    %2711 = vmatpush.msra.mxu0 %v1857
    %2712 = vmatpush.msra.mxu0 %v1856
    %2713 = vmatmul.f32.gmra.mxu0 %v1828
    %v2714 = vpop.f32.mrf.mxu0
    %v2715 = vadd.f32 %v2695, %v2714
    %2716 = vdwg.mxu0
    %v2717 = vadd.f32 %v2715, %v1848
    %v2718 = vmax.f32 %v2717, 0.0
    %v2719 = vld [vmem:[#allocation5] sm:$0x3]
    %v2720 = vmul.f32 %v2719, %v2718
    %2721 = vst.msk [vmem:[#allocation7] sm:$0x3] %vm814, %v2720
    %v2722 = vsub.f32 %v2719, %v2718
    %v2723 = vand.u32 2147483647, %v2722
    %2725 = vrot.lane.b32.xlu0 %v2723, 32
    %v2726 = vpop.permute.xlu0 %2725
    %2728 = vst.msk [vmem:[#allocation7] sm:$0x3] %vm1705, %v2726
    %v2729 = vld [vmem:[#allocation5 + $0x2] sm:$0x3]
    %v2730 = vmul.f32 %v2729, %v2718
    %2731 = vst.msk [vmem:[#allocation7 + $0x2] sm:$0x3] %vm814, %v2730
    %v2732 = vsub.f32 %v2729, %v2718
    %v2733 = vand.u32 2147483647, %v2732
    %2735 = vrot.lane.b32.xlu0 %v2733, 32
    %v2736 = vpop.permute.xlu0 %2735
    %2738 = vst.msk [vmem:[#allocation7 + $0x2] sm:$0x3] %vm1705, %v2736
    %v2739 = vld [vmem:[#allocation5 + $0x4] sm:$0x3]
    %v2740 = vmul.f32 %v2739, %v2718
    %2741 = vst.msk [vmem:[#allocation7 + $0x4] sm:$0x3] %vm814, %v2740
    %v2742 = vsub.f32 %v2739, %v2718
    %v2743 = vand.u32 2147483647, %v2742
    %2745 = vrot.lane.b32.xlu0 %v2743, 32
    %v2746 = vpop.permute.xlu0 %2745
    %2748 = vst.msk [vmem:[#allocation7 + $0x4] sm:$0x3] %vm1705, %v2746
    %v2749 = vld [vmem:[#allocation5 + $0x6] sm:$0x3]
    %v2750 = vmul.f32 %v2749, %v2718
    %2751 = vst.msk [vmem:[#allocation7 + $0x6] sm:$0x3] %vm814, %v2750
    %v2752 = vsub.f32 %v2749, %v2718
    %v2753 = vand.u32 2147483647, %v2752
    %2755 = vrot.lane.b32.xlu0 %v2753, 32
    %v2756 = vpop.permute.xlu0 %2755
    %2758 = vst.msk [vmem:[#allocation7 + $0x6] sm:$0x3] %vm1705, %v2756
    %v2759 = vld [vmem:[#allocation5 + $0x8] sm:$0x3]
    %v2760 = vmul.f32 %v2759, %v2718
    %2761 = vst.msk [vmem:[#allocation7 + $0x8] sm:$0x3] %vm814, %v2760
    %v2762 = vsub.f32 %v2759, %v2718
    %v2763 = vand.u32 2147483647, %v2762
    %2765 = vrot.lane.b32.xlu0 %v2763, 32
    %v2766 = vpop.permute.xlu0 %2765
    %2768 = vst.msk [vmem:[#allocation7 + $0x8] sm:$0x3] %vm1705, %v2766
    %v2769 = vld [vmem:[#allocation5 + $0xa] sm:$0x3]
    %v2770 = vmul.f32 %v2769, %v2718
    %2771 = vst.msk [vmem:[#allocation7 + $0xa] sm:$0x3] %vm814, %v2770
    %v2772 = vsub.f32 %v2769, %v2718
    %v2773 = vand.u32 2147483647, %v2772
    %2775 = vrot.lane.b32.xlu0 %v2773, 32
    %v2776 = vpop.permute.xlu0 %2775
    %2778 = vst.msk [vmem:[#allocation7 + $0xa] sm:$0x3] %vm1705, %v2776
    %v2779 = vld [vmem:[#allocation5 + $0xc] sm:$0x3]
    %v2780 = vmul.f32 %v2779, %v2718
    %2781 = vst.msk [vmem:[#allocation7 + $0xc] sm:$0x3] %vm814, %v2780
    %v2782 = vsub.f32 %v2779, %v2718
    %v2783 = vand.u32 2147483647, %v2782
    %2785 = vrot.lane.b32.xlu0 %v2783, 32
    %v2786 = vpop.permute.xlu0 %2785
    %2788 = vst.msk [vmem:[#allocation7 + $0xc] sm:$0x3] %vm1705, %v2786
    %v2789 = vld [vmem:[#allocation5 + $0xe] sm:$0x3]
    %v2790 = vmul.f32 %v2789, %v2718
    %2791 = vst.msk [vmem:[#allocation7 + $0xe] sm:$0x3] %vm814, %v2790
    %v2792 = vsub.f32 %v2789, %v2718
    %v2793 = vand.u32 2147483647, %v2792
    %2795 = vrot.lane.b32.xlu0 %v2793, 32
    %v2796 = vpop.permute.xlu0 %2795
    %2798 = vst.msk [vmem:[#allocation7 + $0xe] sm:$0x3] %vm1705, %v2796
    %v2799 = vld [vmem:[#allocation7] sm:$0xff]
    %v2800 = vld [vmem:[#allocation7 + $0x8] sm:$0xff]
    %v2801 = vld [vmem:[%s15] sm:$0xff]
    %v2802 = vld [vmem:[%s15 + $0x8] sm:$0xff]
    %v2803 = vld [vmem:[%s15 + $0x10] sm:$0xff]
    %v2804 = vld [vmem:[%s15 + $0x18] sm:$0xff]
    %v2805 = vld [vmem:[%s15 + $0x20] sm:$0xff]
    %v2806 = vld [vmem:[%s15 + $0x28] sm:$0xff]
    %v2807 = vld [vmem:[%s15 + $0x30] sm:$0xff]
    %v2808 = vld [vmem:[%s15 + $0x38] sm:$0xff]
    %v2810 = vsel %vm1689, %v2799, 0
    %v2813 = vsel %vm1689, %v2800, 0
    %2815 = vmatpush.msra.mxu0 0.0
    %2816 = vmatpush.msra.mxu0 0.0
    %2817 = vmatpush.msra.mxu0 0.0
    %2818 = vmatpush.msra.mxu0 0.0
    %2819 = vmatpush.msra.mxu0 0.0
    %2820 = vmatpush.msra.mxu0 0.0
    %2821 = vmatpush.msra.mxu0 0.0
    %2822 = vmatpush.msra.mxu0 0.0
    %2823 = vmatpush.msra.mxu0 %v2808
    %2824 = vmatpush.msra.mxu0 %v2807
    %2825 = vmatpush.msra.mxu0 %v2806
    %2826 = vmatpush.msra.mxu0 %v2805
    %2827 = vmatpush.msra.mxu0 %v2804
    %2828 = vmatpush.msra.mxu0 %v2803
    %2829 = vmatpush.msra.mxu0 %v2802
    %2830 = vmatpush.msra.mxu0 %v2801
    %2831 = vmatmul.f32.gmra.mxu0 %v2810
    %v2832 = vpop.f32.mrf.mxu0
    %v2833 = vadd.f32 0.0, %v2832
    %2834 = vmatmul.f32.gmra.mxu0 %v2813
    %v2835 = vpop.f32.mrf.mxu0
    %v2836 = vadd.f32 0.0, %v2835
    %2837 = vdwg.mxu0
    %v2838 = vadd.f32 %v1815, %v2833
    %v2839 = vadd.f32 %v1818, %v2836
    %v2840 = vtanh.pop %v2838
    %v2841 = vtanh.pop %v2839
    %v2842 = vmul.f32 %v2840, %v1988
    %v2843 = vmul.f32 %v2841, %v1988
    %v2844 = vsel %vm212, %v2842, 0.0
    %2845 = vadd.xlane.f32.xlu0 %v2844
    %v2846 = vpop.xlane.xlu0 %2845
    %v2847 = vsel %vm212, %v2843, 0.0
    %2848 = vadd.xlane.f32.xlu0 %v2847
    %v2849 = vpop.xlane.xlu0 %2848
    %2850 = vst.msk [vmem:[#allocation8] sm:$0xff] %vm1998, %v2846
    %2851 = vst.msk [vmem:[#allocation8 + $0x8] sm:$0xff] %vm1998, %v2849
    %v2852 = vld [vmem:[#allocation8] sm:$0x3]
    %2853 = vst.msk [vmem:[#allocation9] sm:$0x3] %vm2002, %v2852
    %v2854 = vld [vmem:[#allocation8 + $0x2] sm:$0x3]
    %2855 = vst.msk [vmem:[%s2005] sm:$0x3] %vm2002, %v2854
    %v2856 = vld [vmem:[#allocation8 + $0x4] sm:$0x3]
    %2857 = vst.msk [vmem:[%s2008] sm:$0x3] %vm2002, %v2856
    %v2858 = vld [vmem:[#allocation8 + $0x6] sm:$0x3]
    %2859 = vst.msk [vmem:[%s2011] sm:$0x3] %vm2002, %v2858
    %v2860 = vld [vmem:[#allocation8 + $0x8] sm:$0x3]
    %2861 = vst.msk [vmem:[%s2014] sm:$0x3] %vm2002, %v2860
    %v2862 = vld [vmem:[#allocation8 + $0xa] sm:$0x3]
    %2863 = vst.msk [vmem:[%s2017] sm:$0x3] %vm2002, %v2862
    %v2864 = vld [vmem:[#allocation8 + $0xc] sm:$0x3]
    %2865 = vst.msk [vmem:[%s2020] sm:$0x3] %vm2002, %v2864
    %v2866 = vld [vmem:[#allocation8 + $0xe] sm:$0x3]
    %2867 = vst.msk [vmem:[%s2023] sm:$0x3] %vm2002, %v2866
    %v2868 = vld [vmem:[#allocation9] sm:$0x3]
    %v2869 = vld [vmem:[#allocation9 + $0x2] sm:$0x3]
    %v2870 = vld [vmem:[#allocation9 + $0x4] sm:$0x3]
    %v2871 = vld [vmem:[#allocation9 + $0x6] sm:$0x3]
    %v2872 = vld [vmem:[#allocation9 + $0x8] sm:$0x3]
    %v2873 = vld [vmem:[#allocation9 + $0xa] sm:$0x3]
    %v2874 = vld [vmem:[#allocation9 + $0xc] sm:$0x3]
    %v2875 = vld [vmem:[#allocation9 + $0xe] sm:$0x3]
    %v2876 = vsel %vm2002, %v2868, -inf
    %v2877 = vsel %vm2002, %v2869, -inf
    %v2878 = vsel %vm2002, %v2870, -inf
    %v2879 = vsel %vm2002, %v2871, -inf
    %v2880 = vsel %vm2002, %v2872, -inf
    %v2881 = vmax.f32 %v2876, %v2880
    %v2882 = vsel %vm2002, %v2873, -inf
    %v2883 = vmax.f32 %v2877, %v2882
    %v2884 = vsel %vm2002, %v2874, -inf
    %v2885 = vmax.f32 %v2878, %v2884
    %v2886 = vsel %vm2002, %v2875, -inf
    %v2887 = vmax.f32 %v2879, %v2886
    %v2888 = vmax.f32 %v2881, %v2883
    %v2889 = vmax.f32 %v2885, %v2887
    %v2890 = vmax.f32 %v2888, %v2889
    %v2891 = vsub.f32 %v2868, %v2890
    %v2892 = vsub.f32 %v2869, %v2890
    %v2893 = vsub.f32 %v2870, %v2890
    %v2894 = vsub.f32 %v2871, %v2890
    %v2895 = vsub.f32 %v2872, %v2890
    %v2896 = vsub.f32 %v2873, %v2890
    %v2897 = vsub.f32 %v2874, %v2890
    %v2898 = vsub.f32 %v2875, %v2890
    %v2899 = vmul.f32 %v2891, 1.442695
    %v2900 = vpow.pop %v2899
    %v2901 = vmul.f32 %v2892, 1.442695
    %v2902 = vpow.pop %v2901
    %v2903 = vmul.f32 %v2893, 1.442695
    %v2904 = vpow.pop %v2903
    %v2905 = vmul.f32 %v2894, 1.442695
    %v2906 = vpow.pop %v2905
    %v2907 = vmul.f32 %v2895, 1.442695
    %v2908 = vpow.pop %v2907
    %v2909 = vmul.f32 %v2896, 1.442695
    %v2910 = vpow.pop %v2909
    %v2911 = vmul.f32 %v2897, 1.442695
    %v2912 = vpow.pop %v2911
    %v2913 = vmul.f32 %v2898, 1.442695
    %v2914 = vpow.pop %v2913
    %v2915 = vsel %vm2002, %v2900, 0.0
    %v2916 = vsel %vm2002, %v2902, 0.0
    %v2917 = vadd.f32 %v2915, %v2916
    %v2918 = vsel %vm2002, %v2904, 0.0
    %v2919 = vadd.f32 %v2917, %v2918
    %v2920 = vsel %vm2002, %v2906, 0.0
    %v2921 = vadd.f32 %v2919, %v2920
    %v2922 = vsel %vm2002, %v2908, 0.0
    %v2923 = vadd.f32 %v2921, %v2922
    %v2924 = vsel %vm2002, %v2910, 0.0
    %v2925 = vadd.f32 %v2923, %v2924
    %v2926 = vsel %vm2002, %v2912, 0.0
    %v2927 = vadd.f32 %v2925, %v2926
    %v2928 = vsel %vm2002, %v2914, 0.0
    %v2929 = vadd.f32 %v2927, %v2928
    %v2930 = vrcp.pop %v2929
    %v2931 = vmul.f32 %v2900, %v2930
    %v2932 = vmul.f32 %v2902, %v2930
    %v2933 = vmul.f32 %v2904, %v2930
    %v2934 = vmul.f32 %v2906, %v2930
    %v2935 = vmul.f32 %v2908, %v2930
    %v2936 = vmul.f32 %v2910, %v2930
    %v2937 = vmul.f32 %v2912, %v2930
    %v2938 = vmul.f32 %v2914, %v2930
    %v2939 = vld [vmem:[#allocation6] sm:$0x3]
    %v2940 = vadd.f32 %v2939, %v2115
    %v2941 = vxor.u32 %v2940, 2147483648
    %v2942 = vmul.f32 %v2941, 1.442695
    %v2943 = vpow.pop %v2942
    %v2944 = vadd.f32 %v2943, 1.0
    %v2945 = vrcp.pop %v2944
    %v2946 = vmul.f32 %v2944, %v2945
    %v2947 = vsub.f32 1.0, %v2946
    %v2948 = vmul.f32 %v2945, %v2947
    %v2949 = vadd.f32 %v2945, %v2948
    %vm2950 = vweird.f32 %v2944
    %vm2951 = vweird.f32 %v2945
    %vm2952 = vmor %vm2950, %vm2951
    %v2953 = vsel %vm2952, %v2945, %v2949
    %v2954 = vand.u32 2147483647, %v2944
    %vm2955 = vcmp.eq.f32.partialorder %v2954, 8.507059e+37
    %v2956 = vand.u32 %v2944, 2147483648
    %v2957 = vor.u32 1.1754944e-38, %v2956
    %v2958 = vsel %vm2955, %v2957, %v2953
    %v2959 = vmul.f32 1.0, %v2958
    %v2960 = vmul.f32 %v2959, %v2145
    %2962 = vrot.lane.b32.xlu0 %v2960, 32
    %v2963 = vpop.permute.xlu0 %2962
    %v2965 = vadd.f32 %v2939, %v2963
    %v2966 = vtanh.pop %v2965
    %2968 = vset.pattern.permute.xlu0 0
    %2969 = vperm.xlu0 %2968, %v2931
    %v2970 = vpop.permute.xlu0 %2969
    %v2972 = vmul.f32 %v2970, %v2966
    %v2973 = vsub.f32 1.0, %v2931
    %2975 = vset.pattern.permute.xlu0 0
    %2976 = vperm.xlu0 %2975, %v2973
    %v2977 = vpop.permute.xlu0 %2976
    %v2979 = vmul.f32 %v2977, 0.0
    %v2980 = vadd.f32 %v2972, %v2979
    %v2981 = vld [vmem:[#allocation6 + $0x2] sm:$0x3]
    %2983 = vrot.lane.b32.xlu0 %v2980, 96
    %v2984 = vpop.permute.xlu0 %2983
    %v2985 = vsel %vm212, %v2984, 0
    %2987 = vmatpush.msra.mxu0 0.0
    %2988 = vmatpush.msra.mxu0 0.0
    %2989 = vmatpush.msra.mxu0 0.0
    %2990 = vmatpush.msra.mxu0 0.0
    %2991 = vmatpush.msra.mxu0 0.0
    %2992 = vmatpush.msra.mxu0 0.0
    %2993 = vmatpush.msra.mxu0 0.0
    %2994 = vmatpush.msra.mxu0 0.0
    %2995 = vmatpush.msra.mxu0 0.0
    %2996 = vmatpush.msra.mxu0 0.0
    %2997 = vmatpush.msra.mxu0 0.0
    %2998 = vmatpush.msra.mxu0 0.0
    %2999 = vmatpush.msra.mxu0 %v1854
    %3000 = vmatpush.msra.mxu0 %v1853
    %3001 = vmatpush.msra.mxu0 %v1852
    %3002 = vmatpush.msra.mxu0 %v1851
    %3003 = vmatmul.f32.gmra.mxu0 %v2985
    %v3004 = vpop.f32.mrf.mxu0
    %v3005 = vadd.f32 0.0, %v3004
    %3006 = vdwg.mxu0
    %v3007 = vadd.f32 %v2981, %v3005
    %v3008 = vxor.u32 %v3007, 2147483648
    %v3009 = vmul.f32 %v3008, 1.442695
    %v3010 = vpow.pop %v3009
    %v3011 = vadd.f32 %v3010, 1.0
    %v3012 = vrcp.pop %v3011
    %v3013 = vmul.f32 %v3011, %v3012
    %v3014 = vsub.f32 1.0, %v3013
    %v3015 = vmul.f32 %v3012, %v3014
    %v3016 = vadd.f32 %v3012, %v3015
    %vm3017 = vweird.f32 %v3011
    %vm3018 = vweird.f32 %v3012
    %vm3019 = vmor %vm3017, %vm3018
    %v3020 = vsel %vm3019, %v3012, %v3016
    %v3021 = vand.u32 2147483647, %v3011
    %vm3022 = vcmp.eq.f32.partialorder %v3021, 8.507059e+37
    %v3023 = vand.u32 %v3011, 2147483648
    %v3024 = vor.u32 1.1754944e-38, %v3023
    %v3025 = vsel %vm3022, %v3024, %v3020
    %v3026 = vmul.f32 1.0, %v3025
    %v3027 = vadd.f32 %v3005, %v2140
    %3029 = vrot.lane.b32.xlu0 %v3027, 96
    %v3030 = vpop.permute.xlu0 %3029
    %v3032 = vmul.f32 %v3026, %v3030
    %3034 = vrot.lane.b32.xlu0 %v3032, 32
    %v3035 = vpop.permute.xlu0 %3034
    %v3037 = vadd.f32 %v2981, %v3035
    %v3038 = vtanh.pop %v3037
    %3040 = vset.pattern.permute.xlu0 0
    %3041 = vperm.xlu0 %3040, %v2932
    %v3042 = vpop.permute.xlu0 %3041
    %v3044 = vmul.f32 %v3042, %v3038
    %v3045 = vsub.f32 1.0, %v2932
    %3047 = vset.pattern.permute.xlu0 0
    %3048 = vperm.xlu0 %3047, %v3045
    %v3049 = vpop.permute.xlu0 %3048
    %v3051 = vmul.f32 %v3049, %v2980
    %v3052 = vadd.f32 %v3044, %v3051
    %v3053 = vld [vmem:[#allocation6 + $0x4] sm:$0x3]
    %3055 = vrot.lane.b32.xlu0 %v3052, 96
    %v3056 = vpop.permute.xlu0 %3055
    %v3057 = vsel %vm212, %v3056, 0
    %3059 = vmatpush.msra.mxu0 0.0
    %3060 = vmatpush.msra.mxu0 0.0
    %3061 = vmatpush.msra.mxu0 0.0
    %3062 = vmatpush.msra.mxu0 0.0
    %3063 = vmatpush.msra.mxu0 0.0
    %3064 = vmatpush.msra.mxu0 0.0
    %3065 = vmatpush.msra.mxu0 0.0
    %3066 = vmatpush.msra.mxu0 0.0
    %3067 = vmatpush.msra.mxu0 0.0
    %3068 = vmatpush.msra.mxu0 0.0
    %3069 = vmatpush.msra.mxu0 0.0
    %3070 = vmatpush.msra.mxu0 0.0
    %3071 = vmatpush.msra.mxu0 %v1854
    %3072 = vmatpush.msra.mxu0 %v1853
    %3073 = vmatpush.msra.mxu0 %v1852
    %3074 = vmatpush.msra.mxu0 %v1851
    %3075 = vmatmul.f32.gmra.mxu0 %v3057
    %v3076 = vpop.f32.mrf.mxu0
    %v3077 = vadd.f32 0.0, %v3076
    %3078 = vdwg.mxu0
    %v3079 = vadd.f32 %v3053, %v3077
    %v3080 = vxor.u32 %v3079, 2147483648
    %v3081 = vmul.f32 %v3080, 1.442695
    %v3082 = vpow.pop %v3081
    %v3083 = vadd.f32 %v3082, 1.0
    %v3084 = vrcp.pop %v3083
    %v3085 = vmul.f32 %v3083, %v3084
    %v3086 = vsub.f32 1.0, %v3085
    %v3087 = vmul.f32 %v3084, %v3086
    %v3088 = vadd.f32 %v3084, %v3087
    %vm3089 = vweird.f32 %v3083
    %vm3090 = vweird.f32 %v3084
    %vm3091 = vmor %vm3089, %vm3090
    %v3092 = vsel %vm3091, %v3084, %v3088
    %v3093 = vand.u32 2147483647, %v3083
    %vm3094 = vcmp.eq.f32.partialorder %v3093, 8.507059e+37
    %v3095 = vand.u32 %v3083, 2147483648
    %v3096 = vor.u32 1.1754944e-38, %v3095
    %v3097 = vsel %vm3094, %v3096, %v3092
    %v3098 = vmul.f32 1.0, %v3097
    %v3099 = vadd.f32 %v3077, %v2140
    %3101 = vrot.lane.b32.xlu0 %v3099, 96
    %v3102 = vpop.permute.xlu0 %3101
    %v3104 = vmul.f32 %v3098, %v3102
    %3106 = vrot.lane.b32.xlu0 %v3104, 32
    %v3107 = vpop.permute.xlu0 %3106
    %v3109 = vadd.f32 %v3053, %v3107
    %v3110 = vtanh.pop %v3109
    %3112 = vset.pattern.permute.xlu0 0
    %3113 = vperm.xlu0 %3112, %v2933
    %v3114 = vpop.permute.xlu0 %3113
    %v3116 = vmul.f32 %v3114, %v3110
    %v3117 = vsub.f32 1.0, %v2933
    %3119 = vset.pattern.permute.xlu0 0
    %3120 = vperm.xlu0 %3119, %v3117
    %v3121 = vpop.permute.xlu0 %3120
    %v3123 = vmul.f32 %v3121, %v3052
    %v3124 = vadd.f32 %v3116, %v3123
    %v3125 = vld [vmem:[#allocation6 + $0x6] sm:$0x3]
    %3127 = vrot.lane.b32.xlu0 %v3124, 96
    %v3128 = vpop.permute.xlu0 %3127
    %v3129 = vsel %vm212, %v3128, 0
    %3131 = vmatpush.msra.mxu0 0.0
    %3132 = vmatpush.msra.mxu0 0.0
    %3133 = vmatpush.msra.mxu0 0.0
    %3134 = vmatpush.msra.mxu0 0.0
    %3135 = vmatpush.msra.mxu0 0.0
    %3136 = vmatpush.msra.mxu0 0.0
    %3137 = vmatpush.msra.mxu0 0.0
    %3138 = vmatpush.msra.mxu0 0.0
    %3139 = vmatpush.msra.mxu0 0.0
    %3140 = vmatpush.msra.mxu0 0.0
    %3141 = vmatpush.msra.mxu0 0.0
    %3142 = vmatpush.msra.mxu0 0.0
    %3143 = vmatpush.msra.mxu0 %v1854
    %3144 = vmatpush.msra.mxu0 %v1853
    %3145 = vmatpush.msra.mxu0 %v1852
    %3146 = vmatpush.msra.mxu0 %v1851
    %3147 = vmatmul.f32.gmra.mxu0 %v3129
    %v3148 = vpop.f32.mrf.mxu0
    %v3149 = vadd.f32 0.0, %v3148
    %3150 = vdwg.mxu0
    %v3151 = vadd.f32 %v3125, %v3149
    %v3152 = vxor.u32 %v3151, 2147483648
    %v3153 = vmul.f32 %v3152, 1.442695
    %v3154 = vpow.pop %v3153
    %v3155 = vadd.f32 %v3154, 1.0
    %v3156 = vrcp.pop %v3155
    %v3157 = vmul.f32 %v3155, %v3156
    %v3158 = vsub.f32 1.0, %v3157
    %v3159 = vmul.f32 %v3156, %v3158
    %v3160 = vadd.f32 %v3156, %v3159
    %vm3161 = vweird.f32 %v3155
    %vm3162 = vweird.f32 %v3156
    %vm3163 = vmor %vm3161, %vm3162
    %v3164 = vsel %vm3163, %v3156, %v3160
    %v3165 = vand.u32 2147483647, %v3155
    %vm3166 = vcmp.eq.f32.partialorder %v3165, 8.507059e+37
    %v3167 = vand.u32 %v3155, 2147483648
    %v3168 = vor.u32 1.1754944e-38, %v3167
    %v3169 = vsel %vm3166, %v3168, %v3164
    %v3170 = vmul.f32 1.0, %v3169
    %v3171 = vadd.f32 %v3149, %v2140
    %3173 = vrot.lane.b32.xlu0 %v3171, 96
    %v3174 = vpop.permute.xlu0 %3173
    %v3176 = vmul.f32 %v3170, %v3174
    %3178 = vrot.lane.b32.xlu0 %v3176, 32
    %v3179 = vpop.permute.xlu0 %3178
    %v3181 = vadd.f32 %v3125, %v3179
    %v3182 = vtanh.pop %v3181
    %3184 = vset.pattern.permute.xlu0 0
    %3185 = vperm.xlu0 %3184, %v2934
    %v3186 = vpop.permute.xlu0 %3185
    %v3188 = vmul.f32 %v3186, %v3182
    %v3189 = vsub.f32 1.0, %v2934
    %3191 = vset.pattern.permute.xlu0 0
    %3192 = vperm.xlu0 %3191, %v3189
    %v3193 = vpop.permute.xlu0 %3192
    %v3195 = vmul.f32 %v3193, %v3124
    %v3196 = vadd.f32 %v3188, %v3195
    %v3197 = vld [vmem:[#allocation6 + $0x8] sm:$0x3]
    %3199 = vrot.lane.b32.xlu0 %v3196, 96
    %v3200 = vpop.permute.xlu0 %3199
    %v3201 = vsel %vm212, %v3200, 0
    %3203 = vmatpush.msra.mxu0 0.0
    %3204 = vmatpush.msra.mxu0 0.0
    %3205 = vmatpush.msra.mxu0 0.0
    %3206 = vmatpush.msra.mxu0 0.0
    %3207 = vmatpush.msra.mxu0 0.0
    %3208 = vmatpush.msra.mxu0 0.0
    %3209 = vmatpush.msra.mxu0 0.0
    %3210 = vmatpush.msra.mxu0 0.0
    %3211 = vmatpush.msra.mxu0 0.0
    %3212 = vmatpush.msra.mxu0 0.0
    %3213 = vmatpush.msra.mxu0 0.0
    %3214 = vmatpush.msra.mxu0 0.0
    %3215 = vmatpush.msra.mxu0 %v1854
    %3216 = vmatpush.msra.mxu0 %v1853
    %3217 = vmatpush.msra.mxu0 %v1852
    %3218 = vmatpush.msra.mxu0 %v1851
    %3219 = vmatmul.f32.gmra.mxu0 %v3201
    %v3220 = vpop.f32.mrf.mxu0
    %v3221 = vadd.f32 0.0, %v3220
    %3222 = vdwg.mxu0
    %v3223 = vadd.f32 %v3197, %v3221
    %v3224 = vxor.u32 %v3223, 2147483648
    %v3225 = vmul.f32 %v3224, 1.442695
    %v3226 = vpow.pop %v3225
    %v3227 = vadd.f32 %v3226, 1.0
    %v3228 = vrcp.pop %v3227
    %v3229 = vmul.f32 %v3227, %v3228
    %v3230 = vsub.f32 1.0, %v3229
    %v3231 = vmul.f32 %v3228, %v3230
    %v3232 = vadd.f32 %v3228, %v3231
    %vm3233 = vweird.f32 %v3227
    %vm3234 = vweird.f32 %v3228
    %vm3235 = vmor %vm3233, %vm3234
    %v3236 = vsel %vm3235, %v3228, %v3232
    %v3237 = vand.u32 2147483647, %v3227
    %vm3238 = vcmp.eq.f32.partialorder %v3237, 8.507059e+37
    %v3239 = vand.u32 %v3227, 2147483648
    %v3240 = vor.u32 1.1754944e-38, %v3239
    %v3241 = vsel %vm3238, %v3240, %v3236
    %v3242 = vmul.f32 1.0, %v3241
    %v3243 = vadd.f32 %v3221, %v2140
    %3245 = vrot.lane.b32.xlu0 %v3243, 96
    %v3246 = vpop.permute.xlu0 %3245
    %v3248 = vmul.f32 %v3242, %v3246
    %3250 = vrot.lane.b32.xlu0 %v3248, 32
    %v3251 = vpop.permute.xlu0 %3250
    %v3253 = vadd.f32 %v3197, %v3251
    %v3254 = vtanh.pop %v3253
    %3256 = vset.pattern.permute.xlu0 0
    %3257 = vperm.xlu0 %3256, %v2935
    %v3258 = vpop.permute.xlu0 %3257
    %v3260 = vmul.f32 %v3258, %v3254
    %v3261 = vsub.f32 1.0, %v2935
    %3263 = vset.pattern.permute.xlu0 0
    %3264 = vperm.xlu0 %3263, %v3261
    %v3265 = vpop.permute.xlu0 %3264
    %v3267 = vmul.f32 %v3265, %v3196
    %v3268 = vadd.f32 %v3260, %v3267
    %v3269 = vld [vmem:[#allocation6 + $0xa] sm:$0x3]
    %3271 = vrot.lane.b32.xlu0 %v3268, 96
    %v3272 = vpop.permute.xlu0 %3271
    %v3273 = vsel %vm212, %v3272, 0
    %3275 = vmatpush.msra.mxu0 0.0
    %3276 = vmatpush.msra.mxu0 0.0
    %3277 = vmatpush.msra.mxu0 0.0
    %3278 = vmatpush.msra.mxu0 0.0
    %3279 = vmatpush.msra.mxu0 0.0
    %3280 = vmatpush.msra.mxu0 0.0
    %3281 = vmatpush.msra.mxu0 0.0
    %3282 = vmatpush.msra.mxu0 0.0
    %3283 = vmatpush.msra.mxu0 0.0
    %3284 = vmatpush.msra.mxu0 0.0
    %3285 = vmatpush.msra.mxu0 0.0
    %3286 = vmatpush.msra.mxu0 0.0
    %3287 = vmatpush.msra.mxu0 %v1854
    %3288 = vmatpush.msra.mxu0 %v1853
    %3289 = vmatpush.msra.mxu0 %v1852
    %3290 = vmatpush.msra.mxu0 %v1851
    %3291 = vmatmul.f32.gmra.mxu0 %v3273
    %v3292 = vpop.f32.mrf.mxu0
    %v3293 = vadd.f32 0.0, %v3292
    %3294 = vdwg.mxu0
    %v3295 = vadd.f32 %v3269, %v3293
    %v3296 = vxor.u32 %v3295, 2147483648
    %v3297 = vmul.f32 %v3296, 1.442695
    %v3298 = vpow.pop %v3297
    %v3299 = vadd.f32 %v3298, 1.0
    %v3300 = vrcp.pop %v3299
    %v3301 = vmul.f32 %v3299, %v3300
    %v3302 = vsub.f32 1.0, %v3301
    %v3303 = vmul.f32 %v3300, %v3302
    %v3304 = vadd.f32 %v3300, %v3303
    %vm3305 = vweird.f32 %v3299
    %vm3306 = vweird.f32 %v3300
    %vm3307 = vmor %vm3305, %vm3306
    %v3308 = vsel %vm3307, %v3300, %v3304
    %v3309 = vand.u32 2147483647, %v3299
    %vm3310 = vcmp.eq.f32.partialorder %v3309, 8.507059e+37
    %v3311 = vand.u32 %v3299, 2147483648
    %v3312 = vor.u32 1.1754944e-38, %v3311
    %v3313 = vsel %vm3310, %v3312, %v3308
    %v3314 = vmul.f32 1.0, %v3313
    %v3315 = vadd.f32 %v3293, %v2140
    %3317 = vrot.lane.b32.xlu0 %v3315, 96
    %v3318 = vpop.permute.xlu0 %3317
    %v3320 = vmul.f32 %v3314, %v3318
    %3322 = vrot.lane.b32.xlu0 %v3320, 32
    %v3323 = vpop.permute.xlu0 %3322
    %v3325 = vadd.f32 %v3269, %v3323
    %v3326 = vtanh.pop %v3325
    %3328 = vset.pattern.permute.xlu0 0
    %3329 = vperm.xlu0 %3328, %v2936
    %v3330 = vpop.permute.xlu0 %3329
    %v3332 = vmul.f32 %v3330, %v3326
    %v3333 = vsub.f32 1.0, %v2936
    %3335 = vset.pattern.permute.xlu0 0
    %3336 = vperm.xlu0 %3335, %v3333
    %v3337 = vpop.permute.xlu0 %3336
    %v3339 = vmul.f32 %v3337, %v3268
    %v3340 = vadd.f32 %v3332, %v3339
    %v3341 = vld [vmem:[#allocation6 + $0xc] sm:$0x3]
    %3343 = vrot.lane.b32.xlu0 %v3340, 96
    %v3344 = vpop.permute.xlu0 %3343
    %v3345 = vsel %vm212, %v3344, 0
    %3347 = vmatpush.msra.mxu0 0.0
    %3348 = vmatpush.msra.mxu0 0.0
    %3349 = vmatpush.msra.mxu0 0.0
    %3350 = vmatpush.msra.mxu0 0.0
    %3351 = vmatpush.msra.mxu0 0.0
    %3352 = vmatpush.msra.mxu0 0.0
    %3353 = vmatpush.msra.mxu0 0.0
    %3354 = vmatpush.msra.mxu0 0.0
    %3355 = vmatpush.msra.mxu0 0.0
    %3356 = vmatpush.msra.mxu0 0.0
    %3357 = vmatpush.msra.mxu0 0.0
    %3358 = vmatpush.msra.mxu0 0.0
    %3359 = vmatpush.msra.mxu0 %v1854
    %3360 = vmatpush.msra.mxu0 %v1853
    %3361 = vmatpush.msra.mxu0 %v1852
    %3362 = vmatpush.msra.mxu0 %v1851
    %3363 = vmatmul.f32.gmra.mxu0 %v3345
    %v3364 = vpop.f32.mrf.mxu0
    %v3365 = vadd.f32 0.0, %v3364
    %3366 = vdwg.mxu0
    %v3367 = vadd.f32 %v3341, %v3365
    %v3368 = vxor.u32 %v3367, 2147483648
    %v3369 = vmul.f32 %v3368, 1.442695
    %v3370 = vpow.pop %v3369
    %v3371 = vadd.f32 %v3370, 1.0
    %v3372 = vrcp.pop %v3371
    %v3373 = vmul.f32 %v3371, %v3372
    %v3374 = vsub.f32 1.0, %v3373
    %v3375 = vmul.f32 %v3372, %v3374
    %v3376 = vadd.f32 %v3372, %v3375
    %vm3377 = vweird.f32 %v3371
    %vm3378 = vweird.f32 %v3372
    %vm3379 = vmor %vm3377, %vm3378
    %v3380 = vsel %vm3379, %v3372, %v3376
    %v3381 = vand.u32 2147483647, %v3371
    %vm3382 = vcmp.eq.f32.partialorder %v3381, 8.507059e+37
    %v3383 = vand.u32 %v3371, 2147483648
    %v3384 = vor.u32 1.1754944e-38, %v3383
    %v3385 = vsel %vm3382, %v3384, %v3380
    %v3386 = vmul.f32 1.0, %v3385
    %v3387 = vadd.f32 %v3365, %v2140
    %3389 = vrot.lane.b32.xlu0 %v3387, 96
    %v3390 = vpop.permute.xlu0 %3389
    %v3392 = vmul.f32 %v3386, %v3390
    %3394 = vrot.lane.b32.xlu0 %v3392, 32
    %v3395 = vpop.permute.xlu0 %3394
    %v3397 = vadd.f32 %v3341, %v3395
    %v3398 = vtanh.pop %v3397
    %3400 = vset.pattern.permute.xlu0 0
    %3401 = vperm.xlu0 %3400, %v2937
    %v3402 = vpop.permute.xlu0 %3401
    %v3404 = vmul.f32 %v3402, %v3398
    %v3405 = vsub.f32 1.0, %v2937
    %3407 = vset.pattern.permute.xlu0 0
    %3408 = vperm.xlu0 %3407, %v3405
    %v3409 = vpop.permute.xlu0 %3408
    %v3411 = vmul.f32 %v3409, %v3340
    %v3412 = vadd.f32 %v3404, %v3411
    %v3413 = vld [vmem:[#allocation6 + $0xe] sm:$0x3]
    %3415 = vrot.lane.b32.xlu0 %v3412, 96
    %v3416 = vpop.permute.xlu0 %3415
    %v3417 = vsel %vm212, %v3416, 0
    %3419 = vmatpush.msra.mxu0 0.0
    %3420 = vmatpush.msra.mxu0 0.0
    %3421 = vmatpush.msra.mxu0 0.0
    %3422 = vmatpush.msra.mxu0 0.0
    %3423 = vmatpush.msra.mxu0 0.0
    %3424 = vmatpush.msra.mxu0 0.0
    %3425 = vmatpush.msra.mxu0 0.0
    %3426 = vmatpush.msra.mxu0 0.0
    %3427 = vmatpush.msra.mxu0 0.0
    %3428 = vmatpush.msra.mxu0 0.0
    %3429 = vmatpush.msra.mxu0 0.0
    %3430 = vmatpush.msra.mxu0 0.0
    %3431 = vmatpush.msra.mxu0 %v1854
    %3432 = vmatpush.msra.mxu0 %v1853
    %3433 = vmatpush.msra.mxu0 %v1852
    %3434 = vmatpush.msra.mxu0 %v1851
    %3435 = vmatmul.f32.gmra.mxu0 %v3417
    %v3436 = vpop.f32.mrf.mxu0
    %v3437 = vadd.f32 0.0, %v3436
    %3438 = vdwg.mxu0
    %v3439 = vadd.f32 %v3413, %v3437
    %v3440 = vxor.u32 %v3439, 2147483648
    %v3441 = vmul.f32 %v3440, 1.442695
    %v3442 = vpow.pop %v3441
    %v3443 = vadd.f32 %v3442, 1.0
    %v3444 = vrcp.pop %v3443
    %v3445 = vmul.f32 %v3443, %v3444
    %v3446 = vsub.f32 1.0, %v3445
    %v3447 = vmul.f32 %v3444, %v3446
    %v3448 = vadd.f32 %v3444, %v3447
    %vm3449 = vweird.f32 %v3443
    %vm3450 = vweird.f32 %v3444
    %vm3451 = vmor %vm3449, %vm3450
    %v3452 = vsel %vm3451, %v3444, %v3448
    %v3453 = vand.u32 2147483647, %v3443
    %vm3454 = vcmp.eq.f32.partialorder %v3453, 8.507059e+37
    %v3455 = vand.u32 %v3443, 2147483648
    %v3456 = vor.u32 1.1754944e-38, %v3455
    %v3457 = vsel %vm3454, %v3456, %v3452
    %v3458 = vmul.f32 1.0, %v3457
    %v3459 = vadd.f32 %v3437, %v2140
    %3461 = vrot.lane.b32.xlu0 %v3459, 96
    %v3462 = vpop.permute.xlu0 %3461
    %v3464 = vmul.f32 %v3458, %v3462
    %3466 = vrot.lane.b32.xlu0 %v3464, 32
    %v3467 = vpop.permute.xlu0 %3466
    %v3469 = vadd.f32 %v3413, %v3467
    %v3470 = vtanh.pop %v3469
    %3472 = vset.pattern.permute.xlu0 0
    %3473 = vperm.xlu0 %3472, %v2938
    %v3474 = vpop.permute.xlu0 %3473
    %v3476 = vmul.f32 %v3474, %v3470
    %v3477 = vsub.f32 1.0, %v2938
    %3479 = vset.pattern.permute.xlu0 0
    %3480 = vperm.xlu0 %3479, %v3477
    %v3481 = vpop.permute.xlu0 %3480
    %v3483 = vmul.f32 %v3481, %v3412
    %v3484 = vadd.f32 %v3476, %v3483
    %3486 = vrot.lane.b32.xlu0 %v3484, 96
    %v3487 = vpop.permute.xlu0 %3486
    %v3488 = vsel %vm212, %v3487, 0
    %3490 = vmatpush.msra.mxu0 0.0
    %3491 = vmatpush.msra.mxu0 0.0
    %3492 = vmatpush.msra.mxu0 0.0
    %3493 = vmatpush.msra.mxu0 0.0
    %3494 = vmatpush.msra.mxu0 0.0
    %3495 = vmatpush.msra.mxu0 0.0
    %3496 = vmatpush.msra.mxu0 0.0
    %3497 = vmatpush.msra.mxu0 0.0
    %3498 = vmatpush.msra.mxu0 0.0
    %3499 = vmatpush.msra.mxu0 0.0
    %3500 = vmatpush.msra.mxu0 0.0
    %3501 = vmatpush.msra.mxu0 0.0
    %3502 = vmatpush.msra.mxu0 %v1863
    %3503 = vmatpush.msra.mxu0 %v1862
    %3504 = vmatpush.msra.mxu0 %v1861
    %3505 = vmatpush.msra.mxu0 %v1860
    %3506 = vmatmul.f32.gmra.mxu0 %v3488
    %v3507 = vpop.f32.mrf.mxu0
    %v3508 = vadd.f32 0.0, %v3507
    %3509 = vdwg.mxu0
    %v3511 = vsel %vm212, %v2718, 0
    %3513 = vmatpush.msra.mxu0 0.0
    %3514 = vmatpush.msra.mxu0 0.0
    %3515 = vmatpush.msra.mxu0 0.0
    %3516 = vmatpush.msra.mxu0 0.0
    %3517 = vmatpush.msra.mxu0 0.0
    %3518 = vmatpush.msra.mxu0 0.0
    %3519 = vmatpush.msra.mxu0 0.0
    %3520 = vmatpush.msra.mxu0 0.0
    %3521 = vmatpush.msra.mxu0 0.0
    %3522 = vmatpush.msra.mxu0 0.0
    %3523 = vmatpush.msra.mxu0 0.0
    %3524 = vmatpush.msra.mxu0 0.0
    %3525 = vmatpush.msra.mxu0 %v1859
    %3526 = vmatpush.msra.mxu0 %v1858
    %3527 = vmatpush.msra.mxu0 %v1857
    %3528 = vmatpush.msra.mxu0 %v1856
    %3529 = vmatmul.f32.gmra.mxu0 %v3511
    %v3530 = vpop.f32.mrf.mxu0
    %v3531 = vadd.f32 %v3508, %v3530
    %3532 = vdwg.mxu0
    %v3533 = vadd.f32 %v3531, %v1848
    %v3534 = vmax.f32 %v3533, 0.0
    %v3535 = vld [vmem:[#allocation5] sm:$0x3]
    %v3536 = vmul.f32 %v3535, %v3534
    %3537 = vst.msk [vmem:[#allocation7] sm:$0x3] %vm814, %v3536
    %v3538 = vsub.f32 %v3535, %v3534
    %v3539 = vand.u32 2147483647, %v3538
    %3541 = vrot.lane.b32.xlu0 %v3539, 32
    %v3542 = vpop.permute.xlu0 %3541
    %3544 = vst.msk [vmem:[#allocation7] sm:$0x3] %vm1705, %v3542
    %v3545 = vld [vmem:[#allocation5 + $0x2] sm:$0x3]
    %v3546 = vmul.f32 %v3545, %v3534
    %3547 = vst.msk [vmem:[#allocation7 + $0x2] sm:$0x3] %vm814, %v3546
    %v3548 = vsub.f32 %v3545, %v3534
    %v3549 = vand.u32 2147483647, %v3548
    %3551 = vrot.lane.b32.xlu0 %v3549, 32
    %v3552 = vpop.permute.xlu0 %3551
    %3554 = vst.msk [vmem:[#allocation7 + $0x2] sm:$0x3] %vm1705, %v3552
    %v3555 = vld [vmem:[#allocation5 + $0x4] sm:$0x3]
    %v3556 = vmul.f32 %v3555, %v3534
    %3557 = vst.msk [vmem:[#allocation7 + $0x4] sm:$0x3] %vm814, %v3556
    %v3558 = vsub.f32 %v3555, %v3534
    %v3559 = vand.u32 2147483647, %v3558
    %3561 = vrot.lane.b32.xlu0 %v3559, 32
    %v3562 = vpop.permute.xlu0 %3561
    %3564 = vst.msk [vmem:[#allocation7 + $0x4] sm:$0x3] %vm1705, %v3562
    %v3565 = vld [vmem:[#allocation5 + $0x6] sm:$0x3]
    %v3566 = vmul.f32 %v3565, %v3534
    %3567 = vst.msk [vmem:[#allocation7 + $0x6] sm:$0x3] %vm814, %v3566
    %v3568 = vsub.f32 %v3565, %v3534
    %v3569 = vand.u32 2147483647, %v3568
    %3571 = vrot.lane.b32.xlu0 %v3569, 32
    %v3572 = vpop.permute.xlu0 %3571
    %3574 = vst.msk [vmem:[#allocation7 + $0x6] sm:$0x3] %vm1705, %v3572
    %v3575 = vld [vmem:[#allocation5 + $0x8] sm:$0x3]
    %v3576 = vmul.f32 %v3575, %v3534
    %3577 = vst.msk [vmem:[#allocation7 + $0x8] sm:$0x3] %vm814, %v3576
    %v3578 = vsub.f32 %v3575, %v3534
    %v3579 = vand.u32 2147483647, %v3578
    %3581 = vrot.lane.b32.xlu0 %v3579, 32
    %v3582 = vpop.permute.xlu0 %3581
    %3584 = vst.msk [vmem:[#allocation7 + $0x8] sm:$0x3] %vm1705, %v3582
    %v3585 = vld [vmem:[#allocation5 + $0xa] sm:$0x3]
    %v3586 = vmul.f32 %v3585, %v3534
    %3587 = vst.msk [vmem:[#allocation7 + $0xa] sm:$0x3] %vm814, %v3586
    %v3588 = vsub.f32 %v3585, %v3534
    %v3589 = vand.u32 2147483647, %v3588
    %3591 = vrot.lane.b32.xlu0 %v3589, 32
    %v3592 = vpop.permute.xlu0 %3591
    %3594 = vst.msk [vmem:[#allocation7 + $0xa] sm:$0x3] %vm1705, %v3592
    %v3595 = vld [vmem:[#allocation5 + $0xc] sm:$0x3]
    %v3596 = vmul.f32 %v3595, %v3534
    %3597 = vst.msk [vmem:[#allocation7 + $0xc] sm:$0x3] %vm814, %v3596
    %v3598 = vsub.f32 %v3595, %v3534
    %v3599 = vand.u32 2147483647, %v3598
    %3601 = vrot.lane.b32.xlu0 %v3599, 32
    %v3602 = vpop.permute.xlu0 %3601
    %3604 = vst.msk [vmem:[#allocation7 + $0xc] sm:$0x3] %vm1705, %v3602
    %v3605 = vld [vmem:[#allocation5 + $0xe] sm:$0x3]
    %v3606 = vmul.f32 %v3605, %v3534
    %3607 = vst.msk [vmem:[#allocation7 + $0xe] sm:$0x3] %vm814, %v3606
    %v3608 = vsub.f32 %v3605, %v3534
    %v3609 = vand.u32 2147483647, %v3608
    %3611 = vrot.lane.b32.xlu0 %v3609, 32
    %v3612 = vpop.permute.xlu0 %3611
    %3614 = vst.msk [vmem:[#allocation7 + $0xe] sm:$0x3] %vm1705, %v3612
    %v3615 = vld [vmem:[#allocation7] sm:$0xff]
    %v3616 = vld [vmem:[#allocation7 + $0x8] sm:$0xff]
    %v3617 = vld [vmem:[%s15] sm:$0xff]
    %v3618 = vld [vmem:[%s15 + $0x8] sm:$0xff]
    %v3619 = vld [vmem:[%s15 + $0x10] sm:$0xff]
    %v3620 = vld [vmem:[%s15 + $0x18] sm:$0xff]
    %v3621 = vld [vmem:[%s15 + $0x20] sm:$0xff]
    %v3622 = vld [vmem:[%s15 + $0x28] sm:$0xff]
    %v3623 = vld [vmem:[%s15 + $0x30] sm:$0xff]
    %v3624 = vld [vmem:[%s15 + $0x38] sm:$0xff]
    %v3626 = vsel %vm1689, %v3615, 0
    %v3629 = vsel %vm1689, %v3616, 0
    %3631 = vmatpush.msra.mxu0 0.0
    %3632 = vmatpush.msra.mxu0 0.0
    %3633 = vmatpush.msra.mxu0 0.0
    %3634 = vmatpush.msra.mxu0 0.0
    %3635 = vmatpush.msra.mxu0 0.0
    %3636 = vmatpush.msra.mxu0 0.0
    %3637 = vmatpush.msra.mxu0 0.0
    %3638 = vmatpush.msra.mxu0 0.0
    %3639 = vmatpush.msra.mxu0 %v3624
    %3640 = vmatpush.msra.mxu0 %v3623
    %3641 = vmatpush.msra.mxu0 %v3622
    %3642 = vmatpush.msra.mxu0 %v3621
    %3643 = vmatpush.msra.mxu0 %v3620
    %3644 = vmatpush.msra.mxu0 %v3619
    %3645 = vmatpush.msra.mxu0 %v3618
    %3646 = vmatpush.msra.mxu0 %v3617
    %3647 = vmatmul.f32.gmra.mxu0 %v3626
    %v3648 = vpop.f32.mrf.mxu0
    %v3649 = vadd.f32 0.0, %v3648
    %3650 = vmatmul.f32.gmra.mxu0 %v3629
    %v3651 = vpop.f32.mrf.mxu0
    %v3652 = vadd.f32 0.0, %v3651
    %3653 = vdwg.mxu0
    %v3654 = vadd.f32 %v1815, %v3649
    %v3655 = vadd.f32 %v1818, %v3652
    %v3656 = vtanh.pop %v3654
    %v3657 = vtanh.pop %v3655
    %v3658 = vmul.f32 %v3656, %v1988
    %v3659 = vmul.f32 %v3657, %v1988
    %v3660 = vsel %vm212, %v3658, 0.0
    %3661 = vadd.xlane.f32.xlu0 %v3660
    %v3662 = vpop.xlane.xlu0 %3661
    %v3663 = vsel %vm212, %v3659, 0.0
    %3664 = vadd.xlane.f32.xlu0 %v3663
    %v3665 = vpop.xlane.xlu0 %3664
    %3666 = vst.msk [vmem:[#allocation8] sm:$0xff] %vm1998, %v3662
    %3667 = vst.msk [vmem:[#allocation8 + $0x8] sm:$0xff] %vm1998, %v3665
    %v3668 = vld [vmem:[#allocation8] sm:$0x3]
    %3669 = vst.msk [vmem:[#allocation9] sm:$0x3] %vm2002, %v3668
    %v3670 = vld [vmem:[#allocation8 + $0x2] sm:$0x3]
    %3671 = vst.msk [vmem:[%s2005] sm:$0x3] %vm2002, %v3670
    %v3672 = vld [vmem:[#allocation8 + $0x4] sm:$0x3]
    %3673 = vst.msk [vmem:[%s2008] sm:$0x3] %vm2002, %v3672
    %v3674 = vld [vmem:[#allocation8 + $0x6] sm:$0x3]
    %3675 = vst.msk [vmem:[%s2011] sm:$0x3] %vm2002, %v3674
    %v3676 = vld [vmem:[#allocation8 + $0x8] sm:$0x3]
    %3677 = vst.msk [vmem:[%s2014] sm:$0x3] %vm2002, %v3676
    %v3678 = vld [vmem:[#allocation8 + $0xa] sm:$0x3]
    %3679 = vst.msk [vmem:[%s2017] sm:$0x3] %vm2002, %v3678
    %v3680 = vld [vmem:[#allocation8 + $0xc] sm:$0x3]
    %3681 = vst.msk [vmem:[%s2020] sm:$0x3] %vm2002, %v3680
    %v3682 = vld [vmem:[#allocation8 + $0xe] sm:$0x3]
    %3683 = vst.msk [vmem:[%s2023] sm:$0x3] %vm2002, %v3682
    %v3684 = vld [vmem:[#allocation9] sm:$0x3]
    %v3685 = vld [vmem:[#allocation9 + $0x2] sm:$0x3]
    %v3686 = vld [vmem:[#allocation9 + $0x4] sm:$0x3]
    %v3687 = vld [vmem:[#allocation9 + $0x6] sm:$0x3]
    %v3688 = vld [vmem:[#allocation9 + $0x8] sm:$0x3]
    %v3689 = vld [vmem:[#allocation9 + $0xa] sm:$0x3]
    %v3690 = vld [vmem:[#allocation9 + $0xc] sm:$0x3]
    %v3691 = vld [vmem:[#allocation9 + $0xe] sm:$0x3]
    %v3692 = vsel %vm2002, %v3684, -inf
    %v3693 = vsel %vm2002, %v3685, -inf
    %v3694 = vsel %vm2002, %v3686, -inf
    %v3695 = vsel %vm2002, %v3687, -inf
    %v3696 = vsel %vm2002, %v3688, -inf
    %v3697 = vmax.f32 %v3692, %v3696
    %v3698 = vsel %vm2002, %v3689, -inf
    %v3699 = vmax.f32 %v3693, %v3698
    %v3700 = vsel %vm2002, %v3690, -inf
    %v3701 = vmax.f32 %v3694, %v3700
    %v3702 = vsel %vm2002, %v3691, -inf
    %v3703 = vmax.f32 %v3695, %v3702
    %v3704 = vmax.f32 %v3697, %v3699
    %v3705 = vmax.f32 %v3701, %v3703
    %v3706 = vmax.f32 %v3704, %v3705
    %v3707 = vsub.f32 %v3684, %v3706
    %v3708 = vsub.f32 %v3685, %v3706
    %v3709 = vsub.f32 %v3686, %v3706
    %v3710 = vsub.f32 %v3687, %v3706
    %v3711 = vsub.f32 %v3688, %v3706
    %v3712 = vsub.f32 %v3689, %v3706
    %v3713 = vsub.f32 %v3690, %v3706
    %v3714 = vsub.f32 %v3691, %v3706
    %v3715 = vmul.f32 %v3707, 1.442695
    %v3716 = vpow.pop %v3715
    %v3717 = vmul.f32 %v3708, 1.442695
    %v3718 = vpow.pop %v3717
    %v3719 = vmul.f32 %v3709, 1.442695
    %v3720 = vpow.pop %v3719
    %v3721 = vmul.f32 %v3710, 1.442695
    %v3722 = vpow.pop %v3721
    %v3723 = vmul.f32 %v3711, 1.442695
    %v3724 = vpow.pop %v3723
    %v3725 = vmul.f32 %v3712, 1.442695
    %v3726 = vpow.pop %v3725
    %v3727 = vmul.f32 %v3713, 1.442695
    %v3728 = vpow.pop %v3727
    %v3729 = vmul.f32 %v3714, 1.442695
    %v3730 = vpow.pop %v3729
    %v3731 = vsel %vm2002, %v3716, 0.0
    %v3732 = vsel %vm2002, %v3718, 0.0
    %v3733 = vadd.f32 %v3731, %v3732
    %v3734 = vsel %vm2002, %v3720, 0.0
    %v3735 = vadd.f32 %v3733, %v3734
    %v3736 = vsel %vm2002, %v3722, 0.0
    %v3737 = vadd.f32 %v3735, %v3736
    %v3738 = vsel %vm2002, %v3724, 0.0
    %v3739 = vadd.f32 %v3737, %v3738
    %v3740 = vsel %vm2002, %v3726, 0.0
    %v3741 = vadd.f32 %v3739, %v3740
    %v3742 = vsel %vm2002, %v3728, 0.0
    %v3743 = vadd.f32 %v3741, %v3742
    %v3744 = vsel %vm2002, %v3730, 0.0
    %v3745 = vadd.f32 %v3743, %v3744
    %v3746 = vrcp.pop %v3745
    %v3747 = vmul.f32 %v3716, %v3746
    %v3748 = vmul.f32 %v3718, %v3746
    %v3749 = vmul.f32 %v3720, %v3746
    %v3750 = vmul.f32 %v3722, %v3746
    %v3751 = vmul.f32 %v3724, %v3746
    %v3752 = vmul.f32 %v3726, %v3746
    %v3753 = vmul.f32 %v3728, %v3746
    %v3754 = vmul.f32 %v3730, %v3746
    %v3755 = vld [vmem:[#allocation6] sm:$0x3]
    %v3756 = vadd.f32 %v3755, %v2115
    %v3757 = vxor.u32 %v3756, 2147483648
    %v3758 = vmul.f32 %v3757, 1.442695
    %v3759 = vpow.pop %v3758
    %v3760 = vadd.f32 %v3759, 1.0
    %v3761 = vrcp.pop %v3760
    %v3762 = vmul.f32 %v3760, %v3761
    %v3763 = vsub.f32 1.0, %v3762
    %v3764 = vmul.f32 %v3761, %v3763
    %v3765 = vadd.f32 %v3761, %v3764
    %vm3766 = vweird.f32 %v3760
    %vm3767 = vweird.f32 %v3761
    %vm3768 = vmor %vm3766, %vm3767
    %v3769 = vsel %vm3768, %v3761, %v3765
    %v3770 = vand.u32 2147483647, %v3760
    %vm3771 = vcmp.eq.f32.partialorder %v3770, 8.507059e+37
    %v3772 = vand.u32 %v3760, 2147483648
    %v3773 = vor.u32 1.1754944e-38, %v3772
    %v3774 = vsel %vm3771, %v3773, %v3769
    %v3775 = vmul.f32 1.0, %v3774
    %v3776 = vmul.f32 %v3775, %v2145
    %3778 = vrot.lane.b32.xlu0 %v3776, 32
    %v3779 = vpop.permute.xlu0 %3778
    %v3781 = vadd.f32 %v3755, %v3779
    %v3782 = vtanh.pop %v3781
    %3784 = vset.pattern.permute.xlu0 0
    %3785 = vperm.xlu0 %3784, %v3747
    %v3786 = vpop.permute.xlu0 %3785
    %v3788 = vmul.f32 %v3786, %v3782
    %v3789 = vsub.f32 1.0, %v3747
    %3791 = vset.pattern.permute.xlu0 0
    %3792 = vperm.xlu0 %3791, %v3789
    %v3793 = vpop.permute.xlu0 %3792
    %v3795 = vmul.f32 %v3793, 0.0
    %v3796 = vadd.f32 %v3788, %v3795
    %v3797 = vld [vmem:[#allocation6 + $0x2] sm:$0x3]
    %3799 = vrot.lane.b32.xlu0 %v3796, 96
    %v3800 = vpop.permute.xlu0 %3799
    %v3801 = vsel %vm212, %v3800, 0
    %3803 = vmatpush.msra.mxu0 0.0
    %3804 = vmatpush.msra.mxu0 0.0
    %3805 = vmatpush.msra.mxu0 0.0
    %3806 = vmatpush.msra.mxu0 0.0
    %3807 = vmatpush.msra.mxu0 0.0
    %3808 = vmatpush.msra.mxu0 0.0
    %3809 = vmatpush.msra.mxu0 0.0
    %3810 = vmatpush.msra.mxu0 0.0
    %3811 = vmatpush.msra.mxu0 0.0
    %3812 = vmatpush.msra.mxu0 0.0
    %3813 = vmatpush.msra.mxu0 0.0
    %3814 = vmatpush.msra.mxu0 0.0
    %3815 = vmatpush.msra.mxu0 %v1854
    %3816 = vmatpush.msra.mxu0 %v1853
    %3817 = vmatpush.msra.mxu0 %v1852
    %3818 = vmatpush.msra.mxu0 %v1851
    %3819 = vmatmul.f32.gmra.mxu0 %v3801
    %v3820 = vpop.f32.mrf.mxu0
    %v3821 = vadd.f32 0.0, %v3820
    %3822 = vdwg.mxu0
    %v3823 = vadd.f32 %v3797, %v3821
    %v3824 = vxor.u32 %v3823, 2147483648
    %v3825 = vmul.f32 %v3824, 1.442695
    %v3826 = vpow.pop %v3825
    %v3827 = vadd.f32 %v3826, 1.0
    %v3828 = vrcp.pop %v3827
    %v3829 = vmul.f32 %v3827, %v3828
    %v3830 = vsub.f32 1.0, %v3829
    %v3831 = vmul.f32 %v3828, %v3830
    %v3832 = vadd.f32 %v3828, %v3831
    %vm3833 = vweird.f32 %v3827
    %vm3834 = vweird.f32 %v3828
    %vm3835 = vmor %vm3833, %vm3834
    %v3836 = vsel %vm3835, %v3828, %v3832
    %v3837 = vand.u32 2147483647, %v3827
    %vm3838 = vcmp.eq.f32.partialorder %v3837, 8.507059e+37
    %v3839 = vand.u32 %v3827, 2147483648
    %v3840 = vor.u32 1.1754944e-38, %v3839
    %v3841 = vsel %vm3838, %v3840, %v3836
    %v3842 = vmul.f32 1.0, %v3841
    %v3843 = vadd.f32 %v3821, %v2140
    %3845 = vrot.lane.b32.xlu0 %v3843, 96
    %v3846 = vpop.permute.xlu0 %3845
    %v3848 = vmul.f32 %v3842, %v3846
    %3850 = vrot.lane.b32.xlu0 %v3848, 32
    %v3851 = vpop.permute.xlu0 %3850
    %v3853 = vadd.f32 %v3797, %v3851
    %v3854 = vtanh.pop %v3853
    %3856 = vset.pattern.permute.xlu0 0
    %3857 = vperm.xlu0 %3856, %v3748
    %v3858 = vpop.permute.xlu0 %3857
    %v3860 = vmul.f32 %v3858, %v3854
    %v3861 = vsub.f32 1.0, %v3748
    %3863 = vset.pattern.permute.xlu0 0
    %3864 = vperm.xlu0 %3863, %v3861
    %v3865 = vpop.permute.xlu0 %3864
    %v3867 = vmul.f32 %v3865, %v3796
    %v3868 = vadd.f32 %v3860, %v3867
    %v3869 = vld [vmem:[#allocation6 + $0x4] sm:$0x3]
    %3871 = vrot.lane.b32.xlu0 %v3868, 96
    %v3872 = vpop.permute.xlu0 %3871
    %v3873 = vsel %vm212, %v3872, 0
    %3875 = vmatpush.msra.mxu0 0.0
    %3876 = vmatpush.msra.mxu0 0.0
    %3877 = vmatpush.msra.mxu0 0.0
    %3878 = vmatpush.msra.mxu0 0.0
    %3879 = vmatpush.msra.mxu0 0.0
    %3880 = vmatpush.msra.mxu0 0.0
    %3881 = vmatpush.msra.mxu0 0.0
    %3882 = vmatpush.msra.mxu0 0.0
    %3883 = vmatpush.msra.mxu0 0.0
    %3884 = vmatpush.msra.mxu0 0.0
    %3885 = vmatpush.msra.mxu0 0.0
    %3886 = vmatpush.msra.mxu0 0.0
    %3887 = vmatpush.msra.mxu0 %v1854
    %3888 = vmatpush.msra.mxu0 %v1853
    %3889 = vmatpush.msra.mxu0 %v1852
    %3890 = vmatpush.msra.mxu0 %v1851
    %3891 = vmatmul.f32.gmra.mxu0 %v3873
    %v3892 = vpop.f32.mrf.mxu0
    %v3893 = vadd.f32 0.0, %v3892
    %3894 = vdwg.mxu0
    %v3895 = vadd.f32 %v3869, %v3893
    %v3896 = vxor.u32 %v3895, 2147483648
    %v3897 = vmul.f32 %v3896, 1.442695
    %v3898 = vpow.pop %v3897
    %v3899 = vadd.f32 %v3898, 1.0
    %v3900 = vrcp.pop %v3899
    %v3901 = vmul.f32 %v3899, %v3900
    %v3902 = vsub.f32 1.0, %v3901
    %v3903 = vmul.f32 %v3900, %v3902
    %v3904 = vadd.f32 %v3900, %v3903
    %vm3905 = vweird.f32 %v3899
    %vm3906 = vweird.f32 %v3900
    %vm3907 = vmor %vm3905, %vm3906
    %v3908 = vsel %vm3907, %v3900, %v3904
    %v3909 = vand.u32 2147483647, %v3899
    %vm3910 = vcmp.eq.f32.partialorder %v3909, 8.507059e+37
    %v3911 = vand.u32 %v3899, 2147483648
    %v3912 = vor.u32 1.1754944e-38, %v3911
    %v3913 = vsel %vm3910, %v3912, %v3908
    %v3914 = vmul.f32 1.0, %v3913
    %v3915 = vadd.f32 %v3893, %v2140
    %3917 = vrot.lane.b32.xlu0 %v3915, 96
    %v3918 = vpop.permute.xlu0 %3917
    %v3920 = vmul.f32 %v3914, %v3918
    %3922 = vrot.lane.b32.xlu0 %v3920, 32
    %v3923 = vpop.permute.xlu0 %3922
    %v3925 = vadd.f32 %v3869, %v3923
    %v3926 = vtanh.pop %v3925
    %3928 = vset.pattern.permute.xlu0 0
    %3929 = vperm.xlu0 %3928, %v3749
    %v3930 = vpop.permute.xlu0 %3929
    %v3932 = vmul.f32 %v3930, %v3926
    %v3933 = vsub.f32 1.0, %v3749
    %3935 = vset.pattern.permute.xlu0 0
    %3936 = vperm.xlu0 %3935, %v3933
    %v3937 = vpop.permute.xlu0 %3936
    %v3939 = vmul.f32 %v3937, %v3868
    %v3940 = vadd.f32 %v3932, %v3939
    %v3941 = vld [vmem:[#allocation6 + $0x6] sm:$0x3]
    %3943 = vrot.lane.b32.xlu0 %v3940, 96
    %v3944 = vpop.permute.xlu0 %3943
    %v3945 = vsel %vm212, %v3944, 0
    %3947 = vmatpush.msra.mxu0 0.0
    %3948 = vmatpush.msra.mxu0 0.0
    %3949 = vmatpush.msra.mxu0 0.0
    %3950 = vmatpush.msra.mxu0 0.0
    %3951 = vmatpush.msra.mxu0 0.0
    %3952 = vmatpush.msra.mxu0 0.0
    %3953 = vmatpush.msra.mxu0 0.0
    %3954 = vmatpush.msra.mxu0 0.0
    %3955 = vmatpush.msra.mxu0 0.0
    %3956 = vmatpush.msra.mxu0 0.0
    %3957 = vmatpush.msra.mxu0 0.0
    %3958 = vmatpush.msra.mxu0 0.0
    %3959 = vmatpush.msra.mxu0 %v1854
    %3960 = vmatpush.msra.mxu0 %v1853
    %3961 = vmatpush.msra.mxu0 %v1852
    %3962 = vmatpush.msra.mxu0 %v1851
    %3963 = vmatmul.f32.gmra.mxu0 %v3945
    %v3964 = vpop.f32.mrf.mxu0
    %v3965 = vadd.f32 0.0, %v3964
    %3966 = vdwg.mxu0
    %v3967 = vadd.f32 %v3941, %v3965
    %v3968 = vxor.u32 %v3967, 2147483648
    %v3969 = vmul.f32 %v3968, 1.442695
    %v3970 = vpow.pop %v3969
    %v3971 = vadd.f32 %v3970, 1.0
    %v3972 = vrcp.pop %v3971
    %v3973 = vmul.f32 %v3971, %v3972
    %v3974 = vsub.f32 1.0, %v3973
    %v3975 = vmul.f32 %v3972, %v3974
    %v3976 = vadd.f32 %v3972, %v3975
    %vm3977 = vweird.f32 %v3971
    %vm3978 = vweird.f32 %v3972
    %vm3979 = vmor %vm3977, %vm3978
    %v3980 = vsel %vm3979, %v3972, %v3976
    %v3981 = vand.u32 2147483647, %v3971
    %vm3982 = vcmp.eq.f32.partialorder %v3981, 8.507059e+37
    %v3983 = vand.u32 %v3971, 2147483648
    %v3984 = vor.u32 1.1754944e-38, %v3983
    %v3985 = vsel %vm3982, %v3984, %v3980
    %v3986 = vmul.f32 1.0, %v3985
    %v3987 = vadd.f32 %v3965, %v2140
    %3989 = vrot.lane.b32.xlu0 %v3987, 96
    %v3990 = vpop.permute.xlu0 %3989
    %v3992 = vmul.f32 %v3986, %v3990
    %3994 = vrot.lane.b32.xlu0 %v3992, 32
    %v3995 = vpop.permute.xlu0 %3994
    %v3997 = vadd.f32 %v3941, %v3995
    %v3998 = vtanh.pop %v3997
    %4000 = vset.pattern.permute.xlu0 0
    %4001 = vperm.xlu0 %4000, %v3750
    %v4002 = vpop.permute.xlu0 %4001
    %v4004 = vmul.f32 %v4002, %v3998
    %v4005 = vsub.f32 1.0, %v3750
    %4007 = vset.pattern.permute.xlu0 0
    %4008 = vperm.xlu0 %4007, %v4005
    %v4009 = vpop.permute.xlu0 %4008
    %v4011 = vmul.f32 %v4009, %v3940
    %v4012 = vadd.f32 %v4004, %v4011
    %v4013 = vld [vmem:[#allocation6 + $0x8] sm:$0x3]
    %4015 = vrot.lane.b32.xlu0 %v4012, 96
    %v4016 = vpop.permute.xlu0 %4015
    %v4017 = vsel %vm212, %v4016, 0
    %4019 = vmatpush.msra.mxu0 0.0
    %4020 = vmatpush.msra.mxu0 0.0
    %4021 = vmatpush.msra.mxu0 0.0
    %4022 = vmatpush.msra.mxu0 0.0
    %4023 = vmatpush.msra.mxu0 0.0
    %4024 = vmatpush.msra.mxu0 0.0
    %4025 = vmatpush.msra.mxu0 0.0
    %4026 = vmatpush.msra.mxu0 0.0
    %4027 = vmatpush.msra.mxu0 0.0
    %4028 = vmatpush.msra.mxu0 0.0
    %4029 = vmatpush.msra.mxu0 0.0
    %4030 = vmatpush.msra.mxu0 0.0
    %4031 = vmatpush.msra.mxu0 %v1854
    %4032 = vmatpush.msra.mxu0 %v1853
    %4033 = vmatpush.msra.mxu0 %v1852
    %4034 = vmatpush.msra.mxu0 %v1851
    %4035 = vmatmul.f32.gmra.mxu0 %v4017
    %v4036 = vpop.f32.mrf.mxu0
    %v4037 = vadd.f32 0.0, %v4036
    %4038 = vdwg.mxu0
    %v4039 = vadd.f32 %v4013, %v4037
    %v4040 = vxor.u32 %v4039, 2147483648
    %v4041 = vmul.f32 %v4040, 1.442695
    %v4042 = vpow.pop %v4041
    %v4043 = vadd.f32 %v4042, 1.0
    %v4044 = vrcp.pop %v4043
    %v4045 = vmul.f32 %v4043, %v4044
    %v4046 = vsub.f32 1.0, %v4045
    %v4047 = vmul.f32 %v4044, %v4046
    %v4048 = vadd.f32 %v4044, %v4047
    %vm4049 = vweird.f32 %v4043
    %vm4050 = vweird.f32 %v4044
    %vm4051 = vmor %vm4049, %vm4050
    %v4052 = vsel %vm4051, %v4044, %v4048
    %v4053 = vand.u32 2147483647, %v4043
    %vm4054 = vcmp.eq.f32.partialorder %v4053, 8.507059e+37
    %v4055 = vand.u32 %v4043, 2147483648
    %v4056 = vor.u32 1.1754944e-38, %v4055
    %v4057 = vsel %vm4054, %v4056, %v4052
    %v4058 = vmul.f32 1.0, %v4057
    %v4059 = vadd.f32 %v4037, %v2140
    %4061 = vrot.lane.b32.xlu0 %v4059, 96
    %v4062 = vpop.permute.xlu0 %4061
    %v4064 = vmul.f32 %v4058, %v4062
    %4066 = vrot.lane.b32.xlu0 %v4064, 32
    %v4067 = vpop.permute.xlu0 %4066
    %v4069 = vadd.f32 %v4013, %v4067
    %v4070 = vtanh.pop %v4069
    %4072 = vset.pattern.permute.xlu0 0
    %4073 = vperm.xlu0 %4072, %v3751
    %v4074 = vpop.permute.xlu0 %4073
    %v4076 = vmul.f32 %v4074, %v4070
    %v4077 = vsub.f32 1.0, %v3751
    %4079 = vset.pattern.permute.xlu0 0
    %4080 = vperm.xlu0 %4079, %v4077
    %v4081 = vpop.permute.xlu0 %4080
    %v4083 = vmul.f32 %v4081, %v4012
    %v4084 = vadd.f32 %v4076, %v4083
    %v4085 = vld [vmem:[#allocation6 + $0xa] sm:$0x3]
    %4087 = vrot.lane.b32.xlu0 %v4084, 96
    %v4088 = vpop.permute.xlu0 %4087
    %v4089 = vsel %vm212, %v4088, 0
    %4091 = vmatpush.msra.mxu0 0.0
    %4092 = vmatpush.msra.mxu0 0.0
    %4093 = vmatpush.msra.mxu0 0.0
    %4094 = vmatpush.msra.mxu0 0.0
    %4095 = vmatpush.msra.mxu0 0.0
    %4096 = vmatpush.msra.mxu0 0.0
    %4097 = vmatpush.msra.mxu0 0.0
    %4098 = vmatpush.msra.mxu0 0.0
    %4099 = vmatpush.msra.mxu0 0.0
    %4100 = vmatpush.msra.mxu0 0.0
    %4101 = vmatpush.msra.mxu0 0.0
    %4102 = vmatpush.msra.mxu0 0.0
    %4103 = vmatpush.msra.mxu0 %v1854
    %4104 = vmatpush.msra.mxu0 %v1853
    %4105 = vmatpush.msra.mxu0 %v1852
    %4106 = vmatpush.msra.mxu0 %v1851
    %4107 = vmatmul.f32.gmra.mxu0 %v4089
    %v4108 = vpop.f32.mrf.mxu0
    %v4109 = vadd.f32 0.0, %v4108
    %4110 = vdwg.mxu0
    %v4111 = vadd.f32 %v4085, %v4109
    %v4112 = vxor.u32 %v4111, 2147483648
    %v4113 = vmul.f32 %v4112, 1.442695
    %v4114 = vpow.pop %v4113
    %v4115 = vadd.f32 %v4114, 1.0
    %v4116 = vrcp.pop %v4115
    %v4117 = vmul.f32 %v4115, %v4116
    %v4118 = vsub.f32 1.0, %v4117
    %v4119 = vmul.f32 %v4116, %v4118
    %v4120 = vadd.f32 %v4116, %v4119
    %vm4121 = vweird.f32 %v4115
    %vm4122 = vweird.f32 %v4116
    %vm4123 = vmor %vm4121, %vm4122
    %v4124 = vsel %vm4123, %v4116, %v4120
    %v4125 = vand.u32 2147483647, %v4115
    %vm4126 = vcmp.eq.f32.partialorder %v4125, 8.507059e+37
    %v4127 = vand.u32 %v4115, 2147483648
    %v4128 = vor.u32 1.1754944e-38, %v4127
    %v4129 = vsel %vm4126, %v4128, %v4124
    %v4130 = vmul.f32 1.0, %v4129
    %v4131 = vadd.f32 %v4109, %v2140
    %4133 = vrot.lane.b32.xlu0 %v4131, 96
    %v4134 = vpop.permute.xlu0 %4133
    %v4136 = vmul.f32 %v4130, %v4134
    %4138 = vrot.lane.b32.xlu0 %v4136, 32
    %v4139 = vpop.permute.xlu0 %4138
    %v4141 = vadd.f32 %v4085, %v4139
    %v4142 = vtanh.pop %v4141
    %4144 = vset.pattern.permute.xlu0 0
    %4145 = vperm.xlu0 %4144, %v3752
    %v4146 = vpop.permute.xlu0 %4145
    %v4148 = vmul.f32 %v4146, %v4142
    %v4149 = vsub.f32 1.0, %v3752
    %4151 = vset.pattern.permute.xlu0 0
    %4152 = vperm.xlu0 %4151, %v4149
    %v4153 = vpop.permute.xlu0 %4152
    %v4155 = vmul.f32 %v4153, %v4084
    %v4156 = vadd.f32 %v4148, %v4155
    %v4157 = vld [vmem:[#allocation6 + $0xc] sm:$0x3]
    %4159 = vrot.lane.b32.xlu0 %v4156, 96
    %v4160 = vpop.permute.xlu0 %4159
    %v4161 = vsel %vm212, %v4160, 0
    %4163 = vmatpush.msra.mxu0 0.0
    %4164 = vmatpush.msra.mxu0 0.0
    %4165 = vmatpush.msra.mxu0 0.0
    %4166 = vmatpush.msra.mxu0 0.0
    %4167 = vmatpush.msra.mxu0 0.0
    %4168 = vmatpush.msra.mxu0 0.0
    %4169 = vmatpush.msra.mxu0 0.0
    %4170 = vmatpush.msra.mxu0 0.0
    %4171 = vmatpush.msra.mxu0 0.0
    %4172 = vmatpush.msra.mxu0 0.0
    %4173 = vmatpush.msra.mxu0 0.0
    %4174 = vmatpush.msra.mxu0 0.0
    %4175 = vmatpush.msra.mxu0 %v1854
    %4176 = vmatpush.msra.mxu0 %v1853
    %4177 = vmatpush.msra.mxu0 %v1852
    %4178 = vmatpush.msra.mxu0 %v1851
    %4179 = vmatmul.f32.gmra.mxu0 %v4161
    %v4180 = vpop.f32.mrf.mxu0
    %v4181 = vadd.f32 0.0, %v4180
    %4182 = vdwg.mxu0
    %v4183 = vadd.f32 %v4157, %v4181
    %v4184 = vxor.u32 %v4183, 2147483648
    %v4185 = vmul.f32 %v4184, 1.442695
    %v4186 = vpow.pop %v4185
    %v4187 = vadd.f32 %v4186, 1.0
    %v4188 = vrcp.pop %v4187
    %v4189 = vmul.f32 %v4187, %v4188
    %v4190 = vsub.f32 1.0, %v4189
    %v4191 = vmul.f32 %v4188, %v4190
    %v4192 = vadd.f32 %v4188, %v4191
    %vm4193 = vweird.f32 %v4187
    %vm4194 = vweird.f32 %v4188
    %vm4195 = vmor %vm4193, %vm4194
    %v4196 = vsel %vm4195, %v4188, %v4192
    %v4197 = vand.u32 2147483647, %v4187
    %vm4198 = vcmp.eq.f32.partialorder %v4197, 8.507059e+37
    %v4199 = vand.u32 %v4187, 2147483648
    %v4200 = vor.u32 1.1754944e-38, %v4199
    %v4201 = vsel %vm4198, %v4200, %v4196
    %v4202 = vmul.f32 1.0, %v4201
    %v4203 = vadd.f32 %v4181, %v2140
    %4205 = vrot.lane.b32.xlu0 %v4203, 96
    %v4206 = vpop.permute.xlu0 %4205
    %v4208 = vmul.f32 %v4202, %v4206
    %4210 = vrot.lane.b32.xlu0 %v4208, 32
    %v4211 = vpop.permute.xlu0 %4210
    %v4213 = vadd.f32 %v4157, %v4211
    %v4214 = vtanh.pop %v4213
    %4216 = vset.pattern.permute.xlu0 0
    %4217 = vperm.xlu0 %4216, %v3753
    %v4218 = vpop.permute.xlu0 %4217
    %v4220 = vmul.f32 %v4218, %v4214
    %v4221 = vsub.f32 1.0, %v3753
    %4223 = vset.pattern.permute.xlu0 0
    %4224 = vperm.xlu0 %4223, %v4221
    %v4225 = vpop.permute.xlu0 %4224
    %v4227 = vmul.f32 %v4225, %v4156
    %v4228 = vadd.f32 %v4220, %v4227
    %v4229 = vld [vmem:[#allocation6 + $0xe] sm:$0x3]
    %4231 = vrot.lane.b32.xlu0 %v4228, 96
    %v4232 = vpop.permute.xlu0 %4231
    %v4233 = vsel %vm212, %v4232, 0
    %4235 = vmatpush.msra.mxu0 0.0
    %4236 = vmatpush.msra.mxu0 0.0
    %4237 = vmatpush.msra.mxu0 0.0
    %4238 = vmatpush.msra.mxu0 0.0
    %4239 = vmatpush.msra.mxu0 0.0
    %4240 = vmatpush.msra.mxu0 0.0
    %4241 = vmatpush.msra.mxu0 0.0
    %4242 = vmatpush.msra.mxu0 0.0
    %4243 = vmatpush.msra.mxu0 0.0
    %4244 = vmatpush.msra.mxu0 0.0
    %4245 = vmatpush.msra.mxu0 0.0
    %4246 = vmatpush.msra.mxu0 0.0
    %4247 = vmatpush.msra.mxu0 %v1854
    %4248 = vmatpush.msra.mxu0 %v1853
    %4249 = vmatpush.msra.mxu0 %v1852
    %4250 = vmatpush.msra.mxu0 %v1851
    %4251 = vmatmul.f32.gmra.mxu0 %v4233
    %v4252 = vpop.f32.mrf.mxu0
    %v4253 = vadd.f32 0.0, %v4252
    %4254 = vdwg.mxu0
    %v4255 = vadd.f32 %v4229, %v4253
    %v4256 = vxor.u32 %v4255, 2147483648
    %v4257 = vmul.f32 %v4256, 1.442695
    %v4258 = vpow.pop %v4257
    %v4259 = vadd.f32 %v4258, 1.0
    %v4260 = vrcp.pop %v4259
    %v4261 = vmul.f32 %v4259, %v4260
    %v4262 = vsub.f32 1.0, %v4261
    %v4263 = vmul.f32 %v4260, %v4262
    %v4264 = vadd.f32 %v4260, %v4263
    %vm4265 = vweird.f32 %v4259
    %vm4266 = vweird.f32 %v4260
    %vm4267 = vmor %vm4265, %vm4266
    %v4268 = vsel %vm4267, %v4260, %v4264
    %v4269 = vand.u32 2147483647, %v4259
    %vm4270 = vcmp.eq.f32.partialorder %v4269, 8.507059e+37
    %v4271 = vand.u32 %v4259, 2147483648
    %v4272 = vor.u32 1.1754944e-38, %v4271
    %v4273 = vsel %vm4270, %v4272, %v4268
    %v4274 = vmul.f32 1.0, %v4273
    %v4275 = vadd.f32 %v4253, %v2140
    %4277 = vrot.lane.b32.xlu0 %v4275, 96
    %v4278 = vpop.permute.xlu0 %4277
    %v4280 = vmul.f32 %v4274, %v4278
    %4282 = vrot.lane.b32.xlu0 %v4280, 32
    %v4283 = vpop.permute.xlu0 %4282
    %v4285 = vadd.f32 %v4229, %v4283
    %v4286 = vtanh.pop %v4285
    %4288 = vset.pattern.permute.xlu0 0
    %4289 = vperm.xlu0 %4288, %v3754
    %v4290 = vpop.permute.xlu0 %4289
    %v4292 = vmul.f32 %v4290, %v4286
    %v4293 = vsub.f32 1.0, %v3754
    %4295 = vset.pattern.permute.xlu0 0
    %4296 = vperm.xlu0 %4295, %v4293
    %v4297 = vpop.permute.xlu0 %4296
    %v4299 = vmul.f32 %v4297, %v4228
    %v4300 = vadd.f32 %v4292, %v4299
    %4302 = vrot.lane.b32.xlu0 %v4300, 96
    %v4303 = vpop.permute.xlu0 %4302
    %v4304 = vsel %vm212, %v4303, 0
    %4306 = vmatpush.msra.mxu0 0.0
    %4307 = vmatpush.msra.mxu0 0.0
    %4308 = vmatpush.msra.mxu0 0.0
    %4309 = vmatpush.msra.mxu0 0.0
    %4310 = vmatpush.msra.mxu0 0.0
    %4311 = vmatpush.msra.mxu0 0.0
    %4312 = vmatpush.msra.mxu0 0.0
    %4313 = vmatpush.msra.mxu0 0.0
    %4314 = vmatpush.msra.mxu0 0.0
    %4315 = vmatpush.msra.mxu0 0.0
    %4316 = vmatpush.msra.mxu0 0.0
    %4317 = vmatpush.msra.mxu0 0.0
    %4318 = vmatpush.msra.mxu0 %v1863
    %4319 = vmatpush.msra.mxu0 %v1862
    %4320 = vmatpush.msra.mxu0 %v1861
    %4321 = vmatpush.msra.mxu0 %v1860
    %4322 = vmatmul.f32.gmra.mxu0 %v4304
    %v4323 = vpop.f32.mrf.mxu0
    %v4324 = vadd.f32 0.0, %v4323
    %4325 = vdwg.mxu0
    %v4327 = vsel %vm212, %v3534, 0
    %4329 = vmatpush.msra.mxu0 0.0
    %4330 = vmatpush.msra.mxu0 0.0
    %4331 = vmatpush.msra.mxu0 0.0
    %4332 = vmatpush.msra.mxu0 0.0
    %4333 = vmatpush.msra.mxu0 0.0
    %4334 = vmatpush.msra.mxu0 0.0
    %4335 = vmatpush.msra.mxu0 0.0
    %4336 = vmatpush.msra.mxu0 0.0
    %4337 = vmatpush.msra.mxu0 0.0
    %4338 = vmatpush.msra.mxu0 0.0
    %4339 = vmatpush.msra.mxu0 0.0
    %4340 = vmatpush.msra.mxu0 0.0
    %4341 = vmatpush.msra.mxu0 %v1859
    %4342 = vmatpush.msra.mxu0 %v1858
    %4343 = vmatpush.msra.mxu0 %v1857
    %4344 = vmatpush.msra.mxu0 %v1856
    %4345 = vmatmul.f32.gmra.mxu0 %v4327
    %v4346 = vpop.f32.mrf.mxu0
    %v4347 = vadd.f32 %v4324, %v4346
    %4348 = vdwg.mxu0
    %v4349 = vadd.f32 %v4347, %v1848
    %v4350 = vmax.f32 %v4349, 0.0
    %4351 = vst.msk [vmem:[#allocation10] sm:$0x3] %vm814, %v4350
    %4352 = vst.msk [vmem:[#allocation10] sm:$0x3] %vm1705, %v1649
    // Predicated region
    $region106: #{dmn_plus_forward.1} parent=1 // pred_check
      _
    $region107: #{dmn_plus_forward.1} parent=1 // pred_check_branch
      %4354 = sbr.rel (0) target = $region109
    $region108: #{dmn_plus_forward.1} parent=1 // pred_region
      %4356 = vsyncadd [#allocation11], 0
      %s4358 = sshll.u32 [#allocation10], 4
      %s4359 = int_to_ptr.vmem [resolvable:$true] %s4358
      %s4360 = sshll.u32 %s26, 4
      %s4361 = int_to_ptr.hbm [resolvable:$true] %s4360
      %4363 = dma.vmem_to_hbm [thread:$0]  %s4359, 32, %s4361, [#allocation11]
    $region109: #{dmn_plus_forward.1} parent=1 // pred_fallthru
      _
    // Predicated region
    $region110: #{dmn_plus_forward.1} parent=1 // pred_check
      _
    $region111: #{dmn_plus_forward.1} parent=1 // pred_check_branch
      %4365 = sbr.rel (0) target = $region113
    $region112: #{dmn_plus_forward.1} parent=1 // pred_region
      %4367 = dma.done [#allocation11], 32
    $region113: #{dmn_plus_forward.1} parent=1 // pred_fallthru
      _
    %4368 = vsyncpa [#allocation11], 1

</llo_original>
